<compile_context>
chip_gen: v7x
topology: tpu7x:2x2x1
jax: 0.10.0
libtpu: 0.0.40
codegen_flags: <defaults>
</compile_context>

<pallas_src>
import jax
import jax.numpy as jnp
from jax.experimental import pallas as pl
from jax.experimental.pallas import tpu as pltpu

HIDDEN_PAD = 128   # 120 padded up to a full lane/sublane multiple
TM_MAX = 8192      # keeps the (128, tm) f32 hidden temporary at 4 MiB/block
                   # (safe for v7x's 64 MiB VMEM; far under v5e/v6e's 128 MiB)


def _mlp_kernel(xT_ref, p1_ref, p2_ref, o_ref):
    # xT_ref: (2, tm)        input rows, lane-dense
    # p1_ref: (128, 3)       [W1 col0 | W1 col1 | b1], hidden zero-padded to 128
    # p2_ref: (2, 256)       lanes 0..127 = W2 (K padded), lane 128 = b2, rest 0
    # o_ref : (2, tm)        output rows, lane-dense
    x0 = xT_ref[0:1, :]                       # (1, tm)
    x1 = xT_ref[1:2, :]                       # (1, tm)
    w1c0 = p1_ref[:, 0:1]                     # (128, 1)
    w1c1 = p1_ref[:, 1:2]                     # (128, 1)
    b1 = p1_ref[:, 2:3]                       # (128, 1)

    # fc1 + ReLU on the VPU: two broadcast FMAs over a lane-dense (128, tm) tile.
    # (A stride-0 sublane-broadcast load of x0/x1 would move the replication
    #  into the load slot; kept as plain broadcasting for lowering robustness —
    #  the kernel is overhead-bound, not VALU-bound, at these sizes.)
    h = jnp.maximum(w1c0 * x0 + w1c1 * x1 + b1, 0.0)      # (128, tm)

    # fc2 on the MXU: aligned K=128 contraction, lane-dense (2, tm) result.
    w2 = p2_ref[:, :HIDDEN_PAD]                           # (2, 128)
    b2 = p2_ref[:, HIDDEN_PAD:HIDDEN_PAD + 1]             # (2, 1)
    y = jnp.dot(w2, h,
                preferred_element_type=jnp.float32,
                precision=jax.lax.Precision.HIGHEST) + b2
    o_ref[...] = y.astype(o_ref.dtype)


def _num_tensorcores():
    """Trace-time TensorCore count (1 on v5e/v6e, 2 on v7x); safe fallback = 1."""
    try:
        info = pltpu.get_tpu_info()
        for attr in ("num_cores", "tensorcore_count", "num_tensorcores", "core_count"):
            v = getattr(info, attr, None)
            if isinstance(v, int) and v > 0:
                return v
    except Exception:
        pass
    return 1


def _round_up(a, b):
    return ((a + b - 1) // b) * b


@jax.jit
def net_forward(x, w1, b1, w2, b2):
    """x: (..., 2) float32.  Returns (..., 2) float32 = fc2(relu(fc1(x)))."""
    orig_shape = x.shape
    in_f = orig_shape[-1]
    assert in_f == 2
    x2d = x.reshape(-1, in_f)
    M = x2d.shape[0]

    hidden = w1.shape[0]    # 120
    out_f = w2.shape[0]     # 2
    H = HIDDEN_PAD          # 128

    # Grid sized to the core count (1 block on v5e/v6e, 2 on v7x), capped so
    # each block's (128, tm) hidden temporary stays well inside VMEM.
    m_rounded = _round_up(max(M, 128), 128)
    nblocks = max(_num_tensorcores(), pl.cdiv(m_rounded, TM_MAX))
    tm = _round_up(pl.cdiv(m_rounded, nblocks), 128)
    nblocks = pl.cdiv(m_rounded, tm)
    Mp = nblocks * tm

    # Lane-dense layout: features on sublanes, rows on lanes.  Under jit these
    # layout ops fuse with adjacent XLA ops instead of costing extra dispatches.
    xT = jnp.transpose(x2d)                        # (2, M)
    if Mp != M:
        xT = jnp.pad(xT, ((0, 0), (0, Mp - M)))    # pad tail rows (sliced off later)

    # Fold biases into the weight DMAs (3 input refs instead of 5).
    p1 = jnp.pad(jnp.concatenate([w1, b1.reshape(hidden, 1)], axis=1),
                 ((0, H - hidden), (0, 0)))                         # (128, 3)
    p2 = jnp.zeros((out_f, 2 * H), jnp.float32)
    p2 = p2.at[:, :hidden].set(w2).at[:, H].set(b2)                 # (2, 256)

    flops = 2 * Mp * (in_f * H + H * out_f)
    bytes_accessed = 4 * (in_f * Mp + out_f * Mp + H * 3 + out_f * 2 * H)
    cost = pl.CostEstimate(flops=flops, transcendentals=0,
                           bytes_accessed=bytes_accessed)

    out = pl.pallas_call(
        _mlp_kernel,
        out_shape=jax.ShapeDtypeStruct((out_f, Mp), jnp.float32),
        grid_spec=pltpu.PrefetchScalarGridSpec(
            num_scalar_prefetch=0,
            grid=(nblocks,),
            in_specs=[
                pl.BlockSpec((in_f, tm), lambda i: (0, i)),     # x^T tile
                pl.BlockSpec((H, 3), lambda i: (0, 0)),         # [W1 | b1]
                pl.BlockSpec((out_f, 2 * H), lambda i: (0, 0)), # [W2 | b2]
            ],
            out_specs=pl.BlockSpec((out_f, tm), lambda i: (0, i)),
        ),
        compiler_params=pltpu.CompilerParams(
            dimension_semantics=("parallel",),
        ),
        cost_estimate=cost,
    )(xT, p1, p2)

    out = jnp.transpose(out[:, :M])                # (M, 2), fuses under jit
    return out.reshape(orig_shape[:-1] + (out_f,))


def init_params(key):
    """Deterministic init mimicking PyTorch Linear default (U[-1/sqrt(fan_in), ...])."""
    k1, k2, k3, k4 = jax.random.split(key, 4)
    bound1 = 1.0 / jnp.sqrt(2.0)
    bound2 = 1.0 / jnp.sqrt(120.0)
    w1 = jax.random.uniform(k1, (120, 2), jnp.float32, -bound1, bound1)
    b1 = jax.random.uniform(k2, (120,), jnp.float32, -bound1, bound1)
    w2 = jax.random.uniform(k3, (2, 120), jnp.float32, -bound2, bound2)
    b2 = jax.random.uniform(k4, (2,), jnp.float32, -bound2, bound2)
    return w1, b1, w2, b2


if __name__ == "__main__":
    key = jax.random.PRNGKey(0)
    kx, kq1, kq2, kp = jax.random.split(key, 4)

    # Small shapes consistent with the module's data generation:
    # batch=32, seq (N_batch surrogate)=64, features=2 on the last axis.
    batch, seq = 32, 64
    q1 = jax.random.uniform(kq1, (batch, seq, 1), jnp.float32, -jnp.pi, jnp.pi)
    q2 = jax.random.uniform(kq2, (batch, seq, 1), jnp.float32, -jnp.pi, jnp.pi)
    x1 = jnp.cos(q1) + jnp.cos(q2)
    x2 = jnp.sin(q1) + jnp.sin(q2)
    x = jnp.concatenate([x1, x2], axis=-1)   # (32, 64, 2)

    w1, b1, w2, b2 = init_params(kp)

    y = net_forward(x, w1, b1, w2, b2)
    jax.block_until_ready(y)

    # Pure-JAX reference of the same forward pass (HIGHEST precision matmuls
    # so the comparison isn't polluted by XLA's default bf16-pass matmul).
    hp = jax.lax.Precision.HIGHEST
    h_ref = jnp.maximum(jnp.matmul(x, w1.T, precision=hp) + b1, 0.0)
    y_ref = jnp.matmul(h_ref, w2.T, precision=hp) + b2
    assert y.shape == (batch, seq, 2)
    assert bool(jnp.allclose(y, y_ref, atol=1e-4, rtol=1e-4))

    print("KERNEL_OK")
</pallas_src>

<mosaic_0001>
module attributes {stable_mosaic.version = 11 : i64} {
  func.func @_mlp_kernel(%arg0: i32, %arg1: memref<2x2048xf32, #tpu.memory_space<vmem>>, %arg2: memref<128x3xf32, #tpu.memory_space<vmem>>, %arg3: memref<2x256xf32, #tpu.memory_space<vmem>>, %arg4: memref<2x2048xf32, #tpu.memory_space<vmem>>) attributes {dimension_semantics = [#tpu.dimension_semantics<parallel>], iteration_bounds = array<i64: 1>, scalar_prefetch = 0 : i64, scratch_operands = 0 : i64, tpu.core_type = #tpu.core_type<tc>, window_params = [{transform_indices = @transform_0, window_bounds = array<i64: 2, 2048>}, {pipeline_mode = #tpu.pipeline_mode<synchronous>, transform_indices = @transform_1, window_bounds = array<i64: 128, 3>}, {pipeline_mode = #tpu.pipeline_mode<synchronous>, transform_indices = @transform_2, window_bounds = array<i64: 2, 256>}, {transform_indices = @transform_3, window_bounds = array<i64: 2, 2048>}]} {
    %c0 = arith.constant 0 : index
    %c0_0 = arith.constant 0 : index
    %0 = vector.load %arg1[%c0, %c0_0] : memref<2x2048xf32, #tpu.memory_space<vmem>>, vector<1x2048xf32>
    %c1 = arith.constant 1 : index
    %c0_1 = arith.constant 0 : index
    %1 = vector.load %arg1[%c1, %c0_1] : memref<2x2048xf32, #tpu.memory_space<vmem>>, vector<1x2048xf32>
    %c0_2 = arith.constant 0 : index
    %c0_3 = arith.constant 0 : index
    %2 = vector.load %arg2[%c0_2, %c0_3] : memref<128x3xf32, #tpu.memory_space<vmem>>, vector<128x1xf32>
    %c0_4 = arith.constant 0 : index
    %c1_5 = arith.constant 1 : index
    %3 = vector.load %arg2[%c0_4, %c1_5] : memref<128x3xf32, #tpu.memory_space<vmem>>, vector<128x1xf32>
    %c0_6 = arith.constant 0 : index
    %c2 = arith.constant 2 : index
    %4 = vector.load %arg2[%c0_6, %c2] : memref<128x3xf32, #tpu.memory_space<vmem>>, vector<128x1xf32>
    %5 = vector.broadcast %2 : vector<128x1xf32> to vector<128x2048xf32>
    %6 = vector.broadcast %0 : vector<1x2048xf32> to vector<128x2048xf32>
    %7 = arith.mulf %5, %6 : vector<128x2048xf32>
    %8 = vector.broadcast %3 : vector<128x1xf32> to vector<128x2048xf32>
    %9 = vector.broadcast %1 : vector<1x2048xf32> to vector<128x2048xf32>
    %10 = arith.mulf %8, %9 : vector<128x2048xf32>
    %11 = arith.addf %7, %10 : vector<128x2048xf32>
    %12 = vector.broadcast %4 : vector<128x1xf32> to vector<128x2048xf32>
    %13 = arith.addf %11, %12 : vector<128x2048xf32>
    %cst = arith.constant 0.000000e+00 : f32
    %14 = vector.broadcast %cst : f32 to vector<128x2048xf32>
    %15 = arith.maximumf %13, %14 : vector<128x2048xf32>
    %c0_7 = arith.constant 0 : index
    %c0_8 = arith.constant 0 : index
    %16 = vector.load %arg3[%c0_7, %c0_8] : memref<2x256xf32, #tpu.memory_space<vmem>>, vector<2x128xf32>
    %c0_9 = arith.constant 0 : index
    %c128 = arith.constant 128 : index
    %17 = vector.load %arg3[%c0_9, %c128] : memref<2x256xf32, #tpu.memory_space<vmem>>, vector<2x1xf32>
    %cst_10 = arith.constant dense<0.000000e+00> : vector<2x2048xf32>
    %18 = tpu.matmul %16, %15, %cst_10 {dimension_numbers = #tpu.dot_dimension_numbers<[1], [0], [0], [1], [0, 0, 1, 1], [], []>, precision = #tpu.contract_precision<fp32>} : vector<2x128xf32>, vector<128x2048xf32>, vector<2x2048xf32> -> vector<2x2048xf32>
    %19 = vector.broadcast %17 : vector<2x1xf32> to vector<2x2048xf32>
    %20 = arith.addf %18, %19 : vector<2x2048xf32>
    %c0_11 = arith.constant 0 : index
    %c0_12 = arith.constant 0 : index
    %21 = vector.load %arg4[%c0_11, %c0_12] : memref<2x2048xf32, #tpu.memory_space<vmem>>, vector<2x2048xf32>
    tpu.vector_store %arg4[%c0_11, %c0_12], %20 {strides = array<i32>} : memref<2x2048xf32, #tpu.memory_space<vmem>>, vector<2x2048xf32>,
    return
  }
  func.func @transform_0(%arg0: i32) -> (i32, i32) {
    %c0_i32 = arith.constant 0 : i32
    %c0_i32_0 = arith.constant 0 : i32
    return %c0_i32, %arg0 : i32, i32
  }
  func.func @transform_1(%arg0: i32) -> (i32, i32) {
    %c0_i32 = arith.constant 0 : i32
    %c0_i32_0 = arith.constant 0 : i32
    %c0_i32_1 = arith.constant 0 : i32
    return %c0_i32, %c0_i32_0 : i32, i32
  }
  func.func @transform_2(%arg0: i32) -> (i32, i32) {
    %c0_i32 = arith.constant 0 : i32
    %c0_i32_0 = arith.constant 0 : i32
    %c0_i32_1 = arith.constant 0 : i32
    return %c0_i32, %c0_i32_0 : i32, i32
  }
  func.func @transform_3(%arg0: i32) -> (i32, i32) {
    %c0_i32 = arith.constant 0 : i32
    %c0_i32_0 = arith.constant 0 : i32
    return %c0_i32, %arg0 : i32, i32
  }
}

</mosaic_0001>

<llo_original>
// kernel: net_forward.1
$region0: #{net_forward.1}
  #allocation0 [shape = 'u32[]', space=smem, size = 0x4, offset = 0x4, fixed_abs, tag = 'smem constant byte address 0x4 - core index']
  #allocation1 [shape = 'u32[144,128]{1,0:T(1,128)}', space=vmem, size = 0x12000, scoped, tag = 'internal scratch']
  %s0 = inlined_call_operand.vmem [shape: f32[2,2048], index: 0, kind: input, shape index: {}]
  %s1 = inlined_call_operand.vmem [shape: f32[128,3], index: 1, kind: input, shape index: {}]
  %s2 = inlined_call_operand.vmem [shape: f32[2,256], index: 2, kind: input, shape index: {}]
  %s3 = inlined_call_operand.vmem [shape: f32[2,2048], index: 3, kind: output, shape index: {}]
  %s4 = sld [smem:[#allocation0]]
  $region22: #{net_forward.1} parent=0
    _
  %s6 = ssub.s32 1, %s4
  %s7 = scalar_select 0, %s6, %s4
  // Predicated region
  $region2: #{net_forward.1} parent=0 // pred_check
    _
  $region3: #{net_forward.1} parent=0 // pred_check_branch
    %9 = sbr.rel (0) target = $region5
  $region4: #{net_forward.1} parent=0 // pred_region
    _
  $region5: #{net_forward.1} parent=0 // pred_fallthru
    _
  // Predicated region
  $region6: #{net_forward.1} parent=0 // pred_check
    _
  $region7: #{net_forward.1} parent=0 // pred_check_branch
    %11 = sbr.rel (0) target = $region9
  $region8: #{net_forward.1} parent=0 // pred_region
    _
  $region9: #{net_forward.1} parent=0 // pred_fallthru
    _
  // Predicated region
  $region10: #{net_forward.1} parent=0 // pred_check
    _
  $region11: #{net_forward.1} parent=0 // pred_check_branch
    %13 = sbr.rel (0) target = $region13
  $region12: #{net_forward.1} parent=0 // pred_region
    _
  $region13: #{net_forward.1} parent=0 // pred_fallthru
    _
  %v14 = vld [vmem:[%s0] ss:$2 sm:$0xff]
  %s15 = scalar_lea.vmem %s0, 16
  %v16 = vld [vmem:[%s15] ss:$2 sm:$0xff]
  %s17 = scalar_lea.vmem %s0, 1
  %v18 = vld [vmem:[%s17] ss:$2 sm:$0xff]
  %s19 = scalar_lea.vmem %s0, 17
  %v20 = vld [vmem:[%s19] ss:$2 sm:$0xff]
  %v21 = vld [vmem:[%s1] sm:$0xff]
  %v22 = vld [vmem:[%s1 + $0x8] sm:$0xff]
  %v23 = vld [vmem:[%s1 + $0x10] sm:$0xff]
  %v24 = vld [vmem:[%s1 + $0x18] sm:$0xff]
  %v25 = vld [vmem:[%s1 + $0x20] sm:$0xff]
  %v26 = vld [vmem:[%s1 + $0x28] sm:$0xff]
  %v27 = vld [vmem:[%s1 + $0x30] sm:$0xff]
  %v28 = vld [vmem:[%s1 + $0x38] sm:$0xff]
  %v29 = vld [vmem:[%s1 + $0x40] sm:$0xff]
  %v30 = vld [vmem:[%s1 + $0x48] sm:$0xff]
  %v31 = vld [vmem:[%s1 + $0x50] sm:$0xff]
  %v32 = vld [vmem:[%s1 + $0x58] sm:$0xff]
  %v33 = vld [vmem:[%s1 + $0x60] sm:$0xff]
  %v34 = vld [vmem:[%s1 + $0x68] sm:$0xff]
  %v35 = vld [vmem:[%s1 + $0x70] sm:$0xff]
  %v36 = vld [vmem:[%s1 + $0x78] sm:$0xff]
  %38 = vset.pattern.permute.xlu0 0
  %39 = vperm.xlu0 %38, %v21
  %v40 = vpop.permute.xlu0 %39
  %43 = vset.pattern.permute.xlu0 0
  %44 = vperm.xlu0 %43, %v22
  %v45 = vpop.permute.xlu0 %44
  %48 = vset.pattern.permute.xlu0 0
  %49 = vperm.xlu0 %48, %v23
  %v50 = vpop.permute.xlu0 %49
  %53 = vset.pattern.permute.xlu0 0
  %54 = vperm.xlu0 %53, %v24
  %v55 = vpop.permute.xlu0 %54
  %58 = vset.pattern.permute.xlu0 0
  %59 = vperm.xlu0 %58, %v25
  %v60 = vpop.permute.xlu0 %59
  %63 = vset.pattern.permute.xlu0 0
  %64 = vperm.xlu0 %63, %v26
  %v65 = vpop.permute.xlu0 %64
  %68 = vset.pattern.permute.xlu0 0
  %69 = vperm.xlu0 %68, %v27
  %v70 = vpop.permute.xlu0 %69
  %73 = vset.pattern.permute.xlu0 0
  %74 = vperm.xlu0 %73, %v28
  %v75 = vpop.permute.xlu0 %74
  %78 = vset.pattern.permute.xlu0 0
  %79 = vperm.xlu0 %78, %v29
  %v80 = vpop.permute.xlu0 %79
  %83 = vset.pattern.permute.xlu0 0
  %84 = vperm.xlu0 %83, %v30
  %v85 = vpop.permute.xlu0 %84
  %88 = vset.pattern.permute.xlu0 0
  %89 = vperm.xlu0 %88, %v31
  %v90 = vpop.permute.xlu0 %89
  %93 = vset.pattern.permute.xlu0 0
  %94 = vperm.xlu0 %93, %v32
  %v95 = vpop.permute.xlu0 %94
  %98 = vset.pattern.permute.xlu0 0
  %99 = vperm.xlu0 %98, %v33
  %v100 = vpop.permute.xlu0 %99
  %103 = vset.pattern.permute.xlu0 0
  %104 = vperm.xlu0 %103, %v34
  %v105 = vpop.permute.xlu0 %104
  %108 = vset.pattern.permute.xlu0 0
  %109 = vperm.xlu0 %108, %v35
  %v110 = vpop.permute.xlu0 %109
  %113 = vset.pattern.permute.xlu0 0
  %114 = vperm.xlu0 %113, %v36
  %v115 = vpop.permute.xlu0 %114
  %v119 = vlaneseq
  %v120 = vshrl.u32 %v119, 7
  %v121 = vsub.s32 0, %v120
  %v122 = vrot.slane %v14, %v121
  %v123 = vlaneseq
  %v124 = vshrl.u32 %v123, 7
  %v125 = vsub.s32 1, %v124
  %v126 = vrot.slane %v14, %v125
  %v127 = vlaneseq
  %v128 = vshrl.u32 %v127, 7
  %v129 = vsub.s32 2, %v128
  %v130 = vrot.slane %v14, %v129
  %v131 = vlaneseq
  %v132 = vshrl.u32 %v131, 7
  %v133 = vsub.s32 3, %v132
  %v134 = vrot.slane %v14, %v133
  %v135 = vlaneseq
  %v136 = vshrl.u32 %v135, 7
  %v137 = vsub.s32 4, %v136
  %v138 = vrot.slane %v14, %v137
  %v139 = vlaneseq
  %v140 = vshrl.u32 %v139, 7
  %v141 = vsub.s32 5, %v140
  %v142 = vrot.slane %v14, %v141
  %v143 = vlaneseq
  %v144 = vshrl.u32 %v143, 7
  %v145 = vsub.s32 6, %v144
  %v146 = vrot.slane %v14, %v145
  %v147 = vlaneseq
  %v148 = vshrl.u32 %v147, 7
  %v149 = vsub.s32 7, %v148
  %v150 = vrot.slane %v14, %v149
  %v151 = vlaneseq
  %v152 = vshrl.u32 %v151, 7
  %v153 = vsub.s32 0, %v152
  %v154 = vrot.slane %v16, %v153
  %v155 = vlaneseq
  %v156 = vshrl.u32 %v155, 7
  %v157 = vsub.s32 1, %v156
  %v158 = vrot.slane %v16, %v157
  %v159 = vlaneseq
  %v160 = vshrl.u32 %v159, 7
  %v161 = vsub.s32 2, %v160
  %v162 = vrot.slane %v16, %v161
  %v163 = vlaneseq
  %v164 = vshrl.u32 %v163, 7
  %v165 = vsub.s32 3, %v164
  %v166 = vrot.slane %v16, %v165
  %v167 = vlaneseq
  %v168 = vshrl.u32 %v167, 7
  %v169 = vsub.s32 4, %v168
  %v170 = vrot.slane %v16, %v169
  %v171 = vlaneseq
  %v172 = vshrl.u32 %v171, 7
  %v173 = vsub.s32 5, %v172
  %v174 = vrot.slane %v16, %v173
  %v175 = vlaneseq
  %v176 = vshrl.u32 %v175, 7
  %v177 = vsub.s32 6, %v176
  %v178 = vrot.slane %v16, %v177
  %v179 = vlaneseq
  %v180 = vshrl.u32 %v179, 7
  %v181 = vsub.s32 7, %v180
  %v182 = vrot.slane %v16, %v181
  %v199 = vmul.f32 %v40, %v122
  %v200 = vmul.f32 %v40, %v126
  %v201 = vmul.f32 %v40, %v130
  %v202 = vmul.f32 %v40, %v134
  %v203 = vmul.f32 %v40, %v138
  %v204 = vmul.f32 %v40, %v142
  %v205 = vmul.f32 %v40, %v146
  %v206 = vmul.f32 %v40, %v150
  %v207 = vmul.f32 %v40, %v154
  %v208 = vmul.f32 %v40, %v158
  %v209 = vmul.f32 %v40, %v162
  %v210 = vmul.f32 %v40, %v166
  %v211 = vmul.f32 %v40, %v170
  %v212 = vmul.f32 %v40, %v174
  %v213 = vmul.f32 %v40, %v178
  %v214 = vmul.f32 %v40, %v182
  %v215 = vmul.f32 %v45, %v122
  %v216 = vmul.f32 %v45, %v126
  %v217 = vmul.f32 %v45, %v130
  %v218 = vmul.f32 %v45, %v134
  %v219 = vmul.f32 %v45, %v138
  %v220 = vmul.f32 %v45, %v142
  %v221 = vmul.f32 %v45, %v146
  %v222 = vmul.f32 %v45, %v150
  %v223 = vmul.f32 %v45, %v154
  %v224 = vmul.f32 %v45, %v158
  %v225 = vmul.f32 %v45, %v162
  %v226 = vmul.f32 %v45, %v166
  %v227 = vmul.f32 %v45, %v170
  %v228 = vmul.f32 %v45, %v174
  %v229 = vmul.f32 %v45, %v178
  %v230 = vmul.f32 %v45, %v182
  %v231 = vmul.f32 %v50, %v122
  %v232 = vmul.f32 %v50, %v126
  %v233 = vmul.f32 %v50, %v130
  %v234 = vmul.f32 %v50, %v134
  %v235 = vmul.f32 %v50, %v138
  %v236 = vmul.f32 %v50, %v142
  %v237 = vmul.f32 %v50, %v146
  %v238 = vmul.f32 %v50, %v150
  %v239 = vmul.f32 %v50, %v154
  %v240 = vmul.f32 %v50, %v158
  %v241 = vmul.f32 %v50, %v162
  %v242 = vmul.f32 %v50, %v166
  %v243 = vmul.f32 %v50, %v170
  %v244 = vmul.f32 %v50, %v174
  %v245 = vmul.f32 %v50, %v178
  %v246 = vmul.f32 %v50, %v182
  %v247 = vmul.f32 %v55, %v122
  %v248 = vmul.f32 %v55, %v126
  %v249 = vmul.f32 %v55, %v130
  %v250 = vmul.f32 %v55, %v134
  %v251 = vmul.f32 %v55, %v138
  %v252 = vmul.f32 %v55, %v142
  %v253 = vmul.f32 %v55, %v146
  %v254 = vmul.f32 %v55, %v150
  %v255 = vmul.f32 %v55, %v154
  %v256 = vmul.f32 %v55, %v158
  %v257 = vmul.f32 %v55, %v162
  %v258 = vmul.f32 %v55, %v166
  %v259 = vmul.f32 %v55, %v170
  %v260 = vmul.f32 %v55, %v174
  %v261 = vmul.f32 %v55, %v178
  %v262 = vmul.f32 %v55, %v182
  %v263 = vmul.f32 %v60, %v122
  %v264 = vmul.f32 %v60, %v126
  %v265 = vmul.f32 %v60, %v130
  %v266 = vmul.f32 %v60, %v134
  %v267 = vmul.f32 %v60, %v138
  %v268 = vmul.f32 %v60, %v142
  %v269 = vmul.f32 %v60, %v146
  %v270 = vmul.f32 %v60, %v150
  %v271 = vmul.f32 %v60, %v154
  %v272 = vmul.f32 %v60, %v158
  %v273 = vmul.f32 %v60, %v162
  %v274 = vmul.f32 %v60, %v166
  %v275 = vmul.f32 %v60, %v170
  %v276 = vmul.f32 %v60, %v174
  %v277 = vmul.f32 %v60, %v178
  %v278 = vmul.f32 %v60, %v182
  %v279 = vmul.f32 %v65, %v122
  %v280 = vmul.f32 %v65, %v126
  %v281 = vmul.f32 %v65, %v130
  %v282 = vmul.f32 %v65, %v134
  %v283 = vmul.f32 %v65, %v138
  %v284 = vmul.f32 %v65, %v142
  %v285 = vmul.f32 %v65, %v146
  %v286 = vmul.f32 %v65, %v150
  %v287 = vmul.f32 %v65, %v154
  %v288 = vmul.f32 %v65, %v158
  %v289 = vmul.f32 %v65, %v162
  %v290 = vmul.f32 %v65, %v166
  %v291 = vmul.f32 %v65, %v170
  %v292 = vmul.f32 %v65, %v174
  %v293 = vmul.f32 %v65, %v178
  %v294 = vmul.f32 %v65, %v182
  %v295 = vmul.f32 %v70, %v122
  %v296 = vmul.f32 %v70, %v126
  %v297 = vmul.f32 %v70, %v130
  %v298 = vmul.f32 %v70, %v134
  %v299 = vmul.f32 %v70, %v138
  %v300 = vmul.f32 %v70, %v142
  %v301 = vmul.f32 %v70, %v146
  %v302 = vmul.f32 %v70, %v150
  %v303 = vmul.f32 %v70, %v154
  %v304 = vmul.f32 %v70, %v158
  %v305 = vmul.f32 %v70, %v162
  %v306 = vmul.f32 %v70, %v166
  %v307 = vmul.f32 %v70, %v170
  %v308 = vmul.f32 %v70, %v174
  %v309 = vmul.f32 %v70, %v178
  %v310 = vmul.f32 %v70, %v182
  %v311 = vmul.f32 %v75, %v122
  %v312 = vmul.f32 %v75, %v126
  %v313 = vmul.f32 %v75, %v130
  %v314 = vmul.f32 %v75, %v134
  %v315 = vmul.f32 %v75, %v138
  %v316 = vmul.f32 %v75, %v142
  %v317 = vmul.f32 %v75, %v146
  %v318 = vmul.f32 %v75, %v150
  %v319 = vmul.f32 %v75, %v154
  %v320 = vmul.f32 %v75, %v158
  %v321 = vmul.f32 %v75, %v162
  %v322 = vmul.f32 %v75, %v166
  %v323 = vmul.f32 %v75, %v170
  %v324 = vmul.f32 %v75, %v174
  %v325 = vmul.f32 %v75, %v178
  %v326 = vmul.f32 %v75, %v182
  %v327 = vmul.f32 %v80, %v122
  %v328 = vmul.f32 %v80, %v126
  %v329 = vmul.f32 %v80, %v130
  %v330 = vmul.f32 %v80, %v134
  %v331 = vmul.f32 %v80, %v138
  %v332 = vmul.f32 %v80, %v142
  %v333 = vmul.f32 %v80, %v146
  %v334 = vmul.f32 %v80, %v150
  %v335 = vmul.f32 %v80, %v154
  %v336 = vmul.f32 %v80, %v158
  %v337 = vmul.f32 %v80, %v162
  %v338 = vmul.f32 %v80, %v166
  %v339 = vmul.f32 %v80, %v170
  %v340 = vmul.f32 %v80, %v174
  %v341 = vmul.f32 %v80, %v178
  %v342 = vmul.f32 %v80, %v182
  %v343 = vmul.f32 %v85, %v122
  %v344 = vmul.f32 %v85, %v126
  %v345 = vmul.f32 %v85, %v130
  %v346 = vmul.f32 %v85, %v134
  %v347 = vmul.f32 %v85, %v138
  %v348 = vmul.f32 %v85, %v142
  %v349 = vmul.f32 %v85, %v146
  %v350 = vmul.f32 %v85, %v150
  %v351 = vmul.f32 %v85, %v154
  %v352 = vmul.f32 %v85, %v158
  %v353 = vmul.f32 %v85, %v162
  %v354 = vmul.f32 %v85, %v166
  %v355 = vmul.f32 %v85, %v170
  %v356 = vmul.f32 %v85, %v174
  %v357 = vmul.f32 %v85, %v178
  %v358 = vmul.f32 %v85, %v182
  %v359 = vmul.f32 %v90, %v122
  %v360 = vmul.f32 %v90, %v126
  %v361 = vmul.f32 %v90, %v130
  %v362 = vmul.f32 %v90, %v134
  %v363 = vmul.f32 %v90, %v138
  %v364 = vmul.f32 %v90, %v142
  %v365 = vmul.f32 %v90, %v146
  %v366 = vmul.f32 %v90, %v150
  %v367 = vmul.f32 %v90, %v154
  %v368 = vmul.f32 %v90, %v158
  %v369 = vmul.f32 %v90, %v162
  %v370 = vmul.f32 %v90, %v166
  %v371 = vmul.f32 %v90, %v170
  %v372 = vmul.f32 %v90, %v174
  %v373 = vmul.f32 %v90, %v178
  %v374 = vmul.f32 %v90, %v182
  %v375 = vmul.f32 %v95, %v122
  %v376 = vmul.f32 %v95, %v126
  %v377 = vmul.f32 %v95, %v130
  %v378 = vmul.f32 %v95, %v134
  %v379 = vmul.f32 %v95, %v138
  %v380 = vmul.f32 %v95, %v142
  %v381 = vmul.f32 %v95, %v146
  %v382 = vmul.f32 %v95, %v150
  %v383 = vmul.f32 %v95, %v154
  %v384 = vmul.f32 %v95, %v158
  %v385 = vmul.f32 %v95, %v162
  %v386 = vmul.f32 %v95, %v166
  %v387 = vmul.f32 %v95, %v170
  %v388 = vmul.f32 %v95, %v174
  %v389 = vmul.f32 %v95, %v178
  %v390 = vmul.f32 %v95, %v182
  %v391 = vmul.f32 %v100, %v122
  %v392 = vmul.f32 %v100, %v126
  %v393 = vmul.f32 %v100, %v130
  %v394 = vmul.f32 %v100, %v134
  %v395 = vmul.f32 %v100, %v138
  %v396 = vmul.f32 %v100, %v142
  %v397 = vmul.f32 %v100, %v146
  %v398 = vmul.f32 %v100, %v150
  %v399 = vmul.f32 %v100, %v154
  %v400 = vmul.f32 %v100, %v158
  %v401 = vmul.f32 %v100, %v162
  %v402 = vmul.f32 %v100, %v166
  %v403 = vmul.f32 %v100, %v170
  %v404 = vmul.f32 %v100, %v174
  %v405 = vmul.f32 %v100, %v178
  %v406 = vmul.f32 %v100, %v182
  %v407 = vmul.f32 %v105, %v122
  %v408 = vmul.f32 %v105, %v126
  %v409 = vmul.f32 %v105, %v130
  %v410 = vmul.f32 %v105, %v134
  %v411 = vmul.f32 %v105, %v138
  %v412 = vmul.f32 %v105, %v142
  %v413 = vmul.f32 %v105, %v146
  %v414 = vmul.f32 %v105, %v150
  %v415 = vmul.f32 %v105, %v154
  %v416 = vmul.f32 %v105, %v158
  %v417 = vmul.f32 %v105, %v162
  %v418 = vmul.f32 %v105, %v166
  %v419 = vmul.f32 %v105, %v170
  %v420 = vmul.f32 %v105, %v174
  %v421 = vmul.f32 %v105, %v178
  %v422 = vmul.f32 %v105, %v182
  %v423 = vmul.f32 %v110, %v122
  %v424 = vmul.f32 %v110, %v126
  %v425 = vmul.f32 %v110, %v130
  %v426 = vmul.f32 %v110, %v134
  %v427 = vmul.f32 %v110, %v138
  %v428 = vmul.f32 %v110, %v142
  %v429 = vmul.f32 %v110, %v146
  %v430 = vmul.f32 %v110, %v150
  %v431 = vmul.f32 %v110, %v154
  %v432 = vmul.f32 %v110, %v158
  %v433 = vmul.f32 %v110, %v162
  %v434 = vmul.f32 %v110, %v166
  %v435 = vmul.f32 %v110, %v170
  %v436 = vmul.f32 %v110, %v174
  %v437 = vmul.f32 %v110, %v178
  %v438 = vmul.f32 %v110, %v182
  %v439 = vmul.f32 %v115, %v122
  %v440 = vmul.f32 %v115, %v126
  %v441 = vmul.f32 %v115, %v130
  %v442 = vmul.f32 %v115, %v134
  %v443 = vmul.f32 %v115, %v138
  %v444 = vmul.f32 %v115, %v142
  %v445 = vmul.f32 %v115, %v146
  %v446 = vmul.f32 %v115, %v150
  %v447 = vmul.f32 %v115, %v154
  %v448 = vmul.f32 %v115, %v158
  %v449 = vmul.f32 %v115, %v162
  %v450 = vmul.f32 %v115, %v166
  %v451 = vmul.f32 %v115, %v170
  %v452 = vmul.f32 %v115, %v174
  %v453 = vmul.f32 %v115, %v178
  %v454 = vmul.f32 %v115, %v182
  %455 = vset.pattern.permute.xlu0 1
  %456 = vperm.xlu0 %455, %v21
  %v457 = vpop.permute.xlu0 %456
  %459 = vset.pattern.permute.xlu0 1
  %460 = vperm.xlu0 %459, %v22
  %v461 = vpop.permute.xlu0 %460
  %463 = vset.pattern.permute.xlu0 1
  %464 = vperm.xlu0 %463, %v23
  %v465 = vpop.permute.xlu0 %464
  %467 = vset.pattern.permute.xlu0 1
  %468 = vperm.xlu0 %467, %v24
  %v469 = vpop.permute.xlu0 %468
  %471 = vset.pattern.permute.xlu0 1
  %472 = vperm.xlu0 %471, %v25
  %v473 = vpop.permute.xlu0 %472
  %475 = vset.pattern.permute.xlu0 1
  %476 = vperm.xlu0 %475, %v26
  %v477 = vpop.permute.xlu0 %476
  %479 = vset.pattern.permute.xlu0 1
  %480 = vperm.xlu0 %479, %v27
  %v481 = vpop.permute.xlu0 %480
  %483 = vset.pattern.permute.xlu0 1
  %484 = vperm.xlu0 %483, %v28
  %v485 = vpop.permute.xlu0 %484
  %487 = vset.pattern.permute.xlu0 1
  %488 = vperm.xlu0 %487, %v29
  %v489 = vpop.permute.xlu0 %488
  %491 = vset.pattern.permute.xlu0 1
  %492 = vperm.xlu0 %491, %v30
  %v493 = vpop.permute.xlu0 %492
  %495 = vset.pattern.permute.xlu0 1
  %496 = vperm.xlu0 %495, %v31
  %v497 = vpop.permute.xlu0 %496
  %499 = vset.pattern.permute.xlu0 1
  %500 = vperm.xlu0 %499, %v32
  %v501 = vpop.permute.xlu0 %500
  %503 = vset.pattern.permute.xlu0 1
  %504 = vperm.xlu0 %503, %v33
  %v505 = vpop.permute.xlu0 %504
  %507 = vset.pattern.permute.xlu0 1
  %508 = vperm.xlu0 %507, %v34
  %v509 = vpop.permute.xlu0 %508
  %511 = vset.pattern.permute.xlu0 1
  %512 = vperm.xlu0 %511, %v35
  %v513 = vpop.permute.xlu0 %512
  %515 = vset.pattern.permute.xlu0 1
  %516 = vperm.xlu0 %515, %v36
  %v517 = vpop.permute.xlu0 %516
  %v521 = vlaneseq
  %v522 = vshrl.u32 %v521, 7
  %v523 = vsub.s32 0, %v522
  %v524 = vrot.slane %v18, %v523
  %v525 = vlaneseq
  %v526 = vshrl.u32 %v525, 7
  %v527 = vsub.s32 1, %v526
  %v528 = vrot.slane %v18, %v527
  %v529 = vlaneseq
  %v530 = vshrl.u32 %v529, 7
  %v531 = vsub.s32 2, %v530
  %v532 = vrot.slane %v18, %v531
  %v533 = vlaneseq
  %v534 = vshrl.u32 %v533, 7
  %v535 = vsub.s32 3, %v534
  %v536 = vrot.slane %v18, %v535
  %v537 = vlaneseq
  %v538 = vshrl.u32 %v537, 7
  %v539 = vsub.s32 4, %v538
  %v540 = vrot.slane %v18, %v539
  %v541 = vlaneseq
  %v542 = vshrl.u32 %v541, 7
  %v543 = vsub.s32 5, %v542
  %v544 = vrot.slane %v18, %v543
  %v545 = vlaneseq
  %v546 = vshrl.u32 %v545, 7
  %v547 = vsub.s32 6, %v546
  %v548 = vrot.slane %v18, %v547
  %v549 = vlaneseq
  %v550 = vshrl.u32 %v549, 7
  %v551 = vsub.s32 7, %v550
  %v552 = vrot.slane %v18, %v551
  %v553 = vlaneseq
  %v554 = vshrl.u32 %v553, 7
  %v555 = vsub.s32 0, %v554
  %v556 = vrot.slane %v20, %v555
  %v557 = vlaneseq
  %v558 = vshrl.u32 %v557, 7
  %v559 = vsub.s32 1, %v558
  %v560 = vrot.slane %v20, %v559
  %v561 = vlaneseq
  %v562 = vshrl.u32 %v561, 7
  %v563 = vsub.s32 2, %v562
  %v564 = vrot.slane %v20, %v563
  %v565 = vlaneseq
  %v566 = vshrl.u32 %v565, 7
  %v567 = vsub.s32 3, %v566
  %v568 = vrot.slane %v20, %v567
  %v569 = vlaneseq
  %v570 = vshrl.u32 %v569, 7
  %v571 = vsub.s32 4, %v570
  %v572 = vrot.slane %v20, %v571
  %v573 = vlaneseq
  %v574 = vshrl.u32 %v573, 7
  %v575 = vsub.s32 5, %v574
  %v576 = vrot.slane %v20, %v575
  %v577 = vlaneseq
  %v578 = vshrl.u32 %v577, 7
  %v579 = vsub.s32 6, %v578
  %v580 = vrot.slane %v20, %v579
  %v581 = vlaneseq
  %v582 = vshrl.u32 %v581, 7
  %v583 = vsub.s32 7, %v582
  %v584 = vrot.slane %v20, %v583
  %v601 = vmul.f32 %v457, %v524
  %v602 = vmul.f32 %v457, %v528
  %v603 = vmul.f32 %v457, %v532
  %v604 = vmul.f32 %v457, %v536
  %v605 = vmul.f32 %v457, %v540
  %v606 = vmul.f32 %v457, %v544
  %v607 = vmul.f32 %v457, %v548
  %v608 = vmul.f32 %v457, %v552
  %v609 = vmul.f32 %v457, %v556
  %v610 = vmul.f32 %v457, %v560
  %v611 = vmul.f32 %v457, %v564
  %v612 = vmul.f32 %v457, %v568
  %v613 = vmul.f32 %v457, %v572
  %v614 = vmul.f32 %v457, %v576
  %v615 = vmul.f32 %v457, %v580
  %v616 = vmul.f32 %v457, %v584
  %v617 = vmul.f32 %v461, %v524
  %v618 = vmul.f32 %v461, %v528
  %v619 = vmul.f32 %v461, %v532
  %v620 = vmul.f32 %v461, %v536
  %v621 = vmul.f32 %v461, %v540
  %v622 = vmul.f32 %v461, %v544
  %v623 = vmul.f32 %v461, %v548
  %v624 = vmul.f32 %v461, %v552
  %v625 = vmul.f32 %v461, %v556
  %v626 = vmul.f32 %v461, %v560
  %v627 = vmul.f32 %v461, %v564
  %v628 = vmul.f32 %v461, %v568
  %v629 = vmul.f32 %v461, %v572
  %v630 = vmul.f32 %v461, %v576
  %v631 = vmul.f32 %v461, %v580
  %v632 = vmul.f32 %v461, %v584
  %v633 = vmul.f32 %v465, %v524
  %v634 = vmul.f32 %v465, %v528
  %v635 = vmul.f32 %v465, %v532
  %v636 = vmul.f32 %v465, %v536
  %v637 = vmul.f32 %v465, %v540
  %v638 = vmul.f32 %v465, %v544
  %v639 = vmul.f32 %v465, %v548
  %v640 = vmul.f32 %v465, %v552
  %v641 = vmul.f32 %v465, %v556
  %v642 = vmul.f32 %v465, %v560
  %v643 = vmul.f32 %v465, %v564
  %v644 = vmul.f32 %v465, %v568
  %v645 = vmul.f32 %v465, %v572
  %v646 = vmul.f32 %v465, %v576
  %v647 = vmul.f32 %v465, %v580
  %v648 = vmul.f32 %v465, %v584
  %v649 = vmul.f32 %v469, %v524
  %v650 = vmul.f32 %v469, %v528
  %v651 = vmul.f32 %v469, %v532
  %v652 = vmul.f32 %v469, %v536
  %v653 = vmul.f32 %v469, %v540
  %v654 = vmul.f32 %v469, %v544
  %v655 = vmul.f32 %v469, %v548
  %v656 = vmul.f32 %v469, %v552
  %v657 = vmul.f32 %v469, %v556
  %v658 = vmul.f32 %v469, %v560
  %v659 = vmul.f32 %v469, %v564
  %v660 = vmul.f32 %v469, %v568
  %v661 = vmul.f32 %v469, %v572
  %v662 = vmul.f32 %v469, %v576
  %v663 = vmul.f32 %v469, %v580
  %v664 = vmul.f32 %v469, %v584
  %v665 = vmul.f32 %v473, %v524
  %v666 = vmul.f32 %v473, %v528
  %v667 = vmul.f32 %v473, %v532
  %v668 = vmul.f32 %v473, %v536
  %v669 = vmul.f32 %v473, %v540
  %v670 = vmul.f32 %v473, %v544
  %v671 = vmul.f32 %v473, %v548
  %v672 = vmul.f32 %v473, %v552
  %v673 = vmul.f32 %v473, %v556
  %v674 = vmul.f32 %v473, %v560
  %v675 = vmul.f32 %v473, %v564
  %v676 = vmul.f32 %v473, %v568
  %v677 = vmul.f32 %v473, %v572
  %v678 = vmul.f32 %v473, %v576
  %v679 = vmul.f32 %v473, %v580
  %v680 = vmul.f32 %v473, %v584
  %v681 = vmul.f32 %v477, %v524
  %v682 = vmul.f32 %v477, %v528
  %v683 = vmul.f32 %v477, %v532
  %v684 = vmul.f32 %v477, %v536
  %v685 = vmul.f32 %v477, %v540
  %v686 = vmul.f32 %v477, %v544
  %v687 = vmul.f32 %v477, %v548
  %v688 = vmul.f32 %v477, %v552
  %v689 = vmul.f32 %v477, %v556
  %v690 = vmul.f32 %v477, %v560
  %v691 = vmul.f32 %v477, %v564
  %v692 = vmul.f32 %v477, %v568
  %v693 = vmul.f32 %v477, %v572
  %v694 = vmul.f32 %v477, %v576
  %v695 = vmul.f32 %v477, %v580
  %v696 = vmul.f32 %v477, %v584
  %v697 = vmul.f32 %v481, %v524
  %v698 = vmul.f32 %v481, %v528
  %v699 = vmul.f32 %v481, %v532
  %v700 = vmul.f32 %v481, %v536
  %v701 = vmul.f32 %v481, %v540
  %v702 = vmul.f32 %v481, %v544
  %v703 = vmul.f32 %v481, %v548
  %v704 = vmul.f32 %v481, %v552
  %v705 = vmul.f32 %v481, %v556
  %v706 = vmul.f32 %v481, %v560
  %v707 = vmul.f32 %v481, %v564
  %v708 = vmul.f32 %v481, %v568
  %v709 = vmul.f32 %v481, %v572
  %v710 = vmul.f32 %v481, %v576
  %v711 = vmul.f32 %v481, %v580
  %v712 = vmul.f32 %v481, %v584
  %v713 = vmul.f32 %v485, %v524
  %v714 = vmul.f32 %v485, %v528
  %v715 = vmul.f32 %v485, %v532
  %v716 = vmul.f32 %v485, %v536
  %v717 = vmul.f32 %v485, %v540
  %v718 = vmul.f32 %v485, %v544
  %v719 = vmul.f32 %v485, %v548
  %v720 = vmul.f32 %v485, %v552
  %v721 = vmul.f32 %v485, %v556
  %v722 = vmul.f32 %v485, %v560
  %v723 = vmul.f32 %v485, %v564
  %v724 = vmul.f32 %v485, %v568
  %v725 = vmul.f32 %v485, %v572
  %v726 = vmul.f32 %v485, %v576
  %v727 = vmul.f32 %v485, %v580
  %v728 = vmul.f32 %v485, %v584
  %v729 = vmul.f32 %v489, %v524
  %v730 = vmul.f32 %v489, %v528
  %v731 = vmul.f32 %v489, %v532
  %v732 = vmul.f32 %v489, %v536
  %v733 = vmul.f32 %v489, %v540
  %v734 = vmul.f32 %v489, %v544
  %v735 = vmul.f32 %v489, %v548
  %v736 = vmul.f32 %v489, %v552
  %v737 = vmul.f32 %v489, %v556
  %v738 = vmul.f32 %v489, %v560
  %v739 = vmul.f32 %v489, %v564
  %v740 = vmul.f32 %v489, %v568
  %v741 = vmul.f32 %v489, %v572
  %v742 = vmul.f32 %v489, %v576
  %v743 = vmul.f32 %v489, %v580
  %v744 = vmul.f32 %v489, %v584
  %v745 = vmul.f32 %v493, %v524
  %v746 = vmul.f32 %v493, %v528
  %v747 = vmul.f32 %v493, %v532
  %v748 = vmul.f32 %v493, %v536
  %v749 = vmul.f32 %v493, %v540
  %v750 = vmul.f32 %v493, %v544
  %v751 = vmul.f32 %v493, %v548
  %v752 = vmul.f32 %v493, %v552
  %v753 = vmul.f32 %v493, %v556
  %v754 = vmul.f32 %v493, %v560
  %v755 = vmul.f32 %v493, %v564
  %v756 = vmul.f32 %v493, %v568
  %v757 = vmul.f32 %v493, %v572
  %v758 = vmul.f32 %v493, %v576
  %v759 = vmul.f32 %v493, %v580
  %v760 = vmul.f32 %v493, %v584
  %v761 = vmul.f32 %v497, %v524
  %v762 = vmul.f32 %v497, %v528
  %v763 = vmul.f32 %v497, %v532
  %v764 = vmul.f32 %v497, %v536
  %v765 = vmul.f32 %v497, %v540
  %v766 = vmul.f32 %v497, %v544
  %v767 = vmul.f32 %v497, %v548
  %v768 = vmul.f32 %v497, %v552
  %v769 = vmul.f32 %v497, %v556
  %v770 = vmul.f32 %v497, %v560
  %v771 = vmul.f32 %v497, %v564
  %v772 = vmul.f32 %v497, %v568
  %v773 = vmul.f32 %v497, %v572
  %v774 = vmul.f32 %v497, %v576
  %v775 = vmul.f32 %v497, %v580
  %v776 = vmul.f32 %v497, %v584
  %v777 = vmul.f32 %v501, %v524
  %v778 = vmul.f32 %v501, %v528
  %v779 = vmul.f32 %v501, %v532
  %v780 = vmul.f32 %v501, %v536
  %v781 = vmul.f32 %v501, %v540
  %v782 = vmul.f32 %v501, %v544
  %v783 = vmul.f32 %v501, %v548
  %v784 = vmul.f32 %v501, %v552
  %v785 = vmul.f32 %v501, %v556
  %v786 = vmul.f32 %v501, %v560
  %v787 = vmul.f32 %v501, %v564
  %v788 = vmul.f32 %v501, %v568
  %v789 = vmul.f32 %v501, %v572
  %v790 = vmul.f32 %v501, %v576
  %v791 = vmul.f32 %v501, %v580
  %v792 = vmul.f32 %v501, %v584
  %v793 = vmul.f32 %v505, %v524
  %v794 = vmul.f32 %v505, %v528
  %v795 = vmul.f32 %v505, %v532
  %v796 = vmul.f32 %v505, %v536
  %v797 = vmul.f32 %v505, %v540
  %v798 = vmul.f32 %v505, %v544
  %v799 = vmul.f32 %v505, %v548
  %v800 = vmul.f32 %v505, %v552
  %v801 = vmul.f32 %v505, %v556
  %v802 = vmul.f32 %v505, %v560
  %v803 = vmul.f32 %v505, %v564
  %v804 = vmul.f32 %v505, %v568
  %v805 = vmul.f32 %v505, %v572
  %v806 = vmul.f32 %v505, %v576
  %v807 = vmul.f32 %v505, %v580
  %v808 = vmul.f32 %v505, %v584
  %v809 = vmul.f32 %v509, %v524
  %v810 = vmul.f32 %v509, %v528
  %v811 = vmul.f32 %v509, %v532
  %v812 = vmul.f32 %v509, %v536
  %v813 = vmul.f32 %v509, %v540
  %v814 = vmul.f32 %v509, %v544
  %v815 = vmul.f32 %v509, %v548
  %v816 = vmul.f32 %v509, %v552
  %v817 = vmul.f32 %v509, %v556
  %v818 = vmul.f32 %v509, %v560
  %v819 = vmul.f32 %v509, %v564
  %v820 = vmul.f32 %v509, %v568
  %v821 = vmul.f32 %v509, %v572
  %v822 = vmul.f32 %v509, %v576
  %v823 = vmul.f32 %v509, %v580
  %v824 = vmul.f32 %v509, %v584
  %v825 = vmul.f32 %v513, %v524
  %v826 = vmul.f32 %v513, %v528
  %v827 = vmul.f32 %v513, %v532
  %v828 = vmul.f32 %v513, %v536
  %v829 = vmul.f32 %v513, %v540
  %v830 = vmul.f32 %v513, %v544
  %v831 = vmul.f32 %v513, %v548
  %v832 = vmul.f32 %v513, %v552
  %v833 = vmul.f32 %v513, %v556
  %v834 = vmul.f32 %v513, %v560
  %v835 = vmul.f32 %v513, %v564
  %v836 = vmul.f32 %v513, %v568
  %v837 = vmul.f32 %v513, %v572
  %v838 = vmul.f32 %v513, %v576
  %v839 = vmul.f32 %v513, %v580
  %v840 = vmul.f32 %v513, %v584
  %v841 = vmul.f32 %v517, %v524
  %v842 = vmul.f32 %v517, %v528
  %v843 = vmul.f32 %v517, %v532
  %v844 = vmul.f32 %v517, %v536
  %v845 = vmul.f32 %v517, %v540
  %v846 = vmul.f32 %v517, %v544
  %v847 = vmul.f32 %v517, %v548
  %v848 = vmul.f32 %v517, %v552
  %v849 = vmul.f32 %v517, %v556
  %v850 = vmul.f32 %v517, %v560
  %v851 = vmul.f32 %v517, %v564
  %v852 = vmul.f32 %v517, %v568
  %v853 = vmul.f32 %v517, %v572
  %v854 = vmul.f32 %v517, %v576
  %v855 = vmul.f32 %v517, %v580
  %v856 = vmul.f32 %v517, %v584
  %v857 = vadd.f32 %v199, %v601
  %v858 = vadd.f32 %v200, %v602
  %v859 = vadd.f32 %v201, %v603
  %v860 = vadd.f32 %v202, %v604
  %v861 = vadd.f32 %v203, %v605
  %v862 = vadd.f32 %v204, %v606
  %v863 = vadd.f32 %v205, %v607
  %v864 = vadd.f32 %v206, %v608
  %v865 = vadd.f32 %v207, %v609
  %v866 = vadd.f32 %v208, %v610
  %v867 = vadd.f32 %v209, %v611
  %v868 = vadd.f32 %v210, %v612
  %v869 = vadd.f32 %v211, %v613
  %v870 = vadd.f32 %v212, %v614
  %v871 = vadd.f32 %v213, %v615
  %v872 = vadd.f32 %v214, %v616
  %v873 = vadd.f32 %v215, %v617
  %v874 = vadd.f32 %v216, %v618
  %v875 = vadd.f32 %v217, %v619
  %v876 = vadd.f32 %v218, %v620
  %v877 = vadd.f32 %v219, %v621
  %v878 = vadd.f32 %v220, %v622
  %v879 = vadd.f32 %v221, %v623
  %v880 = vadd.f32 %v222, %v624
  %v881 = vadd.f32 %v223, %v625
  %v882 = vadd.f32 %v224, %v626
  %v883 = vadd.f32 %v225, %v627
  %v884 = vadd.f32 %v226, %v628
  %v885 = vadd.f32 %v227, %v629
  %v886 = vadd.f32 %v228, %v630
  %v887 = vadd.f32 %v229, %v631
  %v888 = vadd.f32 %v230, %v632
  %v889 = vadd.f32 %v231, %v633
  %v890 = vadd.f32 %v232, %v634
  %v891 = vadd.f32 %v233, %v635
  %v892 = vadd.f32 %v234, %v636
  %v893 = vadd.f32 %v235, %v637
  %v894 = vadd.f32 %v236, %v638
  %v895 = vadd.f32 %v237, %v639
  %v896 = vadd.f32 %v238, %v640
  %v897 = vadd.f32 %v239, %v641
  %v898 = vadd.f32 %v240, %v642
  %v899 = vadd.f32 %v241, %v643
  %v900 = vadd.f32 %v242, %v644
  %v901 = vadd.f32 %v243, %v645
  %v902 = vadd.f32 %v244, %v646
  %v903 = vadd.f32 %v245, %v647
  %v904 = vadd.f32 %v246, %v648
  %v905 = vadd.f32 %v247, %v649
  %v906 = vadd.f32 %v248, %v650
  %v907 = vadd.f32 %v249, %v651
  %v908 = vadd.f32 %v250, %v652
  %v909 = vadd.f32 %v251, %v653
  %v910 = vadd.f32 %v252, %v654
  %v911 = vadd.f32 %v253, %v655
  %v912 = vadd.f32 %v254, %v656
  %v913 = vadd.f32 %v255, %v657
  %v914 = vadd.f32 %v256, %v658
  %v915 = vadd.f32 %v257, %v659
  %v916 = vadd.f32 %v258, %v660
  %v917 = vadd.f32 %v259, %v661
  %v918 = vadd.f32 %v260, %v662
  %v919 = vadd.f32 %v261, %v663
  %v920 = vadd.f32 %v262, %v664
  %v921 = vadd.f32 %v263, %v665
  %v922 = vadd.f32 %v264, %v666
  %v923 = vadd.f32 %v265, %v667
  %v924 = vadd.f32 %v266, %v668
  %v925 = vadd.f32 %v267, %v669
  %v926 = vadd.f32 %v268, %v670
  %v927 = vadd.f32 %v269, %v671
  %v928 = vadd.f32 %v270, %v672
  %v929 = vadd.f32 %v271, %v673
  %v930 = vadd.f32 %v272, %v674
  %v931 = vadd.f32 %v273, %v675
  %v932 = vadd.f32 %v274, %v676
  %v933 = vadd.f32 %v275, %v677
  %v934 = vadd.f32 %v276, %v678
  %v935 = vadd.f32 %v277, %v679
  %v936 = vadd.f32 %v278, %v680
  %v937 = vadd.f32 %v279, %v681
  %v938 = vadd.f32 %v280, %v682
  %v939 = vadd.f32 %v281, %v683
  %v940 = vadd.f32 %v282, %v684
  %v941 = vadd.f32 %v283, %v685
  %v942 = vadd.f32 %v284, %v686
  %v943 = vadd.f32 %v285, %v687
  %v944 = vadd.f32 %v286, %v688
  %v945 = vadd.f32 %v287, %v689
  %v946 = vadd.f32 %v288, %v690
  %v947 = vadd.f32 %v289, %v691
  %v948 = vadd.f32 %v290, %v692
  %v949 = vadd.f32 %v291, %v693
  %v950 = vadd.f32 %v292, %v694
  %v951 = vadd.f32 %v293, %v695
  %v952 = vadd.f32 %v294, %v696
  %v953 = vadd.f32 %v295, %v697
  %v954 = vadd.f32 %v296, %v698
  %v955 = vadd.f32 %v297, %v699
  %v956 = vadd.f32 %v298, %v700
  %v957 = vadd.f32 %v299, %v701
  %v958 = vadd.f32 %v300, %v702
  %v959 = vadd.f32 %v301, %v703
  %v960 = vadd.f32 %v302, %v704
  %v961 = vadd.f32 %v303, %v705
  %v962 = vadd.f32 %v304, %v706
  %v963 = vadd.f32 %v305, %v707
  %v964 = vadd.f32 %v306, %v708
  %v965 = vadd.f32 %v307, %v709
  %v966 = vadd.f32 %v308, %v710
  %v967 = vadd.f32 %v309, %v711
  %v968 = vadd.f32 %v310, %v712
  %v969 = vadd.f32 %v311, %v713
  %v970 = vadd.f32 %v312, %v714
  %v971 = vadd.f32 %v313, %v715
  %v972 = vadd.f32 %v314, %v716
  %v973 = vadd.f32 %v315, %v717
  %v974 = vadd.f32 %v316, %v718
  %v975 = vadd.f32 %v317, %v719
  %v976 = vadd.f32 %v318, %v720
  %v977 = vadd.f32 %v319, %v721
  %v978 = vadd.f32 %v320, %v722
  %v979 = vadd.f32 %v321, %v723
  %v980 = vadd.f32 %v322, %v724
  %v981 = vadd.f32 %v323, %v725
  %v982 = vadd.f32 %v324, %v726
  %v983 = vadd.f32 %v325, %v727
  %v984 = vadd.f32 %v326, %v728
  %v985 = vadd.f32 %v327, %v729
  %v986 = vadd.f32 %v328, %v730
  %v987 = vadd.f32 %v329, %v731
  %v988 = vadd.f32 %v330, %v732
  %v989 = vadd.f32 %v331, %v733
  %v990 = vadd.f32 %v332, %v734
  %v991 = vadd.f32 %v333, %v735
  %v992 = vadd.f32 %v334, %v736
  %v993 = vadd.f32 %v335, %v737
  %v994 = vadd.f32 %v336, %v738
  %v995 = vadd.f32 %v337, %v739
  %v996 = vadd.f32 %v338, %v740
  %v997 = vadd.f32 %v339, %v741
  %v998 = vadd.f32 %v340, %v742
  %v999 = vadd.f32 %v341, %v743
  %v1000 = vadd.f32 %v342, %v744
  %v1001 = vadd.f32 %v343, %v745
  %v1002 = vadd.f32 %v344, %v746
  %v1003 = vadd.f32 %v345, %v747
  %v1004 = vadd.f32 %v346, %v748
  %v1005 = vadd.f32 %v347, %v749
  %v1006 = vadd.f32 %v348, %v750
  %v1007 = vadd.f32 %v349, %v751
  %v1008 = vadd.f32 %v350, %v752
  %v1009 = vadd.f32 %v351, %v753
  %v1010 = vadd.f32 %v352, %v754
  %v1011 = vadd.f32 %v353, %v755
  %v1012 = vadd.f32 %v354, %v756
  %v1013 = vadd.f32 %v355, %v757
  %v1014 = vadd.f32 %v356, %v758
  %v1015 = vadd.f32 %v357, %v759
  %v1016 = vadd.f32 %v358, %v760
  %v1017 = vadd.f32 %v359, %v761
  %v1018 = vadd.f32 %v360, %v762
  %v1019 = vadd.f32 %v361, %v763
  %v1020 = vadd.f32 %v362, %v764
  %v1021 = vadd.f32 %v363, %v765
  %v1022 = vadd.f32 %v364, %v766
  %v1023 = vadd.f32 %v365, %v767
  %v1024 = vadd.f32 %v366, %v768
  %v1025 = vadd.f32 %v367, %v769
  %v1026 = vadd.f32 %v368, %v770
  %v1027 = vadd.f32 %v369, %v771
  %v1028 = vadd.f32 %v370, %v772
  %v1029 = vadd.f32 %v371, %v773
  %v1030 = vadd.f32 %v372, %v774
  %v1031 = vadd.f32 %v373, %v775
  %v1032 = vadd.f32 %v374, %v776
  %v1033 = vadd.f32 %v375, %v777
  %v1034 = vadd.f32 %v376, %v778
  %v1035 = vadd.f32 %v377, %v779
  %v1036 = vadd.f32 %v378, %v780
  %v1037 = vadd.f32 %v379, %v781
  %v1038 = vadd.f32 %v380, %v782
  %v1039 = vadd.f32 %v381, %v783
  %v1040 = vadd.f32 %v382, %v784
  %v1041 = vadd.f32 %v383, %v785
  %v1042 = vadd.f32 %v384, %v786
  %v1043 = vadd.f32 %v385, %v787
  %v1044 = vadd.f32 %v386, %v788
  %v1045 = vadd.f32 %v387, %v789
  %v1046 = vadd.f32 %v388, %v790
  %v1047 = vadd.f32 %v389, %v791
  %v1048 = vadd.f32 %v390, %v792
  %v1049 = vadd.f32 %v391, %v793
  %v1050 = vadd.f32 %v392, %v794
  %v1051 = vadd.f32 %v393, %v795
  %v1052 = vadd.f32 %v394, %v796
  %v1053 = vadd.f32 %v395, %v797
  %v1054 = vadd.f32 %v396, %v798
  %v1055 = vadd.f32 %v397, %v799
  %v1056 = vadd.f32 %v398, %v800
  %v1057 = vadd.f32 %v399, %v801
  %v1058 = vadd.f32 %v400, %v802
  %v1059 = vadd.f32 %v401, %v803
  %v1060 = vadd.f32 %v402, %v804
  %v1061 = vadd.f32 %v403, %v805
  %v1062 = vadd.f32 %v404, %v806
  %v1063 = vadd.f32 %v405, %v807
  %v1064 = vadd.f32 %v406, %v808
  %v1065 = vadd.f32 %v407, %v809
  %v1066 = vadd.f32 %v408, %v810
  %v1067 = vadd.f32 %v409, %v811
  %v1068 = vadd.f32 %v410, %v812
  %v1069 = vadd.f32 %v411, %v813
  %v1070 = vadd.f32 %v412, %v814
  %v1071 = vadd.f32 %v413, %v815
  %v1072 = vadd.f32 %v414, %v816
  %v1073 = vadd.f32 %v415, %v817
  %v1074 = vadd.f32 %v416, %v818
  %v1075 = vadd.f32 %v417, %v819
  %v1076 = vadd.f32 %v418, %v820
  %v1077 = vadd.f32 %v419, %v821
  %v1078 = vadd.f32 %v420, %v822
  %v1079 = vadd.f32 %v421, %v823
  %v1080 = vadd.f32 %v422, %v824
  %v1081 = vadd.f32 %v423, %v825
  %v1082 = vadd.f32 %v424, %v826
  %v1083 = vadd.f32 %v425, %v827
  %v1084 = vadd.f32 %v426, %v828
  %v1085 = vadd.f32 %v427, %v829
  %v1086 = vadd.f32 %v428, %v830
  %v1087 = vadd.f32 %v429, %v831
  %v1088 = vadd.f32 %v430, %v832
  %v1089 = vadd.f32 %v431, %v833
  %v1090 = vadd.f32 %v432, %v834
  %v1091 = vadd.f32 %v433, %v835
  %v1092 = vadd.f32 %v434, %v836
  %v1093 = vadd.f32 %v435, %v837
  %v1094 = vadd.f32 %v436, %v838
  %v1095 = vadd.f32 %v437, %v839
  %v1096 = vadd.f32 %v438, %v840
  %v1097 = vadd.f32 %v439, %v841
  %v1098 = vadd.f32 %v440, %v842
  %v1099 = vadd.f32 %v441, %v843
  %v1100 = vadd.f32 %v442, %v844
  %v1101 = vadd.f32 %v443, %v845
  %v1102 = vadd.f32 %v444, %v846
  %v1103 = vadd.f32 %v445, %v847
  %v1104 = vadd.f32 %v446, %v848
  %v1105 = vadd.f32 %v447, %v849
  %v1106 = vadd.f32 %v448, %v850
  %v1107 = vadd.f32 %v449, %v851
  %v1108 = vadd.f32 %v450, %v852
  %v1109 = vadd.f32 %v451, %v853
  %v1110 = vadd.f32 %v452, %v854
  %v1111 = vadd.f32 %v453, %v855
  %v1112 = vadd.f32 %v454, %v856
  %1113 = vset.pattern.permute.xlu0 2
  %1114 = vperm.xlu0 %1113, %v21
  %v1115 = vpop.permute.xlu0 %1114
  %1117 = vset.pattern.permute.xlu0 2
  %1118 = vperm.xlu0 %1117, %v22
  %v1119 = vpop.permute.xlu0 %1118
  %1121 = vset.pattern.permute.xlu0 2
  %1122 = vperm.xlu0 %1121, %v23
  %v1123 = vpop.permute.xlu0 %1122
  %1125 = vset.pattern.permute.xlu0 2
  %1126 = vperm.xlu0 %1125, %v24
  %v1127 = vpop.permute.xlu0 %1126
  %1129 = vset.pattern.permute.xlu0 2
  %1130 = vperm.xlu0 %1129, %v25
  %v1131 = vpop.permute.xlu0 %1130
  %1133 = vset.pattern.permute.xlu0 2
  %1134 = vperm.xlu0 %1133, %v26
  %v1135 = vpop.permute.xlu0 %1134
  %1137 = vset.pattern.permute.xlu0 2
  %1138 = vperm.xlu0 %1137, %v27
  %v1139 = vpop.permute.xlu0 %1138
  %1141 = vset.pattern.permute.xlu0 2
  %1142 = vperm.xlu0 %1141, %v28
  %v1143 = vpop.permute.xlu0 %1142
  %1145 = vset.pattern.permute.xlu0 2
  %1146 = vperm.xlu0 %1145, %v29
  %v1147 = vpop.permute.xlu0 %1146
  %1149 = vset.pattern.permute.xlu0 2
  %1150 = vperm.xlu0 %1149, %v30
  %v1151 = vpop.permute.xlu0 %1150
  %1153 = vset.pattern.permute.xlu0 2
  %1154 = vperm.xlu0 %1153, %v31
  %v1155 = vpop.permute.xlu0 %1154
  %1157 = vset.pattern.permute.xlu0 2
  %1158 = vperm.xlu0 %1157, %v32
  %v1159 = vpop.permute.xlu0 %1158
  %1161 = vset.pattern.permute.xlu0 2
  %1162 = vperm.xlu0 %1161, %v33
  %v1163 = vpop.permute.xlu0 %1162
  %1165 = vset.pattern.permute.xlu0 2
  %1166 = vperm.xlu0 %1165, %v34
  %v1167 = vpop.permute.xlu0 %1166
  %1169 = vset.pattern.permute.xlu0 2
  %1170 = vperm.xlu0 %1169, %v35
  %v1171 = vpop.permute.xlu0 %1170
  %1173 = vset.pattern.permute.xlu0 2
  %1174 = vperm.xlu0 %1173, %v36
  %v1175 = vpop.permute.xlu0 %1174
  %v1177 = vadd.f32 %v857, %v1115
  %v1178 = vadd.f32 %v858, %v1115
  %v1179 = vadd.f32 %v859, %v1115
  %v1180 = vadd.f32 %v860, %v1115
  %v1181 = vadd.f32 %v861, %v1115
  %v1182 = vadd.f32 %v862, %v1115
  %v1183 = vadd.f32 %v863, %v1115
  %v1184 = vadd.f32 %v864, %v1115
  %v1185 = vadd.f32 %v865, %v1115
  %v1186 = vadd.f32 %v866, %v1115
  %v1187 = vadd.f32 %v867, %v1115
  %v1188 = vadd.f32 %v868, %v1115
  %v1189 = vadd.f32 %v869, %v1115
  %v1190 = vadd.f32 %v870, %v1115
  %v1191 = vadd.f32 %v871, %v1115
  %v1192 = vadd.f32 %v872, %v1115
  %v1193 = vadd.f32 %v873, %v1119
  %v1194 = vadd.f32 %v874, %v1119
  %v1195 = vadd.f32 %v875, %v1119
  %v1196 = vadd.f32 %v876, %v1119
  %v1197 = vadd.f32 %v877, %v1119
  %v1198 = vadd.f32 %v878, %v1119
  %v1199 = vadd.f32 %v879, %v1119
  %v1200 = vadd.f32 %v880, %v1119
  %v1201 = vadd.f32 %v881, %v1119
  %v1202 = vadd.f32 %v882, %v1119
  %v1203 = vadd.f32 %v883, %v1119
  %v1204 = vadd.f32 %v884, %v1119
  %v1205 = vadd.f32 %v885, %v1119
  %v1206 = vadd.f32 %v886, %v1119
  %v1207 = vadd.f32 %v887, %v1119
  %v1208 = vadd.f32 %v888, %v1119
  %v1209 = vadd.f32 %v889, %v1123
  %v1210 = vadd.f32 %v890, %v1123
  %v1211 = vadd.f32 %v891, %v1123
  %v1212 = vadd.f32 %v892, %v1123
  %v1213 = vadd.f32 %v893, %v1123
  %v1214 = vadd.f32 %v894, %v1123
  %v1215 = vadd.f32 %v895, %v1123
  %v1216 = vadd.f32 %v896, %v1123
  %v1217 = vadd.f32 %v897, %v1123
  %v1218 = vadd.f32 %v898, %v1123
  %v1219 = vadd.f32 %v899, %v1123
  %v1220 = vadd.f32 %v900, %v1123
  %v1221 = vadd.f32 %v901, %v1123
  %v1222 = vadd.f32 %v902, %v1123
  %v1223 = vadd.f32 %v903, %v1123
  %v1224 = vadd.f32 %v904, %v1123
  %v1225 = vadd.f32 %v905, %v1127
  %v1226 = vadd.f32 %v906, %v1127
  %v1227 = vadd.f32 %v907, %v1127
  %v1228 = vadd.f32 %v908, %v1127
  %v1229 = vadd.f32 %v909, %v1127
  %v1230 = vadd.f32 %v910, %v1127
  %v1231 = vadd.f32 %v911, %v1127
  %v1232 = vadd.f32 %v912, %v1127
  %v1233 = vadd.f32 %v913, %v1127
  %v1234 = vadd.f32 %v914, %v1127
  %v1235 = vadd.f32 %v915, %v1127
  %v1236 = vadd.f32 %v916, %v1127
  %v1237 = vadd.f32 %v917, %v1127
  %v1238 = vadd.f32 %v918, %v1127
  %v1239 = vadd.f32 %v919, %v1127
  %v1240 = vadd.f32 %v920, %v1127
  %v1241 = vadd.f32 %v921, %v1131
  %v1242 = vadd.f32 %v922, %v1131
  %v1243 = vadd.f32 %v923, %v1131
  %v1244 = vadd.f32 %v924, %v1131
  %v1245 = vadd.f32 %v925, %v1131
  %v1246 = vadd.f32 %v926, %v1131
  %v1247 = vadd.f32 %v927, %v1131
  %v1248 = vadd.f32 %v928, %v1131
  %v1249 = vadd.f32 %v929, %v1131
  %v1250 = vadd.f32 %v930, %v1131
  %v1251 = vadd.f32 %v931, %v1131
  %v1252 = vadd.f32 %v932, %v1131
  %v1253 = vadd.f32 %v933, %v1131
  %v1254 = vadd.f32 %v934, %v1131
  %v1255 = vadd.f32 %v935, %v1131
  %v1256 = vadd.f32 %v936, %v1131
  %v1257 = vadd.f32 %v937, %v1135
  %v1258 = vadd.f32 %v938, %v1135
  %v1259 = vadd.f32 %v939, %v1135
  %v1260 = vadd.f32 %v940, %v1135
  %v1261 = vadd.f32 %v941, %v1135
  %v1262 = vadd.f32 %v942, %v1135
  %v1263 = vadd.f32 %v943, %v1135
  %v1264 = vadd.f32 %v944, %v1135
  %v1265 = vadd.f32 %v945, %v1135
  %v1266 = vadd.f32 %v946, %v1135
  %v1267 = vadd.f32 %v947, %v1135
  %v1268 = vadd.f32 %v948, %v1135
  %v1269 = vadd.f32 %v949, %v1135
  %v1270 = vadd.f32 %v950, %v1135
  %v1271 = vadd.f32 %v951, %v1135
  %v1272 = vadd.f32 %v952, %v1135
  %v1273 = vadd.f32 %v953, %v1139
  %v1274 = vadd.f32 %v954, %v1139
  %v1275 = vadd.f32 %v955, %v1139
  %v1276 = vadd.f32 %v956, %v1139
  %v1277 = vadd.f32 %v957, %v1139
  %v1278 = vadd.f32 %v958, %v1139
  %v1279 = vadd.f32 %v959, %v1139
  %v1280 = vadd.f32 %v960, %v1139
  %v1281 = vadd.f32 %v961, %v1139
  %v1282 = vadd.f32 %v962, %v1139
  %v1283 = vadd.f32 %v963, %v1139
  %v1284 = vadd.f32 %v964, %v1139
  %v1285 = vadd.f32 %v965, %v1139
  %v1286 = vadd.f32 %v966, %v1139
  %v1287 = vadd.f32 %v967, %v1139
  %v1288 = vadd.f32 %v968, %v1139
  %v1289 = vadd.f32 %v969, %v1143
  %v1290 = vadd.f32 %v970, %v1143
  %v1291 = vadd.f32 %v971, %v1143
  %v1292 = vadd.f32 %v972, %v1143
  %v1293 = vadd.f32 %v973, %v1143
  %v1294 = vadd.f32 %v974, %v1143
  %v1295 = vadd.f32 %v975, %v1143
  %v1296 = vadd.f32 %v976, %v1143
  %v1297 = vadd.f32 %v977, %v1143
  %v1298 = vadd.f32 %v978, %v1143
  %v1299 = vadd.f32 %v979, %v1143
  %v1300 = vadd.f32 %v980, %v1143
  %v1301 = vadd.f32 %v981, %v1143
  %v1302 = vadd.f32 %v982, %v1143
  %v1303 = vadd.f32 %v983, %v1143
  %v1304 = vadd.f32 %v984, %v1143
  %v1305 = vadd.f32 %v985, %v1147
  %v1306 = vadd.f32 %v986, %v1147
  %v1307 = vadd.f32 %v987, %v1147
  %v1308 = vadd.f32 %v988, %v1147
  %v1309 = vadd.f32 %v989, %v1147
  %v1310 = vadd.f32 %v990, %v1147
  %v1311 = vadd.f32 %v991, %v1147
  %v1312 = vadd.f32 %v992, %v1147
  %v1313 = vadd.f32 %v993, %v1147
  %v1314 = vadd.f32 %v994, %v1147
  %v1315 = vadd.f32 %v995, %v1147
  %v1316 = vadd.f32 %v996, %v1147
  %v1317 = vadd.f32 %v997, %v1147
  %v1318 = vadd.f32 %v998, %v1147
  %v1319 = vadd.f32 %v999, %v1147
  %v1320 = vadd.f32 %v1000, %v1147
  %v1321 = vadd.f32 %v1001, %v1151
  %v1322 = vadd.f32 %v1002, %v1151
  %v1323 = vadd.f32 %v1003, %v1151
  %v1324 = vadd.f32 %v1004, %v1151
  %v1325 = vadd.f32 %v1005, %v1151
  %v1326 = vadd.f32 %v1006, %v1151
  %v1327 = vadd.f32 %v1007, %v1151
  %v1328 = vadd.f32 %v1008, %v1151
  %v1329 = vadd.f32 %v1009, %v1151
  %v1330 = vadd.f32 %v1010, %v1151
  %v1331 = vadd.f32 %v1011, %v1151
  %v1332 = vadd.f32 %v1012, %v1151
  %v1333 = vadd.f32 %v1013, %v1151
  %v1334 = vadd.f32 %v1014, %v1151
  %v1335 = vadd.f32 %v1015, %v1151
  %v1336 = vadd.f32 %v1016, %v1151
  %v1337 = vadd.f32 %v1017, %v1155
  %v1338 = vadd.f32 %v1018, %v1155
  %v1339 = vadd.f32 %v1019, %v1155
  %v1340 = vadd.f32 %v1020, %v1155
  %v1341 = vadd.f32 %v1021, %v1155
  %v1342 = vadd.f32 %v1022, %v1155
  %v1343 = vadd.f32 %v1023, %v1155
  %v1344 = vadd.f32 %v1024, %v1155
  %v1345 = vadd.f32 %v1025, %v1155
  %v1346 = vadd.f32 %v1026, %v1155
  %v1347 = vadd.f32 %v1027, %v1155
  %v1348 = vadd.f32 %v1028, %v1155
  %v1349 = vadd.f32 %v1029, %v1155
  %v1350 = vadd.f32 %v1030, %v1155
  %v1351 = vadd.f32 %v1031, %v1155
  %v1352 = vadd.f32 %v1032, %v1155
  %v1353 = vadd.f32 %v1033, %v1159
  %v1354 = vadd.f32 %v1034, %v1159
  %v1355 = vadd.f32 %v1035, %v1159
  %v1356 = vadd.f32 %v1036, %v1159
  %v1357 = vadd.f32 %v1037, %v1159
  %v1358 = vadd.f32 %v1038, %v1159
  %v1359 = vadd.f32 %v1039, %v1159
  %v1360 = vadd.f32 %v1040, %v1159
  %v1361 = vadd.f32 %v1041, %v1159
  %v1362 = vadd.f32 %v1042, %v1159
  %v1363 = vadd.f32 %v1043, %v1159
  %v1364 = vadd.f32 %v1044, %v1159
  %v1365 = vadd.f32 %v1045, %v1159
  %v1366 = vadd.f32 %v1046, %v1159
  %v1367 = vadd.f32 %v1047, %v1159
  %v1368 = vadd.f32 %v1048, %v1159
  %v1369 = vadd.f32 %v1049, %v1163
  %v1370 = vadd.f32 %v1050, %v1163
  %v1371 = vadd.f32 %v1051, %v1163
  %v1372 = vadd.f32 %v1052, %v1163
  %v1373 = vadd.f32 %v1053, %v1163
  %v1374 = vadd.f32 %v1054, %v1163
  %v1375 = vadd.f32 %v1055, %v1163
  %v1376 = vadd.f32 %v1056, %v1163
  %v1377 = vadd.f32 %v1057, %v1163
  %v1378 = vadd.f32 %v1058, %v1163
  %v1379 = vadd.f32 %v1059, %v1163
  %v1380 = vadd.f32 %v1060, %v1163
  %v1381 = vadd.f32 %v1061, %v1163
  %v1382 = vadd.f32 %v1062, %v1163
  %v1383 = vadd.f32 %v1063, %v1163
  %v1384 = vadd.f32 %v1064, %v1163
  %v1385 = vadd.f32 %v1065, %v1167
  %v1386 = vadd.f32 %v1066, %v1167
  %v1387 = vadd.f32 %v1067, %v1167
  %v1388 = vadd.f32 %v1068, %v1167
  %v1389 = vadd.f32 %v1069, %v1167
  %v1390 = vadd.f32 %v1070, %v1167
  %v1391 = vadd.f32 %v1071, %v1167
  %v1392 = vadd.f32 %v1072, %v1167
  %v1393 = vadd.f32 %v1073, %v1167
  %v1394 = vadd.f32 %v1074, %v1167
  %v1395 = vadd.f32 %v1075, %v1167
  %v1396 = vadd.f32 %v1076, %v1167
  %v1397 = vadd.f32 %v1077, %v1167
  %v1398 = vadd.f32 %v1078, %v1167
  %v1399 = vadd.f32 %v1079, %v1167
  %v1400 = vadd.f32 %v1080, %v1167
  %v1401 = vadd.f32 %v1081, %v1171
  %v1402 = vadd.f32 %v1082, %v1171
  %v1403 = vadd.f32 %v1083, %v1171
  %v1404 = vadd.f32 %v1084, %v1171
  %v1405 = vadd.f32 %v1085, %v1171
  %v1406 = vadd.f32 %v1086, %v1171
  %v1407 = vadd.f32 %v1087, %v1171
  %v1408 = vadd.f32 %v1088, %v1171
  %v1409 = vadd.f32 %v1089, %v1171
  %v1410 = vadd.f32 %v1090, %v1171
  %v1411 = vadd.f32 %v1091, %v1171
  %v1412 = vadd.f32 %v1092, %v1171
  %v1413 = vadd.f32 %v1093, %v1171
  %v1414 = vadd.f32 %v1094, %v1171
  %v1415 = vadd.f32 %v1095, %v1171
  %v1416 = vadd.f32 %v1096, %v1171
  %v1417 = vadd.f32 %v1097, %v1175
  %v1418 = vadd.f32 %v1098, %v1175
  %v1419 = vadd.f32 %v1099, %v1175
  %v1420 = vadd.f32 %v1100, %v1175
  %v1421 = vadd.f32 %v1101, %v1175
  %v1422 = vadd.f32 %v1102, %v1175
  %v1423 = vadd.f32 %v1103, %v1175
  %v1424 = vadd.f32 %v1104, %v1175
  %v1425 = vadd.f32 %v1105, %v1175
  %v1426 = vadd.f32 %v1106, %v1175
  %v1427 = vadd.f32 %v1107, %v1175
  %v1428 = vadd.f32 %v1108, %v1175
  %v1429 = vadd.f32 %v1109, %v1175
  %v1430 = vadd.f32 %v1110, %v1175
  %v1431 = vadd.f32 %v1111, %v1175
  %v1432 = vadd.f32 %v1112, %v1175
  %v1433 = vmax.f32 %v1177, 0.0
  %v1434 = vmax.f32 %v1178, 0.0
  %v1435 = vmax.f32 %v1179, 0.0
  %v1436 = vmax.f32 %v1180, 0.0
  %v1437 = vmax.f32 %v1181, 0.0
  %v1438 = vmax.f32 %v1182, 0.0
  %v1439 = vmax.f32 %v1183, 0.0
  %v1440 = vmax.f32 %v1184, 0.0
  %v1441 = vmax.f32 %v1185, 0.0
  %v1442 = vmax.f32 %v1186, 0.0
  %v1443 = vmax.f32 %v1187, 0.0
  %v1444 = vmax.f32 %v1188, 0.0
  %v1445 = vmax.f32 %v1189, 0.0
  %v1446 = vmax.f32 %v1190, 0.0
  %v1447 = vmax.f32 %v1191, 0.0
  %v1448 = vmax.f32 %v1192, 0.0
  %v1449 = vmax.f32 %v1193, 0.0
  %v1450 = vmax.f32 %v1194, 0.0
  %v1451 = vmax.f32 %v1195, 0.0
  %v1452 = vmax.f32 %v1196, 0.0
  %v1453 = vmax.f32 %v1197, 0.0
  %v1454 = vmax.f32 %v1198, 0.0
  %v1455 = vmax.f32 %v1199, 0.0
  %v1456 = vmax.f32 %v1200, 0.0
  %v1457 = vmax.f32 %v1201, 0.0
  %v1458 = vmax.f32 %v1202, 0.0
  %v1459 = vmax.f32 %v1203, 0.0
  %v1460 = vmax.f32 %v1204, 0.0
  %v1461 = vmax.f32 %v1205, 0.0
  %v1462 = vmax.f32 %v1206, 0.0
  %v1463 = vmax.f32 %v1207, 0.0
  %v1464 = vmax.f32 %v1208, 0.0
  %v1465 = vmax.f32 %v1209, 0.0
  %v1466 = vmax.f32 %v1210, 0.0
  %v1467 = vmax.f32 %v1211, 0.0
  %v1468 = vmax.f32 %v1212, 0.0
  %v1469 = vmax.f32 %v1213, 0.0
  %v1470 = vmax.f32 %v1214, 0.0
  %v1471 = vmax.f32 %v1215, 0.0
  %v1472 = vmax.f32 %v1216, 0.0
  %v1473 = vmax.f32 %v1217, 0.0
  %v1474 = vmax.f32 %v1218, 0.0
  %v1475 = vmax.f32 %v1219, 0.0
  %v1476 = vmax.f32 %v1220, 0.0
  %v1477 = vmax.f32 %v1221, 0.0
  %v1478 = vmax.f32 %v1222, 0.0
  %v1479 = vmax.f32 %v1223, 0.0
  %v1480 = vmax.f32 %v1224, 0.0
  %v1481 = vmax.f32 %v1225, 0.0
  %v1482 = vmax.f32 %v1226, 0.0
  %v1483 = vmax.f32 %v1227, 0.0
  %v1484 = vmax.f32 %v1228, 0.0
  %v1485 = vmax.f32 %v1229, 0.0
  %v1486 = vmax.f32 %v1230, 0.0
  %v1487 = vmax.f32 %v1231, 0.0
  %v1488 = vmax.f32 %v1232, 0.0
  %v1489 = vmax.f32 %v1233, 0.0
  %v1490 = vmax.f32 %v1234, 0.0
  %v1491 = vmax.f32 %v1235, 0.0
  %v1492 = vmax.f32 %v1236, 0.0
  %v1493 = vmax.f32 %v1237, 0.0
  %v1494 = vmax.f32 %v1238, 0.0
  %v1495 = vmax.f32 %v1239, 0.0
  %v1496 = vmax.f32 %v1240, 0.0
  %v1497 = vmax.f32 %v1241, 0.0
  %v1498 = vmax.f32 %v1242, 0.0
  %v1499 = vmax.f32 %v1243, 0.0
  %v1500 = vmax.f32 %v1244, 0.0
  %v1501 = vmax.f32 %v1245, 0.0
  %v1502 = vmax.f32 %v1246, 0.0
  %v1503 = vmax.f32 %v1247, 0.0
  %v1504 = vmax.f32 %v1248, 0.0
  %v1505 = vmax.f32 %v1249, 0.0
  %v1506 = vmax.f32 %v1250, 0.0
  %v1507 = vmax.f32 %v1251, 0.0
  %v1508 = vmax.f32 %v1252, 0.0
  %v1509 = vmax.f32 %v1253, 0.0
  %v1510 = vmax.f32 %v1254, 0.0
  %v1511 = vmax.f32 %v1255, 0.0
  %v1512 = vmax.f32 %v1256, 0.0
  %v1513 = vmax.f32 %v1257, 0.0
  %v1514 = vmax.f32 %v1258, 0.0
  %v1515 = vmax.f32 %v1259, 0.0
  %v1516 = vmax.f32 %v1260, 0.0
  %v1517 = vmax.f32 %v1261, 0.0
  %v1518 = vmax.f32 %v1262, 0.0
  %v1519 = vmax.f32 %v1263, 0.0
  %v1520 = vmax.f32 %v1264, 0.0
  %v1521 = vmax.f32 %v1265, 0.0
  %v1522 = vmax.f32 %v1266, 0.0
  %v1523 = vmax.f32 %v1267, 0.0
  %v1524 = vmax.f32 %v1268, 0.0
  %v1525 = vmax.f32 %v1269, 0.0
  %v1526 = vmax.f32 %v1270, 0.0
  %v1527 = vmax.f32 %v1271, 0.0
  %v1528 = vmax.f32 %v1272, 0.0
  %v1529 = vmax.f32 %v1273, 0.0
  %v1530 = vmax.f32 %v1274, 0.0
  %v1531 = vmax.f32 %v1275, 0.0
  %v1532 = vmax.f32 %v1276, 0.0
  %v1533 = vmax.f32 %v1277, 0.0
  %v1534 = vmax.f32 %v1278, 0.0
  %v1535 = vmax.f32 %v1279, 0.0
  %v1536 = vmax.f32 %v1280, 0.0
  %v1537 = vmax.f32 %v1281, 0.0
  %v1538 = vmax.f32 %v1282, 0.0
  %v1539 = vmax.f32 %v1283, 0.0
  %v1540 = vmax.f32 %v1284, 0.0
  %v1541 = vmax.f32 %v1285, 0.0
  %v1542 = vmax.f32 %v1286, 0.0
  %v1543 = vmax.f32 %v1287, 0.0
  %v1544 = vmax.f32 %v1288, 0.0
  %v1545 = vmax.f32 %v1289, 0.0
  %v1546 = vmax.f32 %v1290, 0.0
  %v1547 = vmax.f32 %v1291, 0.0
  %v1548 = vmax.f32 %v1292, 0.0
  %v1549 = vmax.f32 %v1293, 0.0
  %v1550 = vmax.f32 %v1294, 0.0
  %v1551 = vmax.f32 %v1295, 0.0
  %v1552 = vmax.f32 %v1296, 0.0
  %v1553 = vmax.f32 %v1297, 0.0
  %v1554 = vmax.f32 %v1298, 0.0
  %v1555 = vmax.f32 %v1299, 0.0
  %v1556 = vmax.f32 %v1300, 0.0
  %v1557 = vmax.f32 %v1301, 0.0
  %v1558 = vmax.f32 %v1302, 0.0
  %v1559 = vmax.f32 %v1303, 0.0
  %v1560 = vmax.f32 %v1304, 0.0
  %v1561 = vmax.f32 %v1305, 0.0
  %v1562 = vmax.f32 %v1306, 0.0
  %v1563 = vmax.f32 %v1307, 0.0
  %v1564 = vmax.f32 %v1308, 0.0
  %v1565 = vmax.f32 %v1309, 0.0
  %v1566 = vmax.f32 %v1310, 0.0
  %v1567 = vmax.f32 %v1311, 0.0
  %v1568 = vmax.f32 %v1312, 0.0
  %v1569 = vmax.f32 %v1313, 0.0
  %v1570 = vmax.f32 %v1314, 0.0
  %v1571 = vmax.f32 %v1315, 0.0
  %v1572 = vmax.f32 %v1316, 0.0
  %v1573 = vmax.f32 %v1317, 0.0
  %v1574 = vmax.f32 %v1318, 0.0
  %v1575 = vmax.f32 %v1319, 0.0
  %v1576 = vmax.f32 %v1320, 0.0
  %v1577 = vmax.f32 %v1321, 0.0
  %v1578 = vmax.f32 %v1322, 0.0
  %v1579 = vmax.f32 %v1323, 0.0
  %v1580 = vmax.f32 %v1324, 0.0
  %v1581 = vmax.f32 %v1325, 0.0
  %v1582 = vmax.f32 %v1326, 0.0
  %v1583 = vmax.f32 %v1327, 0.0
  %v1584 = vmax.f32 %v1328, 0.0
  %v1585 = vmax.f32 %v1329, 0.0
  %v1586 = vmax.f32 %v1330, 0.0
  %v1587 = vmax.f32 %v1331, 0.0
  %v1588 = vmax.f32 %v1332, 0.0
  %v1589 = vmax.f32 %v1333, 0.0
  %v1590 = vmax.f32 %v1334, 0.0
  %v1591 = vmax.f32 %v1335, 0.0
  %v1592 = vmax.f32 %v1336, 0.0
  %v1593 = vmax.f32 %v1337, 0.0
  %v1594 = vmax.f32 %v1338, 0.0
  %v1595 = vmax.f32 %v1339, 0.0
  %v1596 = vmax.f32 %v1340, 0.0
  %v1597 = vmax.f32 %v1341, 0.0
  %v1598 = vmax.f32 %v1342, 0.0
  %v1599 = vmax.f32 %v1343, 0.0
  %v1600 = vmax.f32 %v1344, 0.0
  %v1601 = vmax.f32 %v1345, 0.0
  %v1602 = vmax.f32 %v1346, 0.0
  %v1603 = vmax.f32 %v1347, 0.0
  %v1604 = vmax.f32 %v1348, 0.0
  %v1605 = vmax.f32 %v1349, 0.0
  %v1606 = vmax.f32 %v1350, 0.0
  %v1607 = vmax.f32 %v1351, 0.0
  %v1608 = vmax.f32 %v1352, 0.0
  %v1609 = vmax.f32 %v1353, 0.0
  %v1610 = vmax.f32 %v1354, 0.0
  %v1611 = vmax.f32 %v1355, 0.0
  %v1612 = vmax.f32 %v1356, 0.0
  %v1613 = vmax.f32 %v1357, 0.0
  %v1614 = vmax.f32 %v1358, 0.0
  %v1615 = vmax.f32 %v1359, 0.0
  %v1616 = vmax.f32 %v1360, 0.0
  %v1617 = vmax.f32 %v1361, 0.0
  %v1618 = vmax.f32 %v1362, 0.0
  %v1619 = vmax.f32 %v1363, 0.0
  %v1620 = vmax.f32 %v1364, 0.0
  %v1621 = vmax.f32 %v1365, 0.0
  %v1622 = vmax.f32 %v1366, 0.0
  %v1623 = vmax.f32 %v1367, 0.0
  %v1624 = vmax.f32 %v1368, 0.0
  %v1625 = vmax.f32 %v1369, 0.0
  %v1626 = vmax.f32 %v1370, 0.0
  %v1627 = vmax.f32 %v1371, 0.0
  %v1628 = vmax.f32 %v1372, 0.0
  %v1629 = vmax.f32 %v1373, 0.0
  %v1630 = vmax.f32 %v1374, 0.0
  %v1631 = vmax.f32 %v1375, 0.0
  %v1632 = vmax.f32 %v1376, 0.0
  %v1633 = vmax.f32 %v1377, 0.0
  %v1634 = vmax.f32 %v1378, 0.0
  %v1635 = vmax.f32 %v1379, 0.0
  %v1636 = vmax.f32 %v1380, 0.0
  %v1637 = vmax.f32 %v1381, 0.0
  %v1638 = vmax.f32 %v1382, 0.0
  %v1639 = vmax.f32 %v1383, 0.0
  %v1640 = vmax.f32 %v1384, 0.0
  %v1641 = vmax.f32 %v1385, 0.0
  %v1642 = vmax.f32 %v1386, 0.0
  %v1643 = vmax.f32 %v1387, 0.0
  %v1644 = vmax.f32 %v1388, 0.0
  %v1645 = vmax.f32 %v1389, 0.0
  %v1646 = vmax.f32 %v1390, 0.0
  %v1647 = vmax.f32 %v1391, 0.0
  %v1648 = vmax.f32 %v1392, 0.0
  %v1649 = vmax.f32 %v1393, 0.0
  %v1650 = vmax.f32 %v1394, 0.0
  %v1651 = vmax.f32 %v1395, 0.0
  %v1652 = vmax.f32 %v1396, 0.0
  %v1653 = vmax.f32 %v1397, 0.0
  %v1654 = vmax.f32 %v1398, 0.0
  %v1655 = vmax.f32 %v1399, 0.0
  %v1656 = vmax.f32 %v1400, 0.0
  %v1657 = vmax.f32 %v1401, 0.0
  %v1658 = vmax.f32 %v1402, 0.0
  %v1659 = vmax.f32 %v1403, 0.0
  %v1660 = vmax.f32 %v1404, 0.0
  %v1661 = vmax.f32 %v1405, 0.0
  %v1662 = vmax.f32 %v1406, 0.0
  %v1663 = vmax.f32 %v1407, 0.0
  %v1664 = vmax.f32 %v1408, 0.0
  %v1665 = vmax.f32 %v1409, 0.0
  %v1666 = vmax.f32 %v1410, 0.0
  %v1667 = vmax.f32 %v1411, 0.0
  %v1668 = vmax.f32 %v1412, 0.0
  %v1669 = vmax.f32 %v1413, 0.0
  %v1670 = vmax.f32 %v1414, 0.0
  %v1671 = vmax.f32 %v1415, 0.0
  %v1672 = vmax.f32 %v1416, 0.0
  %v1673 = vmax.f32 %v1417, 0.0
  %v1674 = vmax.f32 %v1418, 0.0
  %v1675 = vmax.f32 %v1419, 0.0
  %v1676 = vmax.f32 %v1420, 0.0
  %v1677 = vmax.f32 %v1421, 0.0
  %v1678 = vmax.f32 %v1422, 0.0
  %v1679 = vmax.f32 %v1423, 0.0
  %v1680 = vmax.f32 %v1424, 0.0
  %v1681 = vmax.f32 %v1425, 0.0
  %v1682 = vmax.f32 %v1426, 0.0
  %v1683 = vmax.f32 %v1427, 0.0
  %v1684 = vmax.f32 %v1428, 0.0
  %v1685 = vmax.f32 %v1429, 0.0
  %v1686 = vmax.f32 %v1430, 0.0
  %v1687 = vmax.f32 %v1431, 0.0
  %v1688 = vmax.f32 %v1432, 0.0
  %v1689 = vld [vmem:[%s2] sm:$0x3]
  %v1690 = vld [vmem:[%s2 + $0x2] sm:$0x3]
  %1692 = vset.pattern.permute.xlu0 0
  %1693 = vperm.xlu0 %1692, %v1690
  %v1694 = vpop.permute.xlu0 %1693
  %v1697 = vunpack.c.l.s4 269488144
  %v1698 = vunpack.c.0.s8 %v1697
  %v1699 = vlaneseq
  %v1700 = vshrl.u32 %v1699, 7
  %v1701 = vsub.s32 %v1698, %v1700
  %v1702 = vrot.slane %v1694, %v1701
  %v1704 = vcombine.high %v1702, %v1702
  %v1706 = vunpack.c.l.s4 1983009808
  %v1707 = vunpack.c.0.s8 %v1706
  %v1708 = vlaneseq
  %v1709 = vshrl.u32 %v1708, 7
  %v1710 = vsub.s32 %v1707, %v1709
  %v1711 = vrot.slane %v1702, %v1710
  %v1713 = vunpack.c.l.s4 1983009808
  %v1714 = vunpack.c.0.s8 %v1713
  %v1715 = vlaneseq
  %v1716 = vshrl.u32 %v1715, 7
  %v1717 = vsub.s32 %v1714, %v1716
  %v1718 = vrot.slane %v1704, %v1717
  %v1719 = vcombine.high %v1711, %v1711
  %v1720 = vcombine.high %v1718, %v1718
  %v1725 = vand.u32 %v1434, 4294901760
  %1726 = vmatprep.subr.mxu0 %v1725
  %v1727 = vand.u32 %v1433, 4294901760
  %1728 = vmatpush1.msra.mxu0 %v1727
  %v1729 = vand.u32 %v1450, 4294901760
  %1730 = vmatprep.subr.mxu0 %v1729
  %v1731 = vand.u32 %v1449, 4294901760
  %1732 = vmatpush1.msra.mxu0 %v1731
  %v1733 = vand.u32 %v1466, 4294901760
  %1734 = vmatprep.subr.mxu0 %v1733
  %v1735 = vand.u32 %v1465, 4294901760
  %1736 = vmatpush1.msra.mxu0 %v1735
  %v1737 = vand.u32 %v1482, 4294901760
  %1738 = vmatprep.subr.mxu0 %v1737
  %v1739 = vand.u32 %v1481, 4294901760
  %1740 = vmatpush1.msra.mxu0 %v1739
  %v1741 = vand.u32 %v1498, 4294901760
  %1742 = vmatprep.subr.mxu0 %v1741
  %v1743 = vand.u32 %v1497, 4294901760
  %1744 = vmatpush1.msra.mxu0 %v1743
  %v1745 = vand.u32 %v1514, 4294901760
  %1746 = vmatprep.subr.mxu0 %v1745
  %v1747 = vand.u32 %v1513, 4294901760
  %1748 = vmatpush1.msra.mxu0 %v1747
  %v1749 = vand.u32 %v1530, 4294901760
  %1750 = vmatprep.subr.mxu0 %v1749
  %v1751 = vand.u32 %v1529, 4294901760
  %1752 = vmatpush1.msra.mxu0 %v1751
  %v1753 = vand.u32 %v1546, 4294901760
  %1754 = vmatprep.subr.mxu0 %v1753
  %v1755 = vand.u32 %v1545, 4294901760
  %1756 = vmatpush1.msra.mxu0 %v1755
  %v1757 = vand.u32 %v1562, 4294901760
  %1758 = vmatprep.subr.mxu0 %v1757
  %v1759 = vand.u32 %v1561, 4294901760
  %1760 = vmatpush1.msra.mxu0 %v1759
  %v1761 = vand.u32 %v1578, 4294901760
  %1762 = vmatprep.subr.mxu0 %v1761
  %v1763 = vand.u32 %v1577, 4294901760
  %1764 = vmatpush1.msra.mxu0 %v1763
  %v1765 = vand.u32 %v1594, 4294901760
  %1766 = vmatprep.subr.mxu0 %v1765
  %v1767 = vand.u32 %v1593, 4294901760
  %1768 = vmatpush1.msra.mxu0 %v1767
  %v1769 = vand.u32 %v1610, 4294901760
  %1770 = vmatprep.subr.mxu0 %v1769
  %v1771 = vand.u32 %v1609, 4294901760
  %1772 = vmatpush1.msra.mxu0 %v1771
  %v1773 = vand.u32 %v1626, 4294901760
  %1774 = vmatprep.subr.mxu0 %v1773
  %v1775 = vand.u32 %v1625, 4294901760
  %1776 = vmatpush1.msra.mxu0 %v1775
  %v1777 = vand.u32 %v1642, 4294901760
  %1778 = vmatprep.subr.mxu0 %v1777
  %v1779 = vand.u32 %v1641, 4294901760
  %1780 = vmatpush1.msra.mxu0 %v1779
  %v1781 = vand.u32 %v1658, 4294901760
  %1782 = vmatprep.subr.mxu0 %v1781
  %v1783 = vand.u32 %v1657, 4294901760
  %1784 = vmatpush1.msra.mxu0 %v1783
  %v1785 = vand.u32 %v1674, 4294901760
  %1786 = vmatprep.subr.mxu0 %v1785
  %v1787 = vand.u32 %v1673, 4294901760
  %1788 = vmatpush1.msra.mxu0 %v1787
  %1789 = vmatprep.subr.mxu0 0.0
  %1790 = vmatpush1.msra.mxu0 0.0
  %1791 = vmatprep.subr.mxu0 0.0
  %1792 = vmatpush1.msra.mxu0 0.0
  %1793 = vmatprep.subr.mxu0 0.0
  %1794 = vmatpush1.msra.mxu0 0.0
  %1795 = vmatprep.subr.mxu0 0.0
  %1796 = vmatpush1.msra.mxu0 0.0
  %1797 = vmatprep.subr.mxu0 0.0
  %1798 = vmatpush1.msra.mxu0 0.0
  %1799 = vmatprep.subr.mxu0 0.0
  %1800 = vmatpush1.msra.mxu0 0.0
  %1801 = vmatprep.subr.mxu0 0.0
  %1802 = vmatpush1.msra.mxu0 0.0
  %1803 = vmatprep.subr.mxu0 0.0
  %1804 = vmatpush1.msra.mxu0 0.0
  %1805 = vmatprep.subr.mxu0 0.0
  %1806 = vmatpush1.msra.mxu0 0.0
  %1807 = vmatprep.subr.mxu0 0.0
  %1808 = vmatpush1.msra.mxu0 0.0
  %1809 = vmatprep.subr.mxu0 0.0
  %1810 = vmatpush1.msra.mxu0 0.0
  %1811 = vmatprep.subr.mxu0 0.0
  %1812 = vmatpush1.msra.mxu0 0.0
  %1813 = vmatprep.subr.mxu0 0.0
  %1814 = vmatpush1.msra.mxu0 0.0
  %1815 = vmatprep.subr.mxu0 0.0
  %1816 = vmatpush1.msra.mxu0 0.0
  %1817 = vmatprep.subr.mxu0 0.0
  %1818 = vmatpush1.msra.mxu0 0.0
  %1819 = vmatprep.subr.mxu0 0.0
  %1820 = vmatpush1.msra.mxu0 0.0
  %1821 = vmatprep.mubr.f32.mxu0 0.0
  %v1822 = vand.u32 %v1689, 4294901760
  %v1823 = vsub.f32 %v1689, %v1822
  %v1824 = vand.u32 %v1823, 4294901760
  %v1825 = vsub.f32 %v1823, %v1824
  %v1826 = vand.u32 %v1825, 4294901760
  %1827 = vmatmul.mubr.f32.gmra.mrb[0].mxu0 %v1826
  %v1828 = vpop.f32.mrb[0].mxu0
  %v1829 = vadd.f32 %v1711, %v1828
  %v1830 = vpop.f32.mrb[0].mxu0
  %v1831 = vadd.f32 %v1719, %v1830
  %1832 = vdwg.mxu0
  %v1833 = vand.u32 %v1434, 4294901760
  %v1834 = vsub.f32 %v1434, %v1833
  %v1835 = vand.u32 %v1834, 4294901760
  %v1836 = vsub.f32 %v1834, %v1835
  %v1837 = vand.u32 %v1836, 4294901760
  %1838 = vmatprep.subr.mxu0 %v1837
  %v1839 = vand.u32 %v1433, 4294901760
  %v1840 = vsub.f32 %v1433, %v1839
  %v1841 = vand.u32 %v1840, 4294901760
  %v1842 = vsub.f32 %v1840, %v1841
  %v1843 = vand.u32 %v1842, 4294901760
  %1844 = vmatpush1.msra.mxu0 %v1843
  %v1845 = vand.u32 %v1450, 4294901760
  %v1846 = vsub.f32 %v1450, %v1845
  %v1847 = vand.u32 %v1846, 4294901760
  %v1848 = vsub.f32 %v1846, %v1847
  %v1849 = vand.u32 %v1848, 4294901760
  %1850 = vmatprep.subr.mxu0 %v1849
  %v1851 = vand.u32 %v1449, 4294901760
  %v1852 = vsub.f32 %v1449, %v1851
  %v1853 = vand.u32 %v1852, 4294901760
  %v1854 = vsub.f32 %v1852, %v1853
  %v1855 = vand.u32 %v1854, 4294901760
  %1856 = vmatpush1.msra.mxu0 %v1855
  %v1857 = vand.u32 %v1466, 4294901760
  %v1858 = vsub.f32 %v1466, %v1857
  %v1859 = vand.u32 %v1858, 4294901760
  %v1860 = vsub.f32 %v1858, %v1859
  %v1861 = vand.u32 %v1860, 4294901760
  %1862 = vmatprep.subr.mxu0 %v1861
  %v1863 = vand.u32 %v1465, 4294901760
  %v1864 = vsub.f32 %v1465, %v1863
  %v1865 = vand.u32 %v1864, 4294901760
  %v1866 = vsub.f32 %v1864, %v1865
  %v1867 = vand.u32 %v1866, 4294901760
  %1868 = vmatpush1.msra.mxu0 %v1867
  %v1869 = vand.u32 %v1482, 4294901760
  %v1870 = vsub.f32 %v1482, %v1869
  %v1871 = vand.u32 %v1870, 4294901760
  %v1872 = vsub.f32 %v1870, %v1871
  %v1873 = vand.u32 %v1872, 4294901760
  %1874 = vmatprep.subr.mxu0 %v1873
  %v1875 = vand.u32 %v1481, 4294901760
  %v1876 = vsub.f32 %v1481, %v1875
  %v1877 = vand.u32 %v1876, 4294901760
  %v1878 = vsub.f32 %v1876, %v1877
  %v1879 = vand.u32 %v1878, 4294901760
  %1880 = vmatpush1.msra.mxu0 %v1879
  %v1881 = vand.u32 %v1498, 4294901760
  %v1882 = vsub.f32 %v1498, %v1881
  %v1883 = vand.u32 %v1882, 4294901760
  %v1884 = vsub.f32 %v1882, %v1883
  %v1885 = vand.u32 %v1884, 4294901760
  %1886 = vmatprep.subr.mxu0 %v1885
  %v1887 = vand.u32 %v1497, 4294901760
  %v1888 = vsub.f32 %v1497, %v1887
  %v1889 = vand.u32 %v1888, 4294901760
  %v1890 = vsub.f32 %v1888, %v1889
  %v1891 = vand.u32 %v1890, 4294901760
  %1892 = vmatpush1.msra.mxu0 %v1891
  %v1893 = vand.u32 %v1514, 4294901760
  %v1894 = vsub.f32 %v1514, %v1893
  %v1895 = vand.u32 %v1894, 4294901760
  %v1896 = vsub.f32 %v1894, %v1895
  %v1897 = vand.u32 %v1896, 4294901760
  %1898 = vmatprep.subr.mxu0 %v1897
  %v1899 = vand.u32 %v1513, 4294901760
  %v1900 = vsub.f32 %v1513, %v1899
  %v1901 = vand.u32 %v1900, 4294901760
  %v1902 = vsub.f32 %v1900, %v1901
  %v1903 = vand.u32 %v1902, 4294901760
  %1904 = vmatpush1.msra.mxu0 %v1903
  %v1905 = vand.u32 %v1530, 4294901760
  %v1906 = vsub.f32 %v1530, %v1905
  %v1907 = vand.u32 %v1906, 4294901760
  %v1908 = vsub.f32 %v1906, %v1907
  %v1909 = vand.u32 %v1908, 4294901760
  %1910 = vmatprep.subr.mxu0 %v1909
  %v1911 = vand.u32 %v1529, 4294901760
  %v1912 = vsub.f32 %v1529, %v1911
  %v1913 = vand.u32 %v1912, 4294901760
  %v1914 = vsub.f32 %v1912, %v1913
  %v1915 = vand.u32 %v1914, 4294901760
  %1916 = vmatpush1.msra.mxu0 %v1915
  %v1917 = vand.u32 %v1546, 4294901760
  %v1918 = vsub.f32 %v1546, %v1917
  %v1919 = vand.u32 %v1918, 4294901760
  %v1920 = vsub.f32 %v1918, %v1919
  %v1921 = vand.u32 %v1920, 4294901760
  %1922 = vmatprep.subr.mxu0 %v1921
  %v1923 = vand.u32 %v1545, 4294901760
  %v1924 = vsub.f32 %v1545, %v1923
  %v1925 = vand.u32 %v1924, 4294901760
  %v1926 = vsub.f32 %v1924, %v1925
  %v1927 = vand.u32 %v1926, 4294901760
  %1928 = vmatpush1.msra.mxu0 %v1927
  %v1929 = vand.u32 %v1562, 4294901760
  %v1930 = vsub.f32 %v1562, %v1929
  %v1931 = vand.u32 %v1930, 4294901760
  %v1932 = vsub.f32 %v1930, %v1931
  %v1933 = vand.u32 %v1932, 4294901760
  %1934 = vmatprep.subr.mxu0 %v1933
  %v1935 = vand.u32 %v1561, 4294901760
  %v1936 = vsub.f32 %v1561, %v1935
  %v1937 = vand.u32 %v1936, 4294901760
  %v1938 = vsub.f32 %v1936, %v1937
  %v1939 = vand.u32 %v1938, 4294901760
  %1940 = vmatpush1.msra.mxu0 %v1939
  %v1941 = vand.u32 %v1578, 4294901760
  %v1942 = vsub.f32 %v1578, %v1941
  %v1943 = vand.u32 %v1942, 4294901760
  %v1944 = vsub.f32 %v1942, %v1943
  %v1945 = vand.u32 %v1944, 4294901760
  %1946 = vmatprep.subr.mxu0 %v1945
  %v1947 = vand.u32 %v1577, 4294901760
  %v1948 = vsub.f32 %v1577, %v1947
  %v1949 = vand.u32 %v1948, 4294901760
  %v1950 = vsub.f32 %v1948, %v1949
  %v1951 = vand.u32 %v1950, 4294901760
  %1952 = vmatpush1.msra.mxu0 %v1951
  %v1953 = vand.u32 %v1594, 4294901760
  %v1954 = vsub.f32 %v1594, %v1953
  %v1955 = vand.u32 %v1954, 4294901760
  %v1956 = vsub.f32 %v1954, %v1955
  %v1957 = vand.u32 %v1956, 4294901760
  %1958 = vmatprep.subr.mxu0 %v1957
  %v1959 = vand.u32 %v1593, 4294901760
  %v1960 = vsub.f32 %v1593, %v1959
  %v1961 = vand.u32 %v1960, 4294901760
  %v1962 = vsub.f32 %v1960, %v1961
  %v1963 = vand.u32 %v1962, 4294901760
  %1964 = vmatpush1.msra.mxu0 %v1963
  %v1965 = vand.u32 %v1610, 4294901760
  %v1966 = vsub.f32 %v1610, %v1965
  %v1967 = vand.u32 %v1966, 4294901760
  %v1968 = vsub.f32 %v1966, %v1967
  %v1969 = vand.u32 %v1968, 4294901760
  %1970 = vmatprep.subr.mxu0 %v1969
  %v1971 = vand.u32 %v1609, 4294901760
  %v1972 = vsub.f32 %v1609, %v1971
  %v1973 = vand.u32 %v1972, 4294901760
  %v1974 = vsub.f32 %v1972, %v1973
  %v1975 = vand.u32 %v1974, 4294901760
  %1976 = vmatpush1.msra.mxu0 %v1975
  %v1977 = vand.u32 %v1626, 4294901760
  %v1978 = vsub.f32 %v1626, %v1977
  %v1979 = vand.u32 %v1978, 4294901760
  %v1980 = vsub.f32 %v1978, %v1979
  %v1981 = vand.u32 %v1980, 4294901760
  %1982 = vmatprep.subr.mxu0 %v1981
  %v1983 = vand.u32 %v1625, 4294901760
  %v1984 = vsub.f32 %v1625, %v1983
  %v1985 = vand.u32 %v1984, 4294901760
  %v1986 = vsub.f32 %v1984, %v1985
  %v1987 = vand.u32 %v1986, 4294901760
  %1988 = vmatpush1.msra.mxu0 %v1987
  %v1989 = vand.u32 %v1642, 4294901760
  %v1990 = vsub.f32 %v1642, %v1989
  %v1991 = vand.u32 %v1990, 4294901760
  %v1992 = vsub.f32 %v1990, %v1991
  %v1993 = vand.u32 %v1992, 4294901760
  %1994 = vmatprep.subr.mxu0 %v1993
  %v1995 = vand.u32 %v1641, 4294901760
  %v1996 = vsub.f32 %v1641, %v1995
  %v1997 = vand.u32 %v1996, 4294901760
  %v1998 = vsub.f32 %v1996, %v1997
  %v1999 = vand.u32 %v1998, 4294901760
  %2000 = vmatpush1.msra.mxu0 %v1999
  %v2001 = vand.u32 %v1658, 4294901760
  %v2002 = vsub.f32 %v1658, %v2001
  %v2003 = vand.u32 %v2002, 4294901760
  %v2004 = vsub.f32 %v2002, %v2003
  %v2005 = vand.u32 %v2004, 4294901760
  %2006 = vmatprep.subr.mxu0 %v2005
  %v2007 = vand.u32 %v1657, 4294901760
  %v2008 = vsub.f32 %v1657, %v2007
  %v2009 = vand.u32 %v2008, 4294901760
  %v2010 = vsub.f32 %v2008, %v2009
  %v2011 = vand.u32 %v2010, 4294901760
  %2012 = vmatpush1.msra.mxu0 %v2011
  %v2013 = vand.u32 %v1674, 4294901760
  %v2014 = vsub.f32 %v1674, %v2013
  %v2015 = vand.u32 %v2014, 4294901760
  %v2016 = vsub.f32 %v2014, %v2015
  %v2017 = vand.u32 %v2016, 4294901760
  %2018 = vmatprep.subr.mxu0 %v2017
  %v2019 = vand.u32 %v1673, 4294901760
  %v2020 = vsub.f32 %v1673, %v2019
  %v2021 = vand.u32 %v2020, 4294901760
  %v2022 = vsub.f32 %v2020, %v2021
  %v2023 = vand.u32 %v2022, 4294901760
  %2024 = vmatpush1.msra.mxu0 %v2023
  %2025 = vmatprep.subr.mxu0 0.0
  %2026 = vmatpush1.msra.mxu0 0.0
  %2027 = vmatprep.subr.mxu0 0.0
  %2028 = vmatpush1.msra.mxu0 0.0
  %2029 = vmatprep.subr.mxu0 0.0
  %2030 = vmatpush1.msra.mxu0 0.0
  %2031 = vmatprep.subr.mxu0 0.0
  %2032 = vmatpush1.msra.mxu0 0.0
  %2033 = vmatprep.subr.mxu0 0.0
  %2034 = vmatpush1.msra.mxu0 0.0
  %2035 = vmatprep.subr.mxu0 0.0
  %2036 = vmatpush1.msra.mxu0 0.0
  %2037 = vmatprep.subr.mxu0 0.0
  %2038 = vmatpush1.msra.mxu0 0.0
  %2039 = vmatprep.subr.mxu0 0.0
  %2040 = vmatpush1.msra.mxu0 0.0
  %2041 = vmatprep.subr.mxu0 0.0
  %2042 = vmatpush1.msra.mxu0 0.0
  %2043 = vmatprep.subr.mxu0 0.0
  %2044 = vmatpush1.msra.mxu0 0.0
  %2045 = vmatprep.subr.mxu0 0.0
  %2046 = vmatpush1.msra.mxu0 0.0
  %2047 = vmatprep.subr.mxu0 0.0
  %2048 = vmatpush1.msra.mxu0 0.0
  %2049 = vmatprep.subr.mxu0 0.0
  %2050 = vmatpush1.msra.mxu0 0.0
  %2051 = vmatprep.subr.mxu0 0.0
  %2052 = vmatpush1.msra.mxu0 0.0
  %2053 = vmatprep.subr.mxu0 0.0
  %2054 = vmatpush1.msra.mxu0 0.0
  %2055 = vmatprep.subr.mxu0 0.0
  %2056 = vmatpush1.msra.mxu0 0.0
  %2057 = vmatprep.mubr.f32.mxu0 0.0
  %v2058 = vand.u32 %v1689, 4294901760
  %2059 = vmatmul.mubr.f32.gmra.mrb[0].mxu0 %v2058
  %v2060 = vpop.f32.mrb[0].mxu0
  %v2061 = vadd.f32 %v1829, %v2060
  %v2062 = vpop.f32.mrb[0].mxu0
  %v2063 = vadd.f32 %v1831, %v2062
  %2064 = vdwg.mxu0
  %v2065 = vand.u32 %v1434, 4294901760
  %v2066 = vsub.f32 %v1434, %v2065
  %2067 = vmatprep.subr.mxu0 %v2066
  %v2068 = vand.u32 %v1433, 4294901760
  %v2069 = vsub.f32 %v1433, %v2068
  %2070 = vmatpush1.msra.mxu0 %v2069
  %v2071 = vand.u32 %v1450, 4294901760
  %v2072 = vsub.f32 %v1450, %v2071
  %2073 = vmatprep.subr.mxu0 %v2072
  %v2074 = vand.u32 %v1449, 4294901760
  %v2075 = vsub.f32 %v1449, %v2074
  %2076 = vmatpush1.msra.mxu0 %v2075
  %v2077 = vand.u32 %v1466, 4294901760
  %v2078 = vsub.f32 %v1466, %v2077
  %2079 = vmatprep.subr.mxu0 %v2078
  %v2080 = vand.u32 %v1465, 4294901760
  %v2081 = vsub.f32 %v1465, %v2080
  %2082 = vmatpush1.msra.mxu0 %v2081
  %v2083 = vand.u32 %v1482, 4294901760
  %v2084 = vsub.f32 %v1482, %v2083
  %2085 = vmatprep.subr.mxu0 %v2084
  %v2086 = vand.u32 %v1481, 4294901760
  %v2087 = vsub.f32 %v1481, %v2086
  %2088 = vmatpush1.msra.mxu0 %v2087
  %v2089 = vand.u32 %v1498, 4294901760
  %v2090 = vsub.f32 %v1498, %v2089
  %2091 = vmatprep.subr.mxu0 %v2090
  %v2092 = vand.u32 %v1497, 4294901760
  %v2093 = vsub.f32 %v1497, %v2092
  %2094 = vmatpush1.msra.mxu0 %v2093
  %v2095 = vand.u32 %v1514, 4294901760
  %v2096 = vsub.f32 %v1514, %v2095
  %2097 = vmatprep.subr.mxu0 %v2096
  %v2098 = vand.u32 %v1513, 4294901760
  %v2099 = vsub.f32 %v1513, %v2098
  %2100 = vmatpush1.msra.mxu0 %v2099
  %v2101 = vand.u32 %v1530, 4294901760
  %v2102 = vsub.f32 %v1530, %v2101
  %2103 = vmatprep.subr.mxu0 %v2102
  %v2104 = vand.u32 %v1529, 4294901760
  %v2105 = vsub.f32 %v1529, %v2104
  %2106 = vmatpush1.msra.mxu0 %v2105
  %v2107 = vand.u32 %v1546, 4294901760
  %v2108 = vsub.f32 %v1546, %v2107
  %2109 = vmatprep.subr.mxu0 %v2108
  %v2110 = vand.u32 %v1545, 4294901760
  %v2111 = vsub.f32 %v1545, %v2110
  %2112 = vmatpush1.msra.mxu0 %v2111
  %v2113 = vand.u32 %v1562, 4294901760
  %v2114 = vsub.f32 %v1562, %v2113
  %2115 = vmatprep.subr.mxu0 %v2114
  %v2116 = vand.u32 %v1561, 4294901760
  %v2117 = vsub.f32 %v1561, %v2116
  %2118 = vmatpush1.msra.mxu0 %v2117
  %v2119 = vand.u32 %v1578, 4294901760
  %v2120 = vsub.f32 %v1578, %v2119
  %2121 = vmatprep.subr.mxu0 %v2120
  %v2122 = vand.u32 %v1577, 4294901760
  %v2123 = vsub.f32 %v1577, %v2122
  %2124 = vmatpush1.msra.mxu0 %v2123
  %v2125 = vand.u32 %v1594, 4294901760
  %v2126 = vsub.f32 %v1594, %v2125
  %2127 = vmatprep.subr.mxu0 %v2126
  %v2128 = vand.u32 %v1593, 4294901760
  %v2129 = vsub.f32 %v1593, %v2128
  %2130 = vmatpush1.msra.mxu0 %v2129
  %v2131 = vand.u32 %v1610, 4294901760
  %v2132 = vsub.f32 %v1610, %v2131
  %2133 = vmatprep.subr.mxu0 %v2132
  %v2134 = vand.u32 %v1609, 4294901760
  %v2135 = vsub.f32 %v1609, %v2134
  %2136 = vmatpush1.msra.mxu0 %v2135
  %v2137 = vand.u32 %v1626, 4294901760
  %v2138 = vsub.f32 %v1626, %v2137
  %2139 = vmatprep.subr.mxu0 %v2138
  %v2140 = vand.u32 %v1625, 4294901760
  %v2141 = vsub.f32 %v1625, %v2140
  %2142 = vmatpush1.msra.mxu0 %v2141
  %v2143 = vand.u32 %v1642, 4294901760
  %v2144 = vsub.f32 %v1642, %v2143
  %2145 = vmatprep.subr.mxu0 %v2144
  %v2146 = vand.u32 %v1641, 4294901760
  %v2147 = vsub.f32 %v1641, %v2146
  %2148 = vmatpush1.msra.mxu0 %v2147
  %v2149 = vand.u32 %v1658, 4294901760
  %v2150 = vsub.f32 %v1658, %v2149
  %2151 = vmatprep.subr.mxu0 %v2150
  %v2152 = vand.u32 %v1657, 4294901760
  %v2153 = vsub.f32 %v1657, %v2152
  %2154 = vmatpush1.msra.mxu0 %v2153
  %v2155 = vand.u32 %v1674, 4294901760
  %v2156 = vsub.f32 %v1674, %v2155
  %2157 = vmatprep.subr.mxu0 %v2156
  %v2158 = vand.u32 %v1673, 4294901760
  %v2159 = vsub.f32 %v1673, %v2158
  %2160 = vmatpush1.msra.mxu0 %v2159
  %2161 = vmatprep.subr.mxu0 0.0
  %2162 = vmatpush1.msra.mxu0 0.0
  %2163 = vmatprep.subr.mxu0 0.0
  %2164 = vmatpush1.msra.mxu0 0.0
  %2165 = vmatprep.subr.mxu0 0.0
  %2166 = vmatpush1.msra.mxu0 0.0
  %2167 = vmatprep.subr.mxu0 0.0
  %2168 = vmatpush1.msra.mxu0 0.0
  %2169 = vmatprep.subr.mxu0 0.0
  %2170 = vmatpush1.msra.mxu0 0.0
  %2171 = vmatprep.subr.mxu0 0.0
  %2172 = vmatpush1.msra.mxu0 0.0
  %2173 = vmatprep.subr.mxu0 0.0
  %2174 = vmatpush1.msra.mxu0 0.0
  %2175 = vmatprep.subr.mxu0 0.0
  %2176 = vmatpush1.msra.mxu0 0.0
  %2177 = vmatprep.subr.mxu0 0.0
  %2178 = vmatpush1.msra.mxu0 0.0
  %2179 = vmatprep.subr.mxu0 0.0
  %2180 = vmatpush1.msra.mxu0 0.0
  %2181 = vmatprep.subr.mxu0 0.0
  %2182 = vmatpush1.msra.mxu0 0.0
  %2183 = vmatprep.subr.mxu0 0.0
  %2184 = vmatpush1.msra.mxu0 0.0
  %2185 = vmatprep.subr.mxu0 0.0
  %2186 = vmatpush1.msra.mxu0 0.0
  %2187 = vmatprep.subr.mxu0 0.0
  %2188 = vmatpush1.msra.mxu0 0.0
  %2189 = vmatprep.subr.mxu0 0.0
  %2190 = vmatpush1.msra.mxu0 0.0
  %2191 = vmatprep.subr.mxu0 0.0
  %2192 = vmatpush1.msra.mxu0 0.0
  %2193 = vmatprep.mubr.f32.mxu0 0.0
  %v2194 = vand.u32 %v1689, 4294901760
  %v2195 = vsub.f32 %v1689, %v2194
  %2196 = vmatmul.mubr.f32.gmra.mrb[0].mxu0 %v2195
  %v2197 = vpop.f32.mrb[0].mxu0
  %v2198 = vadd.f32 %v2061, %v2197
  %v2199 = vpop.f32.mrb[0].mxu0
  %v2200 = vadd.f32 %v2063, %v2199
  %2201 = vdwg.mxu0
  %v2202 = vand.u32 %v1434, 4294901760
  %2203 = vmatprep.subr.mxu0 %v2202
  %v2204 = vand.u32 %v1433, 4294901760
  %2205 = vmatpush1.msra.mxu0 %v2204
  %v2206 = vand.u32 %v1450, 4294901760
  %2207 = vmatprep.subr.mxu0 %v2206
  %v2208 = vand.u32 %v1449, 4294901760
  %2209 = vmatpush1.msra.mxu0 %v2208
  %v2210 = vand.u32 %v1466, 4294901760
  %2211 = vmatprep.subr.mxu0 %v2210
  %v2212 = vand.u32 %v1465, 4294901760
  %2213 = vmatpush1.msra.mxu0 %v2212
  %v2214 = vand.u32 %v1482, 4294901760
  %2215 = vmatprep.subr.mxu0 %v2214
  %v2216 = vand.u32 %v1481, 4294901760
  %2217 = vmatpush1.msra.mxu0 %v2216
  %v2218 = vand.u32 %v1498, 4294901760
  %2219 = vmatprep.subr.mxu0 %v2218
  %v2220 = vand.u32 %v1497, 4294901760
  %2221 = vmatpush1.msra.mxu0 %v2220
  %v2222 = vand.u32 %v1514, 4294901760
  %2223 = vmatprep.subr.mxu0 %v2222
  %v2224 = vand.u32 %v1513, 4294901760
  %2225 = vmatpush1.msra.mxu0 %v2224
  %v2226 = vand.u32 %v1530, 4294901760
  %2227 = vmatprep.subr.mxu0 %v2226
  %v2228 = vand.u32 %v1529, 4294901760
  %2229 = vmatpush1.msra.mxu0 %v2228
  %v2230 = vand.u32 %v1546, 4294901760
  %2231 = vmatprep.subr.mxu0 %v2230
  %v2232 = vand.u32 %v1545, 4294901760
  %2233 = vmatpush1.msra.mxu0 %v2232
  %v2234 = vand.u32 %v1562, 4294901760
  %2235 = vmatprep.subr.mxu0 %v2234
  %v2236 = vand.u32 %v1561, 4294901760
  %2237 = vmatpush1.msra.mxu0 %v2236
  %v2238 = vand.u32 %v1578, 4294901760
  %2239 = vmatprep.subr.mxu0 %v2238
  %v2240 = vand.u32 %v1577, 4294901760
  %2241 = vmatpush1.msra.mxu0 %v2240
  %v2242 = vand.u32 %v1594, 4294901760
  %2243 = vmatprep.subr.mxu0 %v2242
  %v2244 = vand.u32 %v1593, 4294901760
  %2245 = vmatpush1.msra.mxu0 %v2244
  %v2246 = vand.u32 %v1610, 4294901760
  %2247 = vmatprep.subr.mxu0 %v2246
  %v2248 = vand.u32 %v1609, 4294901760
  %2249 = vmatpush1.msra.mxu0 %v2248
  %v2250 = vand.u32 %v1626, 4294901760
  %2251 = vmatprep.subr.mxu0 %v2250
  %v2252 = vand.u32 %v1625, 4294901760
  %2253 = vmatpush1.msra.mxu0 %v2252
  %v2254 = vand.u32 %v1642, 4294901760
  %2255 = vmatprep.subr.mxu0 %v2254
  %v2256 = vand.u32 %v1641, 4294901760
  %2257 = vmatpush1.msra.mxu0 %v2256
  %v2258 = vand.u32 %v1658, 4294901760
  %2259 = vmatprep.subr.mxu0 %v2258
  %v2260 = vand.u32 %v1657, 4294901760
  %2261 = vmatpush1.msra.mxu0 %v2260
  %v2262 = vand.u32 %v1674, 4294901760
  %2263 = vmatprep.subr.mxu0 %v2262
  %v2264 = vand.u32 %v1673, 4294901760
  %2265 = vmatpush1.msra.mxu0 %v2264
  %2266 = vmatprep.subr.mxu0 0.0
  %2267 = vmatpush1.msra.mxu0 0.0
  %2268 = vmatprep.subr.mxu0 0.0
  %2269 = vmatpush1.msra.mxu0 0.0
  %2270 = vmatprep.subr.mxu0 0.0
  %2271 = vmatpush1.msra.mxu0 0.0
  %2272 = vmatprep.subr.mxu0 0.0
  %2273 = vmatpush1.msra.mxu0 0.0
  %2274 = vmatprep.subr.mxu0 0.0
  %2275 = vmatpush1.msra.mxu0 0.0
  %2276 = vmatprep.subr.mxu0 0.0
  %2277 = vmatpush1.msra.mxu0 0.0
  %2278 = vmatprep.subr.mxu0 0.0
  %2279 = vmatpush1.msra.mxu0 0.0
  %2280 = vmatprep.subr.mxu0 0.0
  %2281 = vmatpush1.msra.mxu0 0.0
  %2282 = vmatprep.subr.mxu0 0.0
  %2283 = vmatpush1.msra.mxu0 0.0
  %2284 = vmatprep.subr.mxu0 0.0
  %2285 = vmatpush1.msra.mxu0 0.0
  %2286 = vmatprep.subr.mxu0 0.0
  %2287 = vmatpush1.msra.mxu0 0.0
  %2288 = vmatprep.subr.mxu0 0.0
  %2289 = vmatpush1.msra.mxu0 0.0
  %2290 = vmatprep.subr.mxu0 0.0
  %2291 = vmatpush1.msra.mxu0 0.0
  %2292 = vmatprep.subr.mxu0 0.0
  %2293 = vmatpush1.msra.mxu0 0.0
  %2294 = vmatprep.subr.mxu0 0.0
  %2295 = vmatpush1.msra.mxu0 0.0
  %2296 = vmatprep.subr.mxu0 0.0
  %2297 = vmatpush1.msra.mxu0 0.0
  %2298 = vmatprep.mubr.f32.mxu0 0.0
  %v2299 = vand.u32 %v1689, 4294901760
  %v2300 = vsub.f32 %v1689, %v2299
  %v2301 = vand.u32 %v2300, 4294901760
  %2302 = vmatmul.mubr.f32.gmra.mrb[0].mxu0 %v2301
  %v2303 = vpop.f32.mrb[0].mxu0
  %v2304 = vadd.f32 %v2198, %v2303
  %v2305 = vpop.f32.mrb[0].mxu0
  %v2306 = vadd.f32 %v2200, %v2305
  %2307 = vdwg.mxu0
  %v2308 = vand.u32 %v1434, 4294901760
  %v2309 = vsub.f32 %v1434, %v2308
  %v2310 = vand.u32 %v2309, 4294901760
  %2311 = vmatprep.subr.mxu0 %v2310
  %v2312 = vand.u32 %v1433, 4294901760
  %v2313 = vsub.f32 %v1433, %v2312
  %v2314 = vand.u32 %v2313, 4294901760
  %2315 = vmatpush1.msra.mxu0 %v2314
  %v2316 = vand.u32 %v1450, 4294901760
  %v2317 = vsub.f32 %v1450, %v2316
  %v2318 = vand.u32 %v2317, 4294901760
  %2319 = vmatprep.subr.mxu0 %v2318
  %v2320 = vand.u32 %v1449, 4294901760
  %v2321 = vsub.f32 %v1449, %v2320
  %v2322 = vand.u32 %v2321, 4294901760
  %2323 = vmatpush1.msra.mxu0 %v2322
  %v2324 = vand.u32 %v1466, 4294901760
  %v2325 = vsub.f32 %v1466, %v2324
  %v2326 = vand.u32 %v2325, 4294901760
  %2327 = vmatprep.subr.mxu0 %v2326
  %v2328 = vand.u32 %v1465, 4294901760
  %v2329 = vsub.f32 %v1465, %v2328
  %v2330 = vand.u32 %v2329, 4294901760
  %2331 = vmatpush1.msra.mxu0 %v2330
  %v2332 = vand.u32 %v1482, 4294901760
  %v2333 = vsub.f32 %v1482, %v2332
  %v2334 = vand.u32 %v2333, 4294901760
  %2335 = vmatprep.subr.mxu0 %v2334
  %v2336 = vand.u32 %v1481, 4294901760
  %v2337 = vsub.f32 %v1481, %v2336
  %v2338 = vand.u32 %v2337, 4294901760
  %2339 = vmatpush1.msra.mxu0 %v2338
  %v2340 = vand.u32 %v1498, 4294901760
  %v2341 = vsub.f32 %v1498, %v2340
  %v2342 = vand.u32 %v2341, 4294901760
  %2343 = vmatprep.subr.mxu0 %v2342
  %v2344 = vand.u32 %v1497, 4294901760
  %v2345 = vsub.f32 %v1497, %v2344
  %v2346 = vand.u32 %v2345, 4294901760
  %2347 = vmatpush1.msra.mxu0 %v2346
  %v2348 = vand.u32 %v1514, 4294901760
  %v2349 = vsub.f32 %v1514, %v2348
  %v2350 = vand.u32 %v2349, 4294901760
  %2351 = vmatprep.subr.mxu0 %v2350
  %v2352 = vand.u32 %v1513, 4294901760
  %v2353 = vsub.f32 %v1513, %v2352
  %v2354 = vand.u32 %v2353, 4294901760
  %2355 = vmatpush1.msra.mxu0 %v2354
  %v2356 = vand.u32 %v1530, 4294901760
  %v2357 = vsub.f32 %v1530, %v2356
  %v2358 = vand.u32 %v2357, 4294901760
  %2359 = vmatprep.subr.mxu0 %v2358
  %v2360 = vand.u32 %v1529, 4294901760
  %v2361 = vsub.f32 %v1529, %v2360
  %v2362 = vand.u32 %v2361, 4294901760
  %2363 = vmatpush1.msra.mxu0 %v2362
  %v2364 = vand.u32 %v1546, 4294901760
  %v2365 = vsub.f32 %v1546, %v2364
  %v2366 = vand.u32 %v2365, 4294901760
  %2367 = vmatprep.subr.mxu0 %v2366
  %v2368 = vand.u32 %v1545, 4294901760
  %v2369 = vsub.f32 %v1545, %v2368
  %v2370 = vand.u32 %v2369, 4294901760
  %2371 = vmatpush1.msra.mxu0 %v2370
  %v2372 = vand.u32 %v1562, 4294901760
  %v2373 = vsub.f32 %v1562, %v2372
  %v2374 = vand.u32 %v2373, 4294901760
  %2375 = vmatprep.subr.mxu0 %v2374
  %v2376 = vand.u32 %v1561, 4294901760
  %v2377 = vsub.f32 %v1561, %v2376
  %v2378 = vand.u32 %v2377, 4294901760
  %2379 = vmatpush1.msra.mxu0 %v2378
  %v2380 = vand.u32 %v1578, 4294901760
  %v2381 = vsub.f32 %v1578, %v2380
  %v2382 = vand.u32 %v2381, 4294901760
  %2383 = vmatprep.subr.mxu0 %v2382
  %v2384 = vand.u32 %v1577, 4294901760
  %v2385 = vsub.f32 %v1577, %v2384
  %v2386 = vand.u32 %v2385, 4294901760
  %2387 = vmatpush1.msra.mxu0 %v2386
  %v2388 = vand.u32 %v1594, 4294901760
  %v2389 = vsub.f32 %v1594, %v2388
  %v2390 = vand.u32 %v2389, 4294901760
  %2391 = vmatprep.subr.mxu0 %v2390
  %v2392 = vand.u32 %v1593, 4294901760
  %v2393 = vsub.f32 %v1593, %v2392
  %v2394 = vand.u32 %v2393, 4294901760
  %2395 = vmatpush1.msra.mxu0 %v2394
  %v2396 = vand.u32 %v1610, 4294901760
  %v2397 = vsub.f32 %v1610, %v2396
  %v2398 = vand.u32 %v2397, 4294901760
  %2399 = vmatprep.subr.mxu0 %v2398
  %v2400 = vand.u32 %v1609, 4294901760
  %v2401 = vsub.f32 %v1609, %v2400
  %v2402 = vand.u32 %v2401, 4294901760
  %2403 = vmatpush1.msra.mxu0 %v2402
  %v2404 = vand.u32 %v1626, 4294901760
  %v2405 = vsub.f32 %v1626, %v2404
  %v2406 = vand.u32 %v2405, 4294901760
  %2407 = vmatprep.subr.mxu0 %v2406
  %v2408 = vand.u32 %v1625, 4294901760
  %v2409 = vsub.f32 %v1625, %v2408
  %v2410 = vand.u32 %v2409, 4294901760
  %2411 = vmatpush1.msra.mxu0 %v2410
  %v2412 = vand.u32 %v1642, 4294901760
  %v2413 = vsub.f32 %v1642, %v2412
  %v2414 = vand.u32 %v2413, 4294901760
  %2415 = vmatprep.subr.mxu0 %v2414
  %v2416 = vand.u32 %v1641, 4294901760
  %v2417 = vsub.f32 %v1641, %v2416
  %v2418 = vand.u32 %v2417, 4294901760
  %2419 = vmatpush1.msra.mxu0 %v2418
  %v2420 = vand.u32 %v1658, 4294901760
  %v2421 = vsub.f32 %v1658, %v2420
  %v2422 = vand.u32 %v2421, 4294901760
  %2423 = vmatprep.subr.mxu0 %v2422
  %v2424 = vand.u32 %v1657, 4294901760
  %v2425 = vsub.f32 %v1657, %v2424
  %v2426 = vand.u32 %v2425, 4294901760
  %2427 = vmatpush1.msra.mxu0 %v2426
  %v2428 = vand.u32 %v1674, 4294901760
  %v2429 = vsub.f32 %v1674, %v2428
  %v2430 = vand.u32 %v2429, 4294901760
  %2431 = vmatprep.subr.mxu0 %v2430
  %v2432 = vand.u32 %v1673, 4294901760
  %v2433 = vsub.f32 %v1673, %v2432
  %v2434 = vand.u32 %v2433, 4294901760
  %2435 = vmatpush1.msra.mxu0 %v2434
  %2436 = vmatprep.subr.mxu0 0.0
  %2437 = vmatpush1.msra.mxu0 0.0
  %2438 = vmatprep.subr.mxu0 0.0
  %2439 = vmatpush1.msra.mxu0 0.0
  %2440 = vmatprep.subr.mxu0 0.0
  %2441 = vmatpush1.msra.mxu0 0.0
  %2442 = vmatprep.subr.mxu0 0.0
  %2443 = vmatpush1.msra.mxu0 0.0
  %2444 = vmatprep.subr.mxu0 0.0
  %2445 = vmatpush1.msra.mxu0 0.0
  %2446 = vmatprep.subr.mxu0 0.0
  %2447 = vmatpush1.msra.mxu0 0.0
  %2448 = vmatprep.subr.mxu0 0.0
  %2449 = vmatpush1.msra.mxu0 0.0
  %2450 = vmatprep.subr.mxu0 0.0
  %2451 = vmatpush1.msra.mxu0 0.0
  %2452 = vmatprep.subr.mxu0 0.0
  %2453 = vmatpush1.msra.mxu0 0.0
  %2454 = vmatprep.subr.mxu0 0.0
  %2455 = vmatpush1.msra.mxu0 0.0
  %2456 = vmatprep.subr.mxu0 0.0
  %2457 = vmatpush1.msra.mxu0 0.0
  %2458 = vmatprep.subr.mxu0 0.0
  %2459 = vmatpush1.msra.mxu0 0.0
  %2460 = vmatprep.subr.mxu0 0.0
  %2461 = vmatpush1.msra.mxu0 0.0
  %2462 = vmatprep.subr.mxu0 0.0
  %2463 = vmatpush1.msra.mxu0 0.0
  %2464 = vmatprep.subr.mxu0 0.0
  %2465 = vmatpush1.msra.mxu0 0.0
  %2466 = vmatprep.subr.mxu0 0.0
  %2467 = vmatpush1.msra.mxu0 0.0
  %2468 = vmatprep.mubr.f32.mxu0 0.0
  %v2469 = vand.u32 %v1689, 4294901760
  %2470 = vmatmul.mubr.f32.gmra.mrb[0].mxu0 %v2469
  %v2471 = vpop.f32.mrb[0].mxu0
  %v2472 = vadd.f32 %v2304, %v2471
  %v2473 = vpop.f32.mrb[0].mxu0
  %v2474 = vadd.f32 %v2306, %v2473
  %2475 = vdwg.mxu0
  %v2476 = vand.u32 %v1434, 4294901760
  %2477 = vmatprep.subr.mxu0 %v2476
  %v2478 = vand.u32 %v1433, 4294901760
  %2479 = vmatpush1.msra.mxu0 %v2478
  %v2480 = vand.u32 %v1450, 4294901760
  %2481 = vmatprep.subr.mxu0 %v2480
  %v2482 = vand.u32 %v1449, 4294901760
  %2483 = vmatpush1.msra.mxu0 %v2482
  %v2484 = vand.u32 %v1466, 4294901760
  %2485 = vmatprep.subr.mxu0 %v2484
  %v2486 = vand.u32 %v1465, 4294901760
  %2487 = vmatpush1.msra.mxu0 %v2486
  %v2488 = vand.u32 %v1482, 4294901760
  %2489 = vmatprep.subr.mxu0 %v2488
  %v2490 = vand.u32 %v1481, 4294901760
  %2491 = vmatpush1.msra.mxu0 %v2490
  %v2492 = vand.u32 %v1498, 4294901760
  %2493 = vmatprep.subr.mxu0 %v2492
  %v2494 = vand.u32 %v1497, 4294901760
  %2495 = vmatpush1.msra.mxu0 %v2494
  %v2496 = vand.u32 %v1514, 4294901760
  %2497 = vmatprep.subr.mxu0 %v2496
  %v2498 = vand.u32 %v1513, 4294901760
  %2499 = vmatpush1.msra.mxu0 %v2498
  %v2500 = vand.u32 %v1530, 4294901760
  %2501 = vmatprep.subr.mxu0 %v2500
  %v2502 = vand.u32 %v1529, 4294901760
  %2503 = vmatpush1.msra.mxu0 %v2502
  %v2504 = vand.u32 %v1546, 4294901760
  %2505 = vmatprep.subr.mxu0 %v2504
  %v2506 = vand.u32 %v1545, 4294901760
  %2507 = vmatpush1.msra.mxu0 %v2506
  %v2508 = vand.u32 %v1562, 4294901760
  %2509 = vmatprep.subr.mxu0 %v2508
  %v2510 = vand.u32 %v1561, 4294901760
  %2511 = vmatpush1.msra.mxu0 %v2510
  %v2512 = vand.u32 %v1578, 4294901760
  %2513 = vmatprep.subr.mxu0 %v2512
  %v2514 = vand.u32 %v1577, 4294901760
  %2515 = vmatpush1.msra.mxu0 %v2514
  %v2516 = vand.u32 %v1594, 4294901760
  %2517 = vmatprep.subr.mxu0 %v2516
  %v2518 = vand.u32 %v1593, 4294901760
  %2519 = vmatpush1.msra.mxu0 %v2518
  %v2520 = vand.u32 %v1610, 4294901760
  %2521 = vmatprep.subr.mxu0 %v2520
  %v2522 = vand.u32 %v1609, 4294901760
  %2523 = vmatpush1.msra.mxu0 %v2522
  %v2524 = vand.u32 %v1626, 4294901760
  %2525 = vmatprep.subr.mxu0 %v2524
  %v2526 = vand.u32 %v1625, 4294901760
  %2527 = vmatpush1.msra.mxu0 %v2526
  %v2528 = vand.u32 %v1642, 4294901760
  %2529 = vmatprep.subr.mxu0 %v2528
  %v2530 = vand.u32 %v1641, 4294901760
  %2531 = vmatpush1.msra.mxu0 %v2530
  %v2532 = vand.u32 %v1658, 4294901760
  %2533 = vmatprep.subr.mxu0 %v2532
  %v2534 = vand.u32 %v1657, 4294901760
  %2535 = vmatpush1.msra.mxu0 %v2534
  %v2536 = vand.u32 %v1674, 4294901760
  %2537 = vmatprep.subr.mxu0 %v2536
  %v2538 = vand.u32 %v1673, 4294901760
  %2539 = vmatpush1.msra.mxu0 %v2538
  %2540 = vmatprep.subr.mxu0 0.0
  %2541 = vmatpush1.msra.mxu0 0.0
  %2542 = vmatprep.subr.mxu0 0.0
  %2543 = vmatpush1.msra.mxu0 0.0
  %2544 = vmatprep.subr.mxu0 0.0
  %2545 = vmatpush1.msra.mxu0 0.0
  %2546 = vmatprep.subr.mxu0 0.0
  %2547 = vmatpush1.msra.mxu0 0.0
  %2548 = vmatprep.subr.mxu0 0.0
  %2549 = vmatpush1.msra.mxu0 0.0
  %2550 = vmatprep.subr.mxu0 0.0
  %2551 = vmatpush1.msra.mxu0 0.0
  %2552 = vmatprep.subr.mxu0 0.0
  %2553 = vmatpush1.msra.mxu0 0.0
  %2554 = vmatprep.subr.mxu0 0.0
  %2555 = vmatpush1.msra.mxu0 0.0
  %2556 = vmatprep.subr.mxu0 0.0
  %2557 = vmatpush1.msra.mxu0 0.0
  %2558 = vmatprep.subr.mxu0 0.0
  %2559 = vmatpush1.msra.mxu0 0.0
  %2560 = vmatprep.subr.mxu0 0.0
  %2561 = vmatpush1.msra.mxu0 0.0
  %2562 = vmatprep.subr.mxu0 0.0
  %2563 = vmatpush1.msra.mxu0 0.0
  %2564 = vmatprep.subr.mxu0 0.0
  %2565 = vmatpush1.msra.mxu0 0.0
  %2566 = vmatprep.subr.mxu0 0.0
  %2567 = vmatpush1.msra.mxu0 0.0
  %2568 = vmatprep.subr.mxu0 0.0
  %2569 = vmatpush1.msra.mxu0 0.0
  %2570 = vmatprep.subr.mxu0 0.0
  %2571 = vmatpush1.msra.mxu0 0.0
  %2572 = vmatprep.mubr.f32.mxu0 0.0
  %v2573 = vand.u32 %v1689, 4294901760
  %2574 = vmatmul.mubr.f32.gmra.mrb[0].mxu0 %v2573
  %v2575 = vpop.f32.mrb[0].mxu0
  %v2576 = vadd.f32 %v2472, %v2575
  %v2577 = vpop.f32.mrb[0].mxu0
  %v2578 = vadd.f32 %v2474, %v2577
  %2579 = vdwg.mxu0
  %v2580 = vand.u32 %v1436, 4294901760
  %2581 = vmatprep.subr.mxu0 %v2580
  %v2582 = vand.u32 %v1435, 4294901760
  %2583 = vmatpush1.msra.mxu0 %v2582
  %v2584 = vand.u32 %v1452, 4294901760
  %2585 = vmatprep.subr.mxu0 %v2584
  %v2586 = vand.u32 %v1451, 4294901760
  %2587 = vmatpush1.msra.mxu0 %v2586
  %v2588 = vand.u32 %v1468, 4294901760
  %2589 = vmatprep.subr.mxu0 %v2588
  %v2590 = vand.u32 %v1467, 4294901760
  %2591 = vmatpush1.msra.mxu0 %v2590
  %v2592 = vand.u32 %v1484, 4294901760
  %2593 = vmatprep.subr.mxu0 %v2592
  %v2594 = vand.u32 %v1483, 4294901760
  %2595 = vmatpush1.msra.mxu0 %v2594
  %v2596 = vand.u32 %v1500, 4294901760
  %2597 = vmatprep.subr.mxu0 %v2596
  %v2598 = vand.u32 %v1499, 4294901760
  %2599 = vmatpush1.msra.mxu0 %v2598
  %v2600 = vand.u32 %v1516, 4294901760
  %2601 = vmatprep.subr.mxu0 %v2600
  %v2602 = vand.u32 %v1515, 4294901760
  %2603 = vmatpush1.msra.mxu0 %v2602
  %v2604 = vand.u32 %v1532, 4294901760
  %2605 = vmatprep.subr.mxu0 %v2604
  %v2606 = vand.u32 %v1531, 4294901760
  %2607 = vmatpush1.msra.mxu0 %v2606
  %v2608 = vand.u32 %v1548, 4294901760
  %2609 = vmatprep.subr.mxu0 %v2608
  %v2610 = vand.u32 %v1547, 4294901760
  %2611 = vmatpush1.msra.mxu0 %v2610
  %v2612 = vand.u32 %v1564, 4294901760
  %2613 = vmatprep.subr.mxu0 %v2612
  %v2614 = vand.u32 %v1563, 4294901760
  %2615 = vmatpush1.msra.mxu0 %v2614
  %v2616 = vand.u32 %v1580, 4294901760
  %2617 = vmatprep.subr.mxu0 %v2616
  %v2618 = vand.u32 %v1579, 4294901760
  %2619 = vmatpush1.msra.mxu0 %v2618
  %v2620 = vand.u32 %v1596, 4294901760
  %2621 = vmatprep.subr.mxu0 %v2620
  %v2622 = vand.u32 %v1595, 4294901760
  %2623 = vmatpush1.msra.mxu0 %v2622
  %v2624 = vand.u32 %v1612, 4294901760
  %2625 = vmatprep.subr.mxu0 %v2624
  %v2626 = vand.u32 %v1611, 4294901760
  %2627 = vmatpush1.msra.mxu0 %v2626
  %v2628 = vand.u32 %v1628, 4294901760
  %2629 = vmatprep.subr.mxu0 %v2628
  %v2630 = vand.u32 %v1627, 4294901760
  %2631 = vmatpush1.msra.mxu0 %v2630
  %v2632 = vand.u32 %v1644, 4294901760
  %2633 = vmatprep.subr.mxu0 %v2632
  %v2634 = vand.u32 %v1643, 4294901760
  %2635 = vmatpush1.msra.mxu0 %v2634
  %v2636 = vand.u32 %v1660, 4294901760
  %2637 = vmatprep.subr.mxu0 %v2636
  %v2638 = vand.u32 %v1659, 4294901760
  %2639 = vmatpush1.msra.mxu0 %v2638
  %v2640 = vand.u32 %v1676, 4294901760
  %2641 = vmatprep.subr.mxu0 %v2640
  %v2642 = vand.u32 %v1675, 4294901760
  %2643 = vmatpush1.msra.mxu0 %v2642
  %2644 = vmatprep.subr.mxu0 0.0
  %2645 = vmatpush1.msra.mxu0 0.0
  %2646 = vmatprep.subr.mxu0 0.0
  %2647 = vmatpush1.msra.mxu0 0.0
  %2648 = vmatprep.subr.mxu0 0.0
  %2649 = vmatpush1.msra.mxu0 0.0
  %2650 = vmatprep.subr.mxu0 0.0
  %2651 = vmatpush1.msra.mxu0 0.0
  %2652 = vmatprep.subr.mxu0 0.0
  %2653 = vmatpush1.msra.mxu0 0.0
  %2654 = vmatprep.subr.mxu0 0.0
  %2655 = vmatpush1.msra.mxu0 0.0
  %2656 = vmatprep.subr.mxu0 0.0
  %2657 = vmatpush1.msra.mxu0 0.0
  %2658 = vmatprep.subr.mxu0 0.0
  %2659 = vmatpush1.msra.mxu0 0.0
  %2660 = vmatprep.subr.mxu0 0.0
  %2661 = vmatpush1.msra.mxu0 0.0
  %2662 = vmatprep.subr.mxu0 0.0
  %2663 = vmatpush1.msra.mxu0 0.0
  %2664 = vmatprep.subr.mxu0 0.0
  %2665 = vmatpush1.msra.mxu0 0.0
  %2666 = vmatprep.subr.mxu0 0.0
  %2667 = vmatpush1.msra.mxu0 0.0
  %2668 = vmatprep.subr.mxu0 0.0
  %2669 = vmatpush1.msra.mxu0 0.0
  %2670 = vmatprep.subr.mxu0 0.0
  %2671 = vmatpush1.msra.mxu0 0.0
  %2672 = vmatprep.subr.mxu0 0.0
  %2673 = vmatpush1.msra.mxu0 0.0
  %2674 = vmatprep.subr.mxu0 0.0
  %2675 = vmatpush1.msra.mxu0 0.0
  %2676 = vmatprep.mubr.f32.mxu0 0.0
  %v2677 = vand.u32 %v1689, 4294901760
  %v2678 = vsub.f32 %v1689, %v2677
  %v2679 = vand.u32 %v2678, 4294901760
  %v2680 = vsub.f32 %v2678, %v2679
  %v2681 = vand.u32 %v2680, 4294901760
  %2682 = vmatmul.mubr.f32.gmra.mrb[0].mxu0 %v2681
  %v2683 = vpop.f32.mrb[0].mxu0
  %v2684 = vadd.f32 %v1718, %v2683
  %v2685 = vpop.f32.mrb[0].mxu0
  %v2686 = vadd.f32 %v1720, %v2685
  %2687 = vdwg.mxu0
  %v2688 = vand.u32 %v1436, 4294901760
  %v2689 = vsub.f32 %v1436, %v2688
  %v2690 = vand.u32 %v2689, 4294901760
  %v2691 = vsub.f32 %v2689, %v2690
  %v2692 = vand.u32 %v2691, 4294901760
  %2693 = vmatprep.subr.mxu0 %v2692
  %v2694 = vand.u32 %v1435, 4294901760
  %v2695 = vsub.f32 %v1435, %v2694
  %v2696 = vand.u32 %v2695, 4294901760
  %v2697 = vsub.f32 %v2695, %v2696
  %v2698 = vand.u32 %v2697, 4294901760
  %2699 = vmatpush1.msra.mxu0 %v2698
  %v2700 = vand.u32 %v1452, 4294901760
  %v2701 = vsub.f32 %v1452, %v2700
  %v2702 = vand.u32 %v2701, 4294901760
  %v2703 = vsub.f32 %v2701, %v2702
  %v2704 = vand.u32 %v2703, 4294901760
  %2705 = vmatprep.subr.mxu0 %v2704
  %v2706 = vand.u32 %v1451, 4294901760
  %v2707 = vsub.f32 %v1451, %v2706
  %v2708 = vand.u32 %v2707, 4294901760
  %v2709 = vsub.f32 %v2707, %v2708
  %v2710 = vand.u32 %v2709, 4294901760
  %2711 = vmatpush1.msra.mxu0 %v2710
  %v2712 = vand.u32 %v1468, 4294901760
  %v2713 = vsub.f32 %v1468, %v2712
  %v2714 = vand.u32 %v2713, 4294901760
  %v2715 = vsub.f32 %v2713, %v2714
  %v2716 = vand.u32 %v2715, 4294901760
  %2717 = vmatprep.subr.mxu0 %v2716
  %v2718 = vand.u32 %v1467, 4294901760
  %v2719 = vsub.f32 %v1467, %v2718
  %v2720 = vand.u32 %v2719, 4294901760
  %v2721 = vsub.f32 %v2719, %v2720
  %v2722 = vand.u32 %v2721, 4294901760
  %2723 = vmatpush1.msra.mxu0 %v2722
  %v2724 = vand.u32 %v1484, 4294901760
  %v2725 = vsub.f32 %v1484, %v2724
  %v2726 = vand.u32 %v2725, 4294901760
  %v2727 = vsub.f32 %v2725, %v2726
  %v2728 = vand.u32 %v2727, 4294901760
  %2729 = vmatprep.subr.mxu0 %v2728
  %v2730 = vand.u32 %v1483, 4294901760
  %v2731 = vsub.f32 %v1483, %v2730
  %v2732 = vand.u32 %v2731, 4294901760
  %v2733 = vsub.f32 %v2731, %v2732
  %v2734 = vand.u32 %v2733, 4294901760
  %2735 = vmatpush1.msra.mxu0 %v2734
  %v2736 = vand.u32 %v1500, 4294901760
  %v2737 = vsub.f32 %v1500, %v2736
  %v2738 = vand.u32 %v2737, 4294901760
  %v2739 = vsub.f32 %v2737, %v2738
  %v2740 = vand.u32 %v2739, 4294901760
  %2741 = vmatprep.subr.mxu0 %v2740
  %v2742 = vand.u32 %v1499, 4294901760
  %v2743 = vsub.f32 %v1499, %v2742
  %v2744 = vand.u32 %v2743, 4294901760
  %v2745 = vsub.f32 %v2743, %v2744
  %v2746 = vand.u32 %v2745, 4294901760
  %2747 = vmatpush1.msra.mxu0 %v2746
  %v2748 = vand.u32 %v1516, 4294901760
  %v2749 = vsub.f32 %v1516, %v2748
  %v2750 = vand.u32 %v2749, 4294901760
  %v2751 = vsub.f32 %v2749, %v2750
  %v2752 = vand.u32 %v2751, 4294901760
  %2753 = vmatprep.subr.mxu0 %v2752
  %v2754 = vand.u32 %v1515, 4294901760
  %v2755 = vsub.f32 %v1515, %v2754
  %v2756 = vand.u32 %v2755, 4294901760
  %v2757 = vsub.f32 %v2755, %v2756
  %v2758 = vand.u32 %v2757, 4294901760
  %2759 = vmatpush1.msra.mxu0 %v2758
  %v2760 = vand.u32 %v1532, 4294901760
  %v2761 = vsub.f32 %v1532, %v2760
  %v2762 = vand.u32 %v2761, 4294901760
  %v2763 = vsub.f32 %v2761, %v2762
  %v2764 = vand.u32 %v2763, 4294901760
  %2765 = vmatprep.subr.mxu0 %v2764
  %v2766 = vand.u32 %v1531, 4294901760
  %v2767 = vsub.f32 %v1531, %v2766
  %v2768 = vand.u32 %v2767, 4294901760
  %v2769 = vsub.f32 %v2767, %v2768
  %v2770 = vand.u32 %v2769, 4294901760
  %2771 = vmatpush1.msra.mxu0 %v2770
  %v2772 = vand.u32 %v1548, 4294901760
  %v2773 = vsub.f32 %v1548, %v2772
  %v2774 = vand.u32 %v2773, 4294901760
  %v2775 = vsub.f32 %v2773, %v2774
  %v2776 = vand.u32 %v2775, 4294901760
  %2777 = vmatprep.subr.mxu0 %v2776
  %v2778 = vand.u32 %v1547, 4294901760
  %v2779 = vsub.f32 %v1547, %v2778
  %v2780 = vand.u32 %v2779, 4294901760
  %v2781 = vsub.f32 %v2779, %v2780
  %v2782 = vand.u32 %v2781, 4294901760
  %2783 = vmatpush1.msra.mxu0 %v2782
  %v2784 = vand.u32 %v1564, 4294901760
  %v2785 = vsub.f32 %v1564, %v2784
  %v2786 = vand.u32 %v2785, 4294901760
  %v2787 = vsub.f32 %v2785, %v2786
  %v2788 = vand.u32 %v2787, 4294901760
  %2789 = vmatprep.subr.mxu0 %v2788
  %v2790 = vand.u32 %v1563, 4294901760
  %v2791 = vsub.f32 %v1563, %v2790
  %v2792 = vand.u32 %v2791, 4294901760
  %v2793 = vsub.f32 %v2791, %v2792
  %v2794 = vand.u32 %v2793, 4294901760
  %2795 = vmatpush1.msra.mxu0 %v2794
  %v2796 = vand.u32 %v1580, 4294901760
  %v2797 = vsub.f32 %v1580, %v2796
  %v2798 = vand.u32 %v2797, 4294901760
  %v2799 = vsub.f32 %v2797, %v2798
  %v2800 = vand.u32 %v2799, 4294901760
  %2801 = vmatprep.subr.mxu0 %v2800
  %v2802 = vand.u32 %v1579, 4294901760
  %v2803 = vsub.f32 %v1579, %v2802
  %v2804 = vand.u32 %v2803, 4294901760
  %v2805 = vsub.f32 %v2803, %v2804
  %v2806 = vand.u32 %v2805, 4294901760
  %2807 = vmatpush1.msra.mxu0 %v2806
  %v2808 = vand.u32 %v1596, 4294901760
  %v2809 = vsub.f32 %v1596, %v2808
  %v2810 = vand.u32 %v2809, 4294901760
  %v2811 = vsub.f32 %v2809, %v2810
  %v2812 = vand.u32 %v2811, 4294901760
  %2813 = vmatprep.subr.mxu0 %v2812
  %v2814 = vand.u32 %v1595, 4294901760
  %v2815 = vsub.f32 %v1595, %v2814
  %v2816 = vand.u32 %v2815, 4294901760
  %v2817 = vsub.f32 %v2815, %v2816
  %v2818 = vand.u32 %v2817, 4294901760
  %2819 = vmatpush1.msra.mxu0 %v2818
  %v2820 = vand.u32 %v1612, 4294901760
  %v2821 = vsub.f32 %v1612, %v2820
  %v2822 = vand.u32 %v2821, 4294901760
  %v2823 = vsub.f32 %v2821, %v2822
  %v2824 = vand.u32 %v2823, 4294901760
  %2825 = vmatprep.subr.mxu0 %v2824
  %v2826 = vand.u32 %v1611, 4294901760
  %v2827 = vsub.f32 %v1611, %v2826
  %v2828 = vand.u32 %v2827, 4294901760
  %v2829 = vsub.f32 %v2827, %v2828
  %v2830 = vand.u32 %v2829, 4294901760
  %2831 = vmatpush1.msra.mxu0 %v2830
  %v2832 = vand.u32 %v1628, 4294901760
  %v2833 = vsub.f32 %v1628, %v2832
  %v2834 = vand.u32 %v2833, 4294901760
  %v2835 = vsub.f32 %v2833, %v2834
  %v2836 = vand.u32 %v2835, 4294901760
  %2837 = vmatprep.subr.mxu0 %v2836
  %v2838 = vand.u32 %v1627, 4294901760
  %v2839 = vsub.f32 %v1627, %v2838
  %v2840 = vand.u32 %v2839, 4294901760
  %v2841 = vsub.f32 %v2839, %v2840
  %v2842 = vand.u32 %v2841, 4294901760
  %2843 = vmatpush1.msra.mxu0 %v2842
  %v2844 = vand.u32 %v1644, 4294901760
  %v2845 = vsub.f32 %v1644, %v2844
  %v2846 = vand.u32 %v2845, 4294901760
  %v2847 = vsub.f32 %v2845, %v2846
  %v2848 = vand.u32 %v2847, 4294901760
  %2849 = vmatprep.subr.mxu0 %v2848
  %v2850 = vand.u32 %v1643, 4294901760
  %v2851 = vsub.f32 %v1643, %v2850
  %v2852 = vand.u32 %v2851, 4294901760
  %v2853 = vsub.f32 %v2851, %v2852
  %v2854 = vand.u32 %v2853, 4294901760
  %2855 = vmatpush1.msra.mxu0 %v2854
  %v2856 = vand.u32 %v1660, 4294901760
  %v2857 = vsub.f32 %v1660, %v2856
  %v2858 = vand.u32 %v2857, 4294901760
  %v2859 = vsub.f32 %v2857, %v2858
  %v2860 = vand.u32 %v2859, 4294901760
  %2861 = vmatprep.subr.mxu0 %v2860
  %v2862 = vand.u32 %v1659, 4294901760
  %v2863 = vsub.f32 %v1659, %v2862
  %v2864 = vand.u32 %v2863, 4294901760
  %v2865 = vsub.f32 %v2863, %v2864
  %v2866 = vand.u32 %v2865, 4294901760
  %2867 = vmatpush1.msra.mxu0 %v2866
  %v2868 = vand.u32 %v1676, 4294901760
  %v2869 = vsub.f32 %v1676, %v2868
  %v2870 = vand.u32 %v2869, 4294901760
  %v2871 = vsub.f32 %v2869, %v2870
  %v2872 = vand.u32 %v2871, 4294901760
  %2873 = vmatprep.subr.mxu0 %v2872
  %v2874 = vand.u32 %v1675, 4294901760
  %v2875 = vsub.f32 %v1675, %v2874
  %v2876 = vand.u32 %v2875, 4294901760
  %v2877 = vsub.f32 %v2875, %v2876
  %v2878 = vand.u32 %v2877, 4294901760
  %2879 = vmatpush1.msra.mxu0 %v2878
  %2880 = vmatprep.subr.mxu0 0.0
  %2881 = vmatpush1.msra.mxu0 0.0
  %2882 = vmatprep.subr.mxu0 0.0
  %2883 = vmatpush1.msra.mxu0 0.0
  %2884 = vmatprep.subr.mxu0 0.0
  %2885 = vmatpush1.msra.mxu0 0.0
  %2886 = vmatprep.subr.mxu0 0.0
  %2887 = vmatpush1.msra.mxu0 0.0
  %2888 = vmatprep.subr.mxu0 0.0
  %2889 = vmatpush1.msra.mxu0 0.0
  %2890 = vmatprep.subr.mxu0 0.0
  %2891 = vmatpush1.msra.mxu0 0.0
  %2892 = vmatprep.subr.mxu0 0.0
  %2893 = vmatpush1.msra.mxu0 0.0
  %2894 = vmatprep.subr.mxu0 0.0
  %2895 = vmatpush1.msra.mxu0 0.0
  %2896 = vmatprep.subr.mxu0 0.0
  %2897 = vmatpush1.msra.mxu0 0.0
  %2898 = vmatprep.subr.mxu0 0.0
  %2899 = vmatpush1.msra.mxu0 0.0
  %2900 = vmatprep.subr.mxu0 0.0
  %2901 = vmatpush1.msra.mxu0 0.0
  %2902 = vmatprep.subr.mxu0 0.0
  %2903 = vmatpush1.msra.mxu0 0.0
  %2904 = vmatprep.subr.mxu0 0.0
  %2905 = vmatpush1.msra.mxu0 0.0
  %2906 = vmatprep.subr.mxu0 0.0
  %2907 = vmatpush1.msra.mxu0 0.0
  %2908 = vmatprep.subr.mxu0 0.0
  %2909 = vmatpush1.msra.mxu0 0.0
  %2910 = vmatprep.subr.mxu0 0.0
  %2911 = vmatpush1.msra.mxu0 0.0
  %2912 = vmatprep.mubr.f32.mxu0 0.0
  %v2913 = vand.u32 %v1689, 4294901760
  %2914 = vmatmul.mubr.f32.gmra.mrb[0].mxu0 %v2913
  %v2915 = vpop.f32.mrb[0].mxu0
  %v2916 = vadd.f32 %v2684, %v2915
  %v2917 = vpop.f32.mrb[0].mxu0
  %v2918 = vadd.f32 %v2686, %v2917
  %2919 = vdwg.mxu0
  %v2920 = vand.u32 %v1436, 4294901760
  %v2921 = vsub.f32 %v1436, %v2920
  %2922 = vmatprep.subr.mxu0 %v2921
  %v2923 = vand.u32 %v1435, 4294901760
  %v2924 = vsub.f32 %v1435, %v2923
  %2925 = vmatpush1.msra.mxu0 %v2924
  %v2926 = vand.u32 %v1452, 4294901760
  %v2927 = vsub.f32 %v1452, %v2926
  %2928 = vmatprep.subr.mxu0 %v2927
  %v2929 = vand.u32 %v1451, 4294901760
  %v2930 = vsub.f32 %v1451, %v2929
  %2931 = vmatpush1.msra.mxu0 %v2930
  %v2932 = vand.u32 %v1468, 4294901760
  %v2933 = vsub.f32 %v1468, %v2932
  %2934 = vmatprep.subr.mxu0 %v2933
  %v2935 = vand.u32 %v1467, 4294901760
  %v2936 = vsub.f32 %v1467, %v2935
  %2937 = vmatpush1.msra.mxu0 %v2936
  %v2938 = vand.u32 %v1484, 4294901760
  %v2939 = vsub.f32 %v1484, %v2938
  %2940 = vmatprep.subr.mxu0 %v2939
  %v2941 = vand.u32 %v1483, 4294901760
  %v2942 = vsub.f32 %v1483, %v2941
  %2943 = vmatpush1.msra.mxu0 %v2942
  %v2944 = vand.u32 %v1500, 4294901760
  %v2945 = vsub.f32 %v1500, %v2944
  %2946 = vmatprep.subr.mxu0 %v2945
  %v2947 = vand.u32 %v1499, 4294901760
  %v2948 = vsub.f32 %v1499, %v2947
  %2949 = vmatpush1.msra.mxu0 %v2948
  %v2950 = vand.u32 %v1516, 4294901760
  %v2951 = vsub.f32 %v1516, %v2950
  %2952 = vmatprep.subr.mxu0 %v2951
  %v2953 = vand.u32 %v1515, 4294901760
  %v2954 = vsub.f32 %v1515, %v2953
  %2955 = vmatpush1.msra.mxu0 %v2954
  %v2956 = vand.u32 %v1532, 4294901760
  %v2957 = vsub.f32 %v1532, %v2956
  %2958 = vmatprep.subr.mxu0 %v2957
  %v2959 = vand.u32 %v1531, 4294901760
  %v2960 = vsub.f32 %v1531, %v2959
  %2961 = vmatpush1.msra.mxu0 %v2960
  %v2962 = vand.u32 %v1548, 4294901760
  %v2963 = vsub.f32 %v1548, %v2962
  %2964 = vmatprep.subr.mxu0 %v2963
  %v2965 = vand.u32 %v1547, 4294901760
  %v2966 = vsub.f32 %v1547, %v2965
  %2967 = vmatpush1.msra.mxu0 %v2966
  %v2968 = vand.u32 %v1564, 4294901760
  %v2969 = vsub.f32 %v1564, %v2968
  %2970 = vmatprep.subr.mxu0 %v2969
  %v2971 = vand.u32 %v1563, 4294901760
  %v2972 = vsub.f32 %v1563, %v2971
  %2973 = vmatpush1.msra.mxu0 %v2972
  %v2974 = vand.u32 %v1580, 4294901760
  %v2975 = vsub.f32 %v1580, %v2974
  %2976 = vmatprep.subr.mxu0 %v2975
  %v2977 = vand.u32 %v1579, 4294901760
  %v2978 = vsub.f32 %v1579, %v2977
  %2979 = vmatpush1.msra.mxu0 %v2978
  %v2980 = vand.u32 %v1596, 4294901760
  %v2981 = vsub.f32 %v1596, %v2980
  %2982 = vmatprep.subr.mxu0 %v2981
  %v2983 = vand.u32 %v1595, 4294901760
  %v2984 = vsub.f32 %v1595, %v2983
  %2985 = vmatpush1.msra.mxu0 %v2984
  %v2986 = vand.u32 %v1612, 4294901760
  %v2987 = vsub.f32 %v1612, %v2986
  %2988 = vmatprep.subr.mxu0 %v2987
  %v2989 = vand.u32 %v1611, 4294901760
  %v2990 = vsub.f32 %v1611, %v2989
  %2991 = vmatpush1.msra.mxu0 %v2990
  %v2992 = vand.u32 %v1628, 4294901760
  %v2993 = vsub.f32 %v1628, %v2992
  %2994 = vmatprep.subr.mxu0 %v2993
  %v2995 = vand.u32 %v1627, 4294901760
  %v2996 = vsub.f32 %v1627, %v2995
  %2997 = vmatpush1.msra.mxu0 %v2996
  %v2998 = vand.u32 %v1644, 4294901760
  %v2999 = vsub.f32 %v1644, %v2998
  %3000 = vmatprep.subr.mxu0 %v2999
  %v3001 = vand.u32 %v1643, 4294901760
  %v3002 = vsub.f32 %v1643, %v3001
  %3003 = vmatpush1.msra.mxu0 %v3002
  %v3004 = vand.u32 %v1660, 4294901760
  %v3005 = vsub.f32 %v1660, %v3004
  %3006 = vmatprep.subr.mxu0 %v3005
  %v3007 = vand.u32 %v1659, 4294901760
  %v3008 = vsub.f32 %v1659, %v3007
  %3009 = vmatpush1.msra.mxu0 %v3008
  %v3010 = vand.u32 %v1676, 4294901760
  %v3011 = vsub.f32 %v1676, %v3010
  %3012 = vmatprep.subr.mxu0 %v3011
  %v3013 = vand.u32 %v1675, 4294901760
  %v3014 = vsub.f32 %v1675, %v3013
  %3015 = vmatpush1.msra.mxu0 %v3014
  %3016 = vmatprep.subr.mxu0 0.0
  %3017 = vmatpush1.msra.mxu0 0.0
  %3018 = vmatprep.subr.mxu0 0.0
  %3019 = vmatpush1.msra.mxu0 0.0
  %3020 = vmatprep.subr.mxu0 0.0
  %3021 = vmatpush1.msra.mxu0 0.0
  %3022 = vmatprep.subr.mxu0 0.0
  %3023 = vmatpush1.msra.mxu0 0.0
  %3024 = vmatprep.subr.mxu0 0.0
  %3025 = vmatpush1.msra.mxu0 0.0
  %3026 = vmatprep.subr.mxu0 0.0
  %3027 = vmatpush1.msra.mxu0 0.0
  %3028 = vmatprep.subr.mxu0 0.0
  %3029 = vmatpush1.msra.mxu0 0.0
  %3030 = vmatprep.subr.mxu0 0.0
  %3031 = vmatpush1.msra.mxu0 0.0
  %3032 = vmatprep.subr.mxu0 0.0
  %3033 = vmatpush1.msra.mxu0 0.0
  %3034 = vmatprep.subr.mxu0 0.0
  %3035 = vmatpush1.msra.mxu0 0.0
  %3036 = vmatprep.subr.mxu0 0.0
  %3037 = vmatpush1.msra.mxu0 0.0
  %3038 = vmatprep.subr.mxu0 0.0
  %3039 = vmatpush1.msra.mxu0 0.0
  %3040 = vmatprep.subr.mxu0 0.0
  %3041 = vmatpush1.msra.mxu0 0.0
  %3042 = vmatprep.subr.mxu0 0.0
  %3043 = vmatpush1.msra.mxu0 0.0
  %3044 = vmatprep.subr.mxu0 0.0
  %3045 = vmatpush1.msra.mxu0 0.0
  %3046 = vmatprep.subr.mxu0 0.0
  %3047 = vmatpush1.msra.mxu0 0.0
  %3048 = vmatprep.mubr.f32.mxu0 0.0
  %v3049 = vand.u32 %v1689, 4294901760
  %v3050 = vsub.f32 %v1689, %v3049
  %3051 = vmatmul.mubr.f32.gmra.mrb[0].mxu0 %v3050
  %v3052 = vpop.f32.mrb[0].mxu0
  %v3053 = vadd.f32 %v2916, %v3052
  %v3054 = vpop.f32.mrb[0].mxu0
  %v3055 = vadd.f32 %v2918, %v3054
  %3056 = vdwg.mxu0
  %v3057 = vand.u32 %v1436, 4294901760
  %3058 = vmatprep.subr.mxu0 %v3057
  %v3059 = vand.u32 %v1435, 4294901760
  %3060 = vmatpush1.msra.mxu0 %v3059
  %v3061 = vand.u32 %v1452, 4294901760
  %3062 = vmatprep.subr.mxu0 %v3061
  %v3063 = vand.u32 %v1451, 4294901760
  %3064 = vmatpush1.msra.mxu0 %v3063
  %v3065 = vand.u32 %v1468, 4294901760
  %3066 = vmatprep.subr.mxu0 %v3065
  %v3067 = vand.u32 %v1467, 4294901760
  %3068 = vmatpush1.msra.mxu0 %v3067
  %v3069 = vand.u32 %v1484, 4294901760
  %3070 = vmatprep.subr.mxu0 %v3069
  %v3071 = vand.u32 %v1483, 4294901760
  %3072 = vmatpush1.msra.mxu0 %v3071
  %v3073 = vand.u32 %v1500, 4294901760
  %3074 = vmatprep.subr.mxu0 %v3073
  %v3075 = vand.u32 %v1499, 4294901760
  %3076 = vmatpush1.msra.mxu0 %v3075
  %v3077 = vand.u32 %v1516, 4294901760
  %3078 = vmatprep.subr.mxu0 %v3077
  %v3079 = vand.u32 %v1515, 4294901760
  %3080 = vmatpush1.msra.mxu0 %v3079
  %v3081 = vand.u32 %v1532, 4294901760
  %3082 = vmatprep.subr.mxu0 %v3081
  %v3083 = vand.u32 %v1531, 4294901760
  %3084 = vmatpush1.msra.mxu0 %v3083
  %v3085 = vand.u32 %v1548, 4294901760
  %3086 = vmatprep.subr.mxu0 %v3085
  %v3087 = vand.u32 %v1547, 4294901760
  %3088 = vmatpush1.msra.mxu0 %v3087
  %v3089 = vand.u32 %v1564, 4294901760
  %3090 = vmatprep.subr.mxu0 %v3089
  %v3091 = vand.u32 %v1563, 4294901760
  %3092 = vmatpush1.msra.mxu0 %v3091
  %v3093 = vand.u32 %v1580, 4294901760
  %3094 = vmatprep.subr.mxu0 %v3093
  %v3095 = vand.u32 %v1579, 4294901760
  %3096 = vmatpush1.msra.mxu0 %v3095
  %v3097 = vand.u32 %v1596, 4294901760
  %3098 = vmatprep.subr.mxu0 %v3097
  %v3099 = vand.u32 %v1595, 4294901760
  %3100 = vmatpush1.msra.mxu0 %v3099
  %v3101 = vand.u32 %v1612, 4294901760
  %3102 = vmatprep.subr.mxu0 %v3101
  %v3103 = vand.u32 %v1611, 4294901760
  %3104 = vmatpush1.msra.mxu0 %v3103
  %v3105 = vand.u32 %v1628, 4294901760
  %3106 = vmatprep.subr.mxu0 %v3105
  %v3107 = vand.u32 %v1627, 4294901760
  %3108 = vmatpush1.msra.mxu0 %v3107
  %v3109 = vand.u32 %v1644, 4294901760
  %3110 = vmatprep.subr.mxu0 %v3109
  %v3111 = vand.u32 %v1643, 4294901760
  %3112 = vmatpush1.msra.mxu0 %v3111
  %v3113 = vand.u32 %v1660, 4294901760
  %3114 = vmatprep.subr.mxu0 %v3113
  %v3115 = vand.u32 %v1659, 4294901760
  %3116 = vmatpush1.msra.mxu0 %v3115
  %v3117 = vand.u32 %v1676, 4294901760
  %3118 = vmatprep.subr.mxu0 %v3117
  %v3119 = vand.u32 %v1675, 4294901760
  %3120 = vmatpush1.msra.mxu0 %v3119
  %3121 = vmatprep.subr.mxu0 0.0
  %3122 = vmatpush1.msra.mxu0 0.0
  %3123 = vmatprep.subr.mxu0 0.0
  %3124 = vmatpush1.msra.mxu0 0.0
  %3125 = vmatprep.subr.mxu0 0.0
  %3126 = vmatpush1.msra.mxu0 0.0
  %3127 = vmatprep.subr.mxu0 0.0
  %3128 = vmatpush1.msra.mxu0 0.0
  %3129 = vmatprep.subr.mxu0 0.0
  %3130 = vmatpush1.msra.mxu0 0.0
  %3131 = vmatprep.subr.mxu0 0.0
  %3132 = vmatpush1.msra.mxu0 0.0
  %3133 = vmatprep.subr.mxu0 0.0
  %3134 = vmatpush1.msra.mxu0 0.0
  %3135 = vmatprep.subr.mxu0 0.0
  %3136 = vmatpush1.msra.mxu0 0.0
  %3137 = vmatprep.subr.mxu0 0.0
  %3138 = vmatpush1.msra.mxu0 0.0
  %3139 = vmatprep.subr.mxu0 0.0
  %3140 = vmatpush1.msra.mxu0 0.0
  %3141 = vmatprep.subr.mxu0 0.0
  %3142 = vmatpush1.msra.mxu0 0.0
  %3143 = vmatprep.subr.mxu0 0.0
  %3144 = vmatpush1.msra.mxu0 0.0
  %3145 = vmatprep.subr.mxu0 0.0
  %3146 = vmatpush1.msra.mxu0 0.0
  %3147 = vmatprep.subr.mxu0 0.0
  %3148 = vmatpush1.msra.mxu0 0.0
  %3149 = vmatprep.subr.mxu0 0.0
  %3150 = vmatpush1.msra.mxu0 0.0
  %3151 = vmatprep.subr.mxu0 0.0
  %3152 = vmatpush1.msra.mxu0 0.0
  %3153 = vmatprep.mubr.f32.mxu0 0.0
  %v3154 = vand.u32 %v1689, 4294901760
  %v3155 = vsub.f32 %v1689, %v3154
  %v3156 = vand.u32 %v3155, 4294901760
  %3157 = vmatmul.mubr.f32.gmra.mrb[0].mxu0 %v3156
  %v3158 = vpop.f32.mrb[0].mxu0
  %v3159 = vadd.f32 %v3053, %v3158
  %v3160 = vpop.f32.mrb[0].mxu0
  %v3161 = vadd.f32 %v3055, %v3160
  %3162 = vdwg.mxu0
  %v3163 = vand.u32 %v1436, 4294901760
  %v3164 = vsub.f32 %v1436, %v3163
  %v3165 = vand.u32 %v3164, 4294901760
  %3166 = vmatprep.subr.mxu0 %v3165
  %v3167 = vand.u32 %v1435, 4294901760
  %v3168 = vsub.f32 %v1435, %v3167
  %v3169 = vand.u32 %v3168, 4294901760
  %3170 = vmatpush1.msra.mxu0 %v3169
  %v3171 = vand.u32 %v1452, 4294901760
  %v3172 = vsub.f32 %v1452, %v3171
  %v3173 = vand.u32 %v3172, 4294901760
  %3174 = vmatprep.subr.mxu0 %v3173
  %v3175 = vand.u32 %v1451, 4294901760
  %v3176 = vsub.f32 %v1451, %v3175
  %v3177 = vand.u32 %v3176, 4294901760
  %3178 = vmatpush1.msra.mxu0 %v3177
  %v3179 = vand.u32 %v1468, 4294901760
  %v3180 = vsub.f32 %v1468, %v3179
  %v3181 = vand.u32 %v3180, 4294901760
  %3182 = vmatprep.subr.mxu0 %v3181
  %v3183 = vand.u32 %v1467, 4294901760
  %v3184 = vsub.f32 %v1467, %v3183
  %v3185 = vand.u32 %v3184, 4294901760
  %3186 = vmatpush1.msra.mxu0 %v3185
  %v3187 = vand.u32 %v1484, 4294901760
  %v3188 = vsub.f32 %v1484, %v3187
  %v3189 = vand.u32 %v3188, 4294901760
  %3190 = vmatprep.subr.mxu0 %v3189
  %v3191 = vand.u32 %v1483, 4294901760
  %v3192 = vsub.f32 %v1483, %v3191
  %v3193 = vand.u32 %v3192, 4294901760
  %3194 = vmatpush1.msra.mxu0 %v3193
  %v3195 = vand.u32 %v1500, 4294901760
  %v3196 = vsub.f32 %v1500, %v3195
  %v3197 = vand.u32 %v3196, 4294901760
  %3198 = vmatprep.subr.mxu0 %v3197
  %v3199 = vand.u32 %v1499, 4294901760
  %v3200 = vsub.f32 %v1499, %v3199
  %v3201 = vand.u32 %v3200, 4294901760
  %3202 = vmatpush1.msra.mxu0 %v3201
  %v3203 = vand.u32 %v1516, 4294901760
  %v3204 = vsub.f32 %v1516, %v3203
  %v3205 = vand.u32 %v3204, 4294901760
  %3206 = vmatprep.subr.mxu0 %v3205
  %v3207 = vand.u32 %v1515, 4294901760
  %v3208 = vsub.f32 %v1515, %v3207
  %v3209 = vand.u32 %v3208, 4294901760
  %3210 = vmatpush1.msra.mxu0 %v3209
  %v3211 = vand.u32 %v1532, 4294901760
  %v3212 = vsub.f32 %v1532, %v3211
  %v3213 = vand.u32 %v3212, 4294901760
  %3214 = vmatprep.subr.mxu0 %v3213
  %v3215 = vand.u32 %v1531, 4294901760
  %v3216 = vsub.f32 %v1531, %v3215
  %v3217 = vand.u32 %v3216, 4294901760
  %3218 = vmatpush1.msra.mxu0 %v3217
  %v3219 = vand.u32 %v1548, 4294901760
  %v3220 = vsub.f32 %v1548, %v3219
  %v3221 = vand.u32 %v3220, 4294901760
  %3222 = vmatprep.subr.mxu0 %v3221
  %v3223 = vand.u32 %v1547, 4294901760
  %v3224 = vsub.f32 %v1547, %v3223
  %v3225 = vand.u32 %v3224, 4294901760
  %3226 = vmatpush1.msra.mxu0 %v3225
  %v3227 = vand.u32 %v1564, 4294901760
  %v3228 = vsub.f32 %v1564, %v3227
  %v3229 = vand.u32 %v3228, 4294901760
  %3230 = vmatprep.subr.mxu0 %v3229
  %v3231 = vand.u32 %v1563, 4294901760
  %v3232 = vsub.f32 %v1563, %v3231
  %v3233 = vand.u32 %v3232, 4294901760
  %3234 = vmatpush1.msra.mxu0 %v3233
  %v3235 = vand.u32 %v1580, 4294901760
  %v3236 = vsub.f32 %v1580, %v3235
  %v3237 = vand.u32 %v3236, 4294901760
  %3238 = vmatprep.subr.mxu0 %v3237
  %v3239 = vand.u32 %v1579, 4294901760
  %v3240 = vsub.f32 %v1579, %v3239
  %v3241 = vand.u32 %v3240, 4294901760
  %3242 = vmatpush1.msra.mxu0 %v3241
  %v3243 = vand.u32 %v1596, 4294901760
  %v3244 = vsub.f32 %v1596, %v3243
  %v3245 = vand.u32 %v3244, 4294901760
  %3246 = vmatprep.subr.mxu0 %v3245
  %v3247 = vand.u32 %v1595, 4294901760
  %v3248 = vsub.f32 %v1595, %v3247
  %v3249 = vand.u32 %v3248, 4294901760
  %3250 = vmatpush1.msra.mxu0 %v3249
  %v3251 = vand.u32 %v1612, 4294901760
  %v3252 = vsub.f32 %v1612, %v3251
  %v3253 = vand.u32 %v3252, 4294901760
  %3254 = vmatprep.subr.mxu0 %v3253
  %v3255 = vand.u32 %v1611, 4294901760
  %v3256 = vsub.f32 %v1611, %v3255
  %v3257 = vand.u32 %v3256, 4294901760
  %3258 = vmatpush1.msra.mxu0 %v3257
  %v3259 = vand.u32 %v1628, 4294901760
  %v3260 = vsub.f32 %v1628, %v3259
  %v3261 = vand.u32 %v3260, 4294901760
  %3262 = vmatprep.subr.mxu0 %v3261
  %v3263 = vand.u32 %v1627, 4294901760
  %v3264 = vsub.f32 %v1627, %v3263
  %v3265 = vand.u32 %v3264, 4294901760
  %3266 = vmatpush1.msra.mxu0 %v3265
  %v3267 = vand.u32 %v1644, 4294901760
  %v3268 = vsub.f32 %v1644, %v3267
  %v3269 = vand.u32 %v3268, 4294901760
  %3270 = vmatprep.subr.mxu0 %v3269
  %v3271 = vand.u32 %v1643, 4294901760
  %v3272 = vsub.f32 %v1643, %v3271
  %v3273 = vand.u32 %v3272, 4294901760
  %3274 = vmatpush1.msra.mxu0 %v3273
  %v3275 = vand.u32 %v1660, 4294901760
  %v3276 = vsub.f32 %v1660, %v3275
  %v3277 = vand.u32 %v3276, 4294901760
  %3278 = vmatprep.subr.mxu0 %v3277
  %v3279 = vand.u32 %v1659, 4294901760
  %v3280 = vsub.f32 %v1659, %v3279
  %v3281 = vand.u32 %v3280, 4294901760
  %3282 = vmatpush1.msra.mxu0 %v3281
  %v3283 = vand.u32 %v1676, 4294901760
  %v3284 = vsub.f32 %v1676, %v3283
  %v3285 = vand.u32 %v3284, 4294901760
  %3286 = vmatprep.subr.mxu0 %v3285
  %v3287 = vand.u32 %v1675, 4294901760
  %v3288 = vsub.f32 %v1675, %v3287
  %v3289 = vand.u32 %v3288, 4294901760
  %3290 = vmatpush1.msra.mxu0 %v3289
  %3291 = vmatprep.subr.mxu0 0.0
  %3292 = vmatpush1.msra.mxu0 0.0
  %3293 = vmatprep.subr.mxu0 0.0
  %3294 = vmatpush1.msra.mxu0 0.0
  %3295 = vmatprep.subr.mxu0 0.0
  %3296 = vmatpush1.msra.mxu0 0.0
  %3297 = vmatprep.subr.mxu0 0.0
  %3298 = vmatpush1.msra.mxu0 0.0
  %3299 = vmatprep.subr.mxu0 0.0
  %3300 = vmatpush1.msra.mxu0 0.0
  %3301 = vmatprep.subr.mxu0 0.0
  %3302 = vmatpush1.msra.mxu0 0.0
  %3303 = vmatprep.subr.mxu0 0.0
  %3304 = vmatpush1.msra.mxu0 0.0
  %3305 = vmatprep.subr.mxu0 0.0
  %3306 = vmatpush1.msra.mxu0 0.0
  %3307 = vmatprep.subr.mxu0 0.0
  %3308 = vmatpush1.msra.mxu0 0.0
  %3309 = vmatprep.subr.mxu0 0.0
  %3310 = vmatpush1.msra.mxu0 0.0
  %3311 = vmatprep.subr.mxu0 0.0
  %3312 = vmatpush1.msra.mxu0 0.0
  %3313 = vmatprep.subr.mxu0 0.0
  %3314 = vmatpush1.msra.mxu0 0.0
  %3315 = vmatprep.subr.mxu0 0.0
  %3316 = vmatpush1.msra.mxu0 0.0
  %3317 = vmatprep.subr.mxu0 0.0
  %3318 = vmatpush1.msra.mxu0 0.0
  %3319 = vmatprep.subr.mxu0 0.0
  %3320 = vmatpush1.msra.mxu0 0.0
  %3321 = vmatprep.subr.mxu0 0.0
  %3322 = vmatpush1.msra.mxu0 0.0
  %3323 = vmatprep.mubr.f32.mxu0 0.0
  %v3324 = vand.u32 %v1689, 4294901760
  %3325 = vmatmul.mubr.f32.gmra.mrb[0].mxu0 %v3324
  %v3326 = vpop.f32.mrb[0].mxu0
  %v3327 = vadd.f32 %v3159, %v3326
  %v3328 = vpop.f32.mrb[0].mxu0
  %v3329 = vadd.f32 %v3161, %v3328
  %3330 = vdwg.mxu0
  %v3331 = vand.u32 %v1436, 4294901760
  %3332 = vmatprep.subr.mxu0 %v3331
  %v3333 = vand.u32 %v1435, 4294901760
  %3334 = vmatpush1.msra.mxu0 %v3333
  %v3335 = vand.u32 %v1452, 4294901760
  %3336 = vmatprep.subr.mxu0 %v3335
  %v3337 = vand.u32 %v1451, 4294901760
  %3338 = vmatpush1.msra.mxu0 %v3337
  %v3339 = vand.u32 %v1468, 4294901760
  %3340 = vmatprep.subr.mxu0 %v3339
  %v3341 = vand.u32 %v1467, 4294901760
  %3342 = vmatpush1.msra.mxu0 %v3341
  %v3343 = vand.u32 %v1484, 4294901760
  %3344 = vmatprep.subr.mxu0 %v3343
  %v3345 = vand.u32 %v1483, 4294901760
  %3346 = vmatpush1.msra.mxu0 %v3345
  %v3347 = vand.u32 %v1500, 4294901760
  %3348 = vmatprep.subr.mxu0 %v3347
  %v3349 = vand.u32 %v1499, 4294901760
  %3350 = vmatpush1.msra.mxu0 %v3349
  %v3351 = vand.u32 %v1516, 4294901760
  %3352 = vmatprep.subr.mxu0 %v3351
  %v3353 = vand.u32 %v1515, 4294901760
  %3354 = vmatpush1.msra.mxu0 %v3353
  %v3355 = vand.u32 %v1532, 4294901760
  %3356 = vmatprep.subr.mxu0 %v3355
  %v3357 = vand.u32 %v1531, 4294901760
  %3358 = vmatpush1.msra.mxu0 %v3357
  %v3359 = vand.u32 %v1548, 4294901760
  %3360 = vmatprep.subr.mxu0 %v3359
  %v3361 = vand.u32 %v1547, 4294901760
  %3362 = vmatpush1.msra.mxu0 %v3361
  %v3363 = vand.u32 %v1564, 4294901760
  %3364 = vmatprep.subr.mxu0 %v3363
  %v3365 = vand.u32 %v1563, 4294901760
  %3366 = vmatpush1.msra.mxu0 %v3365
  %v3367 = vand.u32 %v1580, 4294901760
  %3368 = vmatprep.subr.mxu0 %v3367
  %v3369 = vand.u32 %v1579, 4294901760
  %3370 = vmatpush1.msra.mxu0 %v3369
  %v3371 = vand.u32 %v1596, 4294901760
  %3372 = vmatprep.subr.mxu0 %v3371
  %v3373 = vand.u32 %v1595, 4294901760
  %3374 = vmatpush1.msra.mxu0 %v3373
  %v3375 = vand.u32 %v1612, 4294901760
  %3376 = vmatprep.subr.mxu0 %v3375
  %v3377 = vand.u32 %v1611, 4294901760
  %3378 = vmatpush1.msra.mxu0 %v3377
  %v3379 = vand.u32 %v1628, 4294901760
  %3380 = vmatprep.subr.mxu0 %v3379
  %v3381 = vand.u32 %v1627, 4294901760
  %3382 = vmatpush1.msra.mxu0 %v3381
  %v3383 = vand.u32 %v1644, 4294901760
  %3384 = vmatprep.subr.mxu0 %v3383
  %v3385 = vand.u32 %v1643, 4294901760
  %3386 = vmatpush1.msra.mxu0 %v3385
  %v3387 = vand.u32 %v1660, 4294901760
  %3388 = vmatprep.subr.mxu0 %v3387
  %v3389 = vand.u32 %v1659, 4294901760
  %3390 = vmatpush1.msra.mxu0 %v3389
  %v3391 = vand.u32 %v1676, 4294901760
  %3392 = vmatprep.subr.mxu0 %v3391
  %v3393 = vand.u32 %v1675, 4294901760
  %3394 = vmatpush1.msra.mxu0 %v3393
  %3395 = vmatprep.subr.mxu0 0.0
  %3396 = vmatpush1.msra.mxu0 0.0
  %3397 = vmatprep.subr.mxu0 0.0
  %3398 = vmatpush1.msra.mxu0 0.0
  %3399 = vmatprep.subr.mxu0 0.0
  %3400 = vmatpush1.msra.mxu0 0.0
  %3401 = vmatprep.subr.mxu0 0.0
  %3402 = vmatpush1.msra.mxu0 0.0
  %3403 = vmatprep.subr.mxu0 0.0
  %3404 = vmatpush1.msra.mxu0 0.0
  %3405 = vmatprep.subr.mxu0 0.0
  %3406 = vmatpush1.msra.mxu0 0.0
  %3407 = vmatprep.subr.mxu0 0.0
  %3408 = vmatpush1.msra.mxu0 0.0
  %3409 = vmatprep.subr.mxu0 0.0
  %3410 = vmatpush1.msra.mxu0 0.0
  %3411 = vmatprep.subr.mxu0 0.0
  %3412 = vmatpush1.msra.mxu0 0.0
  %3413 = vmatprep.subr.mxu0 0.0
  %3414 = vmatpush1.msra.mxu0 0.0
  %3415 = vmatprep.subr.mxu0 0.0
  %3416 = vmatpush1.msra.mxu0 0.0
  %3417 = vmatprep.subr.mxu0 0.0
  %3418 = vmatpush1.msra.mxu0 0.0
  %3419 = vmatprep.subr.mxu0 0.0
  %3420 = vmatpush1.msra.mxu0 0.0
  %3421 = vmatprep.subr.mxu0 0.0
  %3422 = vmatpush1.msra.mxu0 0.0
  %3423 = vmatprep.subr.mxu0 0.0
  %3424 = vmatpush1.msra.mxu0 0.0
  %3425 = vmatprep.subr.mxu0 0.0
  %3426 = vmatpush1.msra.mxu0 0.0
  %3427 = vmatprep.mubr.f32.mxu0 0.0
  %v3428 = vand.u32 %v1689, 4294901760
  %3429 = vmatmul.mubr.f32.gmra.mrb[0].mxu0 %v3428
  %v3430 = vpop.f32.mrb[0].mxu0
  %v3431 = vadd.f32 %v3327, %v3430
  %v3432 = vpop.f32.mrb[0].mxu0
  %v3433 = vadd.f32 %v3329, %v3432
  %3434 = vdwg.mxu0
  %v3435 = vand.u32 %v1438, 4294901760
  %3436 = vmatprep.subr.mxu0 %v3435
  %v3437 = vand.u32 %v1437, 4294901760
  %3438 = vmatpush1.msra.mxu0 %v3437
  %v3439 = vand.u32 %v1454, 4294901760
  %3440 = vmatprep.subr.mxu0 %v3439
  %v3441 = vand.u32 %v1453, 4294901760
  %3442 = vmatpush1.msra.mxu0 %v3441
  %v3443 = vand.u32 %v1470, 4294901760
  %3444 = vmatprep.subr.mxu0 %v3443
  %v3445 = vand.u32 %v1469, 4294901760
  %3446 = vmatpush1.msra.mxu0 %v3445
  %v3447 = vand.u32 %v1486, 4294901760
  %3448 = vmatprep.subr.mxu0 %v3447
  %v3449 = vand.u32 %v1485, 4294901760
  %3450 = vmatpush1.msra.mxu0 %v3449
  %v3451 = vand.u32 %v1502, 4294901760
  %3452 = vmatprep.subr.mxu0 %v3451
  %v3453 = vand.u32 %v1501, 4294901760
  %3454 = vmatpush1.msra.mxu0 %v3453
  %v3455 = vand.u32 %v1518, 4294901760
  %3456 = vmatprep.subr.mxu0 %v3455
  %v3457 = vand.u32 %v1517, 4294901760
  %3458 = vmatpush1.msra.mxu0 %v3457
  %v3459 = vand.u32 %v1534, 4294901760
  %3460 = vmatprep.subr.mxu0 %v3459
  %v3461 = vand.u32 %v1533, 4294901760
  %3462 = vmatpush1.msra.mxu0 %v3461
  %v3463 = vand.u32 %v1550, 4294901760
  %3464 = vmatprep.subr.mxu0 %v3463
  %v3465 = vand.u32 %v1549, 4294901760
  %3466 = vmatpush1.msra.mxu0 %v3465
  %v3467 = vand.u32 %v1566, 4294901760
  %3468 = vmatprep.subr.mxu0 %v3467
  %v3469 = vand.u32 %v1565, 4294901760
  %3470 = vmatpush1.msra.mxu0 %v3469
  %v3471 = vand.u32 %v1582, 4294901760
  %3472 = vmatprep.subr.mxu0 %v3471
  %v3473 = vand.u32 %v1581, 4294901760
  %3474 = vmatpush1.msra.mxu0 %v3473
  %v3475 = vand.u32 %v1598, 4294901760
  %3476 = vmatprep.subr.mxu0 %v3475
  %v3477 = vand.u32 %v1597, 4294901760
  %3478 = vmatpush1.msra.mxu0 %v3477
  %v3479 = vand.u32 %v1614, 4294901760
  %3480 = vmatprep.subr.mxu0 %v3479
  %v3481 = vand.u32 %v1613, 4294901760
  %3482 = vmatpush1.msra.mxu0 %v3481
  %v3483 = vand.u32 %v1630, 4294901760
  %3484 = vmatprep.subr.mxu0 %v3483
  %v3485 = vand.u32 %v1629, 4294901760
  %3486 = vmatpush1.msra.mxu0 %v3485
  %v3487 = vand.u32 %v1646, 4294901760
  %3488 = vmatprep.subr.mxu0 %v3487
  %v3489 = vand.u32 %v1645, 4294901760
  %3490 = vmatpush1.msra.mxu0 %v3489
  %v3491 = vand.u32 %v1662, 4294901760
  %3492 = vmatprep.subr.mxu0 %v3491
  %v3493 = vand.u32 %v1661, 4294901760
  %3494 = vmatpush1.msra.mxu0 %v3493
  %v3495 = vand.u32 %v1678, 4294901760
  %3496 = vmatprep.subr.mxu0 %v3495
  %v3497 = vand.u32 %v1677, 4294901760
  %3498 = vmatpush1.msra.mxu0 %v3497
  %3499 = vmatprep.subr.mxu0 0.0
  %3500 = vmatpush1.msra.mxu0 0.0
  %3501 = vmatprep.subr.mxu0 0.0
  %3502 = vmatpush1.msra.mxu0 0.0
  %3503 = vmatprep.subr.mxu0 0.0
  %3504 = vmatpush1.msra.mxu0 0.0
  %3505 = vmatprep.subr.mxu0 0.0
  %3506 = vmatpush1.msra.mxu0 0.0
  %3507 = vmatprep.subr.mxu0 0.0
  %3508 = vmatpush1.msra.mxu0 0.0
  %3509 = vmatprep.subr.mxu0 0.0
  %3510 = vmatpush1.msra.mxu0 0.0
  %3511 = vmatprep.subr.mxu0 0.0
  %3512 = vmatpush1.msra.mxu0 0.0
  %3513 = vmatprep.subr.mxu0 0.0
  %3514 = vmatpush1.msra.mxu0 0.0
  %3515 = vmatprep.subr.mxu0 0.0
  %3516 = vmatpush1.msra.mxu0 0.0
  %3517 = vmatprep.subr.mxu0 0.0
  %3518 = vmatpush1.msra.mxu0 0.0
  %3519 = vmatprep.subr.mxu0 0.0
  %3520 = vmatpush1.msra.mxu0 0.0
  %3521 = vmatprep.subr.mxu0 0.0
  %3522 = vmatpush1.msra.mxu0 0.0
  %3523 = vmatprep.subr.mxu0 0.0
  %3524 = vmatpush1.msra.mxu0 0.0
  %3525 = vmatprep.subr.mxu0 0.0
  %3526 = vmatpush1.msra.mxu0 0.0
  %3527 = vmatprep.subr.mxu0 0.0
  %3528 = vmatpush1.msra.mxu0 0.0
  %3529 = vmatprep.subr.mxu0 0.0
  %3530 = vmatpush1.msra.mxu0 0.0
  %3531 = vmatprep.mubr.f32.mxu0 0.0
  %v3532 = vand.u32 %v1689, 4294901760
  %v3533 = vsub.f32 %v1689, %v3532
  %v3534 = vand.u32 %v3533, 4294901760
  %v3535 = vsub.f32 %v3533, %v3534
  %v3536 = vand.u32 %v3535, 4294901760
  %3537 = vmatmul.mubr.f32.gmra.mrb[0].mxu0 %v3536
  %v3538 = vpop.f32.mrb[0].mxu0
  %v3539 = vadd.f32 %v1711, %v3538
  %v3540 = vpop.f32.mrb[0].mxu0
  %v3541 = vadd.f32 %v1719, %v3540
  %3542 = vdwg.mxu0
  %v3543 = vand.u32 %v1438, 4294901760
  %v3544 = vsub.f32 %v1438, %v3543
  %v3545 = vand.u32 %v3544, 4294901760
  %v3546 = vsub.f32 %v3544, %v3545
  %v3547 = vand.u32 %v3546, 4294901760
  %3548 = vmatprep.subr.mxu0 %v3547
  %v3549 = vand.u32 %v1437, 4294901760
  %v3550 = vsub.f32 %v1437, %v3549
  %v3551 = vand.u32 %v3550, 4294901760
  %v3552 = vsub.f32 %v3550, %v3551
  %v3553 = vand.u32 %v3552, 4294901760
  %3554 = vmatpush1.msra.mxu0 %v3553
  %v3555 = vand.u32 %v1454, 4294901760
  %v3556 = vsub.f32 %v1454, %v3555
  %v3557 = vand.u32 %v3556, 4294901760
  %v3558 = vsub.f32 %v3556, %v3557
  %v3559 = vand.u32 %v3558, 4294901760
  %3560 = vmatprep.subr.mxu0 %v3559
  %v3561 = vand.u32 %v1453, 4294901760
  %v3562 = vsub.f32 %v1453, %v3561
  %v3563 = vand.u32 %v3562, 4294901760
  %v3564 = vsub.f32 %v3562, %v3563
  %v3565 = vand.u32 %v3564, 4294901760
  %3566 = vmatpush1.msra.mxu0 %v3565
  %v3567 = vand.u32 %v1470, 4294901760
  %v3568 = vsub.f32 %v1470, %v3567
  %v3569 = vand.u32 %v3568, 4294901760
  %v3570 = vsub.f32 %v3568, %v3569
  %v3571 = vand.u32 %v3570, 4294901760
  %3572 = vmatprep.subr.mxu0 %v3571
  %v3573 = vand.u32 %v1469, 4294901760
  %v3574 = vsub.f32 %v1469, %v3573
  %v3575 = vand.u32 %v3574, 4294901760
  %v3576 = vsub.f32 %v3574, %v3575
  %v3577 = vand.u32 %v3576, 4294901760
  %3578 = vmatpush1.msra.mxu0 %v3577
  %v3579 = vand.u32 %v1486, 4294901760
  %v3580 = vsub.f32 %v1486, %v3579
  %v3581 = vand.u32 %v3580, 4294901760
  %v3582 = vsub.f32 %v3580, %v3581
  %v3583 = vand.u32 %v3582, 4294901760
  %3584 = vmatprep.subr.mxu0 %v3583
  %v3585 = vand.u32 %v1485, 4294901760
  %v3586 = vsub.f32 %v1485, %v3585
  %v3587 = vand.u32 %v3586, 4294901760
  %v3588 = vsub.f32 %v3586, %v3587
  %v3589 = vand.u32 %v3588, 4294901760
  %3590 = vmatpush1.msra.mxu0 %v3589
  %v3591 = vand.u32 %v1502, 4294901760
  %v3592 = vsub.f32 %v1502, %v3591
  %v3593 = vand.u32 %v3592, 4294901760
  %v3594 = vsub.f32 %v3592, %v3593
  %v3595 = vand.u32 %v3594, 4294901760
  %3596 = vmatprep.subr.mxu0 %v3595
  %v3597 = vand.u32 %v1501, 4294901760
  %v3598 = vsub.f32 %v1501, %v3597
  %v3599 = vand.u32 %v3598, 4294901760
  %v3600 = vsub.f32 %v3598, %v3599
  %v3601 = vand.u32 %v3600, 4294901760
  %3602 = vmatpush1.msra.mxu0 %v3601
  %v3603 = vand.u32 %v1518, 4294901760
  %v3604 = vsub.f32 %v1518, %v3603
  %v3605 = vand.u32 %v3604, 4294901760
  %v3606 = vsub.f32 %v3604, %v3605
  %v3607 = vand.u32 %v3606, 4294901760
  %3608 = vmatprep.subr.mxu0 %v3607
  %v3609 = vand.u32 %v1517, 4294901760
  %v3610 = vsub.f32 %v1517, %v3609
  %v3611 = vand.u32 %v3610, 4294901760
  %v3612 = vsub.f32 %v3610, %v3611
  %v3613 = vand.u32 %v3612, 4294901760
  %3614 = vmatpush1.msra.mxu0 %v3613
  %v3615 = vand.u32 %v1534, 4294901760
  %v3616 = vsub.f32 %v1534, %v3615
  %v3617 = vand.u32 %v3616, 4294901760
  %v3618 = vsub.f32 %v3616, %v3617
  %v3619 = vand.u32 %v3618, 4294901760
  %3620 = vmatprep.subr.mxu0 %v3619
  %v3621 = vand.u32 %v1533, 4294901760
  %v3622 = vsub.f32 %v1533, %v3621
  %v3623 = vand.u32 %v3622, 4294901760
  %v3624 = vsub.f32 %v3622, %v3623
  %v3625 = vand.u32 %v3624, 4294901760
  %3626 = vmatpush1.msra.mxu0 %v3625
  %v3627 = vand.u32 %v1550, 4294901760
  %v3628 = vsub.f32 %v1550, %v3627
  %v3629 = vand.u32 %v3628, 4294901760
  %v3630 = vsub.f32 %v3628, %v3629
  %v3631 = vand.u32 %v3630, 4294901760
  %3632 = vmatprep.subr.mxu0 %v3631
  %v3633 = vand.u32 %v1549, 4294901760
  %v3634 = vsub.f32 %v1549, %v3633
  %v3635 = vand.u32 %v3634, 4294901760
  %v3636 = vsub.f32 %v3634, %v3635
  %v3637 = vand.u32 %v3636, 4294901760
  %3638 = vmatpush1.msra.mxu0 %v3637
  %v3639 = vand.u32 %v1566, 4294901760
  %v3640 = vsub.f32 %v1566, %v3639
  %v3641 = vand.u32 %v3640, 4294901760
  %v3642 = vsub.f32 %v3640, %v3641
  %v3643 = vand.u32 %v3642, 4294901760
  %3644 = vmatprep.subr.mxu0 %v3643
  %v3645 = vand.u32 %v1565, 4294901760
  %v3646 = vsub.f32 %v1565, %v3645
  %v3647 = vand.u32 %v3646, 4294901760
  %v3648 = vsub.f32 %v3646, %v3647
  %v3649 = vand.u32 %v3648, 4294901760
  %3650 = vmatpush1.msra.mxu0 %v3649
  %v3651 = vand.u32 %v1582, 4294901760
  %v3652 = vsub.f32 %v1582, %v3651
  %v3653 = vand.u32 %v3652, 4294901760
  %v3654 = vsub.f32 %v3652, %v3653
  %v3655 = vand.u32 %v3654, 4294901760
  %3656 = vmatprep.subr.mxu0 %v3655
  %v3657 = vand.u32 %v1581, 4294901760
  %v3658 = vsub.f32 %v1581, %v3657
  %v3659 = vand.u32 %v3658, 4294901760
  %v3660 = vsub.f32 %v3658, %v3659
  %v3661 = vand.u32 %v3660, 4294901760
  %3662 = vmatpush1.msra.mxu0 %v3661
  %v3663 = vand.u32 %v1598, 4294901760
  %v3664 = vsub.f32 %v1598, %v3663
  %v3665 = vand.u32 %v3664, 4294901760
  %v3666 = vsub.f32 %v3664, %v3665
  %v3667 = vand.u32 %v3666, 4294901760
  %3668 = vmatprep.subr.mxu0 %v3667
  %v3669 = vand.u32 %v1597, 4294901760
  %v3670 = vsub.f32 %v1597, %v3669
  %v3671 = vand.u32 %v3670, 4294901760
  %v3672 = vsub.f32 %v3670, %v3671
  %v3673 = vand.u32 %v3672, 4294901760
  %3674 = vmatpush1.msra.mxu0 %v3673
  %v3675 = vand.u32 %v1614, 4294901760
  %v3676 = vsub.f32 %v1614, %v3675
  %v3677 = vand.u32 %v3676, 4294901760
  %v3678 = vsub.f32 %v3676, %v3677
  %v3679 = vand.u32 %v3678, 4294901760
  %3680 = vmatprep.subr.mxu0 %v3679
  %v3681 = vand.u32 %v1613, 4294901760
  %v3682 = vsub.f32 %v1613, %v3681
  %v3683 = vand.u32 %v3682, 4294901760
  %v3684 = vsub.f32 %v3682, %v3683
  %v3685 = vand.u32 %v3684, 4294901760
  %3686 = vmatpush1.msra.mxu0 %v3685
  %v3687 = vand.u32 %v1630, 4294901760
  %v3688 = vsub.f32 %v1630, %v3687
  %v3689 = vand.u32 %v3688, 4294901760
  %v3690 = vsub.f32 %v3688, %v3689
  %v3691 = vand.u32 %v3690, 4294901760
  %3692 = vmatprep.subr.mxu0 %v3691
  %v3693 = vand.u32 %v1629, 4294901760
  %v3694 = vsub.f32 %v1629, %v3693
  %v3695 = vand.u32 %v3694, 4294901760
  %v3696 = vsub.f32 %v3694, %v3695
  %v3697 = vand.u32 %v3696, 4294901760
  %3698 = vmatpush1.msra.mxu0 %v3697
  %v3699 = vand.u32 %v1646, 4294901760
  %v3700 = vsub.f32 %v1646, %v3699
  %v3701 = vand.u32 %v3700, 4294901760
  %v3702 = vsub.f32 %v3700, %v3701
  %v3703 = vand.u32 %v3702, 4294901760
  %3704 = vmatprep.subr.mxu0 %v3703
  %v3705 = vand.u32 %v1645, 4294901760
  %v3706 = vsub.f32 %v1645, %v3705
  %v3707 = vand.u32 %v3706, 4294901760
  %v3708 = vsub.f32 %v3706, %v3707
  %v3709 = vand.u32 %v3708, 4294901760
  %3710 = vmatpush1.msra.mxu0 %v3709
  %v3711 = vand.u32 %v1662, 4294901760
  %v3712 = vsub.f32 %v1662, %v3711
  %v3713 = vand.u32 %v3712, 4294901760
  %v3714 = vsub.f32 %v3712, %v3713
  %v3715 = vand.u32 %v3714, 4294901760
  %3716 = vmatprep.subr.mxu0 %v3715
  %v3717 = vand.u32 %v1661, 4294901760
  %v3718 = vsub.f32 %v1661, %v3717
  %v3719 = vand.u32 %v3718, 4294901760
  %v3720 = vsub.f32 %v3718, %v3719
  %v3721 = vand.u32 %v3720, 4294901760
  %3722 = vmatpush1.msra.mxu0 %v3721
  %v3723 = vand.u32 %v1678, 4294901760
  %v3724 = vsub.f32 %v1678, %v3723
  %v3725 = vand.u32 %v3724, 4294901760
  %v3726 = vsub.f32 %v3724, %v3725
  %v3727 = vand.u32 %v3726, 4294901760
  %3728 = vmatprep.subr.mxu0 %v3727
  %v3729 = vand.u32 %v1677, 4294901760
  %v3730 = vsub.f32 %v1677, %v3729
  %v3731 = vand.u32 %v3730, 4294901760
  %v3732 = vsub.f32 %v3730, %v3731
  %v3733 = vand.u32 %v3732, 4294901760
  %3734 = vmatpush1.msra.mxu0 %v3733
  %3735 = vmatprep.subr.mxu0 0.0
  %3736 = vmatpush1.msra.mxu0 0.0
  %3737 = vmatprep.subr.mxu0 0.0
  %3738 = vmatpush1.msra.mxu0 0.0
  %3739 = vmatprep.subr.mxu0 0.0
  %3740 = vmatpush1.msra.mxu0 0.0
  %3741 = vmatprep.subr.mxu0 0.0
  %3742 = vmatpush1.msra.mxu0 0.0
  %3743 = vmatprep.subr.mxu0 0.0
  %3744 = vmatpush1.msra.mxu0 0.0
  %3745 = vmatprep.subr.mxu0 0.0
  %3746 = vmatpush1.msra.mxu0 0.0
  %3747 = vmatprep.subr.mxu0 0.0
  %3748 = vmatpush1.msra.mxu0 0.0
  %3749 = vmatprep.subr.mxu0 0.0
  %3750 = vmatpush1.msra.mxu0 0.0
  %3751 = vmatprep.subr.mxu0 0.0
  %3752 = vmatpush1.msra.mxu0 0.0
  %3753 = vmatprep.subr.mxu0 0.0
  %3754 = vmatpush1.msra.mxu0 0.0
  %3755 = vmatprep.subr.mxu0 0.0
  %3756 = vmatpush1.msra.mxu0 0.0
  %3757 = vmatprep.subr.mxu0 0.0
  %3758 = vmatpush1.msra.mxu0 0.0
  %3759 = vmatprep.subr.mxu0 0.0
  %3760 = vmatpush1.msra.mxu0 0.0
  %3761 = vmatprep.subr.mxu0 0.0
  %3762 = vmatpush1.msra.mxu0 0.0
  %3763 = vmatprep.subr.mxu0 0.0
  %3764 = vmatpush1.msra.mxu0 0.0
  %3765 = vmatprep.subr.mxu0 0.0
  %3766 = vmatpush1.msra.mxu0 0.0
  %3767 = vmatprep.mubr.f32.mxu0 0.0
  %v3768 = vand.u32 %v1689, 4294901760
  %3769 = vmatmul.mubr.f32.gmra.mrb[0].mxu0 %v3768
  %v3770 = vpop.f32.mrb[0].mxu0
  %v3771 = vadd.f32 %v3539, %v3770
  %v3772 = vpop.f32.mrb[0].mxu0
  %v3773 = vadd.f32 %v3541, %v3772
  %3774 = vdwg.mxu0
  %v3775 = vand.u32 %v1438, 4294901760
  %v3776 = vsub.f32 %v1438, %v3775
  %3777 = vmatprep.subr.mxu0 %v3776
  %v3778 = vand.u32 %v1437, 4294901760
  %v3779 = vsub.f32 %v1437, %v3778
  %3780 = vmatpush1.msra.mxu0 %v3779
  %v3781 = vand.u32 %v1454, 4294901760
  %v3782 = vsub.f32 %v1454, %v3781
  %3783 = vmatprep.subr.mxu0 %v3782
  %v3784 = vand.u32 %v1453, 4294901760
  %v3785 = vsub.f32 %v1453, %v3784
  %3786 = vmatpush1.msra.mxu0 %v3785
  %v3787 = vand.u32 %v1470, 4294901760
  %v3788 = vsub.f32 %v1470, %v3787
  %3789 = vmatprep.subr.mxu0 %v3788
  %v3790 = vand.u32 %v1469, 4294901760
  %v3791 = vsub.f32 %v1469, %v3790
  %3792 = vmatpush1.msra.mxu0 %v3791
  %v3793 = vand.u32 %v1486, 4294901760
  %v3794 = vsub.f32 %v1486, %v3793
  %3795 = vmatprep.subr.mxu0 %v3794
  %v3796 = vand.u32 %v1485, 4294901760
  %v3797 = vsub.f32 %v1485, %v3796
  %3798 = vmatpush1.msra.mxu0 %v3797
  %v3799 = vand.u32 %v1502, 4294901760
  %v3800 = vsub.f32 %v1502, %v3799
  %3801 = vmatprep.subr.mxu0 %v3800
  %v3802 = vand.u32 %v1501, 4294901760
  %v3803 = vsub.f32 %v1501, %v3802
  %3804 = vmatpush1.msra.mxu0 %v3803
  %v3805 = vand.u32 %v1518, 4294901760
  %v3806 = vsub.f32 %v1518, %v3805
  %3807 = vmatprep.subr.mxu0 %v3806
  %v3808 = vand.u32 %v1517, 4294901760
  %v3809 = vsub.f32 %v1517, %v3808
  %3810 = vmatpush1.msra.mxu0 %v3809
  %v3811 = vand.u32 %v1534, 4294901760
  %v3812 = vsub.f32 %v1534, %v3811
  %3813 = vmatprep.subr.mxu0 %v3812
  %v3814 = vand.u32 %v1533, 4294901760
  %v3815 = vsub.f32 %v1533, %v3814
  %3816 = vmatpush1.msra.mxu0 %v3815
  %v3817 = vand.u32 %v1550, 4294901760
  %v3818 = vsub.f32 %v1550, %v3817
  %3819 = vmatprep.subr.mxu0 %v3818
  %v3820 = vand.u32 %v1549, 4294901760
  %v3821 = vsub.f32 %v1549, %v3820
  %3822 = vmatpush1.msra.mxu0 %v3821
  %v3823 = vand.u32 %v1566, 4294901760
  %v3824 = vsub.f32 %v1566, %v3823
  %3825 = vmatprep.subr.mxu0 %v3824
  %v3826 = vand.u32 %v1565, 4294901760
  %v3827 = vsub.f32 %v1565, %v3826
  %3828 = vmatpush1.msra.mxu0 %v3827
  %v3829 = vand.u32 %v1582, 4294901760
  %v3830 = vsub.f32 %v1582, %v3829
  %3831 = vmatprep.subr.mxu0 %v3830
  %v3832 = vand.u32 %v1581, 4294901760
  %v3833 = vsub.f32 %v1581, %v3832
  %3834 = vmatpush1.msra.mxu0 %v3833
  %v3835 = vand.u32 %v1598, 4294901760
  %v3836 = vsub.f32 %v1598, %v3835
  %3837 = vmatprep.subr.mxu0 %v3836
  %v3838 = vand.u32 %v1597, 4294901760
  %v3839 = vsub.f32 %v1597, %v3838
  %3840 = vmatpush1.msra.mxu0 %v3839
  %v3841 = vand.u32 %v1614, 4294901760
  %v3842 = vsub.f32 %v1614, %v3841
  %3843 = vmatprep.subr.mxu0 %v3842
  %v3844 = vand.u32 %v1613, 4294901760
  %v3845 = vsub.f32 %v1613, %v3844
  %3846 = vmatpush1.msra.mxu0 %v3845
  %v3847 = vand.u32 %v1630, 4294901760
  %v3848 = vsub.f32 %v1630, %v3847
  %3849 = vmatprep.subr.mxu0 %v3848
  %v3850 = vand.u32 %v1629, 4294901760
  %v3851 = vsub.f32 %v1629, %v3850
  %3852 = vmatpush1.msra.mxu0 %v3851
  %v3853 = vand.u32 %v1646, 4294901760
  %v3854 = vsub.f32 %v1646, %v3853
  %3855 = vmatprep.subr.mxu0 %v3854
  %v3856 = vand.u32 %v1645, 4294901760
  %v3857 = vsub.f32 %v1645, %v3856
  %3858 = vmatpush1.msra.mxu0 %v3857
  %v3859 = vand.u32 %v1662, 4294901760
  %v3860 = vsub.f32 %v1662, %v3859
  %3861 = vmatprep.subr.mxu0 %v3860
  %v3862 = vand.u32 %v1661, 4294901760
  %v3863 = vsub.f32 %v1661, %v3862
  %3864 = vmatpush1.msra.mxu0 %v3863
  %v3865 = vand.u32 %v1678, 4294901760
  %v3866 = vsub.f32 %v1678, %v3865
  %3867 = vmatprep.subr.mxu0 %v3866
  %v3868 = vand.u32 %v1677, 4294901760
  %v3869 = vsub.f32 %v1677, %v3868
  %3870 = vmatpush1.msra.mxu0 %v3869
  %3871 = vmatprep.subr.mxu0 0.0
  %3872 = vmatpush1.msra.mxu0 0.0
  %3873 = vmatprep.subr.mxu0 0.0
  %3874 = vmatpush1.msra.mxu0 0.0
  %3875 = vmatprep.subr.mxu0 0.0
  %3876 = vmatpush1.msra.mxu0 0.0
  %3877 = vmatprep.subr.mxu0 0.0
  %3878 = vmatpush1.msra.mxu0 0.0
  %3879 = vmatprep.subr.mxu0 0.0
  %3880 = vmatpush1.msra.mxu0 0.0
  %3881 = vmatprep.subr.mxu0 0.0
  %3882 = vmatpush1.msra.mxu0 0.0
  %3883 = vmatprep.subr.mxu0 0.0
  %3884 = vmatpush1.msra.mxu0 0.0
  %3885 = vmatprep.subr.mxu0 0.0
  %3886 = vmatpush1.msra.mxu0 0.0
  %3887 = vmatprep.subr.mxu0 0.0
  %3888 = vmatpush1.msra.mxu0 0.0
  %3889 = vmatprep.subr.mxu0 0.0
  %3890 = vmatpush1.msra.mxu0 0.0
  %3891 = vmatprep.subr.mxu0 0.0
  %3892 = vmatpush1.msra.mxu0 0.0
  %3893 = vmatprep.subr.mxu0 0.0
  %3894 = vmatpush1.msra.mxu0 0.0
  %3895 = vmatprep.subr.mxu0 0.0
  %3896 = vmatpush1.msra.mxu0 0.0
  %3897 = vmatprep.subr.mxu0 0.0
  %3898 = vmatpush1.msra.mxu0 0.0
  %3899 = vmatprep.subr.mxu0 0.0
  %3900 = vmatpush1.msra.mxu0 0.0
  %3901 = vmatprep.subr.mxu0 0.0
  %3902 = vmatpush1.msra.mxu0 0.0
  %3903 = vmatprep.mubr.f32.mxu0 0.0
  %v3904 = vand.u32 %v1689, 4294901760
  %v3905 = vsub.f32 %v1689, %v3904
  %3906 = vmatmul.mubr.f32.gmra.mrb[0].mxu0 %v3905
  %v3907 = vpop.f32.mrb[0].mxu0
  %v3908 = vadd.f32 %v3771, %v3907
  %v3909 = vpop.f32.mrb[0].mxu0
  %v3910 = vadd.f32 %v3773, %v3909
  %3911 = vdwg.mxu0
  %v3912 = vand.u32 %v1438, 4294901760
  %3913 = vmatprep.subr.mxu0 %v3912
  %v3914 = vand.u32 %v1437, 4294901760
  %3915 = vmatpush1.msra.mxu0 %v3914
  %v3916 = vand.u32 %v1454, 4294901760
  %3917 = vmatprep.subr.mxu0 %v3916
  %v3918 = vand.u32 %v1453, 4294901760
  %3919 = vmatpush1.msra.mxu0 %v3918
  %v3920 = vand.u32 %v1470, 4294901760
  %3921 = vmatprep.subr.mxu0 %v3920
  %v3922 = vand.u32 %v1469, 4294901760
  %3923 = vmatpush1.msra.mxu0 %v3922
  %v3924 = vand.u32 %v1486, 4294901760
  %3925 = vmatprep.subr.mxu0 %v3924
  %v3926 = vand.u32 %v1485, 4294901760
  %3927 = vmatpush1.msra.mxu0 %v3926
  %v3928 = vand.u32 %v1502, 4294901760
  %3929 = vmatprep.subr.mxu0 %v3928
  %v3930 = vand.u32 %v1501, 4294901760
  %3931 = vmatpush1.msra.mxu0 %v3930
  %v3932 = vand.u32 %v1518, 4294901760
  %3933 = vmatprep.subr.mxu0 %v3932
  %v3934 = vand.u32 %v1517, 4294901760
  %3935 = vmatpush1.msra.mxu0 %v3934
  %v3936 = vand.u32 %v1534, 4294901760
  %3937 = vmatprep.subr.mxu0 %v3936
  %v3938 = vand.u32 %v1533, 4294901760
  %3939 = vmatpush1.msra.mxu0 %v3938
  %v3940 = vand.u32 %v1550, 4294901760
  %3941 = vmatprep.subr.mxu0 %v3940
  %v3942 = vand.u32 %v1549, 4294901760
  %3943 = vmatpush1.msra.mxu0 %v3942
  %v3944 = vand.u32 %v1566, 4294901760
  %3945 = vmatprep.subr.mxu0 %v3944
  %v3946 = vand.u32 %v1565, 4294901760
  %3947 = vmatpush1.msra.mxu0 %v3946
  %v3948 = vand.u32 %v1582, 4294901760
  %3949 = vmatprep.subr.mxu0 %v3948
  %v3950 = vand.u32 %v1581, 4294901760
  %3951 = vmatpush1.msra.mxu0 %v3950
  %v3952 = vand.u32 %v1598, 4294901760
  %3953 = vmatprep.subr.mxu0 %v3952
  %v3954 = vand.u32 %v1597, 4294901760
  %3955 = vmatpush1.msra.mxu0 %v3954
  %v3956 = vand.u32 %v1614, 4294901760
  %3957 = vmatprep.subr.mxu0 %v3956
  %v3958 = vand.u32 %v1613, 4294901760
  %3959 = vmatpush1.msra.mxu0 %v3958
  %v3960 = vand.u32 %v1630, 4294901760
  %3961 = vmatprep.subr.mxu0 %v3960
  %v3962 = vand.u32 %v1629, 4294901760
  %3963 = vmatpush1.msra.mxu0 %v3962
  %v3964 = vand.u32 %v1646, 4294901760
  %3965 = vmatprep.subr.mxu0 %v3964
  %v3966 = vand.u32 %v1645, 4294901760
  %3967 = vmatpush1.msra.mxu0 %v3966
  %v3968 = vand.u32 %v1662, 4294901760
  %3969 = vmatprep.subr.mxu0 %v3968
  %v3970 = vand.u32 %v1661, 4294901760
  %3971 = vmatpush1.msra.mxu0 %v3970
  %v3972 = vand.u32 %v1678, 4294901760
  %3973 = vmatprep.subr.mxu0 %v3972
  %v3974 = vand.u32 %v1677, 4294901760
  %3975 = vmatpush1.msra.mxu0 %v3974
  %3976 = vmatprep.subr.mxu0 0.0
  %3977 = vmatpush1.msra.mxu0 0.0
  %3978 = vmatprep.subr.mxu0 0.0
  %3979 = vmatpush1.msra.mxu0 0.0
  %3980 = vmatprep.subr.mxu0 0.0
  %3981 = vmatpush1.msra.mxu0 0.0
  %3982 = vmatprep.subr.mxu0 0.0
  %3983 = vmatpush1.msra.mxu0 0.0
  %3984 = vmatprep.subr.mxu0 0.0
  %3985 = vmatpush1.msra.mxu0 0.0
  %3986 = vmatprep.subr.mxu0 0.0
  %3987 = vmatpush1.msra.mxu0 0.0
  %3988 = vmatprep.subr.mxu0 0.0
  %3989 = vmatpush1.msra.mxu0 0.0
  %3990 = vmatprep.subr.mxu0 0.0
  %3991 = vmatpush1.msra.mxu0 0.0
  %3992 = vmatprep.subr.mxu0 0.0
  %3993 = vmatpush1.msra.mxu0 0.0
  %3994 = vmatprep.subr.mxu0 0.0
  %3995 = vmatpush1.msra.mxu0 0.0
  %3996 = vmatprep.subr.mxu0 0.0
  %3997 = vmatpush1.msra.mxu0 0.0
  %3998 = vmatprep.subr.mxu0 0.0
  %3999 = vmatpush1.msra.mxu0 0.0
  %4000 = vmatprep.subr.mxu0 0.0
  %4001 = vmatpush1.msra.mxu0 0.0
  %4002 = vmatprep.subr.mxu0 0.0
  %4003 = vmatpush1.msra.mxu0 0.0
  %4004 = vmatprep.subr.mxu0 0.0
  %4005 = vmatpush1.msra.mxu0 0.0
  %4006 = vmatprep.subr.mxu0 0.0
  %4007 = vmatpush1.msra.mxu0 0.0
  %4008 = vmatprep.mubr.f32.mxu0 0.0
  %v4009 = vand.u32 %v1689, 4294901760
  %v4010 = vsub.f32 %v1689, %v4009
  %v4011 = vand.u32 %v4010, 4294901760
  %4012 = vmatmul.mubr.f32.gmra.mrb[0].mxu0 %v4011
  %v4013 = vpop.f32.mrb[0].mxu0
  %v4014 = vadd.f32 %v3908, %v4013
  %v4015 = vpop.f32.mrb[0].mxu0
  %v4016 = vadd.f32 %v3910, %v4015
  %4017 = vdwg.mxu0
  %v4018 = vand.u32 %v1438, 4294901760
  %v4019 = vsub.f32 %v1438, %v4018
  %v4020 = vand.u32 %v4019, 4294901760
  %4021 = vmatprep.subr.mxu0 %v4020
  %v4022 = vand.u32 %v1437, 4294901760
  %v4023 = vsub.f32 %v1437, %v4022
  %v4024 = vand.u32 %v4023, 4294901760
  %4025 = vmatpush1.msra.mxu0 %v4024
  %v4026 = vand.u32 %v1454, 4294901760
  %v4027 = vsub.f32 %v1454, %v4026
  %v4028 = vand.u32 %v4027, 4294901760
  %4029 = vmatprep.subr.mxu0 %v4028
  %v4030 = vand.u32 %v1453, 4294901760
  %v4031 = vsub.f32 %v1453, %v4030
  %v4032 = vand.u32 %v4031, 4294901760
  %4033 = vmatpush1.msra.mxu0 %v4032
  %v4034 = vand.u32 %v1470, 4294901760
  %v4035 = vsub.f32 %v1470, %v4034
  %v4036 = vand.u32 %v4035, 4294901760
  %4037 = vmatprep.subr.mxu0 %v4036
  %v4038 = vand.u32 %v1469, 4294901760
  %v4039 = vsub.f32 %v1469, %v4038
  %v4040 = vand.u32 %v4039, 4294901760
  %4041 = vmatpush1.msra.mxu0 %v4040
  %v4042 = vand.u32 %v1486, 4294901760
  %v4043 = vsub.f32 %v1486, %v4042
  %v4044 = vand.u32 %v4043, 4294901760
  %4045 = vmatprep.subr.mxu0 %v4044
  %v4046 = vand.u32 %v1485, 4294901760
  %v4047 = vsub.f32 %v1485, %v4046
  %v4048 = vand.u32 %v4047, 4294901760
  %4049 = vmatpush1.msra.mxu0 %v4048
  %v4050 = vand.u32 %v1502, 4294901760
  %v4051 = vsub.f32 %v1502, %v4050
  %v4052 = vand.u32 %v4051, 4294901760
  %4053 = vmatprep.subr.mxu0 %v4052
  %v4054 = vand.u32 %v1501, 4294901760
  %v4055 = vsub.f32 %v1501, %v4054
  %v4056 = vand.u32 %v4055, 4294901760
  %4057 = vmatpush1.msra.mxu0 %v4056
  %v4058 = vand.u32 %v1518, 4294901760
  %v4059 = vsub.f32 %v1518, %v4058
  %v4060 = vand.u32 %v4059, 4294901760
  %4061 = vmatprep.subr.mxu0 %v4060
  %v4062 = vand.u32 %v1517, 4294901760
  %v4063 = vsub.f32 %v1517, %v4062
  %v4064 = vand.u32 %v4063, 4294901760
  %4065 = vmatpush1.msra.mxu0 %v4064
  %v4066 = vand.u32 %v1534, 4294901760
  %v4067 = vsub.f32 %v1534, %v4066
  %v4068 = vand.u32 %v4067, 4294901760
  %4069 = vmatprep.subr.mxu0 %v4068
  %v4070 = vand.u32 %v1533, 4294901760
  %v4071 = vsub.f32 %v1533, %v4070
  %v4072 = vand.u32 %v4071, 4294901760
  %4073 = vmatpush1.msra.mxu0 %v4072
  %v4074 = vand.u32 %v1550, 4294901760
  %v4075 = vsub.f32 %v1550, %v4074
  %v4076 = vand.u32 %v4075, 4294901760
  %4077 = vmatprep.subr.mxu0 %v4076
  %v4078 = vand.u32 %v1549, 4294901760
  %v4079 = vsub.f32 %v1549, %v4078
  %v4080 = vand.u32 %v4079, 4294901760
  %4081 = vmatpush1.msra.mxu0 %v4080
  %v4082 = vand.u32 %v1566, 4294901760
  %v4083 = vsub.f32 %v1566, %v4082
  %v4084 = vand.u32 %v4083, 4294901760
  %4085 = vmatprep.subr.mxu0 %v4084
  %v4086 = vand.u32 %v1565, 4294901760
  %v4087 = vsub.f32 %v1565, %v4086
  %v4088 = vand.u32 %v4087, 4294901760
  %4089 = vmatpush1.msra.mxu0 %v4088
  %v4090 = vand.u32 %v1582, 4294901760
  %v4091 = vsub.f32 %v1582, %v4090
  %v4092 = vand.u32 %v4091, 4294901760
  %4093 = vmatprep.subr.mxu0 %v4092
  %v4094 = vand.u32 %v1581, 4294901760
  %v4095 = vsub.f32 %v1581, %v4094
  %v4096 = vand.u32 %v4095, 4294901760
  %4097 = vmatpush1.msra.mxu0 %v4096
  %v4098 = vand.u32 %v1598, 4294901760
  %v4099 = vsub.f32 %v1598, %v4098
  %v4100 = vand.u32 %v4099, 4294901760
  %4101 = vmatprep.subr.mxu0 %v4100
  %v4102 = vand.u32 %v1597, 4294901760
  %v4103 = vsub.f32 %v1597, %v4102
  %v4104 = vand.u32 %v4103, 4294901760
  %4105 = vmatpush1.msra.mxu0 %v4104
  %v4106 = vand.u32 %v1614, 4294901760
  %v4107 = vsub.f32 %v1614, %v4106
  %v4108 = vand.u32 %v4107, 4294901760
  %4109 = vmatprep.subr.mxu0 %v4108
  %v4110 = vand.u32 %v1613, 4294901760
  %v4111 = vsub.f32 %v1613, %v4110
  %v4112 = vand.u32 %v4111, 4294901760
  %4113 = vmatpush1.msra.mxu0 %v4112
  %v4114 = vand.u32 %v1630, 4294901760
  %v4115 = vsub.f32 %v1630, %v4114
  %v4116 = vand.u32 %v4115, 4294901760
  %4117 = vmatprep.subr.mxu0 %v4116
  %v4118 = vand.u32 %v1629, 4294901760
  %v4119 = vsub.f32 %v1629, %v4118
  %v4120 = vand.u32 %v4119, 4294901760
  %4121 = vmatpush1.msra.mxu0 %v4120
  %v4122 = vand.u32 %v1646, 4294901760
  %v4123 = vsub.f32 %v1646, %v4122
  %v4124 = vand.u32 %v4123, 4294901760
  %4125 = vmatprep.subr.mxu0 %v4124
  %v4126 = vand.u32 %v1645, 4294901760
  %v4127 = vsub.f32 %v1645, %v4126
  %v4128 = vand.u32 %v4127, 4294901760
  %4129 = vmatpush1.msra.mxu0 %v4128
  %v4130 = vand.u32 %v1662, 4294901760
  %v4131 = vsub.f32 %v1662, %v4130
  %v4132 = vand.u32 %v4131, 4294901760
  %4133 = vmatprep.subr.mxu0 %v4132
  %v4134 = vand.u32 %v1661, 4294901760
  %v4135 = vsub.f32 %v1661, %v4134
  %v4136 = vand.u32 %v4135, 4294901760
  %4137 = vmatpush1.msra.mxu0 %v4136
  %v4138 = vand.u32 %v1678, 4294901760
  %v4139 = vsub.f32 %v1678, %v4138
  %v4140 = vand.u32 %v4139, 4294901760
  %4141 = vmatprep.subr.mxu0 %v4140
  %v4142 = vand.u32 %v1677, 4294901760
  %v4143 = vsub.f32 %v1677, %v4142
  %v4144 = vand.u32 %v4143, 4294901760
  %4145 = vmatpush1.msra.mxu0 %v4144
  %4146 = vmatprep.subr.mxu0 0.0
  %4147 = vmatpush1.msra.mxu0 0.0
  %4148 = vmatprep.subr.mxu0 0.0
  %4149 = vmatpush1.msra.mxu0 0.0
  %4150 = vmatprep.subr.mxu0 0.0
  %4151 = vmatpush1.msra.mxu0 0.0
  %4152 = vmatprep.subr.mxu0 0.0
  %4153 = vmatpush1.msra.mxu0 0.0
  %4154 = vmatprep.subr.mxu0 0.0
  %4155 = vmatpush1.msra.mxu0 0.0
  %4156 = vmatprep.subr.mxu0 0.0
  %4157 = vmatpush1.msra.mxu0 0.0
  %4158 = vmatprep.subr.mxu0 0.0
  %4159 = vmatpush1.msra.mxu0 0.0
  %4160 = vmatprep.subr.mxu0 0.0
  %4161 = vmatpush1.msra.mxu0 0.0
  %4162 = vmatprep.subr.mxu0 0.0
  %4163 = vmatpush1.msra.mxu0 0.0
  %4164 = vmatprep.subr.mxu0 0.0
  %4165 = vmatpush1.msra.mxu0 0.0
  %4166 = vmatprep.subr.mxu0 0.0
  %4167 = vmatpush1.msra.mxu0 0.0
  %4168 = vmatprep.subr.mxu0 0.0
  %4169 = vmatpush1.msra.mxu0 0.0
  %4170 = vmatprep.subr.mxu0 0.0
  %4171 = vmatpush1.msra.mxu0 0.0
  %4172 = vmatprep.subr.mxu0 0.0
  %4173 = vmatpush1.msra.mxu0 0.0
  %4174 = vmatprep.subr.mxu0 0.0
  %4175 = vmatpush1.msra.mxu0 0.0
  %4176 = vmatprep.subr.mxu0 0.0
  %4177 = vmatpush1.msra.mxu0 0.0
  %4178 = vmatprep.mubr.f32.mxu0 0.0
  %v4179 = vand.u32 %v1689, 4294901760
  %4180 = vmatmul.mubr.f32.gmra.mrb[0].mxu0 %v4179
  %v4181 = vpop.f32.mrb[0].mxu0
  %v4182 = vadd.f32 %v4014, %v4181
  %v4183 = vpop.f32.mrb[0].mxu0
  %v4184 = vadd.f32 %v4016, %v4183
  %4185 = vdwg.mxu0
  %v4186 = vand.u32 %v1438, 4294901760
  %4187 = vmatprep.subr.mxu0 %v4186
  %v4188 = vand.u32 %v1437, 4294901760
  %4189 = vmatpush1.msra.mxu0 %v4188
  %v4190 = vand.u32 %v1454, 4294901760
  %4191 = vmatprep.subr.mxu0 %v4190
  %v4192 = vand.u32 %v1453, 4294901760
  %4193 = vmatpush1.msra.mxu0 %v4192
  %v4194 = vand.u32 %v1470, 4294901760
  %4195 = vmatprep.subr.mxu0 %v4194
  %v4196 = vand.u32 %v1469, 4294901760
  %4197 = vmatpush1.msra.mxu0 %v4196
  %v4198 = vand.u32 %v1486, 4294901760
  %4199 = vmatprep.subr.mxu0 %v4198
  %v4200 = vand.u32 %v1485, 4294901760
  %4201 = vmatpush1.msra.mxu0 %v4200
  %v4202 = vand.u32 %v1502, 4294901760
  %4203 = vmatprep.subr.mxu0 %v4202
  %v4204 = vand.u32 %v1501, 4294901760
  %4205 = vmatpush1.msra.mxu0 %v4204
  %v4206 = vand.u32 %v1518, 4294901760
  %4207 = vmatprep.subr.mxu0 %v4206
  %v4208 = vand.u32 %v1517, 4294901760
  %4209 = vmatpush1.msra.mxu0 %v4208
  %v4210 = vand.u32 %v1534, 4294901760
  %4211 = vmatprep.subr.mxu0 %v4210
  %v4212 = vand.u32 %v1533, 4294901760
  %4213 = vmatpush1.msra.mxu0 %v4212
  %v4214 = vand.u32 %v1550, 4294901760
  %4215 = vmatprep.subr.mxu0 %v4214
  %v4216 = vand.u32 %v1549, 4294901760
  %4217 = vmatpush1.msra.mxu0 %v4216
  %v4218 = vand.u32 %v1566, 4294901760
  %4219 = vmatprep.subr.mxu0 %v4218
  %v4220 = vand.u32 %v1565, 4294901760
  %4221 = vmatpush1.msra.mxu0 %v4220
  %v4222 = vand.u32 %v1582, 4294901760
  %4223 = vmatprep.subr.mxu0 %v4222
  %v4224 = vand.u32 %v1581, 4294901760
  %4225 = vmatpush1.msra.mxu0 %v4224
  %v4226 = vand.u32 %v1598, 4294901760
  %4227 = vmatprep.subr.mxu0 %v4226
  %v4228 = vand.u32 %v1597, 4294901760
  %4229 = vmatpush1.msra.mxu0 %v4228
  %v4230 = vand.u32 %v1614, 4294901760
  %4231 = vmatprep.subr.mxu0 %v4230
  %v4232 = vand.u32 %v1613, 4294901760
  %4233 = vmatpush1.msra.mxu0 %v4232
  %v4234 = vand.u32 %v1630, 4294901760
  %4235 = vmatprep.subr.mxu0 %v4234
  %v4236 = vand.u32 %v1629, 4294901760
  %4237 = vmatpush1.msra.mxu0 %v4236
  %v4238 = vand.u32 %v1646, 4294901760
  %4239 = vmatprep.subr.mxu0 %v4238
  %v4240 = vand.u32 %v1645, 4294901760
  %4241 = vmatpush1.msra.mxu0 %v4240
  %v4242 = vand.u32 %v1662, 4294901760
  %4243 = vmatprep.subr.mxu0 %v4242
  %v4244 = vand.u32 %v1661, 4294901760
  %4245 = vmatpush1.msra.mxu0 %v4244
  %v4246 = vand.u32 %v1678, 4294901760
  %4247 = vmatprep.subr.mxu0 %v4246
  %v4248 = vand.u32 %v1677, 4294901760
  %4249 = vmatpush1.msra.mxu0 %v4248
  %4250 = vmatprep.subr.mxu0 0.0
  %4251 = vmatpush1.msra.mxu0 0.0
  %4252 = vmatprep.subr.mxu0 0.0
  %4253 = vmatpush1.msra.mxu0 0.0
  %4254 = vmatprep.subr.mxu0 0.0
  %4255 = vmatpush1.msra.mxu0 0.0
  %4256 = vmatprep.subr.mxu0 0.0
  %4257 = vmatpush1.msra.mxu0 0.0
  %4258 = vmatprep.subr.mxu0 0.0
  %4259 = vmatpush1.msra.mxu0 0.0
  %4260 = vmatprep.subr.mxu0 0.0
  %4261 = vmatpush1.msra.mxu0 0.0
  %4262 = vmatprep.subr.mxu0 0.0
  %4263 = vmatpush1.msra.mxu0 0.0
  %4264 = vmatprep.subr.mxu0 0.0
  %4265 = vmatpush1.msra.mxu0 0.0
  %4266 = vmatprep.subr.mxu0 0.0
  %4267 = vmatpush1.msra.mxu0 0.0
  %4268 = vmatprep.subr.mxu0 0.0
  %4269 = vmatpush1.msra.mxu0 0.0
  %4270 = vmatprep.subr.mxu0 0.0
  %4271 = vmatpush1.msra.mxu0 0.0
  %4272 = vmatprep.subr.mxu0 0.0
  %4273 = vmatpush1.msra.mxu0 0.0
  %4274 = vmatprep.subr.mxu0 0.0
  %4275 = vmatpush1.msra.mxu0 0.0
  %4276 = vmatprep.subr.mxu0 0.0
  %4277 = vmatpush1.msra.mxu0 0.0
  %4278 = vmatprep.subr.mxu0 0.0
  %4279 = vmatpush1.msra.mxu0 0.0
  %4280 = vmatprep.subr.mxu0 0.0
  %4281 = vmatpush1.msra.mxu0 0.0
  %4282 = vmatprep.mubr.f32.mxu0 0.0
  %v4283 = vand.u32 %v1689, 4294901760
  %4284 = vmatmul.mubr.f32.gmra.mrb[0].mxu0 %v4283
  %v4285 = vpop.f32.mrb[0].mxu0
  %v4286 = vadd.f32 %v4182, %v4285
  %v4287 = vpop.f32.mrb[0].mxu0
  %v4288 = vadd.f32 %v4184, %v4287
  %4289 = vdwg.mxu0
  %v4290 = vand.u32 %v1440, 4294901760
  %4291 = vmatprep.subr.mxu0 %v4290
  %v4292 = vand.u32 %v1439, 4294901760
  %4293 = vmatpush1.msra.mxu0 %v4292
  %v4294 = vand.u32 %v1456, 4294901760
  %4295 = vmatprep.subr.mxu0 %v4294
  %v4296 = vand.u32 %v1455, 4294901760
  %4297 = vmatpush1.msra.mxu0 %v4296
  %v4298 = vand.u32 %v1472, 4294901760
  %4299 = vmatprep.subr.mxu0 %v4298
  %v4300 = vand.u32 %v1471, 4294901760
  %4301 = vmatpush1.msra.mxu0 %v4300
  %v4302 = vand.u32 %v1488, 4294901760
  %4303 = vmatprep.subr.mxu0 %v4302
  %v4304 = vand.u32 %v1487, 4294901760
  %4305 = vmatpush1.msra.mxu0 %v4304
  %v4306 = vand.u32 %v1504, 4294901760
  %4307 = vmatprep.subr.mxu0 %v4306
  %v4308 = vand.u32 %v1503, 4294901760
  %4309 = vmatpush1.msra.mxu0 %v4308
  %v4310 = vand.u32 %v1520, 4294901760
  %4311 = vmatprep.subr.mxu0 %v4310
  %v4312 = vand.u32 %v1519, 4294901760
  %4313 = vmatpush1.msra.mxu0 %v4312
  %v4314 = vand.u32 %v1536, 4294901760
  %4315 = vmatprep.subr.mxu0 %v4314
  %v4316 = vand.u32 %v1535, 4294901760
  %4317 = vmatpush1.msra.mxu0 %v4316
  %v4318 = vand.u32 %v1552, 4294901760
  %4319 = vmatprep.subr.mxu0 %v4318
  %v4320 = vand.u32 %v1551, 4294901760
  %4321 = vmatpush1.msra.mxu0 %v4320
  %v4322 = vand.u32 %v1568, 4294901760
  %4323 = vmatprep.subr.mxu0 %v4322
  %v4324 = vand.u32 %v1567, 4294901760
  %4325 = vmatpush1.msra.mxu0 %v4324
  %v4326 = vand.u32 %v1584, 4294901760
  %4327 = vmatprep.subr.mxu0 %v4326
  %v4328 = vand.u32 %v1583, 4294901760
  %4329 = vmatpush1.msra.mxu0 %v4328
  %v4330 = vand.u32 %v1600, 4294901760
  %4331 = vmatprep.subr.mxu0 %v4330
  %v4332 = vand.u32 %v1599, 4294901760
  %4333 = vmatpush1.msra.mxu0 %v4332
  %v4334 = vand.u32 %v1616, 4294901760
  %4335 = vmatprep.subr.mxu0 %v4334
  %v4336 = vand.u32 %v1615, 4294901760
  %4337 = vmatpush1.msra.mxu0 %v4336
  %v4338 = vand.u32 %v1632, 4294901760
  %4339 = vmatprep.subr.mxu0 %v4338
  %v4340 = vand.u32 %v1631, 4294901760
  %4341 = vmatpush1.msra.mxu0 %v4340
  %v4342 = vand.u32 %v1648, 4294901760
  %4343 = vmatprep.subr.mxu0 %v4342
  %v4344 = vand.u32 %v1647, 4294901760
  %4345 = vmatpush1.msra.mxu0 %v4344
  %v4346 = vand.u32 %v1664, 4294901760
  %4347 = vmatprep.subr.mxu0 %v4346
  %v4348 = vand.u32 %v1663, 4294901760
  %4349 = vmatpush1.msra.mxu0 %v4348
  %v4350 = vand.u32 %v1680, 4294901760
  %4351 = vmatprep.subr.mxu0 %v4350
  %v4352 = vand.u32 %v1679, 4294901760
  %4353 = vmatpush1.msra.mxu0 %v4352
  %4354 = vmatprep.subr.mxu0 0.0
  %4355 = vmatpush1.msra.mxu0 0.0
  %4356 = vmatprep.subr.mxu0 0.0
  %4357 = vmatpush1.msra.mxu0 0.0
  %4358 = vmatprep.subr.mxu0 0.0
  %4359 = vmatpush1.msra.mxu0 0.0
  %4360 = vmatprep.subr.mxu0 0.0
  %4361 = vmatpush1.msra.mxu0 0.0
  %4362 = vmatprep.subr.mxu0 0.0
  %4363 = vmatpush1.msra.mxu0 0.0
  %4364 = vmatprep.subr.mxu0 0.0
  %4365 = vmatpush1.msra.mxu0 0.0
  %4366 = vmatprep.subr.mxu0 0.0
  %4367 = vmatpush1.msra.mxu0 0.0
  %4368 = vmatprep.subr.mxu0 0.0
  %4369 = vmatpush1.msra.mxu0 0.0
  %4370 = vmatprep.subr.mxu0 0.0
  %4371 = vmatpush1.msra.mxu0 0.0
  %4372 = vmatprep.subr.mxu0 0.0
  %4373 = vmatpush1.msra.mxu0 0.0
  %4374 = vmatprep.subr.mxu0 0.0
  %4375 = vmatpush1.msra.mxu0 0.0
  %4376 = vmatprep.subr.mxu0 0.0
  %4377 = vmatpush1.msra.mxu0 0.0
  %4378 = vmatprep.subr.mxu0 0.0
  %4379 = vmatpush1.msra.mxu0 0.0
  %4380 = vmatprep.subr.mxu0 0.0
  %4381 = vmatpush1.msra.mxu0 0.0
  %4382 = vmatprep.subr.mxu0 0.0
  %4383 = vmatpush1.msra.mxu0 0.0
  %4384 = vmatprep.subr.mxu0 0.0
  %4385 = vmatpush1.msra.mxu0 0.0
  %4386 = vmatprep.mubr.f32.mxu0 0.0
  %v4387 = vand.u32 %v1689, 4294901760
  %v4388 = vsub.f32 %v1689, %v4387
  %v4389 = vand.u32 %v4388, 4294901760
  %v4390 = vsub.f32 %v4388, %v4389
  %v4391 = vand.u32 %v4390, 4294901760
  %4392 = vmatmul.mubr.f32.gmra.mrb[0].mxu0 %v4391
  %v4393 = vpop.f32.mrb[0].mxu0
  %v4394 = vadd.f32 %v1718, %v4393
  %v4395 = vpop.f32.mrb[0].mxu0
  %v4396 = vadd.f32 %v1720, %v4395
  %4397 = vdwg.mxu0
  %v4398 = vand.u32 %v1440, 4294901760
  %v4399 = vsub.f32 %v1440, %v4398
  %v4400 = vand.u32 %v4399, 4294901760
  %v4401 = vsub.f32 %v4399, %v4400
  %v4402 = vand.u32 %v4401, 4294901760
  %4403 = vmatprep.subr.mxu0 %v4402
  %v4404 = vand.u32 %v1439, 4294901760
  %v4405 = vsub.f32 %v1439, %v4404
  %v4406 = vand.u32 %v4405, 4294901760
  %v4407 = vsub.f32 %v4405, %v4406
  %v4408 = vand.u32 %v4407, 4294901760
  %4409 = vmatpush1.msra.mxu0 %v4408
  %v4410 = vand.u32 %v1456, 4294901760
  %v4411 = vsub.f32 %v1456, %v4410
  %v4412 = vand.u32 %v4411, 4294901760
  %v4413 = vsub.f32 %v4411, %v4412
  %v4414 = vand.u32 %v4413, 4294901760
  %4415 = vmatprep.subr.mxu0 %v4414
  %v4416 = vand.u32 %v1455, 4294901760
  %v4417 = vsub.f32 %v1455, %v4416
  %v4418 = vand.u32 %v4417, 4294901760
  %v4419 = vsub.f32 %v4417, %v4418
  %v4420 = vand.u32 %v4419, 4294901760
  %4421 = vmatpush1.msra.mxu0 %v4420
  %v4422 = vand.u32 %v1472, 4294901760
  %v4423 = vsub.f32 %v1472, %v4422
  %v4424 = vand.u32 %v4423, 4294901760
  %v4425 = vsub.f32 %v4423, %v4424
  %v4426 = vand.u32 %v4425, 4294901760
  %4427 = vmatprep.subr.mxu0 %v4426
  %v4428 = vand.u32 %v1471, 4294901760
  %v4429 = vsub.f32 %v1471, %v4428
  %v4430 = vand.u32 %v4429, 4294901760
  %v4431 = vsub.f32 %v4429, %v4430
  %v4432 = vand.u32 %v4431, 4294901760
  %4433 = vmatpush1.msra.mxu0 %v4432
  %v4434 = vand.u32 %v1488, 4294901760
  %v4435 = vsub.f32 %v1488, %v4434
  %v4436 = vand.u32 %v4435, 4294901760
  %v4437 = vsub.f32 %v4435, %v4436
  %v4438 = vand.u32 %v4437, 4294901760
  %4439 = vmatprep.subr.mxu0 %v4438
  %v4440 = vand.u32 %v1487, 4294901760
  %v4441 = vsub.f32 %v1487, %v4440
  %v4442 = vand.u32 %v4441, 4294901760
  %v4443 = vsub.f32 %v4441, %v4442
  %v4444 = vand.u32 %v4443, 4294901760
  %4445 = vmatpush1.msra.mxu0 %v4444
  %v4446 = vand.u32 %v1504, 4294901760
  %v4447 = vsub.f32 %v1504, %v4446
  %v4448 = vand.u32 %v4447, 4294901760
  %v4449 = vsub.f32 %v4447, %v4448
  %v4450 = vand.u32 %v4449, 4294901760
  %4451 = vmatprep.subr.mxu0 %v4450
  %v4452 = vand.u32 %v1503, 4294901760
  %v4453 = vsub.f32 %v1503, %v4452
  %v4454 = vand.u32 %v4453, 4294901760
  %v4455 = vsub.f32 %v4453, %v4454
  %v4456 = vand.u32 %v4455, 4294901760
  %4457 = vmatpush1.msra.mxu0 %v4456
  %v4458 = vand.u32 %v1520, 4294901760
  %v4459 = vsub.f32 %v1520, %v4458
  %v4460 = vand.u32 %v4459, 4294901760
  %v4461 = vsub.f32 %v4459, %v4460
  %v4462 = vand.u32 %v4461, 4294901760
  %4463 = vmatprep.subr.mxu0 %v4462
  %v4464 = vand.u32 %v1519, 4294901760
  %v4465 = vsub.f32 %v1519, %v4464
  %v4466 = vand.u32 %v4465, 4294901760
  %v4467 = vsub.f32 %v4465, %v4466
  %v4468 = vand.u32 %v4467, 4294901760
  %4469 = vmatpush1.msra.mxu0 %v4468
  %v4470 = vand.u32 %v1536, 4294901760
  %v4471 = vsub.f32 %v1536, %v4470
  %v4472 = vand.u32 %v4471, 4294901760
  %v4473 = vsub.f32 %v4471, %v4472
  %v4474 = vand.u32 %v4473, 4294901760
  %4475 = vmatprep.subr.mxu0 %v4474
  %v4476 = vand.u32 %v1535, 4294901760
  %v4477 = vsub.f32 %v1535, %v4476
  %v4478 = vand.u32 %v4477, 4294901760
  %v4479 = vsub.f32 %v4477, %v4478
  %v4480 = vand.u32 %v4479, 4294901760
  %4481 = vmatpush1.msra.mxu0 %v4480
  %v4482 = vand.u32 %v1552, 4294901760
  %v4483 = vsub.f32 %v1552, %v4482
  %v4484 = vand.u32 %v4483, 4294901760
  %v4485 = vsub.f32 %v4483, %v4484
  %v4486 = vand.u32 %v4485, 4294901760
  %4487 = vmatprep.subr.mxu0 %v4486
  %v4488 = vand.u32 %v1551, 4294901760
  %v4489 = vsub.f32 %v1551, %v4488
  %v4490 = vand.u32 %v4489, 4294901760
  %v4491 = vsub.f32 %v4489, %v4490
  %v4492 = vand.u32 %v4491, 4294901760
  %4493 = vmatpush1.msra.mxu0 %v4492
  %v4494 = vand.u32 %v1568, 4294901760
  %v4495 = vsub.f32 %v1568, %v4494
  %v4496 = vand.u32 %v4495, 4294901760
  %v4497 = vsub.f32 %v4495, %v4496
  %v4498 = vand.u32 %v4497, 4294901760
  %4499 = vmatprep.subr.mxu0 %v4498
  %v4500 = vand.u32 %v1567, 4294901760
  %v4501 = vsub.f32 %v1567, %v4500
  %v4502 = vand.u32 %v4501, 4294901760
  %v4503 = vsub.f32 %v4501, %v4502
  %v4504 = vand.u32 %v4503, 4294901760
  %4505 = vmatpush1.msra.mxu0 %v4504
  %v4506 = vand.u32 %v1584, 4294901760
  %v4507 = vsub.f32 %v1584, %v4506
  %v4508 = vand.u32 %v4507, 4294901760
  %v4509 = vsub.f32 %v4507, %v4508
  %v4510 = vand.u32 %v4509, 4294901760
  %4511 = vmatprep.subr.mxu0 %v4510
  %v4512 = vand.u32 %v1583, 4294901760
  %v4513 = vsub.f32 %v1583, %v4512
  %v4514 = vand.u32 %v4513, 4294901760
  %v4515 = vsub.f32 %v4513, %v4514
  %v4516 = vand.u32 %v4515, 4294901760
  %4517 = vmatpush1.msra.mxu0 %v4516
  %v4518 = vand.u32 %v1600, 4294901760
  %v4519 = vsub.f32 %v1600, %v4518
  %v4520 = vand.u32 %v4519, 4294901760
  %v4521 = vsub.f32 %v4519, %v4520
  %v4522 = vand.u32 %v4521, 4294901760
  %4523 = vmatprep.subr.mxu0 %v4522
  %v4524 = vand.u32 %v1599, 4294901760
  %v4525 = vsub.f32 %v1599, %v4524
  %v4526 = vand.u32 %v4525, 4294901760
  %v4527 = vsub.f32 %v4525, %v4526
  %v4528 = vand.u32 %v4527, 4294901760
  %4529 = vmatpush1.msra.mxu0 %v4528
  %v4530 = vand.u32 %v1616, 4294901760
  %v4531 = vsub.f32 %v1616, %v4530
  %v4532 = vand.u32 %v4531, 4294901760
  %v4533 = vsub.f32 %v4531, %v4532
  %v4534 = vand.u32 %v4533, 4294901760
  %4535 = vmatprep.subr.mxu0 %v4534
  %v4536 = vand.u32 %v1615, 4294901760
  %v4537 = vsub.f32 %v1615, %v4536
  %v4538 = vand.u32 %v4537, 4294901760
  %v4539 = vsub.f32 %v4537, %v4538
  %v4540 = vand.u32 %v4539, 4294901760
  %4541 = vmatpush1.msra.mxu0 %v4540
  %v4542 = vand.u32 %v1632, 4294901760
  %v4543 = vsub.f32 %v1632, %v4542
  %v4544 = vand.u32 %v4543, 4294901760
  %v4545 = vsub.f32 %v4543, %v4544
  %v4546 = vand.u32 %v4545, 4294901760
  %4547 = vmatprep.subr.mxu0 %v4546
  %v4548 = vand.u32 %v1631, 4294901760
  %v4549 = vsub.f32 %v1631, %v4548
  %v4550 = vand.u32 %v4549, 4294901760
  %v4551 = vsub.f32 %v4549, %v4550
  %v4552 = vand.u32 %v4551, 4294901760
  %4553 = vmatpush1.msra.mxu0 %v4552
  %v4554 = vand.u32 %v1648, 4294901760
  %v4555 = vsub.f32 %v1648, %v4554
  %v4556 = vand.u32 %v4555, 4294901760
  %v4557 = vsub.f32 %v4555, %v4556
  %v4558 = vand.u32 %v4557, 4294901760
  %4559 = vmatprep.subr.mxu0 %v4558
  %v4560 = vand.u32 %v1647, 4294901760
  %v4561 = vsub.f32 %v1647, %v4560
  %v4562 = vand.u32 %v4561, 4294901760
  %v4563 = vsub.f32 %v4561, %v4562
  %v4564 = vand.u32 %v4563, 4294901760
  %4565 = vmatpush1.msra.mxu0 %v4564
  %v4566 = vand.u32 %v1664, 4294901760
  %v4567 = vsub.f32 %v1664, %v4566
  %v4568 = vand.u32 %v4567, 4294901760
  %v4569 = vsub.f32 %v4567, %v4568
  %v4570 = vand.u32 %v4569, 4294901760
  %4571 = vmatprep.subr.mxu0 %v4570
  %v4572 = vand.u32 %v1663, 4294901760
  %v4573 = vsub.f32 %v1663, %v4572
  %v4574 = vand.u32 %v4573, 4294901760
  %v4575 = vsub.f32 %v4573, %v4574
  %v4576 = vand.u32 %v4575, 4294901760
  %4577 = vmatpush1.msra.mxu0 %v4576
  %v4578 = vand.u32 %v1680, 4294901760
  %v4579 = vsub.f32 %v1680, %v4578
  %v4580 = vand.u32 %v4579, 4294901760
  %v4581 = vsub.f32 %v4579, %v4580
  %v4582 = vand.u32 %v4581, 4294901760
  %4583 = vmatprep.subr.mxu0 %v4582
  %v4584 = vand.u32 %v1679, 4294901760
  %v4585 = vsub.f32 %v1679, %v4584
  %v4586 = vand.u32 %v4585, 4294901760
  %v4587 = vsub.f32 %v4585, %v4586
  %v4588 = vand.u32 %v4587, 4294901760
  %4589 = vmatpush1.msra.mxu0 %v4588
  %4590 = vmatprep.subr.mxu0 0.0
  %4591 = vmatpush1.msra.mxu0 0.0
  %4592 = vmatprep.subr.mxu0 0.0
  %4593 = vmatpush1.msra.mxu0 0.0
  %4594 = vmatprep.subr.mxu0 0.0
  %4595 = vmatpush1.msra.mxu0 0.0
  %4596 = vmatprep.subr.mxu0 0.0
  %4597 = vmatpush1.msra.mxu0 0.0
  %4598 = vmatprep.subr.mxu0 0.0
  %4599 = vmatpush1.msra.mxu0 0.0
  %4600 = vmatprep.subr.mxu0 0.0
  %4601 = vmatpush1.msra.mxu0 0.0
  %4602 = vmatprep.subr.mxu0 0.0
  %4603 = vmatpush1.msra.mxu0 0.0
  %4604 = vmatprep.subr.mxu0 0.0
  %4605 = vmatpush1.msra.mxu0 0.0
  %4606 = vmatprep.subr.mxu0 0.0
  %4607 = vmatpush1.msra.mxu0 0.0
  %4608 = vmatprep.subr.mxu0 0.0
  %4609 = vmatpush1.msra.mxu0 0.0
  %4610 = vmatprep.subr.mxu0 0.0
  %4611 = vmatpush1.msra.mxu0 0.0
  %4612 = vmatprep.subr.mxu0 0.0
  %4613 = vmatpush1.msra.mxu0 0.0
  %4614 = vmatprep.subr.mxu0 0.0
  %4615 = vmatpush1.msra.mxu0 0.0
  %4616 = vmatprep.subr.mxu0 0.0
  %4617 = vmatpush1.msra.mxu0 0.0
  %4618 = vmatprep.subr.mxu0 0.0
  %4619 = vmatpush1.msra.mxu0 0.0
  %4620 = vmatprep.subr.mxu0 0.0
  %4621 = vmatpush1.msra.mxu0 0.0
  %4622 = vmatprep.mubr.f32.mxu0 0.0
  %v4623 = vand.u32 %v1689, 4294901760
  %4624 = vmatmul.mubr.f32.gmra.mrb[0].mxu0 %v4623
  %v4625 = vpop.f32.mrb[0].mxu0
  %v4626 = vadd.f32 %v4394, %v4625
  %v4627 = vpop.f32.mrb[0].mxu0
  %v4628 = vadd.f32 %v4396, %v4627
  %4629 = vdwg.mxu0
  %v4630 = vand.u32 %v1440, 4294901760
  %v4631 = vsub.f32 %v1440, %v4630
  %4632 = vmatprep.subr.mxu0 %v4631
  %v4633 = vand.u32 %v1439, 4294901760
  %v4634 = vsub.f32 %v1439, %v4633
  %4635 = vmatpush1.msra.mxu0 %v4634
  %v4636 = vand.u32 %v1456, 4294901760
  %v4637 = vsub.f32 %v1456, %v4636
  %4638 = vmatprep.subr.mxu0 %v4637
  %v4639 = vand.u32 %v1455, 4294901760
  %v4640 = vsub.f32 %v1455, %v4639
  %4641 = vmatpush1.msra.mxu0 %v4640
  %v4642 = vand.u32 %v1472, 4294901760
  %v4643 = vsub.f32 %v1472, %v4642
  %4644 = vmatprep.subr.mxu0 %v4643
  %v4645 = vand.u32 %v1471, 4294901760
  %v4646 = vsub.f32 %v1471, %v4645
  %4647 = vmatpush1.msra.mxu0 %v4646
  %v4648 = vand.u32 %v1488, 4294901760
  %v4649 = vsub.f32 %v1488, %v4648
  %4650 = vmatprep.subr.mxu0 %v4649
  %v4651 = vand.u32 %v1487, 4294901760
  %v4652 = vsub.f32 %v1487, %v4651
  %4653 = vmatpush1.msra.mxu0 %v4652
  %v4654 = vand.u32 %v1504, 4294901760
  %v4655 = vsub.f32 %v1504, %v4654
  %4656 = vmatprep.subr.mxu0 %v4655
  %v4657 = vand.u32 %v1503, 4294901760
  %v4658 = vsub.f32 %v1503, %v4657
  %4659 = vmatpush1.msra.mxu0 %v4658
  %v4660 = vand.u32 %v1520, 4294901760
  %v4661 = vsub.f32 %v1520, %v4660
  %4662 = vmatprep.subr.mxu0 %v4661
  %v4663 = vand.u32 %v1519, 4294901760
  %v4664 = vsub.f32 %v1519, %v4663
  %4665 = vmatpush1.msra.mxu0 %v4664
  %v4666 = vand.u32 %v1536, 4294901760
  %v4667 = vsub.f32 %v1536, %v4666
  %4668 = vmatprep.subr.mxu0 %v4667
  %v4669 = vand.u32 %v1535, 4294901760
  %v4670 = vsub.f32 %v1535, %v4669
  %4671 = vmatpush1.msra.mxu0 %v4670
  %v4672 = vand.u32 %v1552, 4294901760
  %v4673 = vsub.f32 %v1552, %v4672
  %4674 = vmatprep.subr.mxu0 %v4673
  %v4675 = vand.u32 %v1551, 4294901760
  %v4676 = vsub.f32 %v1551, %v4675
  %4677 = vmatpush1.msra.mxu0 %v4676
  %v4678 = vand.u32 %v1568, 4294901760
  %v4679 = vsub.f32 %v1568, %v4678
  %4680 = vmatprep.subr.mxu0 %v4679
  %v4681 = vand.u32 %v1567, 4294901760
  %v4682 = vsub.f32 %v1567, %v4681
  %4683 = vmatpush1.msra.mxu0 %v4682
  %v4684 = vand.u32 %v1584, 4294901760
  %v4685 = vsub.f32 %v1584, %v4684
  %4686 = vmatprep.subr.mxu0 %v4685
  %v4687 = vand.u32 %v1583, 4294901760
  %v4688 = vsub.f32 %v1583, %v4687
  %4689 = vmatpush1.msra.mxu0 %v4688
  %v4690 = vand.u32 %v1600, 4294901760
  %v4691 = vsub.f32 %v1600, %v4690
  %4692 = vmatprep.subr.mxu0 %v4691
  %v4693 = vand.u32 %v1599, 4294901760
  %v4694 = vsub.f32 %v1599, %v4693
  %4695 = vmatpush1.msra.mxu0 %v4694
  %v4696 = vand.u32 %v1616, 4294901760
  %v4697 = vsub.f32 %v1616, %v4696
  %4698 = vmatprep.subr.mxu0 %v4697
  %v4699 = vand.u32 %v1615, 4294901760
  %v4700 = vsub.f32 %v1615, %v4699
  %4701 = vmatpush1.msra.mxu0 %v4700
  %v4702 = vand.u32 %v1632, 4294901760
  %v4703 = vsub.f32 %v1632, %v4702
  %4704 = vmatprep.subr.mxu0 %v4703
  %v4705 = vand.u32 %v1631, 4294901760
  %v4706 = vsub.f32 %v1631, %v4705
  %4707 = vmatpush1.msra.mxu0 %v4706
  %v4708 = vand.u32 %v1648, 4294901760
  %v4709 = vsub.f32 %v1648, %v4708
  %4710 = vmatprep.subr.mxu0 %v4709
  %v4711 = vand.u32 %v1647, 4294901760
  %v4712 = vsub.f32 %v1647, %v4711
  %4713 = vmatpush1.msra.mxu0 %v4712
  %v4714 = vand.u32 %v1664, 4294901760
  %v4715 = vsub.f32 %v1664, %v4714
  %4716 = vmatprep.subr.mxu0 %v4715
  %v4717 = vand.u32 %v1663, 4294901760
  %v4718 = vsub.f32 %v1663, %v4717
  %4719 = vmatpush1.msra.mxu0 %v4718
  %v4720 = vand.u32 %v1680, 4294901760
  %v4721 = vsub.f32 %v1680, %v4720
  %4722 = vmatprep.subr.mxu0 %v4721
  %v4723 = vand.u32 %v1679, 4294901760
  %v4724 = vsub.f32 %v1679, %v4723
  %4725 = vmatpush1.msra.mxu0 %v4724
  %4726 = vmatprep.subr.mxu0 0.0
  %4727 = vmatpush1.msra.mxu0 0.0
  %4728 = vmatprep.subr.mxu0 0.0
  %4729 = vmatpush1.msra.mxu0 0.0
  %4730 = vmatprep.subr.mxu0 0.0
  %4731 = vmatpush1.msra.mxu0 0.0
  %4732 = vmatprep.subr.mxu0 0.0
  %4733 = vmatpush1.msra.mxu0 0.0
  %4734 = vmatprep.subr.mxu0 0.0
  %4735 = vmatpush1.msra.mxu0 0.0
  %4736 = vmatprep.subr.mxu0 0.0
  %4737 = vmatpush1.msra.mxu0 0.0
  %4738 = vmatprep.subr.mxu0 0.0
  %4739 = vmatpush1.msra.mxu0 0.0
  %4740 = vmatprep.subr.mxu0 0.0
  %4741 = vmatpush1.msra.mxu0 0.0
  %4742 = vmatprep.subr.mxu0 0.0
  %4743 = vmatpush1.msra.mxu0 0.0
  %4744 = vmatprep.subr.mxu0 0.0
  %4745 = vmatpush1.msra.mxu0 0.0
  %4746 = vmatprep.subr.mxu0 0.0
  %4747 = vmatpush1.msra.mxu0 0.0
  %4748 = vmatprep.subr.mxu0 0.0
  %4749 = vmatpush1.msra.mxu0 0.0
  %4750 = vmatprep.subr.mxu0 0.0
  %4751 = vmatpush1.msra.mxu0 0.0
  %4752 = vmatprep.subr.mxu0 0.0
  %4753 = vmatpush1.msra.mxu0 0.0
  %4754 = vmatprep.subr.mxu0 0.0
  %4755 = vmatpush1.msra.mxu0 0.0
  %4756 = vmatprep.subr.mxu0 0.0
  %4757 = vmatpush1.msra.mxu0 0.0
  %4758 = vmatprep.mubr.f32.mxu0 0.0
  %v4759 = vand.u32 %v1689, 4294901760
  %v4760 = vsub.f32 %v1689, %v4759
  %4761 = vmatmul.mubr.f32.gmra.mrb[0].mxu0 %v4760
  %v4762 = vpop.f32.mrb[0].mxu0
  %v4763 = vadd.f32 %v4626, %v4762
  %v4764 = vpop.f32.mrb[0].mxu0
  %v4765 = vadd.f32 %v4628, %v4764
  %4766 = vdwg.mxu0
  %v4767 = vand.u32 %v1440, 4294901760
  %4768 = vmatprep.subr.mxu0 %v4767
  %v4769 = vand.u32 %v1439, 4294901760
  %4770 = vmatpush1.msra.mxu0 %v4769
  %v4771 = vand.u32 %v1456, 4294901760
  %4772 = vmatprep.subr.mxu0 %v4771
  %v4773 = vand.u32 %v1455, 4294901760
  %4774 = vmatpush1.msra.mxu0 %v4773
  %v4775 = vand.u32 %v1472, 4294901760
  %4776 = vmatprep.subr.mxu0 %v4775
  %v4777 = vand.u32 %v1471, 4294901760
  %4778 = vmatpush1.msra.mxu0 %v4777
  %v4779 = vand.u32 %v1488, 4294901760
  %4780 = vmatprep.subr.mxu0 %v4779
  %v4781 = vand.u32 %v1487, 4294901760
  %4782 = vmatpush1.msra.mxu0 %v4781
  %v4783 = vand.u32 %v1504, 4294901760
  %4784 = vmatprep.subr.mxu0 %v4783
  %v4785 = vand.u32 %v1503, 4294901760
  %4786 = vmatpush1.msra.mxu0 %v4785
  %v4787 = vand.u32 %v1520, 4294901760
  %4788 = vmatprep.subr.mxu0 %v4787
  %v4789 = vand.u32 %v1519, 4294901760
  %4790 = vmatpush1.msra.mxu0 %v4789
  %v4791 = vand.u32 %v1536, 4294901760
  %4792 = vmatprep.subr.mxu0 %v4791
  %v4793 = vand.u32 %v1535, 4294901760
  %4794 = vmatpush1.msra.mxu0 %v4793
  %v4795 = vand.u32 %v1552, 4294901760
  %4796 = vmatprep.subr.mxu0 %v4795
  %v4797 = vand.u32 %v1551, 4294901760
  %4798 = vmatpush1.msra.mxu0 %v4797
  %v4799 = vand.u32 %v1568, 4294901760
  %4800 = vmatprep.subr.mxu0 %v4799
  %v4801 = vand.u32 %v1567, 4294901760
  %4802 = vmatpush1.msra.mxu0 %v4801
  %v4803 = vand.u32 %v1584, 4294901760
  %4804 = vmatprep.subr.mxu0 %v4803
  %v4805 = vand.u32 %v1583, 4294901760
  %4806 = vmatpush1.msra.mxu0 %v4805
  %v4807 = vand.u32 %v1600, 4294901760
  %4808 = vmatprep.subr.mxu0 %v4807
  %v4809 = vand.u32 %v1599, 4294901760
  %4810 = vmatpush1.msra.mxu0 %v4809
  %v4811 = vand.u32 %v1616, 4294901760
  %4812 = vmatprep.subr.mxu0 %v4811
  %v4813 = vand.u32 %v1615, 4294901760
  %4814 = vmatpush1.msra.mxu0 %v4813
  %v4815 = vand.u32 %v1632, 4294901760
  %4816 = vmatprep.subr.mxu0 %v4815
  %v4817 = vand.u32 %v1631, 4294901760
  %4818 = vmatpush1.msra.mxu0 %v4817
  %v4819 = vand.u32 %v1648, 4294901760
  %4820 = vmatprep.subr.mxu0 %v4819
  %v4821 = vand.u32 %v1647, 4294901760
  %4822 = vmatpush1.msra.mxu0 %v4821
  %v4823 = vand.u32 %v1664, 4294901760
  %4824 = vmatprep.subr.mxu0 %v4823
  %v4825 = vand.u32 %v1663, 4294901760
  %4826 = vmatpush1.msra.mxu0 %v4825
  %v4827 = vand.u32 %v1680, 4294901760
  %4828 = vmatprep.subr.mxu0 %v4827
  %v4829 = vand.u32 %v1679, 4294901760
  %4830 = vmatpush1.msra.mxu0 %v4829
  %4831 = vmatprep.subr.mxu0 0.0
  %4832 = vmatpush1.msra.mxu0 0.0
  %4833 = vmatprep.subr.mxu0 0.0
  %4834 = vmatpush1.msra.mxu0 0.0
  %4835 = vmatprep.subr.mxu0 0.0
  %4836 = vmatpush1.msra.mxu0 0.0
  %4837 = vmatprep.subr.mxu0 0.0
  %4838 = vmatpush1.msra.mxu0 0.0
  %4839 = vmatprep.subr.mxu0 0.0
  %4840 = vmatpush1.msra.mxu0 0.0
  %4841 = vmatprep.subr.mxu0 0.0
  %4842 = vmatpush1.msra.mxu0 0.0
  %4843 = vmatprep.subr.mxu0 0.0
  %4844 = vmatpush1.msra.mxu0 0.0
  %4845 = vmatprep.subr.mxu0 0.0
  %4846 = vmatpush1.msra.mxu0 0.0
  %4847 = vmatprep.subr.mxu0 0.0
  %4848 = vmatpush1.msra.mxu0 0.0
  %4849 = vmatprep.subr.mxu0 0.0
  %4850 = vmatpush1.msra.mxu0 0.0
  %4851 = vmatprep.subr.mxu0 0.0
  %4852 = vmatpush1.msra.mxu0 0.0
  %4853 = vmatprep.subr.mxu0 0.0
  %4854 = vmatpush1.msra.mxu0 0.0
  %4855 = vmatprep.subr.mxu0 0.0
  %4856 = vmatpush1.msra.mxu0 0.0
  %4857 = vmatprep.subr.mxu0 0.0
  %4858 = vmatpush1.msra.mxu0 0.0
  %4859 = vmatprep.subr.mxu0 0.0
  %4860 = vmatpush1.msra.mxu0 0.0
  %4861 = vmatprep.subr.mxu0 0.0
  %4862 = vmatpush1.msra.mxu0 0.0
  %4863 = vmatprep.mubr.f32.mxu0 0.0
  %v4864 = vand.u32 %v1689, 4294901760
  %v4865 = vsub.f32 %v1689, %v4864
  %v4866 = vand.u32 %v4865, 4294901760
  %4867 = vmatmul.mubr.f32.gmra.mrb[0].mxu0 %v4866
  %v4868 = vpop.f32.mrb[0].mxu0
  %v4869 = vadd.f32 %v4763, %v4868
  %v4870 = vpop.f32.mrb[0].mxu0
  %v4871 = vadd.f32 %v4765, %v4870
  %4872 = vdwg.mxu0
  %v4873 = vand.u32 %v1440, 4294901760
  %v4874 = vsub.f32 %v1440, %v4873
  %v4875 = vand.u32 %v4874, 4294901760
  %4876 = vmatprep.subr.mxu0 %v4875
  %v4877 = vand.u32 %v1439, 4294901760
  %v4878 = vsub.f32 %v1439, %v4877
  %v4879 = vand.u32 %v4878, 4294901760
  %4880 = vmatpush1.msra.mxu0 %v4879
  %v4881 = vand.u32 %v1456, 4294901760
  %v4882 = vsub.f32 %v1456, %v4881
  %v4883 = vand.u32 %v4882, 4294901760
  %4884 = vmatprep.subr.mxu0 %v4883
  %v4885 = vand.u32 %v1455, 4294901760
  %v4886 = vsub.f32 %v1455, %v4885
  %v4887 = vand.u32 %v4886, 4294901760
  %4888 = vmatpush1.msra.mxu0 %v4887
  %v4889 = vand.u32 %v1472, 4294901760
  %v4890 = vsub.f32 %v1472, %v4889
  %v4891 = vand.u32 %v4890, 4294901760
  %4892 = vmatprep.subr.mxu0 %v4891
  %v4893 = vand.u32 %v1471, 4294901760
  %v4894 = vsub.f32 %v1471, %v4893
  %v4895 = vand.u32 %v4894, 4294901760
  %4896 = vmatpush1.msra.mxu0 %v4895
  %v4897 = vand.u32 %v1488, 4294901760
  %v4898 = vsub.f32 %v1488, %v4897
  %v4899 = vand.u32 %v4898, 4294901760
  %4900 = vmatprep.subr.mxu0 %v4899
  %v4901 = vand.u32 %v1487, 4294901760
  %v4902 = vsub.f32 %v1487, %v4901
  %v4903 = vand.u32 %v4902, 4294901760
  %4904 = vmatpush1.msra.mxu0 %v4903
  %v4905 = vand.u32 %v1504, 4294901760
  %v4906 = vsub.f32 %v1504, %v4905
  %v4907 = vand.u32 %v4906, 4294901760
  %4908 = vmatprep.subr.mxu0 %v4907
  %v4909 = vand.u32 %v1503, 4294901760
  %v4910 = vsub.f32 %v1503, %v4909
  %v4911 = vand.u32 %v4910, 4294901760
  %4912 = vmatpush1.msra.mxu0 %v4911
  %v4913 = vand.u32 %v1520, 4294901760
  %v4914 = vsub.f32 %v1520, %v4913
  %v4915 = vand.u32 %v4914, 4294901760
  %4916 = vmatprep.subr.mxu0 %v4915
  %v4917 = vand.u32 %v1519, 4294901760
  %v4918 = vsub.f32 %v1519, %v4917
  %v4919 = vand.u32 %v4918, 4294901760
  %4920 = vmatpush1.msra.mxu0 %v4919
  %v4921 = vand.u32 %v1536, 4294901760
  %v4922 = vsub.f32 %v1536, %v4921
  %v4923 = vand.u32 %v4922, 4294901760
  %4924 = vmatprep.subr.mxu0 %v4923
  %v4925 = vand.u32 %v1535, 4294901760
  %v4926 = vsub.f32 %v1535, %v4925
  %v4927 = vand.u32 %v4926, 4294901760
  %4928 = vmatpush1.msra.mxu0 %v4927
  %v4929 = vand.u32 %v1552, 4294901760
  %v4930 = vsub.f32 %v1552, %v4929
  %v4931 = vand.u32 %v4930, 4294901760
  %4932 = vmatprep.subr.mxu0 %v4931
  %v4933 = vand.u32 %v1551, 4294901760
  %v4934 = vsub.f32 %v1551, %v4933
  %v4935 = vand.u32 %v4934, 4294901760
  %4936 = vmatpush1.msra.mxu0 %v4935
  %v4937 = vand.u32 %v1568, 4294901760
  %v4938 = vsub.f32 %v1568, %v4937
  %v4939 = vand.u32 %v4938, 4294901760
  %4940 = vmatprep.subr.mxu0 %v4939
  %v4941 = vand.u32 %v1567, 4294901760
  %v4942 = vsub.f32 %v1567, %v4941
  %v4943 = vand.u32 %v4942, 4294901760
  %4944 = vmatpush1.msra.mxu0 %v4943
  %v4945 = vand.u32 %v1584, 4294901760
  %v4946 = vsub.f32 %v1584, %v4945
  %v4947 = vand.u32 %v4946, 4294901760
  %4948 = vmatprep.subr.mxu0 %v4947
  %v4949 = vand.u32 %v1583, 4294901760
  %v4950 = vsub.f32 %v1583, %v4949
  %v4951 = vand.u32 %v4950, 4294901760
  %4952 = vmatpush1.msra.mxu0 %v4951
  %v4953 = vand.u32 %v1600, 4294901760
  %v4954 = vsub.f32 %v1600, %v4953
  %v4955 = vand.u32 %v4954, 4294901760
  %4956 = vmatprep.subr.mxu0 %v4955
  %v4957 = vand.u32 %v1599, 4294901760
  %v4958 = vsub.f32 %v1599, %v4957
  %v4959 = vand.u32 %v4958, 4294901760
  %4960 = vmatpush1.msra.mxu0 %v4959
  %v4961 = vand.u32 %v1616, 4294901760
  %v4962 = vsub.f32 %v1616, %v4961
  %v4963 = vand.u32 %v4962, 4294901760
  %4964 = vmatprep.subr.mxu0 %v4963
  %v4965 = vand.u32 %v1615, 4294901760
  %v4966 = vsub.f32 %v1615, %v4965
  %v4967 = vand.u32 %v4966, 4294901760
  %4968 = vmatpush1.msra.mxu0 %v4967
  %v4969 = vand.u32 %v1632, 4294901760
  %v4970 = vsub.f32 %v1632, %v4969
  %v4971 = vand.u32 %v4970, 4294901760
  %4972 = vmatprep.subr.mxu0 %v4971
  %v4973 = vand.u32 %v1631, 4294901760
  %v4974 = vsub.f32 %v1631, %v4973
  %v4975 = vand.u32 %v4974, 4294901760
  %4976 = vmatpush1.msra.mxu0 %v4975
  %v4977 = vand.u32 %v1648, 4294901760
  %v4978 = vsub.f32 %v1648, %v4977
  %v4979 = vand.u32 %v4978, 4294901760
  %4980 = vmatprep.subr.mxu0 %v4979
  %v4981 = vand.u32 %v1647, 4294901760
  %v4982 = vsub.f32 %v1647, %v4981
  %v4983 = vand.u32 %v4982, 4294901760
  %4984 = vmatpush1.msra.mxu0 %v4983
  %v4985 = vand.u32 %v1664, 4294901760
  %v4986 = vsub.f32 %v1664, %v4985
  %v4987 = vand.u32 %v4986, 4294901760
  %4988 = vmatprep.subr.mxu0 %v4987
  %v4989 = vand.u32 %v1663, 4294901760
  %v4990 = vsub.f32 %v1663, %v4989
  %v4991 = vand.u32 %v4990, 4294901760
  %4992 = vmatpush1.msra.mxu0 %v4991
  %v4993 = vand.u32 %v1680, 4294901760
  %v4994 = vsub.f32 %v1680, %v4993
  %v4995 = vand.u32 %v4994, 4294901760
  %4996 = vmatprep.subr.mxu0 %v4995
  %v4997 = vand.u32 %v1679, 4294901760
  %v4998 = vsub.f32 %v1679, %v4997
  %v4999 = vand.u32 %v4998, 4294901760
  %5000 = vmatpush1.msra.mxu0 %v4999
  %5001 = vmatprep.subr.mxu0 0.0
  %5002 = vmatpush1.msra.mxu0 0.0
  %5003 = vmatprep.subr.mxu0 0.0
  %5004 = vmatpush1.msra.mxu0 0.0
  %5005 = vmatprep.subr.mxu0 0.0
  %5006 = vmatpush1.msra.mxu0 0.0
  %5007 = vmatprep.subr.mxu0 0.0
  %5008 = vmatpush1.msra.mxu0 0.0
  %5009 = vmatprep.subr.mxu0 0.0
  %5010 = vmatpush1.msra.mxu0 0.0
  %5011 = vmatprep.subr.mxu0 0.0
  %5012 = vmatpush1.msra.mxu0 0.0
  %5013 = vmatprep.subr.mxu0 0.0
  %5014 = vmatpush1.msra.mxu0 0.0
  %5015 = vmatprep.subr.mxu0 0.0
  %5016 = vmatpush1.msra.mxu0 0.0
  %5017 = vmatprep.subr.mxu0 0.0
  %5018 = vmatpush1.msra.mxu0 0.0
  %5019 = vmatprep.subr.mxu0 0.0
  %5020 = vmatpush1.msra.mxu0 0.0
  %5021 = vmatprep.subr.mxu0 0.0
  %5022 = vmatpush1.msra.mxu0 0.0
  %5023 = vmatprep.subr.mxu0 0.0
  %5024 = vmatpush1.msra.mxu0 0.0
  %5025 = vmatprep.subr.mxu0 0.0
  %5026 = vmatpush1.msra.mxu0 0.0
  %5027 = vmatprep.subr.mxu0 0.0
  %5028 = vmatpush1.msra.mxu0 0.0
  %5029 = vmatprep.subr.mxu0 0.0
  %5030 = vmatpush1.msra.mxu0 0.0
  %5031 = vmatprep.subr.mxu0 0.0
  %5032 = vmatpush1.msra.mxu0 0.0
  %5033 = vmatprep.mubr.f32.mxu0 0.0
  %v5034 = vand.u32 %v1689, 4294901760
  %5035 = vmatmul.mubr.f32.gmra.mrb[0].mxu0 %v5034
  %v5036 = vpop.f32.mrb[0].mxu0
  %v5037 = vadd.f32 %v4869, %v5036
  %v5038 = vpop.f32.mrb[0].mxu0
  %v5039 = vadd.f32 %v4871, %v5038
  %5040 = vdwg.mxu0
  %v5041 = vand.u32 %v1440, 4294901760
  %5042 = vmatprep.subr.mxu0 %v5041
  %v5043 = vand.u32 %v1439, 4294901760
  %5044 = vmatpush1.msra.mxu0 %v5043
  %v5045 = vand.u32 %v1456, 4294901760
  %5046 = vmatprep.subr.mxu0 %v5045
  %v5047 = vand.u32 %v1455, 4294901760
  %5048 = vmatpush1.msra.mxu0 %v5047
  %v5049 = vand.u32 %v1472, 4294901760
  %5050 = vmatprep.subr.mxu0 %v5049
  %v5051 = vand.u32 %v1471, 4294901760
  %5052 = vmatpush1.msra.mxu0 %v5051
  %v5053 = vand.u32 %v1488, 4294901760
  %5054 = vmatprep.subr.mxu0 %v5053
  %v5055 = vand.u32 %v1487, 4294901760
  %5056 = vmatpush1.msra.mxu0 %v5055
  %v5057 = vand.u32 %v1504, 4294901760
  %5058 = vmatprep.subr.mxu0 %v5057
  %v5059 = vand.u32 %v1503, 4294901760
  %5060 = vmatpush1.msra.mxu0 %v5059
  %v5061 = vand.u32 %v1520, 4294901760
  %5062 = vmatprep.subr.mxu0 %v5061
  %v5063 = vand.u32 %v1519, 4294901760
  %5064 = vmatpush1.msra.mxu0 %v5063
  %v5065 = vand.u32 %v1536, 4294901760
  %5066 = vmatprep.subr.mxu0 %v5065
  %v5067 = vand.u32 %v1535, 4294901760
  %5068 = vmatpush1.msra.mxu0 %v5067
  %v5069 = vand.u32 %v1552, 4294901760
  %5070 = vmatprep.subr.mxu0 %v5069
  %v5071 = vand.u32 %v1551, 4294901760
  %5072 = vmatpush1.msra.mxu0 %v5071
  %v5073 = vand.u32 %v1568, 4294901760
  %5074 = vmatprep.subr.mxu0 %v5073
  %v5075 = vand.u32 %v1567, 4294901760
  %5076 = vmatpush1.msra.mxu0 %v5075
  %v5077 = vand.u32 %v1584, 4294901760
  %5078 = vmatprep.subr.mxu0 %v5077
  %v5079 = vand.u32 %v1583, 4294901760
  %5080 = vmatpush1.msra.mxu0 %v5079
  %v5081 = vand.u32 %v1600, 4294901760
  %5082 = vmatprep.subr.mxu0 %v5081
  %v5083 = vand.u32 %v1599, 4294901760
  %5084 = vmatpush1.msra.mxu0 %v5083
  %v5085 = vand.u32 %v1616, 4294901760
  %5086 = vmatprep.subr.mxu0 %v5085
  %v5087 = vand.u32 %v1615, 4294901760
  %5088 = vmatpush1.msra.mxu0 %v5087
  %v5089 = vand.u32 %v1632, 4294901760
  %5090 = vmatprep.subr.mxu0 %v5089
  %v5091 = vand.u32 %v1631, 4294901760
  %5092 = vmatpush1.msra.mxu0 %v5091
  %v5093 = vand.u32 %v1648, 4294901760
  %5094 = vmatprep.subr.mxu0 %v5093
  %v5095 = vand.u32 %v1647, 4294901760
  %5096 = vmatpush1.msra.mxu0 %v5095
  %v5097 = vand.u32 %v1664, 4294901760
  %5098 = vmatprep.subr.mxu0 %v5097
  %v5099 = vand.u32 %v1663, 4294901760
  %5100 = vmatpush1.msra.mxu0 %v5099
  %v5101 = vand.u32 %v1680, 4294901760
  %5102 = vmatprep.subr.mxu0 %v5101
  %v5103 = vand.u32 %v1679, 4294901760
  %5104 = vmatpush1.msra.mxu0 %v5103
  %5105 = vmatprep.subr.mxu0 0.0
  %5106 = vmatpush1.msra.mxu0 0.0
  %5107 = vmatprep.subr.mxu0 0.0
  %5108 = vmatpush1.msra.mxu0 0.0
  %5109 = vmatprep.subr.mxu0 0.0
  %5110 = vmatpush1.msra.mxu0 0.0
  %5111 = vmatprep.subr.mxu0 0.0
  %5112 = vmatpush1.msra.mxu0 0.0
  %5113 = vmatprep.subr.mxu0 0.0
  %5114 = vmatpush1.msra.mxu0 0.0
  %5115 = vmatprep.subr.mxu0 0.0
  %5116 = vmatpush1.msra.mxu0 0.0
  %5117 = vmatprep.subr.mxu0 0.0
  %5118 = vmatpush1.msra.mxu0 0.0
  %5119 = vmatprep.subr.mxu0 0.0
  %5120 = vmatpush1.msra.mxu0 0.0
  %5121 = vmatprep.subr.mxu0 0.0
  %5122 = vmatpush1.msra.mxu0 0.0
  %5123 = vmatprep.subr.mxu0 0.0
  %5124 = vmatpush1.msra.mxu0 0.0
  %5125 = vmatprep.subr.mxu0 0.0
  %5126 = vmatpush1.msra.mxu0 0.0
  %5127 = vmatprep.subr.mxu0 0.0
  %5128 = vmatpush1.msra.mxu0 0.0
  %5129 = vmatprep.subr.mxu0 0.0
  %5130 = vmatpush1.msra.mxu0 0.0
  %5131 = vmatprep.subr.mxu0 0.0
  %5132 = vmatpush1.msra.mxu0 0.0
  %5133 = vmatprep.subr.mxu0 0.0
  %5134 = vmatpush1.msra.mxu0 0.0
  %5135 = vmatprep.subr.mxu0 0.0
  %5136 = vmatpush1.msra.mxu0 0.0
  %5137 = vmatprep.mubr.f32.mxu0 0.0
  %v5138 = vand.u32 %v1689, 4294901760
  %5139 = vmatmul.mubr.f32.gmra.mrb[0].mxu0 %v5138
  %v5140 = vpop.f32.mrb[0].mxu0
  %v5141 = vadd.f32 %v5037, %v5140
  %v5142 = vpop.f32.mrb[0].mxu0
  %v5143 = vadd.f32 %v5039, %v5142
  %5144 = vdwg.mxu0
  %v5145 = vand.u32 %v1442, 4294901760
  %5146 = vmatprep.subr.mxu0 %v5145
  %v5147 = vand.u32 %v1441, 4294901760
  %5148 = vmatpush1.msra.mxu0 %v5147
  %v5149 = vand.u32 %v1458, 4294901760
  %5150 = vmatprep.subr.mxu0 %v5149
  %v5151 = vand.u32 %v1457, 4294901760
  %5152 = vmatpush1.msra.mxu0 %v5151
  %v5153 = vand.u32 %v1474, 4294901760
  %5154 = vmatprep.subr.mxu0 %v5153
  %v5155 = vand.u32 %v1473, 4294901760
  %5156 = vmatpush1.msra.mxu0 %v5155
  %v5157 = vand.u32 %v1490, 4294901760
  %5158 = vmatprep.subr.mxu0 %v5157
  %v5159 = vand.u32 %v1489, 4294901760
  %5160 = vmatpush1.msra.mxu0 %v5159
  %v5161 = vand.u32 %v1506, 4294901760
  %5162 = vmatprep.subr.mxu0 %v5161
  %v5163 = vand.u32 %v1505, 4294901760
  %5164 = vmatpush1.msra.mxu0 %v5163
  %v5165 = vand.u32 %v1522, 4294901760
  %5166 = vmatprep.subr.mxu0 %v5165
  %v5167 = vand.u32 %v1521, 4294901760
  %5168 = vmatpush1.msra.mxu0 %v5167
  %v5169 = vand.u32 %v1538, 4294901760
  %5170 = vmatprep.subr.mxu0 %v5169
  %v5171 = vand.u32 %v1537, 4294901760
  %5172 = vmatpush1.msra.mxu0 %v5171
  %v5173 = vand.u32 %v1554, 4294901760
  %5174 = vmatprep.subr.mxu0 %v5173
  %v5175 = vand.u32 %v1553, 4294901760
  %5176 = vmatpush1.msra.mxu0 %v5175
  %v5177 = vand.u32 %v1570, 4294901760
  %5178 = vmatprep.subr.mxu0 %v5177
  %v5179 = vand.u32 %v1569, 4294901760
  %5180 = vmatpush1.msra.mxu0 %v5179
  %v5181 = vand.u32 %v1586, 4294901760
  %5182 = vmatprep.subr.mxu0 %v5181
  %v5183 = vand.u32 %v1585, 4294901760
  %5184 = vmatpush1.msra.mxu0 %v5183
  %v5185 = vand.u32 %v1602, 4294901760
  %5186 = vmatprep.subr.mxu0 %v5185
  %v5187 = vand.u32 %v1601, 4294901760
  %5188 = vmatpush1.msra.mxu0 %v5187
  %v5189 = vand.u32 %v1618, 4294901760
  %5190 = vmatprep.subr.mxu0 %v5189
  %v5191 = vand.u32 %v1617, 4294901760
  %5192 = vmatpush1.msra.mxu0 %v5191
  %v5193 = vand.u32 %v1634, 4294901760
  %5194 = vmatprep.subr.mxu0 %v5193
  %v5195 = vand.u32 %v1633, 4294901760
  %5196 = vmatpush1.msra.mxu0 %v5195
  %v5197 = vand.u32 %v1650, 4294901760
  %5198 = vmatprep.subr.mxu0 %v5197
  %v5199 = vand.u32 %v1649, 4294901760
  %5200 = vmatpush1.msra.mxu0 %v5199
  %v5201 = vand.u32 %v1666, 4294901760
  %5202 = vmatprep.subr.mxu0 %v5201
  %v5203 = vand.u32 %v1665, 4294901760
  %5204 = vmatpush1.msra.mxu0 %v5203
  %v5205 = vand.u32 %v1682, 4294901760
  %5206 = vmatprep.subr.mxu0 %v5205
  %v5207 = vand.u32 %v1681, 4294901760
  %5208 = vmatpush1.msra.mxu0 %v5207
  %5209 = vmatprep.subr.mxu0 0.0
  %5210 = vmatpush1.msra.mxu0 0.0
  %5211 = vmatprep.subr.mxu0 0.0
  %5212 = vmatpush1.msra.mxu0 0.0
  %5213 = vmatprep.subr.mxu0 0.0
  %5214 = vmatpush1.msra.mxu0 0.0
  %5215 = vmatprep.subr.mxu0 0.0
  %5216 = vmatpush1.msra.mxu0 0.0
  %5217 = vmatprep.subr.mxu0 0.0
  %5218 = vmatpush1.msra.mxu0 0.0
  %5219 = vmatprep.subr.mxu0 0.0
  %5220 = vmatpush1.msra.mxu0 0.0
  %5221 = vmatprep.subr.mxu0 0.0
  %5222 = vmatpush1.msra.mxu0 0.0
  %5223 = vmatprep.subr.mxu0 0.0
  %5224 = vmatpush1.msra.mxu0 0.0
  %5225 = vmatprep.subr.mxu0 0.0
  %5226 = vmatpush1.msra.mxu0 0.0
  %5227 = vmatprep.subr.mxu0 0.0
  %5228 = vmatpush1.msra.mxu0 0.0
  %5229 = vmatprep.subr.mxu0 0.0
  %5230 = vmatpush1.msra.mxu0 0.0
  %5231 = vmatprep.subr.mxu0 0.0
  %5232 = vmatpush1.msra.mxu0 0.0
  %5233 = vmatprep.subr.mxu0 0.0
  %5234 = vmatpush1.msra.mxu0 0.0
  %5235 = vmatprep.subr.mxu0 0.0
  %5236 = vmatpush1.msra.mxu0 0.0
  %5237 = vmatprep.subr.mxu0 0.0
  %5238 = vmatpush1.msra.mxu0 0.0
  %5239 = vmatprep.subr.mxu0 0.0
  %5240 = vmatpush1.msra.mxu0 0.0
  %5241 = vmatprep.mubr.f32.mxu0 0.0
  %v5242 = vand.u32 %v1689, 4294901760
  %v5243 = vsub.f32 %v1689, %v5242
  %v5244 = vand.u32 %v5243, 4294901760
  %v5245 = vsub.f32 %v5243, %v5244
  %v5246 = vand.u32 %v5245, 4294901760
  %5247 = vmatmul.mubr.f32.gmra.mrb[0].mxu0 %v5246
  %v5248 = vpop.f32.mrb[0].mxu0
  %v5249 = vadd.f32 %v1711, %v5248
  %v5250 = vpop.f32.mrb[0].mxu0
  %v5251 = vadd.f32 %v1719, %v5250
  %5252 = vdwg.mxu0
  %v5253 = vand.u32 %v1442, 4294901760
  %v5254 = vsub.f32 %v1442, %v5253
  %v5255 = vand.u32 %v5254, 4294901760
  %v5256 = vsub.f32 %v5254, %v5255
  %v5257 = vand.u32 %v5256, 4294901760
  %5258 = vmatprep.subr.mxu0 %v5257
  %v5259 = vand.u32 %v1441, 4294901760
  %v5260 = vsub.f32 %v1441, %v5259
  %v5261 = vand.u32 %v5260, 4294901760
  %v5262 = vsub.f32 %v5260, %v5261
  %v5263 = vand.u32 %v5262, 4294901760
  %5264 = vmatpush1.msra.mxu0 %v5263
  %v5265 = vand.u32 %v1458, 4294901760
  %v5266 = vsub.f32 %v1458, %v5265
  %v5267 = vand.u32 %v5266, 4294901760
  %v5268 = vsub.f32 %v5266, %v5267
  %v5269 = vand.u32 %v5268, 4294901760
  %5270 = vmatprep.subr.mxu0 %v5269
  %v5271 = vand.u32 %v1457, 4294901760
  %v5272 = vsub.f32 %v1457, %v5271
  %v5273 = vand.u32 %v5272, 4294901760
  %v5274 = vsub.f32 %v5272, %v5273
  %v5275 = vand.u32 %v5274, 4294901760
  %5276 = vmatpush1.msra.mxu0 %v5275
  %v5277 = vand.u32 %v1474, 4294901760
  %v5278 = vsub.f32 %v1474, %v5277
  %v5279 = vand.u32 %v5278, 4294901760
  %v5280 = vsub.f32 %v5278, %v5279
  %v5281 = vand.u32 %v5280, 4294901760
  %5282 = vmatprep.subr.mxu0 %v5281
  %v5283 = vand.u32 %v1473, 4294901760
  %v5284 = vsub.f32 %v1473, %v5283
  %v5285 = vand.u32 %v5284, 4294901760
  %v5286 = vsub.f32 %v5284, %v5285
  %v5287 = vand.u32 %v5286, 4294901760
  %5288 = vmatpush1.msra.mxu0 %v5287
  %v5289 = vand.u32 %v1490, 4294901760
  %v5290 = vsub.f32 %v1490, %v5289
  %v5291 = vand.u32 %v5290, 4294901760
  %v5292 = vsub.f32 %v5290, %v5291
  %v5293 = vand.u32 %v5292, 4294901760
  %5294 = vmatprep.subr.mxu0 %v5293
  %v5295 = vand.u32 %v1489, 4294901760
  %v5296 = vsub.f32 %v1489, %v5295
  %v5297 = vand.u32 %v5296, 4294901760
  %v5298 = vsub.f32 %v5296, %v5297
  %v5299 = vand.u32 %v5298, 4294901760
  %5300 = vmatpush1.msra.mxu0 %v5299
  %v5301 = vand.u32 %v1506, 4294901760
  %v5302 = vsub.f32 %v1506, %v5301
  %v5303 = vand.u32 %v5302, 4294901760
  %v5304 = vsub.f32 %v5302, %v5303
  %v5305 = vand.u32 %v5304, 4294901760
  %5306 = vmatprep.subr.mxu0 %v5305
  %v5307 = vand.u32 %v1505, 4294901760
  %v5308 = vsub.f32 %v1505, %v5307
  %v5309 = vand.u32 %v5308, 4294901760
  %v5310 = vsub.f32 %v5308, %v5309
  %v5311 = vand.u32 %v5310, 4294901760
  %5312 = vmatpush1.msra.mxu0 %v5311
  %v5313 = vand.u32 %v1522, 4294901760
  %v5314 = vsub.f32 %v1522, %v5313
  %v5315 = vand.u32 %v5314, 4294901760
  %v5316 = vsub.f32 %v5314, %v5315
  %v5317 = vand.u32 %v5316, 4294901760
  %5318 = vmatprep.subr.mxu0 %v5317
  %v5319 = vand.u32 %v1521, 4294901760
  %v5320 = vsub.f32 %v1521, %v5319
  %v5321 = vand.u32 %v5320, 4294901760
  %v5322 = vsub.f32 %v5320, %v5321
  %v5323 = vand.u32 %v5322, 4294901760
  %5324 = vmatpush1.msra.mxu0 %v5323
  %v5325 = vand.u32 %v1538, 4294901760
  %v5326 = vsub.f32 %v1538, %v5325
  %v5327 = vand.u32 %v5326, 4294901760
  %v5328 = vsub.f32 %v5326, %v5327
  %v5329 = vand.u32 %v5328, 4294901760
  %5330 = vmatprep.subr.mxu0 %v5329
  %v5331 = vand.u32 %v1537, 4294901760
  %v5332 = vsub.f32 %v1537, %v5331
  %v5333 = vand.u32 %v5332, 4294901760
  %v5334 = vsub.f32 %v5332, %v5333
  %v5335 = vand.u32 %v5334, 4294901760
  %5336 = vmatpush1.msra.mxu0 %v5335
  %v5337 = vand.u32 %v1554, 4294901760
  %v5338 = vsub.f32 %v1554, %v5337
  %v5339 = vand.u32 %v5338, 4294901760
  %v5340 = vsub.f32 %v5338, %v5339
  %v5341 = vand.u32 %v5340, 4294901760
  %5342 = vmatprep.subr.mxu0 %v5341
  %v5343 = vand.u32 %v1553, 4294901760
  %v5344 = vsub.f32 %v1553, %v5343
  %v5345 = vand.u32 %v5344, 4294901760
  %v5346 = vsub.f32 %v5344, %v5345
  %v5347 = vand.u32 %v5346, 4294901760
  %5348 = vmatpush1.msra.mxu0 %v5347
  %v5349 = vand.u32 %v1570, 4294901760
  %v5350 = vsub.f32 %v1570, %v5349
  %v5351 = vand.u32 %v5350, 4294901760
  %v5352 = vsub.f32 %v5350, %v5351
  %v5353 = vand.u32 %v5352, 4294901760
  %5354 = vmatprep.subr.mxu0 %v5353
  %v5355 = vand.u32 %v1569, 4294901760
  %v5356 = vsub.f32 %v1569, %v5355
  %v5357 = vand.u32 %v5356, 4294901760
  %v5358 = vsub.f32 %v5356, %v5357
  %v5359 = vand.u32 %v5358, 4294901760
  %5360 = vmatpush1.msra.mxu0 %v5359
  %v5361 = vand.u32 %v1586, 4294901760
  %v5362 = vsub.f32 %v1586, %v5361
  %v5363 = vand.u32 %v5362, 4294901760
  %v5364 = vsub.f32 %v5362, %v5363
  %v5365 = vand.u32 %v5364, 4294901760
  %5366 = vmatprep.subr.mxu0 %v5365
  %v5367 = vand.u32 %v1585, 4294901760
  %v5368 = vsub.f32 %v1585, %v5367
  %v5369 = vand.u32 %v5368, 4294901760
  %v5370 = vsub.f32 %v5368, %v5369
  %v5371 = vand.u32 %v5370, 4294901760
  %5372 = vmatpush1.msra.mxu0 %v5371
  %v5373 = vand.u32 %v1602, 4294901760
  %v5374 = vsub.f32 %v1602, %v5373
  %v5375 = vand.u32 %v5374, 4294901760
  %v5376 = vsub.f32 %v5374, %v5375
  %v5377 = vand.u32 %v5376, 4294901760
  %5378 = vmatprep.subr.mxu0 %v5377
  %v5379 = vand.u32 %v1601, 4294901760
  %v5380 = vsub.f32 %v1601, %v5379
  %v5381 = vand.u32 %v5380, 4294901760
  %v5382 = vsub.f32 %v5380, %v5381
  %v5383 = vand.u32 %v5382, 4294901760
  %5384 = vmatpush1.msra.mxu0 %v5383
  %v5385 = vand.u32 %v1618, 4294901760
  %v5386 = vsub.f32 %v1618, %v5385
  %v5387 = vand.u32 %v5386, 4294901760
  %v5388 = vsub.f32 %v5386, %v5387
  %v5389 = vand.u32 %v5388, 4294901760
  %5390 = vmatprep.subr.mxu0 %v5389
  %v5391 = vand.u32 %v1617, 4294901760
  %v5392 = vsub.f32 %v1617, %v5391
  %v5393 = vand.u32 %v5392, 4294901760
  %v5394 = vsub.f32 %v5392, %v5393
  %v5395 = vand.u32 %v5394, 4294901760
  %5396 = vmatpush1.msra.mxu0 %v5395
  %v5397 = vand.u32 %v1634, 4294901760
  %v5398 = vsub.f32 %v1634, %v5397
  %v5399 = vand.u32 %v5398, 4294901760
  %v5400 = vsub.f32 %v5398, %v5399
  %v5401 = vand.u32 %v5400, 4294901760
  %5402 = vmatprep.subr.mxu0 %v5401
  %v5403 = vand.u32 %v1633, 4294901760
  %v5404 = vsub.f32 %v1633, %v5403
  %v5405 = vand.u32 %v5404, 4294901760
  %v5406 = vsub.f32 %v5404, %v5405
  %v5407 = vand.u32 %v5406, 4294901760
  %5408 = vmatpush1.msra.mxu0 %v5407
  %v5409 = vand.u32 %v1650, 4294901760
  %v5410 = vsub.f32 %v1650, %v5409
  %v5411 = vand.u32 %v5410, 4294901760
  %v5412 = vsub.f32 %v5410, %v5411
  %v5413 = vand.u32 %v5412, 4294901760
  %5414 = vmatprep.subr.mxu0 %v5413
  %v5415 = vand.u32 %v1649, 4294901760
  %v5416 = vsub.f32 %v1649, %v5415
  %v5417 = vand.u32 %v5416, 4294901760
  %v5418 = vsub.f32 %v5416, %v5417
  %v5419 = vand.u32 %v5418, 4294901760
  %5420 = vmatpush1.msra.mxu0 %v5419
  %v5421 = vand.u32 %v1666, 4294901760
  %v5422 = vsub.f32 %v1666, %v5421
  %v5423 = vand.u32 %v5422, 4294901760
  %v5424 = vsub.f32 %v5422, %v5423
  %v5425 = vand.u32 %v5424, 4294901760
  %5426 = vmatprep.subr.mxu0 %v5425
  %v5427 = vand.u32 %v1665, 4294901760
  %v5428 = vsub.f32 %v1665, %v5427
  %v5429 = vand.u32 %v5428, 4294901760
  %v5430 = vsub.f32 %v5428, %v5429
  %v5431 = vand.u32 %v5430, 4294901760
  %5432 = vmatpush1.msra.mxu0 %v5431
  %v5433 = vand.u32 %v1682, 4294901760
  %v5434 = vsub.f32 %v1682, %v5433
  %v5435 = vand.u32 %v5434, 4294901760
  %v5436 = vsub.f32 %v5434, %v5435
  %v5437 = vand.u32 %v5436, 4294901760
  %5438 = vmatprep.subr.mxu0 %v5437
  %v5439 = vand.u32 %v1681, 4294901760
  %v5440 = vsub.f32 %v1681, %v5439
  %v5441 = vand.u32 %v5440, 4294901760
  %v5442 = vsub.f32 %v5440, %v5441
  %v5443 = vand.u32 %v5442, 4294901760
  %5444 = vmatpush1.msra.mxu0 %v5443
  %5445 = vmatprep.subr.mxu0 0.0
  %5446 = vmatpush1.msra.mxu0 0.0
  %5447 = vmatprep.subr.mxu0 0.0
  %5448 = vmatpush1.msra.mxu0 0.0
  %5449 = vmatprep.subr.mxu0 0.0
  %5450 = vmatpush1.msra.mxu0 0.0
  %5451 = vmatprep.subr.mxu0 0.0
  %5452 = vmatpush1.msra.mxu0 0.0
  %5453 = vmatprep.subr.mxu0 0.0
  %5454 = vmatpush1.msra.mxu0 0.0
  %5455 = vmatprep.subr.mxu0 0.0
  %5456 = vmatpush1.msra.mxu0 0.0
  %5457 = vmatprep.subr.mxu0 0.0
  %5458 = vmatpush1.msra.mxu0 0.0
  %5459 = vmatprep.subr.mxu0 0.0
  %5460 = vmatpush1.msra.mxu0 0.0
  %5461 = vmatprep.subr.mxu0 0.0
  %5462 = vmatpush1.msra.mxu0 0.0
  %5463 = vmatprep.subr.mxu0 0.0
  %5464 = vmatpush1.msra.mxu0 0.0
  %5465 = vmatprep.subr.mxu0 0.0
  %5466 = vmatpush1.msra.mxu0 0.0
  %5467 = vmatprep.subr.mxu0 0.0
  %5468 = vmatpush1.msra.mxu0 0.0
  %5469 = vmatprep.subr.mxu0 0.0
  %5470 = vmatpush1.msra.mxu0 0.0
  %5471 = vmatprep.subr.mxu0 0.0
  %5472 = vmatpush1.msra.mxu0 0.0
  %5473 = vmatprep.subr.mxu0 0.0
  %5474 = vmatpush1.msra.mxu0 0.0
  %5475 = vmatprep.subr.mxu0 0.0
  %5476 = vmatpush1.msra.mxu0 0.0
  %5477 = vmatprep.mubr.f32.mxu0 0.0
  %v5478 = vand.u32 %v1689, 4294901760
  %5479 = vmatmul.mubr.f32.gmra.mrb[0].mxu0 %v5478
  %v5480 = vpop.f32.mrb[0].mxu0
  %v5481 = vadd.f32 %v5249, %v5480
  %v5482 = vpop.f32.mrb[0].mxu0
  %v5483 = vadd.f32 %v5251, %v5482
  %5484 = vdwg.mxu0
  %v5485 = vand.u32 %v1442, 4294901760
  %v5486 = vsub.f32 %v1442, %v5485
  %5487 = vmatprep.subr.mxu0 %v5486
  %v5488 = vand.u32 %v1441, 4294901760
  %v5489 = vsub.f32 %v1441, %v5488
  %5490 = vmatpush1.msra.mxu0 %v5489
  %v5491 = vand.u32 %v1458, 4294901760
  %v5492 = vsub.f32 %v1458, %v5491
  %5493 = vmatprep.subr.mxu0 %v5492
  %v5494 = vand.u32 %v1457, 4294901760
  %v5495 = vsub.f32 %v1457, %v5494
  %5496 = vmatpush1.msra.mxu0 %v5495
  %v5497 = vand.u32 %v1474, 4294901760
  %v5498 = vsub.f32 %v1474, %v5497
  %5499 = vmatprep.subr.mxu0 %v5498
  %v5500 = vand.u32 %v1473, 4294901760
  %v5501 = vsub.f32 %v1473, %v5500
  %5502 = vmatpush1.msra.mxu0 %v5501
  %v5503 = vand.u32 %v1490, 4294901760
  %v5504 = vsub.f32 %v1490, %v5503
  %5505 = vmatprep.subr.mxu0 %v5504
  %v5506 = vand.u32 %v1489, 4294901760
  %v5507 = vsub.f32 %v1489, %v5506
  %5508 = vmatpush1.msra.mxu0 %v5507
  %v5509 = vand.u32 %v1506, 4294901760
  %v5510 = vsub.f32 %v1506, %v5509
  %5511 = vmatprep.subr.mxu0 %v5510
  %v5512 = vand.u32 %v1505, 4294901760
  %v5513 = vsub.f32 %v1505, %v5512
  %5514 = vmatpush1.msra.mxu0 %v5513
  %v5515 = vand.u32 %v1522, 4294901760
  %v5516 = vsub.f32 %v1522, %v5515
  %5517 = vmatprep.subr.mxu0 %v5516
  %v5518 = vand.u32 %v1521, 4294901760
  %v5519 = vsub.f32 %v1521, %v5518
  %5520 = vmatpush1.msra.mxu0 %v5519
  %v5521 = vand.u32 %v1538, 4294901760
  %v5522 = vsub.f32 %v1538, %v5521
  %5523 = vmatprep.subr.mxu0 %v5522
  %v5524 = vand.u32 %v1537, 4294901760
  %v5525 = vsub.f32 %v1537, %v5524
  %5526 = vmatpush1.msra.mxu0 %v5525
  %v5527 = vand.u32 %v1554, 4294901760
  %v5528 = vsub.f32 %v1554, %v5527
  %5529 = vmatprep.subr.mxu0 %v5528
  %v5530 = vand.u32 %v1553, 4294901760
  %v5531 = vsub.f32 %v1553, %v5530
  %5532 = vmatpush1.msra.mxu0 %v5531
  %v5533 = vand.u32 %v1570, 4294901760
  %v5534 = vsub.f32 %v1570, %v5533
  %5535 = vmatprep.subr.mxu0 %v5534
  %v5536 = vand.u32 %v1569, 4294901760
  %v5537 = vsub.f32 %v1569, %v5536
  %5538 = vmatpush1.msra.mxu0 %v5537
  %v5539 = vand.u32 %v1586, 4294901760
  %v5540 = vsub.f32 %v1586, %v5539
  %5541 = vmatprep.subr.mxu0 %v5540
  %v5542 = vand.u32 %v1585, 4294901760
  %v5543 = vsub.f32 %v1585, %v5542
  %5544 = vmatpush1.msra.mxu0 %v5543
  %v5545 = vand.u32 %v1602, 4294901760
  %v5546 = vsub.f32 %v1602, %v5545
  %5547 = vmatprep.subr.mxu0 %v5546
  %v5548 = vand.u32 %v1601, 4294901760
  %v5549 = vsub.f32 %v1601, %v5548
  %5550 = vmatpush1.msra.mxu0 %v5549
  %v5551 = vand.u32 %v1618, 4294901760
  %v5552 = vsub.f32 %v1618, %v5551
  %5553 = vmatprep.subr.mxu0 %v5552
  %v5554 = vand.u32 %v1617, 4294901760
  %v5555 = vsub.f32 %v1617, %v5554
  %5556 = vmatpush1.msra.mxu0 %v5555
  %v5557 = vand.u32 %v1634, 4294901760
  %v5558 = vsub.f32 %v1634, %v5557
  %5559 = vmatprep.subr.mxu0 %v5558
  %v5560 = vand.u32 %v1633, 4294901760
  %v5561 = vsub.f32 %v1633, %v5560
  %5562 = vmatpush1.msra.mxu0 %v5561
  %v5563 = vand.u32 %v1650, 4294901760
  %v5564 = vsub.f32 %v1650, %v5563
  %5565 = vmatprep.subr.mxu0 %v5564
  %v5566 = vand.u32 %v1649, 4294901760
  %v5567 = vsub.f32 %v1649, %v5566
  %5568 = vmatpush1.msra.mxu0 %v5567
  %v5569 = vand.u32 %v1666, 4294901760
  %v5570 = vsub.f32 %v1666, %v5569
  %5571 = vmatprep.subr.mxu0 %v5570
  %v5572 = vand.u32 %v1665, 4294901760
  %v5573 = vsub.f32 %v1665, %v5572
  %5574 = vmatpush1.msra.mxu0 %v5573
  %v5575 = vand.u32 %v1682, 4294901760
  %v5576 = vsub.f32 %v1682, %v5575
  %5577 = vmatprep.subr.mxu0 %v5576
  %v5578 = vand.u32 %v1681, 4294901760
  %v5579 = vsub.f32 %v1681, %v5578
  %5580 = vmatpush1.msra.mxu0 %v5579
  %5581 = vmatprep.subr.mxu0 0.0
  %5582 = vmatpush1.msra.mxu0 0.0
  %5583 = vmatprep.subr.mxu0 0.0
  %5584 = vmatpush1.msra.mxu0 0.0
  %5585 = vmatprep.subr.mxu0 0.0
  %5586 = vmatpush1.msra.mxu0 0.0
  %5587 = vmatprep.subr.mxu0 0.0
  %5588 = vmatpush1.msra.mxu0 0.0
  %5589 = vmatprep.subr.mxu0 0.0
  %5590 = vmatpush1.msra.mxu0 0.0
  %5591 = vmatprep.subr.mxu0 0.0
  %5592 = vmatpush1.msra.mxu0 0.0
  %5593 = vmatprep.subr.mxu0 0.0
  %5594 = vmatpush1.msra.mxu0 0.0
  %5595 = vmatprep.subr.mxu0 0.0
  %5596 = vmatpush1.msra.mxu0 0.0
  %5597 = vmatprep.subr.mxu0 0.0
  %5598 = vmatpush1.msra.mxu0 0.0
  %5599 = vmatprep.subr.mxu0 0.0
  %5600 = vmatpush1.msra.mxu0 0.0
  %5601 = vmatprep.subr.mxu0 0.0
  %5602 = vmatpush1.msra.mxu0 0.0
  %5603 = vmatprep.subr.mxu0 0.0
  %5604 = vmatpush1.msra.mxu0 0.0
  %5605 = vmatprep.subr.mxu0 0.0
  %5606 = vmatpush1.msra.mxu0 0.0
  %5607 = vmatprep.subr.mxu0 0.0
  %5608 = vmatpush1.msra.mxu0 0.0
  %5609 = vmatprep.subr.mxu0 0.0
  %5610 = vmatpush1.msra.mxu0 0.0
  %5611 = vmatprep.subr.mxu0 0.0
  %5612 = vmatpush1.msra.mxu0 0.0
  %5613 = vmatprep.mubr.f32.mxu0 0.0
  %v5614 = vand.u32 %v1689, 4294901760
  %v5615 = vsub.f32 %v1689, %v5614
  %5616 = vmatmul.mubr.f32.gmra.mrb[0].mxu0 %v5615
  %v5617 = vpop.f32.mrb[0].mxu0
  %v5618 = vadd.f32 %v5481, %v5617
  %v5619 = vpop.f32.mrb[0].mxu0
  %v5620 = vadd.f32 %v5483, %v5619
  %5621 = vdwg.mxu0
  %v5622 = vand.u32 %v1442, 4294901760
  %5623 = vmatprep.subr.mxu0 %v5622
  %v5624 = vand.u32 %v1441, 4294901760
  %5625 = vmatpush1.msra.mxu0 %v5624
  %v5626 = vand.u32 %v1458, 4294901760
  %5627 = vmatprep.subr.mxu0 %v5626
  %v5628 = vand.u32 %v1457, 4294901760
  %5629 = vmatpush1.msra.mxu0 %v5628
  %v5630 = vand.u32 %v1474, 4294901760
  %5631 = vmatprep.subr.mxu0 %v5630
  %v5632 = vand.u32 %v1473, 4294901760
  %5633 = vmatpush1.msra.mxu0 %v5632
  %v5634 = vand.u32 %v1490, 4294901760
  %5635 = vmatprep.subr.mxu0 %v5634
  %v5636 = vand.u32 %v1489, 4294901760
  %5637 = vmatpush1.msra.mxu0 %v5636
  %v5638 = vand.u32 %v1506, 4294901760
  %5639 = vmatprep.subr.mxu0 %v5638
  %v5640 = vand.u32 %v1505, 4294901760
  %5641 = vmatpush1.msra.mxu0 %v5640
  %v5642 = vand.u32 %v1522, 4294901760
  %5643 = vmatprep.subr.mxu0 %v5642
  %v5644 = vand.u32 %v1521, 4294901760
  %5645 = vmatpush1.msra.mxu0 %v5644
  %v5646 = vand.u32 %v1538, 4294901760
  %5647 = vmatprep.subr.mxu0 %v5646
  %v5648 = vand.u32 %v1537, 4294901760
  %5649 = vmatpush1.msra.mxu0 %v5648
  %v5650 = vand.u32 %v1554, 4294901760
  %5651 = vmatprep.subr.mxu0 %v5650
  %v5652 = vand.u32 %v1553, 4294901760
  %5653 = vmatpush1.msra.mxu0 %v5652
  %v5654 = vand.u32 %v1570, 4294901760
  %5655 = vmatprep.subr.mxu0 %v5654
  %v5656 = vand.u32 %v1569, 4294901760
  %5657 = vmatpush1.msra.mxu0 %v5656
  %v5658 = vand.u32 %v1586, 4294901760
  %5659 = vmatprep.subr.mxu0 %v5658
  %v5660 = vand.u32 %v1585, 4294901760
  %5661 = vmatpush1.msra.mxu0 %v5660
  %v5662 = vand.u32 %v1602, 4294901760
  %5663 = vmatprep.subr.mxu0 %v5662
  %v5664 = vand.u32 %v1601, 4294901760
  %5665 = vmatpush1.msra.mxu0 %v5664
  %v5666 = vand.u32 %v1618, 4294901760
  %5667 = vmatprep.subr.mxu0 %v5666
  %v5668 = vand.u32 %v1617, 4294901760
  %5669 = vmatpush1.msra.mxu0 %v5668
  %v5670 = vand.u32 %v1634, 4294901760
  %5671 = vmatprep.subr.mxu0 %v5670
  %v5672 = vand.u32 %v1633, 4294901760
  %5673 = vmatpush1.msra.mxu0 %v5672
  %v5674 = vand.u32 %v1650, 4294901760
  %5675 = vmatprep.subr.mxu0 %v5674
  %v5676 = vand.u32 %v1649, 4294901760
  %5677 = vmatpush1.msra.mxu0 %v5676
  %v5678 = vand.u32 %v1666, 4294901760
  %5679 = vmatprep.subr.mxu0 %v5678
  %v5680 = vand.u32 %v1665, 4294901760
  %5681 = vmatpush1.msra.mxu0 %v5680
  %v5682 = vand.u32 %v1682, 4294901760
  %5683 = vmatprep.subr.mxu0 %v5682
  %v5684 = vand.u32 %v1681, 4294901760
  %5685 = vmatpush1.msra.mxu0 %v5684
  %5686 = vmatprep.subr.mxu0 0.0
  %5687 = vmatpush1.msra.mxu0 0.0
  %5688 = vmatprep.subr.mxu0 0.0
  %5689 = vmatpush1.msra.mxu0 0.0
  %5690 = vmatprep.subr.mxu0 0.0
  %5691 = vmatpush1.msra.mxu0 0.0
  %5692 = vmatprep.subr.mxu0 0.0
  %5693 = vmatpush1.msra.mxu0 0.0
  %5694 = vmatprep.subr.mxu0 0.0
  %5695 = vmatpush1.msra.mxu0 0.0
  %5696 = vmatprep.subr.mxu0 0.0
  %5697 = vmatpush1.msra.mxu0 0.0
  %5698 = vmatprep.subr.mxu0 0.0
  %5699 = vmatpush1.msra.mxu0 0.0
  %5700 = vmatprep.subr.mxu0 0.0
  %5701 = vmatpush1.msra.mxu0 0.0
  %5702 = vmatprep.subr.mxu0 0.0
  %5703 = vmatpush1.msra.mxu0 0.0
  %5704 = vmatprep.subr.mxu0 0.0
  %5705 = vmatpush1.msra.mxu0 0.0
  %5706 = vmatprep.subr.mxu0 0.0
  %5707 = vmatpush1.msra.mxu0 0.0
  %5708 = vmatprep.subr.mxu0 0.0
  %5709 = vmatpush1.msra.mxu0 0.0
  %5710 = vmatprep.subr.mxu0 0.0
  %5711 = vmatpush1.msra.mxu0 0.0
  %5712 = vmatprep.subr.mxu0 0.0
  %5713 = vmatpush1.msra.mxu0 0.0
  %5714 = vmatprep.subr.mxu0 0.0
  %5715 = vmatpush1.msra.mxu0 0.0
  %5716 = vmatprep.subr.mxu0 0.0
  %5717 = vmatpush1.msra.mxu0 0.0
  %5718 = vmatprep.mubr.f32.mxu0 0.0
  %v5719 = vand.u32 %v1689, 4294901760
  %v5720 = vsub.f32 %v1689, %v5719
  %v5721 = vand.u32 %v5720, 4294901760
  %5722 = vmatmul.mubr.f32.gmra.mrb[0].mxu0 %v5721
  %v5723 = vpop.f32.mrb[0].mxu0
  %v5724 = vadd.f32 %v5618, %v5723
  %v5725 = vpop.f32.mrb[0].mxu0
  %v5726 = vadd.f32 %v5620, %v5725
  %5727 = vdwg.mxu0
  %v5728 = vand.u32 %v1442, 4294901760
  %v5729 = vsub.f32 %v1442, %v5728
  %v5730 = vand.u32 %v5729, 4294901760
  %5731 = vmatprep.subr.mxu0 %v5730
  %v5732 = vand.u32 %v1441, 4294901760
  %v5733 = vsub.f32 %v1441, %v5732
  %v5734 = vand.u32 %v5733, 4294901760
  %5735 = vmatpush1.msra.mxu0 %v5734
  %v5736 = vand.u32 %v1458, 4294901760
  %v5737 = vsub.f32 %v1458, %v5736
  %v5738 = vand.u32 %v5737, 4294901760
  %5739 = vmatprep.subr.mxu0 %v5738
  %v5740 = vand.u32 %v1457, 4294901760
  %v5741 = vsub.f32 %v1457, %v5740
  %v5742 = vand.u32 %v5741, 4294901760
  %5743 = vmatpush1.msra.mxu0 %v5742
  %v5744 = vand.u32 %v1474, 4294901760
  %v5745 = vsub.f32 %v1474, %v5744
  %v5746 = vand.u32 %v5745, 4294901760
  %5747 = vmatprep.subr.mxu0 %v5746
  %v5748 = vand.u32 %v1473, 4294901760
  %v5749 = vsub.f32 %v1473, %v5748
  %v5750 = vand.u32 %v5749, 4294901760
  %5751 = vmatpush1.msra.mxu0 %v5750
  %v5752 = vand.u32 %v1490, 4294901760
  %v5753 = vsub.f32 %v1490, %v5752
  %v5754 = vand.u32 %v5753, 4294901760
  %5755 = vmatprep.subr.mxu0 %v5754
  %v5756 = vand.u32 %v1489, 4294901760
  %v5757 = vsub.f32 %v1489, %v5756
  %v5758 = vand.u32 %v5757, 4294901760
  %5759 = vmatpush1.msra.mxu0 %v5758
  %v5760 = vand.u32 %v1506, 4294901760
  %v5761 = vsub.f32 %v1506, %v5760
  %v5762 = vand.u32 %v5761, 4294901760
  %5763 = vmatprep.subr.mxu0 %v5762
  %v5764 = vand.u32 %v1505, 4294901760
  %v5765 = vsub.f32 %v1505, %v5764
  %v5766 = vand.u32 %v5765, 4294901760
  %5767 = vmatpush1.msra.mxu0 %v5766
  %v5768 = vand.u32 %v1522, 4294901760
  %v5769 = vsub.f32 %v1522, %v5768
  %v5770 = vand.u32 %v5769, 4294901760
  %5771 = vmatprep.subr.mxu0 %v5770
  %v5772 = vand.u32 %v1521, 4294901760
  %v5773 = vsub.f32 %v1521, %v5772
  %v5774 = vand.u32 %v5773, 4294901760
  %5775 = vmatpush1.msra.mxu0 %v5774
  %v5776 = vand.u32 %v1538, 4294901760
  %v5777 = vsub.f32 %v1538, %v5776
  %v5778 = vand.u32 %v5777, 4294901760
  %5779 = vmatprep.subr.mxu0 %v5778
  %v5780 = vand.u32 %v1537, 4294901760
  %v5781 = vsub.f32 %v1537, %v5780
  %v5782 = vand.u32 %v5781, 4294901760
  %5783 = vmatpush1.msra.mxu0 %v5782
  %v5784 = vand.u32 %v1554, 4294901760
  %v5785 = vsub.f32 %v1554, %v5784
  %v5786 = vand.u32 %v5785, 4294901760
  %5787 = vmatprep.subr.mxu0 %v5786
  %v5788 = vand.u32 %v1553, 4294901760
  %v5789 = vsub.f32 %v1553, %v5788
  %v5790 = vand.u32 %v5789, 4294901760
  %5791 = vmatpush1.msra.mxu0 %v5790
  %v5792 = vand.u32 %v1570, 4294901760
  %v5793 = vsub.f32 %v1570, %v5792
  %v5794 = vand.u32 %v5793, 4294901760
  %5795 = vmatprep.subr.mxu0 %v5794
  %v5796 = vand.u32 %v1569, 4294901760
  %v5797 = vsub.f32 %v1569, %v5796
  %v5798 = vand.u32 %v5797, 4294901760
  %5799 = vmatpush1.msra.mxu0 %v5798
  %v5800 = vand.u32 %v1586, 4294901760
  %v5801 = vsub.f32 %v1586, %v5800
  %v5802 = vand.u32 %v5801, 4294901760
  %5803 = vmatprep.subr.mxu0 %v5802
  %v5804 = vand.u32 %v1585, 4294901760
  %v5805 = vsub.f32 %v1585, %v5804
  %v5806 = vand.u32 %v5805, 4294901760
  %5807 = vmatpush1.msra.mxu0 %v5806
  %v5808 = vand.u32 %v1602, 4294901760
  %v5809 = vsub.f32 %v1602, %v5808
  %v5810 = vand.u32 %v5809, 4294901760
  %5811 = vmatprep.subr.mxu0 %v5810
  %v5812 = vand.u32 %v1601, 4294901760
  %v5813 = vsub.f32 %v1601, %v5812
  %v5814 = vand.u32 %v5813, 4294901760
  %5815 = vmatpush1.msra.mxu0 %v5814
  %v5816 = vand.u32 %v1618, 4294901760
  %v5817 = vsub.f32 %v1618, %v5816
  %v5818 = vand.u32 %v5817, 4294901760
  %5819 = vmatprep.subr.mxu0 %v5818
  %v5820 = vand.u32 %v1617, 4294901760
  %v5821 = vsub.f32 %v1617, %v5820
  %v5822 = vand.u32 %v5821, 4294901760
  %5823 = vmatpush1.msra.mxu0 %v5822
  %v5824 = vand.u32 %v1634, 4294901760
  %v5825 = vsub.f32 %v1634, %v5824
  %v5826 = vand.u32 %v5825, 4294901760
  %5827 = vmatprep.subr.mxu0 %v5826
  %v5828 = vand.u32 %v1633, 4294901760
  %v5829 = vsub.f32 %v1633, %v5828
  %v5830 = vand.u32 %v5829, 4294901760
  %5831 = vmatpush1.msra.mxu0 %v5830
  %v5832 = vand.u32 %v1650, 4294901760
  %v5833 = vsub.f32 %v1650, %v5832
  %v5834 = vand.u32 %v5833, 4294901760
  %5835 = vmatprep.subr.mxu0 %v5834
  %v5836 = vand.u32 %v1649, 4294901760
  %v5837 = vsub.f32 %v1649, %v5836
  %v5838 = vand.u32 %v5837, 4294901760
  %5839 = vmatpush1.msra.mxu0 %v5838
  %v5840 = vand.u32 %v1666, 4294901760
  %v5841 = vsub.f32 %v1666, %v5840
  %v5842 = vand.u32 %v5841, 4294901760
  %5843 = vmatprep.subr.mxu0 %v5842
  %v5844 = vand.u32 %v1665, 4294901760
  %v5845 = vsub.f32 %v1665, %v5844
  %v5846 = vand.u32 %v5845, 4294901760
  %5847 = vmatpush1.msra.mxu0 %v5846
  %v5848 = vand.u32 %v1682, 4294901760
  %v5849 = vsub.f32 %v1682, %v5848
  %v5850 = vand.u32 %v5849, 4294901760
  %5851 = vmatprep.subr.mxu0 %v5850
  %v5852 = vand.u32 %v1681, 4294901760
  %v5853 = vsub.f32 %v1681, %v5852
  %v5854 = vand.u32 %v5853, 4294901760
  %5855 = vmatpush1.msra.mxu0 %v5854
  %5856 = vmatprep.subr.mxu0 0.0
  %5857 = vmatpush1.msra.mxu0 0.0
  %5858 = vmatprep.subr.mxu0 0.0
  %5859 = vmatpush1.msra.mxu0 0.0
  %5860 = vmatprep.subr.mxu0 0.0
  %5861 = vmatpush1.msra.mxu0 0.0
  %5862 = vmatprep.subr.mxu0 0.0
  %5863 = vmatpush1.msra.mxu0 0.0
  %5864 = vmatprep.subr.mxu0 0.0
  %5865 = vmatpush1.msra.mxu0 0.0
  %5866 = vmatprep.subr.mxu0 0.0
  %5867 = vmatpush1.msra.mxu0 0.0
  %5868 = vmatprep.subr.mxu0 0.0
  %5869 = vmatpush1.msra.mxu0 0.0
  %5870 = vmatprep.subr.mxu0 0.0
  %5871 = vmatpush1.msra.mxu0 0.0
  %5872 = vmatprep.subr.mxu0 0.0
  %5873 = vmatpush1.msra.mxu0 0.0
  %5874 = vmatprep.subr.mxu0 0.0
  %5875 = vmatpush1.msra.mxu0 0.0
  %5876 = vmatprep.subr.mxu0 0.0
  %5877 = vmatpush1.msra.mxu0 0.0
  %5878 = vmatprep.subr.mxu0 0.0
  %5879 = vmatpush1.msra.mxu0 0.0
  %5880 = vmatprep.subr.mxu0 0.0
  %5881 = vmatpush1.msra.mxu0 0.0
  %5882 = vmatprep.subr.mxu0 0.0
  %5883 = vmatpush1.msra.mxu0 0.0
  %5884 = vmatprep.subr.mxu0 0.0
  %5885 = vmatpush1.msra.mxu0 0.0
  %5886 = vmatprep.subr.mxu0 0.0
  %5887 = vmatpush1.msra.mxu0 0.0
  %5888 = vmatprep.mubr.f32.mxu0 0.0
  %v5889 = vand.u32 %v1689, 4294901760
  %5890 = vmatmul.mubr.f32.gmra.mrb[0].mxu0 %v5889
  %v5891 = vpop.f32.mrb[0].mxu0
  %v5892 = vadd.f32 %v5724, %v5891
  %v5893 = vpop.f32.mrb[0].mxu0
  %v5894 = vadd.f32 %v5726, %v5893
  %5895 = vdwg.mxu0
  %v5896 = vand.u32 %v1442, 4294901760
  %5897 = vmatprep.subr.mxu0 %v5896
  %v5898 = vand.u32 %v1441, 4294901760
  %5899 = vmatpush1.msra.mxu0 %v5898
  %v5900 = vand.u32 %v1458, 4294901760
  %5901 = vmatprep.subr.mxu0 %v5900
  %v5902 = vand.u32 %v1457, 4294901760
  %5903 = vmatpush1.msra.mxu0 %v5902
  %v5904 = vand.u32 %v1474, 4294901760
  %5905 = vmatprep.subr.mxu0 %v5904
  %v5906 = vand.u32 %v1473, 4294901760
  %5907 = vmatpush1.msra.mxu0 %v5906
  %v5908 = vand.u32 %v1490, 4294901760
  %5909 = vmatprep.subr.mxu0 %v5908
  %v5910 = vand.u32 %v1489, 4294901760
  %5911 = vmatpush1.msra.mxu0 %v5910
  %v5912 = vand.u32 %v1506, 4294901760
  %5913 = vmatprep.subr.mxu0 %v5912
  %v5914 = vand.u32 %v1505, 4294901760
  %5915 = vmatpush1.msra.mxu0 %v5914
  %v5916 = vand.u32 %v1522, 4294901760
  %5917 = vmatprep.subr.mxu0 %v5916
  %v5918 = vand.u32 %v1521, 4294901760
  %5919 = vmatpush1.msra.mxu0 %v5918
  %v5920 = vand.u32 %v1538, 4294901760
  %5921 = vmatprep.subr.mxu0 %v5920
  %v5922 = vand.u32 %v1537, 4294901760
  %5923 = vmatpush1.msra.mxu0 %v5922
  %v5924 = vand.u32 %v1554, 4294901760
  %5925 = vmatprep.subr.mxu0 %v5924
  %v5926 = vand.u32 %v1553, 4294901760
  %5927 = vmatpush1.msra.mxu0 %v5926
  %v5928 = vand.u32 %v1570, 4294901760
  %5929 = vmatprep.subr.mxu0 %v5928
  %v5930 = vand.u32 %v1569, 4294901760
  %5931 = vmatpush1.msra.mxu0 %v5930
  %v5932 = vand.u32 %v1586, 4294901760
  %5933 = vmatprep.subr.mxu0 %v5932
  %v5934 = vand.u32 %v1585, 4294901760
  %5935 = vmatpush1.msra.mxu0 %v5934
  %v5936 = vand.u32 %v1602, 4294901760
  %5937 = vmatprep.subr.mxu0 %v5936
  %v5938 = vand.u32 %v1601, 4294901760
  %5939 = vmatpush1.msra.mxu0 %v5938
  %v5940 = vand.u32 %v1618, 4294901760
  %5941 = vmatprep.subr.mxu0 %v5940
  %v5942 = vand.u32 %v1617, 4294901760
  %5943 = vmatpush1.msra.mxu0 %v5942
  %v5944 = vand.u32 %v1634, 4294901760
  %5945 = vmatprep.subr.mxu0 %v5944
  %v5946 = vand.u32 %v1633, 4294901760
  %5947 = vmatpush1.msra.mxu0 %v5946
  %v5948 = vand.u32 %v1650, 4294901760
  %5949 = vmatprep.subr.mxu0 %v5948
  %v5950 = vand.u32 %v1649, 4294901760
  %5951 = vmatpush1.msra.mxu0 %v5950
  %v5952 = vand.u32 %v1666, 4294901760
  %5953 = vmatprep.subr.mxu0 %v5952
  %v5954 = vand.u32 %v1665, 4294901760
  %5955 = vmatpush1.msra.mxu0 %v5954
  %v5956 = vand.u32 %v1682, 4294901760
  %5957 = vmatprep.subr.mxu0 %v5956
  %v5958 = vand.u32 %v1681, 4294901760
  %5959 = vmatpush1.msra.mxu0 %v5958
  %5960 = vmatprep.subr.mxu0 0.0
  %5961 = vmatpush1.msra.mxu0 0.0
  %5962 = vmatprep.subr.mxu0 0.0
  %5963 = vmatpush1.msra.mxu0 0.0
  %5964 = vmatprep.subr.mxu0 0.0
  %5965 = vmatpush1.msra.mxu0 0.0
  %5966 = vmatprep.subr.mxu0 0.0
  %5967 = vmatpush1.msra.mxu0 0.0
  %5968 = vmatprep.subr.mxu0 0.0
  %5969 = vmatpush1.msra.mxu0 0.0
  %5970 = vmatprep.subr.mxu0 0.0
  %5971 = vmatpush1.msra.mxu0 0.0
  %5972 = vmatprep.subr.mxu0 0.0
  %5973 = vmatpush1.msra.mxu0 0.0
  %5974 = vmatprep.subr.mxu0 0.0
  %5975 = vmatpush1.msra.mxu0 0.0
  %5976 = vmatprep.subr.mxu0 0.0
  %5977 = vmatpush1.msra.mxu0 0.0
  %5978 = vmatprep.subr.mxu0 0.0
  %5979 = vmatpush1.msra.mxu0 0.0
  %5980 = vmatprep.subr.mxu0 0.0
  %5981 = vmatpush1.msra.mxu0 0.0
  %5982 = vmatprep.subr.mxu0 0.0
  %5983 = vmatpush1.msra.mxu0 0.0
  %5984 = vmatprep.subr.mxu0 0.0
  %5985 = vmatpush1.msra.mxu0 0.0
  %5986 = vmatprep.subr.mxu0 0.0
  %5987 = vmatpush1.msra.mxu0 0.0
  %5988 = vmatprep.subr.mxu0 0.0
  %5989 = vmatpush1.msra.mxu0 0.0
  %5990 = vmatprep.subr.mxu0 0.0
  %5991 = vmatpush1.msra.mxu0 0.0
  %5992 = vmatprep.mubr.f32.mxu0 0.0
  %v5993 = vand.u32 %v1689, 4294901760
  %5994 = vmatmul.mubr.f32.gmra.mrb[0].mxu0 %v5993
  %v5995 = vpop.f32.mrb[0].mxu0
  %v5996 = vadd.f32 %v5892, %v5995
  %v5997 = vpop.f32.mrb[0].mxu0
  %v5998 = vadd.f32 %v5894, %v5997
  %5999 = vdwg.mxu0
  %v6000 = vand.u32 %v1444, 4294901760
  %6001 = vmatprep.subr.mxu0 %v6000
  %v6002 = vand.u32 %v1443, 4294901760
  %6003 = vmatpush1.msra.mxu0 %v6002
  %v6004 = vand.u32 %v1460, 4294901760
  %6005 = vmatprep.subr.mxu0 %v6004
  %v6006 = vand.u32 %v1459, 4294901760
  %6007 = vmatpush1.msra.mxu0 %v6006
  %v6008 = vand.u32 %v1476, 4294901760
  %6009 = vmatprep.subr.mxu0 %v6008
  %v6010 = vand.u32 %v1475, 4294901760
  %6011 = vmatpush1.msra.mxu0 %v6010
  %v6012 = vand.u32 %v1492, 4294901760
  %6013 = vmatprep.subr.mxu0 %v6012
  %v6014 = vand.u32 %v1491, 4294901760
  %6015 = vmatpush1.msra.mxu0 %v6014
  %v6016 = vand.u32 %v1508, 4294901760
  %6017 = vmatprep.subr.mxu0 %v6016
  %v6018 = vand.u32 %v1507, 4294901760
  %6019 = vmatpush1.msra.mxu0 %v6018
  %v6020 = vand.u32 %v1524, 4294901760
  %6021 = vmatprep.subr.mxu0 %v6020
  %v6022 = vand.u32 %v1523, 4294901760
  %6023 = vmatpush1.msra.mxu0 %v6022
  %v6024 = vand.u32 %v1540, 4294901760
  %6025 = vmatprep.subr.mxu0 %v6024
  %v6026 = vand.u32 %v1539, 4294901760
  %6027 = vmatpush1.msra.mxu0 %v6026
  %v6028 = vand.u32 %v1556, 4294901760
  %6029 = vmatprep.subr.mxu0 %v6028
  %v6030 = vand.u32 %v1555, 4294901760
  %6031 = vmatpush1.msra.mxu0 %v6030
  %v6032 = vand.u32 %v1572, 4294901760
  %6033 = vmatprep.subr.mxu0 %v6032
  %v6034 = vand.u32 %v1571, 4294901760
  %6035 = vmatpush1.msra.mxu0 %v6034
  %v6036 = vand.u32 %v1588, 4294901760
  %6037 = vmatprep.subr.mxu0 %v6036
  %v6038 = vand.u32 %v1587, 4294901760
  %6039 = vmatpush1.msra.mxu0 %v6038
  %v6040 = vand.u32 %v1604, 4294901760
  %6041 = vmatprep.subr.mxu0 %v6040
  %v6042 = vand.u32 %v1603, 4294901760
  %6043 = vmatpush1.msra.mxu0 %v6042
  %v6044 = vand.u32 %v1620, 4294901760
  %6045 = vmatprep.subr.mxu0 %v6044
  %v6046 = vand.u32 %v1619, 4294901760
  %6047 = vmatpush1.msra.mxu0 %v6046
  %v6048 = vand.u32 %v1636, 4294901760
  %6049 = vmatprep.subr.mxu0 %v6048
  %v6050 = vand.u32 %v1635, 4294901760
  %6051 = vmatpush1.msra.mxu0 %v6050
  %v6052 = vand.u32 %v1652, 4294901760
  %6053 = vmatprep.subr.mxu0 %v6052
  %v6054 = vand.u32 %v1651, 4294901760
  %6055 = vmatpush1.msra.mxu0 %v6054
  %v6056 = vand.u32 %v1668, 4294901760
  %6057 = vmatprep.subr.mxu0 %v6056
  %v6058 = vand.u32 %v1667, 4294901760
  %6059 = vmatpush1.msra.mxu0 %v6058
  %v6060 = vand.u32 %v1684, 4294901760
  %6061 = vmatprep.subr.mxu0 %v6060
  %v6062 = vand.u32 %v1683, 4294901760
  %6063 = vmatpush1.msra.mxu0 %v6062
  %6064 = vmatprep.subr.mxu0 0.0
  %6065 = vmatpush1.msra.mxu0 0.0
  %6066 = vmatprep.subr.mxu0 0.0
  %6067 = vmatpush1.msra.mxu0 0.0
  %6068 = vmatprep.subr.mxu0 0.0
  %6069 = vmatpush1.msra.mxu0 0.0
  %6070 = vmatprep.subr.mxu0 0.0
  %6071 = vmatpush1.msra.mxu0 0.0
  %6072 = vmatprep.subr.mxu0 0.0
  %6073 = vmatpush1.msra.mxu0 0.0
  %6074 = vmatprep.subr.mxu0 0.0
  %6075 = vmatpush1.msra.mxu0 0.0
  %6076 = vmatprep.subr.mxu0 0.0
  %6077 = vmatpush1.msra.mxu0 0.0
  %6078 = vmatprep.subr.mxu0 0.0
  %6079 = vmatpush1.msra.mxu0 0.0
  %6080 = vmatprep.subr.mxu0 0.0
  %6081 = vmatpush1.msra.mxu0 0.0
  %6082 = vmatprep.subr.mxu0 0.0
  %6083 = vmatpush1.msra.mxu0 0.0
  %6084 = vmatprep.subr.mxu0 0.0
  %6085 = vmatpush1.msra.mxu0 0.0
  %6086 = vmatprep.subr.mxu0 0.0
  %6087 = vmatpush1.msra.mxu0 0.0
  %6088 = vmatprep.subr.mxu0 0.0
  %6089 = vmatpush1.msra.mxu0 0.0
  %6090 = vmatprep.subr.mxu0 0.0
  %6091 = vmatpush1.msra.mxu0 0.0
  %6092 = vmatprep.subr.mxu0 0.0
  %6093 = vmatpush1.msra.mxu0 0.0
  %6094 = vmatprep.subr.mxu0 0.0
  %6095 = vmatpush1.msra.mxu0 0.0
  %6096 = vmatprep.mubr.f32.mxu0 0.0
  %v6097 = vand.u32 %v1689, 4294901760
  %v6098 = vsub.f32 %v1689, %v6097
  %v6099 = vand.u32 %v6098, 4294901760
  %v6100 = vsub.f32 %v6098, %v6099
  %v6101 = vand.u32 %v6100, 4294901760
  %6102 = vmatmul.mubr.f32.gmra.mrb[0].mxu0 %v6101
  %v6103 = vpop.f32.mrb[0].mxu0
  %v6104 = vadd.f32 %v1718, %v6103
  %v6105 = vpop.f32.mrb[0].mxu0
  %v6106 = vadd.f32 %v1720, %v6105
  %6107 = vdwg.mxu0
  %v6108 = vand.u32 %v1444, 4294901760
  %v6109 = vsub.f32 %v1444, %v6108
  %v6110 = vand.u32 %v6109, 4294901760
  %v6111 = vsub.f32 %v6109, %v6110
  %v6112 = vand.u32 %v6111, 4294901760
  %6113 = vmatprep.subr.mxu0 %v6112
  %v6114 = vand.u32 %v1443, 4294901760
  %v6115 = vsub.f32 %v1443, %v6114
  %v6116 = vand.u32 %v6115, 4294901760
  %v6117 = vsub.f32 %v6115, %v6116
  %v6118 = vand.u32 %v6117, 4294901760
  %6119 = vmatpush1.msra.mxu0 %v6118
  %v6120 = vand.u32 %v1460, 4294901760
  %v6121 = vsub.f32 %v1460, %v6120
  %v6122 = vand.u32 %v6121, 4294901760
  %v6123 = vsub.f32 %v6121, %v6122
  %v6124 = vand.u32 %v6123, 4294901760
  %6125 = vmatprep.subr.mxu0 %v6124
  %v6126 = vand.u32 %v1459, 4294901760
  %v6127 = vsub.f32 %v1459, %v6126
  %v6128 = vand.u32 %v6127, 4294901760
  %v6129 = vsub.f32 %v6127, %v6128
  %v6130 = vand.u32 %v6129, 4294901760
  %6131 = vmatpush1.msra.mxu0 %v6130
  %v6132 = vand.u32 %v1476, 4294901760
  %v6133 = vsub.f32 %v1476, %v6132
  %v6134 = vand.u32 %v6133, 4294901760
  %v6135 = vsub.f32 %v6133, %v6134
  %v6136 = vand.u32 %v6135, 4294901760
  %6137 = vmatprep.subr.mxu0 %v6136
  %v6138 = vand.u32 %v1475, 4294901760
  %v6139 = vsub.f32 %v1475, %v6138
  %v6140 = vand.u32 %v6139, 4294901760
  %v6141 = vsub.f32 %v6139, %v6140
  %v6142 = vand.u32 %v6141, 4294901760
  %6143 = vmatpush1.msra.mxu0 %v6142
  %v6144 = vand.u32 %v1492, 4294901760
  %v6145 = vsub.f32 %v1492, %v6144
  %v6146 = vand.u32 %v6145, 4294901760
  %v6147 = vsub.f32 %v6145, %v6146
  %v6148 = vand.u32 %v6147, 4294901760
  %6149 = vmatprep.subr.mxu0 %v6148
  %v6150 = vand.u32 %v1491, 4294901760
  %v6151 = vsub.f32 %v1491, %v6150
  %v6152 = vand.u32 %v6151, 4294901760
  %v6153 = vsub.f32 %v6151, %v6152
  %v6154 = vand.u32 %v6153, 4294901760
  %6155 = vmatpush1.msra.mxu0 %v6154
  %v6156 = vand.u32 %v1508, 4294901760
  %v6157 = vsub.f32 %v1508, %v6156
  %v6158 = vand.u32 %v6157, 4294901760
  %v6159 = vsub.f32 %v6157, %v6158
  %v6160 = vand.u32 %v6159, 4294901760
  %6161 = vmatprep.subr.mxu0 %v6160
  %v6162 = vand.u32 %v1507, 4294901760
  %v6163 = vsub.f32 %v1507, %v6162
  %v6164 = vand.u32 %v6163, 4294901760
  %v6165 = vsub.f32 %v6163, %v6164
  %v6166 = vand.u32 %v6165, 4294901760
  %6167 = vmatpush1.msra.mxu0 %v6166
  %v6168 = vand.u32 %v1524, 4294901760
  %v6169 = vsub.f32 %v1524, %v6168
  %v6170 = vand.u32 %v6169, 4294901760
  %v6171 = vsub.f32 %v6169, %v6170
  %v6172 = vand.u32 %v6171, 4294901760
  %6173 = vmatprep.subr.mxu0 %v6172
  %v6174 = vand.u32 %v1523, 4294901760
  %v6175 = vsub.f32 %v1523, %v6174
  %v6176 = vand.u32 %v6175, 4294901760
  %v6177 = vsub.f32 %v6175, %v6176
  %v6178 = vand.u32 %v6177, 4294901760
  %6179 = vmatpush1.msra.mxu0 %v6178
  %v6180 = vand.u32 %v1540, 4294901760
  %v6181 = vsub.f32 %v1540, %v6180
  %v6182 = vand.u32 %v6181, 4294901760
  %v6183 = vsub.f32 %v6181, %v6182
  %v6184 = vand.u32 %v6183, 4294901760
  %6185 = vmatprep.subr.mxu0 %v6184
  %v6186 = vand.u32 %v1539, 4294901760
  %v6187 = vsub.f32 %v1539, %v6186
  %v6188 = vand.u32 %v6187, 4294901760
  %v6189 = vsub.f32 %v6187, %v6188
  %v6190 = vand.u32 %v6189, 4294901760
  %6191 = vmatpush1.msra.mxu0 %v6190
  %v6192 = vand.u32 %v1556, 4294901760
  %v6193 = vsub.f32 %v1556, %v6192
  %v6194 = vand.u32 %v6193, 4294901760
  %v6195 = vsub.f32 %v6193, %v6194
  %v6196 = vand.u32 %v6195, 4294901760
  %6197 = vmatprep.subr.mxu0 %v6196
  %v6198 = vand.u32 %v1555, 4294901760
  %v6199 = vsub.f32 %v1555, %v6198
  %v6200 = vand.u32 %v6199, 4294901760
  %v6201 = vsub.f32 %v6199, %v6200
  %v6202 = vand.u32 %v6201, 4294901760
  %6203 = vmatpush1.msra.mxu0 %v6202
  %v6204 = vand.u32 %v1572, 4294901760
  %v6205 = vsub.f32 %v1572, %v6204
  %v6206 = vand.u32 %v6205, 4294901760
  %v6207 = vsub.f32 %v6205, %v6206
  %v6208 = vand.u32 %v6207, 4294901760
  %6209 = vmatprep.subr.mxu0 %v6208
  %v6210 = vand.u32 %v1571, 4294901760
  %v6211 = vsub.f32 %v1571, %v6210
  %v6212 = vand.u32 %v6211, 4294901760
  %v6213 = vsub.f32 %v6211, %v6212
  %v6214 = vand.u32 %v6213, 4294901760
  %6215 = vmatpush1.msra.mxu0 %v6214
  %v6216 = vand.u32 %v1588, 4294901760
  %v6217 = vsub.f32 %v1588, %v6216
  %v6218 = vand.u32 %v6217, 4294901760
  %v6219 = vsub.f32 %v6217, %v6218
  %v6220 = vand.u32 %v6219, 4294901760
  %6221 = vmatprep.subr.mxu0 %v6220
  %v6222 = vand.u32 %v1587, 4294901760
  %v6223 = vsub.f32 %v1587, %v6222
  %v6224 = vand.u32 %v6223, 4294901760
  %v6225 = vsub.f32 %v6223, %v6224
  %v6226 = vand.u32 %v6225, 4294901760
  %6227 = vmatpush1.msra.mxu0 %v6226
  %v6228 = vand.u32 %v1604, 4294901760
  %v6229 = vsub.f32 %v1604, %v6228
  %v6230 = vand.u32 %v6229, 4294901760
  %v6231 = vsub.f32 %v6229, %v6230
  %v6232 = vand.u32 %v6231, 4294901760
  %6233 = vmatprep.subr.mxu0 %v6232
  %v6234 = vand.u32 %v1603, 4294901760
  %v6235 = vsub.f32 %v1603, %v6234
  %v6236 = vand.u32 %v6235, 4294901760
  %v6237 = vsub.f32 %v6235, %v6236
  %v6238 = vand.u32 %v6237, 4294901760
  %6239 = vmatpush1.msra.mxu0 %v6238
  %v6240 = vand.u32 %v1620, 4294901760
  %v6241 = vsub.f32 %v1620, %v6240
  %v6242 = vand.u32 %v6241, 4294901760
  %v6243 = vsub.f32 %v6241, %v6242
  %v6244 = vand.u32 %v6243, 4294901760
  %6245 = vmatprep.subr.mxu0 %v6244
  %v6246 = vand.u32 %v1619, 4294901760
  %v6247 = vsub.f32 %v1619, %v6246
  %v6248 = vand.u32 %v6247, 4294901760
  %v6249 = vsub.f32 %v6247, %v6248
  %v6250 = vand.u32 %v6249, 4294901760
  %6251 = vmatpush1.msra.mxu0 %v6250
  %v6252 = vand.u32 %v1636, 4294901760
  %v6253 = vsub.f32 %v1636, %v6252
  %v6254 = vand.u32 %v6253, 4294901760
  %v6255 = vsub.f32 %v6253, %v6254
  %v6256 = vand.u32 %v6255, 4294901760
  %6257 = vmatprep.subr.mxu0 %v6256
  %v6258 = vand.u32 %v1635, 4294901760
  %v6259 = vsub.f32 %v1635, %v6258
  %v6260 = vand.u32 %v6259, 4294901760
  %v6261 = vsub.f32 %v6259, %v6260
  %v6262 = vand.u32 %v6261, 4294901760
  %6263 = vmatpush1.msra.mxu0 %v6262
  %v6264 = vand.u32 %v1652, 4294901760
  %v6265 = vsub.f32 %v1652, %v6264
  %v6266 = vand.u32 %v6265, 4294901760
  %v6267 = vsub.f32 %v6265, %v6266
  %v6268 = vand.u32 %v6267, 4294901760
  %6269 = vmatprep.subr.mxu0 %v6268
  %v6270 = vand.u32 %v1651, 4294901760
  %v6271 = vsub.f32 %v1651, %v6270
  %v6272 = vand.u32 %v6271, 4294901760
  %v6273 = vsub.f32 %v6271, %v6272
  %v6274 = vand.u32 %v6273, 4294901760
  %6275 = vmatpush1.msra.mxu0 %v6274
  %v6276 = vand.u32 %v1668, 4294901760
  %v6277 = vsub.f32 %v1668, %v6276
  %v6278 = vand.u32 %v6277, 4294901760
  %v6279 = vsub.f32 %v6277, %v6278
  %v6280 = vand.u32 %v6279, 4294901760
  %6281 = vmatprep.subr.mxu0 %v6280
  %v6282 = vand.u32 %v1667, 4294901760
  %v6283 = vsub.f32 %v1667, %v6282
  %v6284 = vand.u32 %v6283, 4294901760
  %v6285 = vsub.f32 %v6283, %v6284
  %v6286 = vand.u32 %v6285, 4294901760
  %6287 = vmatpush1.msra.mxu0 %v6286
  %v6288 = vand.u32 %v1684, 4294901760
  %v6289 = vsub.f32 %v1684, %v6288
  %v6290 = vand.u32 %v6289, 4294901760
  %v6291 = vsub.f32 %v6289, %v6290
  %v6292 = vand.u32 %v6291, 4294901760
  %6293 = vmatprep.subr.mxu0 %v6292
  %v6294 = vand.u32 %v1683, 4294901760
  %v6295 = vsub.f32 %v1683, %v6294
  %v6296 = vand.u32 %v6295, 4294901760
  %v6297 = vsub.f32 %v6295, %v6296
  %v6298 = vand.u32 %v6297, 4294901760
  %6299 = vmatpush1.msra.mxu0 %v6298
  %6300 = vmatprep.subr.mxu0 0.0
  %6301 = vmatpush1.msra.mxu0 0.0
  %6302 = vmatprep.subr.mxu0 0.0
  %6303 = vmatpush1.msra.mxu0 0.0
  %6304 = vmatprep.subr.mxu0 0.0
  %6305 = vmatpush1.msra.mxu0 0.0
  %6306 = vmatprep.subr.mxu0 0.0
  %6307 = vmatpush1.msra.mxu0 0.0
  %6308 = vmatprep.subr.mxu0 0.0
  %6309 = vmatpush1.msra.mxu0 0.0
  %6310 = vmatprep.subr.mxu0 0.0
  %6311 = vmatpush1.msra.mxu0 0.0
  %6312 = vmatprep.subr.mxu0 0.0
  %6313 = vmatpush1.msra.mxu0 0.0
  %6314 = vmatprep.subr.mxu0 0.0
  %6315 = vmatpush1.msra.mxu0 0.0
  %6316 = vmatprep.subr.mxu0 0.0
  %6317 = vmatpush1.msra.mxu0 0.0
  %6318 = vmatprep.subr.mxu0 0.0
  %6319 = vmatpush1.msra.mxu0 0.0
  %6320 = vmatprep.subr.mxu0 0.0
  %6321 = vmatpush1.msra.mxu0 0.0
  %6322 = vmatprep.subr.mxu0 0.0
  %6323 = vmatpush1.msra.mxu0 0.0
  %6324 = vmatprep.subr.mxu0 0.0
  %6325 = vmatpush1.msra.mxu0 0.0
  %6326 = vmatprep.subr.mxu0 0.0
  %6327 = vmatpush1.msra.mxu0 0.0
  %6328 = vmatprep.subr.mxu0 0.0
  %6329 = vmatpush1.msra.mxu0 0.0
  %6330 = vmatprep.subr.mxu0 0.0
  %6331 = vmatpush1.msra.mxu0 0.0
  %6332 = vmatprep.mubr.f32.mxu0 0.0
  %v6333 = vand.u32 %v1689, 4294901760
  %6334 = vmatmul.mubr.f32.gmra.mrb[0].mxu0 %v6333
  %v6335 = vpop.f32.mrb[0].mxu0
  %v6336 = vadd.f32 %v6104, %v6335
  %v6337 = vpop.f32.mrb[0].mxu0
  %v6338 = vadd.f32 %v6106, %v6337
  %6339 = vdwg.mxu0
  %v6340 = vand.u32 %v1444, 4294901760
  %v6341 = vsub.f32 %v1444, %v6340
  %6342 = vmatprep.subr.mxu0 %v6341
  %v6343 = vand.u32 %v1443, 4294901760
  %v6344 = vsub.f32 %v1443, %v6343
  %6345 = vmatpush1.msra.mxu0 %v6344
  %v6346 = vand.u32 %v1460, 4294901760
  %v6347 = vsub.f32 %v1460, %v6346
  %6348 = vmatprep.subr.mxu0 %v6347
  %v6349 = vand.u32 %v1459, 4294901760
  %v6350 = vsub.f32 %v1459, %v6349
  %6351 = vmatpush1.msra.mxu0 %v6350
  %v6352 = vand.u32 %v1476, 4294901760
  %v6353 = vsub.f32 %v1476, %v6352
  %6354 = vmatprep.subr.mxu0 %v6353
  %v6355 = vand.u32 %v1475, 4294901760
  %v6356 = vsub.f32 %v1475, %v6355
  %6357 = vmatpush1.msra.mxu0 %v6356
  %v6358 = vand.u32 %v1492, 4294901760
  %v6359 = vsub.f32 %v1492, %v6358
  %6360 = vmatprep.subr.mxu0 %v6359
  %v6361 = vand.u32 %v1491, 4294901760
  %v6362 = vsub.f32 %v1491, %v6361
  %6363 = vmatpush1.msra.mxu0 %v6362
  %v6364 = vand.u32 %v1508, 4294901760
  %v6365 = vsub.f32 %v1508, %v6364
  %6366 = vmatprep.subr.mxu0 %v6365
  %v6367 = vand.u32 %v1507, 4294901760
  %v6368 = vsub.f32 %v1507, %v6367
  %6369 = vmatpush1.msra.mxu0 %v6368
  %v6370 = vand.u32 %v1524, 4294901760
  %v6371 = vsub.f32 %v1524, %v6370
  %6372 = vmatprep.subr.mxu0 %v6371
  %v6373 = vand.u32 %v1523, 4294901760
  %v6374 = vsub.f32 %v1523, %v6373
  %6375 = vmatpush1.msra.mxu0 %v6374
  %v6376 = vand.u32 %v1540, 4294901760
  %v6377 = vsub.f32 %v1540, %v6376
  %6378 = vmatprep.subr.mxu0 %v6377
  %v6379 = vand.u32 %v1539, 4294901760
  %v6380 = vsub.f32 %v1539, %v6379
  %6381 = vmatpush1.msra.mxu0 %v6380
  %v6382 = vand.u32 %v1556, 4294901760
  %v6383 = vsub.f32 %v1556, %v6382
  %6384 = vmatprep.subr.mxu0 %v6383
  %v6385 = vand.u32 %v1555, 4294901760
  %v6386 = vsub.f32 %v1555, %v6385
  %6387 = vmatpush1.msra.mxu0 %v6386
  %v6388 = vand.u32 %v1572, 4294901760
  %v6389 = vsub.f32 %v1572, %v6388
  %6390 = vmatprep.subr.mxu0 %v6389
  %v6391 = vand.u32 %v1571, 4294901760
  %v6392 = vsub.f32 %v1571, %v6391
  %6393 = vmatpush1.msra.mxu0 %v6392
  %v6394 = vand.u32 %v1588, 4294901760
  %v6395 = vsub.f32 %v1588, %v6394
  %6396 = vmatprep.subr.mxu0 %v6395
  %v6397 = vand.u32 %v1587, 4294901760
  %v6398 = vsub.f32 %v1587, %v6397
  %6399 = vmatpush1.msra.mxu0 %v6398
  %v6400 = vand.u32 %v1604, 4294901760
  %v6401 = vsub.f32 %v1604, %v6400
  %6402 = vmatprep.subr.mxu0 %v6401
  %v6403 = vand.u32 %v1603, 4294901760
  %v6404 = vsub.f32 %v1603, %v6403
  %6405 = vmatpush1.msra.mxu0 %v6404
  %v6406 = vand.u32 %v1620, 4294901760
  %v6407 = vsub.f32 %v1620, %v6406
  %6408 = vmatprep.subr.mxu0 %v6407
  %v6409 = vand.u32 %v1619, 4294901760
  %v6410 = vsub.f32 %v1619, %v6409
  %6411 = vmatpush1.msra.mxu0 %v6410
  %v6412 = vand.u32 %v1636, 4294901760
  %v6413 = vsub.f32 %v1636, %v6412
  %6414 = vmatprep.subr.mxu0 %v6413
  %v6415 = vand.u32 %v1635, 4294901760
  %v6416 = vsub.f32 %v1635, %v6415
  %6417 = vmatpush1.msra.mxu0 %v6416
  %v6418 = vand.u32 %v1652, 4294901760
  %v6419 = vsub.f32 %v1652, %v6418
  %6420 = vmatprep.subr.mxu0 %v6419
  %v6421 = vand.u32 %v1651, 4294901760
  %v6422 = vsub.f32 %v1651, %v6421
  %6423 = vmatpush1.msra.mxu0 %v6422
  %v6424 = vand.u32 %v1668, 4294901760
  %v6425 = vsub.f32 %v1668, %v6424
  %6426 = vmatprep.subr.mxu0 %v6425
  %v6427 = vand.u32 %v1667, 4294901760
  %v6428 = vsub.f32 %v1667, %v6427
  %6429 = vmatpush1.msra.mxu0 %v6428
  %v6430 = vand.u32 %v1684, 4294901760
  %v6431 = vsub.f32 %v1684, %v6430
  %6432 = vmatprep.subr.mxu0 %v6431
  %v6433 = vand.u32 %v1683, 4294901760
  %v6434 = vsub.f32 %v1683, %v6433
  %6435 = vmatpush1.msra.mxu0 %v6434
  %6436 = vmatprep.subr.mxu0 0.0
  %6437 = vmatpush1.msra.mxu0 0.0
  %6438 = vmatprep.subr.mxu0 0.0
  %6439 = vmatpush1.msra.mxu0 0.0
  %6440 = vmatprep.subr.mxu0 0.0
  %6441 = vmatpush1.msra.mxu0 0.0
  %6442 = vmatprep.subr.mxu0 0.0
  %6443 = vmatpush1.msra.mxu0 0.0
  %6444 = vmatprep.subr.mxu0 0.0
  %6445 = vmatpush1.msra.mxu0 0.0
  %6446 = vmatprep.subr.mxu0 0.0
  %6447 = vmatpush1.msra.mxu0 0.0
  %6448 = vmatprep.subr.mxu0 0.0
  %6449 = vmatpush1.msra.mxu0 0.0
  %6450 = vmatprep.subr.mxu0 0.0
  %6451 = vmatpush1.msra.mxu0 0.0
  %6452 = vmatprep.subr.mxu0 0.0
  %6453 = vmatpush1.msra.mxu0 0.0
  %6454 = vmatprep.subr.mxu0 0.0
  %6455 = vmatpush1.msra.mxu0 0.0
  %6456 = vmatprep.subr.mxu0 0.0
  %6457 = vmatpush1.msra.mxu0 0.0
  %6458 = vmatprep.subr.mxu0 0.0
  %6459 = vmatpush1.msra.mxu0 0.0
  %6460 = vmatprep.subr.mxu0 0.0
  %6461 = vmatpush1.msra.mxu0 0.0
  %6462 = vmatprep.subr.mxu0 0.0
  %6463 = vmatpush1.msra.mxu0 0.0
  %6464 = vmatprep.subr.mxu0 0.0
  %6465 = vmatpush1.msra.mxu0 0.0
  %6466 = vmatprep.subr.mxu0 0.0
  %6467 = vmatpush1.msra.mxu0 0.0
  %6468 = vmatprep.mubr.f32.mxu0 0.0
  %v6469 = vand.u32 %v1689, 4294901760
  %v6470 = vsub.f32 %v1689, %v6469
  %6471 = vmatmul.mubr.f32.gmra.mrb[0].mxu0 %v6470
  %v6472 = vpop.f32.mrb[0].mxu0
  %v6473 = vadd.f32 %v6336, %v6472
  %v6474 = vpop.f32.mrb[0].mxu0
  %v6475 = vadd.f32 %v6338, %v6474
  %6476 = vdwg.mxu0
  %v6477 = vand.u32 %v1444, 4294901760
  %6478 = vmatprep.subr.mxu0 %v6477
  %v6479 = vand.u32 %v1443, 4294901760
  %6480 = vmatpush1.msra.mxu0 %v6479
  %v6481 = vand.u32 %v1460, 4294901760
  %6482 = vmatprep.subr.mxu0 %v6481
  %v6483 = vand.u32 %v1459, 4294901760
  %6484 = vmatpush1.msra.mxu0 %v6483
  %v6485 = vand.u32 %v1476, 4294901760
  %6486 = vmatprep.subr.mxu0 %v6485
  %v6487 = vand.u32 %v1475, 4294901760
  %6488 = vmatpush1.msra.mxu0 %v6487
  %v6489 = vand.u32 %v1492, 4294901760
  %6490 = vmatprep.subr.mxu0 %v6489
  %v6491 = vand.u32 %v1491, 4294901760
  %6492 = vmatpush1.msra.mxu0 %v6491
  %v6493 = vand.u32 %v1508, 4294901760
  %6494 = vmatprep.subr.mxu0 %v6493
  %v6495 = vand.u32 %v1507, 4294901760
  %6496 = vmatpush1.msra.mxu0 %v6495
  %v6497 = vand.u32 %v1524, 4294901760
  %6498 = vmatprep.subr.mxu0 %v6497
  %v6499 = vand.u32 %v1523, 4294901760
  %6500 = vmatpush1.msra.mxu0 %v6499
  %v6501 = vand.u32 %v1540, 4294901760
  %6502 = vmatprep.subr.mxu0 %v6501
  %v6503 = vand.u32 %v1539, 4294901760
  %6504 = vmatpush1.msra.mxu0 %v6503
  %v6505 = vand.u32 %v1556, 4294901760
  %6506 = vmatprep.subr.mxu0 %v6505
  %v6507 = vand.u32 %v1555, 4294901760
  %6508 = vmatpush1.msra.mxu0 %v6507
  %v6509 = vand.u32 %v1572, 4294901760
  %6510 = vmatprep.subr.mxu0 %v6509
  %v6511 = vand.u32 %v1571, 4294901760
  %6512 = vmatpush1.msra.mxu0 %v6511
  %v6513 = vand.u32 %v1588, 4294901760
  %6514 = vmatprep.subr.mxu0 %v6513
  %v6515 = vand.u32 %v1587, 4294901760
  %6516 = vmatpush1.msra.mxu0 %v6515
  %v6517 = vand.u32 %v1604, 4294901760
  %6518 = vmatprep.subr.mxu0 %v6517
  %v6519 = vand.u32 %v1603, 4294901760
  %6520 = vmatpush1.msra.mxu0 %v6519
  %v6521 = vand.u32 %v1620, 4294901760
  %6522 = vmatprep.subr.mxu0 %v6521
  %v6523 = vand.u32 %v1619, 4294901760
  %6524 = vmatpush1.msra.mxu0 %v6523
  %v6525 = vand.u32 %v1636, 4294901760
  %6526 = vmatprep.subr.mxu0 %v6525
  %v6527 = vand.u32 %v1635, 4294901760
  %6528 = vmatpush1.msra.mxu0 %v6527
  %v6529 = vand.u32 %v1652, 4294901760
  %6530 = vmatprep.subr.mxu0 %v6529
  %v6531 = vand.u32 %v1651, 4294901760
  %6532 = vmatpush1.msra.mxu0 %v6531
  %v6533 = vand.u32 %v1668, 4294901760
  %6534 = vmatprep.subr.mxu0 %v6533
  %v6535 = vand.u32 %v1667, 4294901760
  %6536 = vmatpush1.msra.mxu0 %v6535
  %v6537 = vand.u32 %v1684, 4294901760
  %6538 = vmatprep.subr.mxu0 %v6537
  %v6539 = vand.u32 %v1683, 4294901760
  %6540 = vmatpush1.msra.mxu0 %v6539
  %6541 = vmatprep.subr.mxu0 0.0
  %6542 = vmatpush1.msra.mxu0 0.0
  %6543 = vmatprep.subr.mxu0 0.0
  %6544 = vmatpush1.msra.mxu0 0.0
  %6545 = vmatprep.subr.mxu0 0.0
  %6546 = vmatpush1.msra.mxu0 0.0
  %6547 = vmatprep.subr.mxu0 0.0
  %6548 = vmatpush1.msra.mxu0 0.0
  %6549 = vmatprep.subr.mxu0 0.0
  %6550 = vmatpush1.msra.mxu0 0.0
  %6551 = vmatprep.subr.mxu0 0.0
  %6552 = vmatpush1.msra.mxu0 0.0
  %6553 = vmatprep.subr.mxu0 0.0
  %6554 = vmatpush1.msra.mxu0 0.0
  %6555 = vmatprep.subr.mxu0 0.0
  %6556 = vmatpush1.msra.mxu0 0.0
  %6557 = vmatprep.subr.mxu0 0.0
  %6558 = vmatpush1.msra.mxu0 0.0
  %6559 = vmatprep.subr.mxu0 0.0
  %6560 = vmatpush1.msra.mxu0 0.0
  %6561 = vmatprep.subr.mxu0 0.0
  %6562 = vmatpush1.msra.mxu0 0.0
  %6563 = vmatprep.subr.mxu0 0.0
  %6564 = vmatpush1.msra.mxu0 0.0
  %6565 = vmatprep.subr.mxu0 0.0
  %6566 = vmatpush1.msra.mxu0 0.0
  %6567 = vmatprep.subr.mxu0 0.0
  %6568 = vmatpush1.msra.mxu0 0.0
  %6569 = vmatprep.subr.mxu0 0.0
  %6570 = vmatpush1.msra.mxu0 0.0
  %6571 = vmatprep.subr.mxu0 0.0
  %6572 = vmatpush1.msra.mxu0 0.0
  %6573 = vmatprep.mubr.f32.mxu0 0.0
  %v6574 = vand.u32 %v1689, 4294901760
  %v6575 = vsub.f32 %v1689, %v6574
  %v6576 = vand.u32 %v6575, 4294901760
  %6577 = vmatmul.mubr.f32.gmra.mrb[0].mxu0 %v6576
  %v6578 = vpop.f32.mrb[0].mxu0
  %v6579 = vadd.f32 %v6473, %v6578
  %v6580 = vpop.f32.mrb[0].mxu0
  %v6581 = vadd.f32 %v6475, %v6580
  %6582 = vdwg.mxu0
  %v6583 = vand.u32 %v1444, 4294901760
  %v6584 = vsub.f32 %v1444, %v6583
  %v6585 = vand.u32 %v6584, 4294901760
  %6586 = vmatprep.subr.mxu0 %v6585
  %v6587 = vand.u32 %v1443, 4294901760
  %v6588 = vsub.f32 %v1443, %v6587
  %v6589 = vand.u32 %v6588, 4294901760
  %6590 = vmatpush1.msra.mxu0 %v6589
  %v6591 = vand.u32 %v1460, 4294901760
  %v6592 = vsub.f32 %v1460, %v6591
  %v6593 = vand.u32 %v6592, 4294901760
  %6594 = vmatprep.subr.mxu0 %v6593
  %v6595 = vand.u32 %v1459, 4294901760
  %v6596 = vsub.f32 %v1459, %v6595
  %v6597 = vand.u32 %v6596, 4294901760
  %6598 = vmatpush1.msra.mxu0 %v6597
  %v6599 = vand.u32 %v1476, 4294901760
  %v6600 = vsub.f32 %v1476, %v6599
  %v6601 = vand.u32 %v6600, 4294901760
  %6602 = vmatprep.subr.mxu0 %v6601
  %v6603 = vand.u32 %v1475, 4294901760
  %v6604 = vsub.f32 %v1475, %v6603
  %v6605 = vand.u32 %v6604, 4294901760
  %6606 = vmatpush1.msra.mxu0 %v6605
  %v6607 = vand.u32 %v1492, 4294901760
  %v6608 = vsub.f32 %v1492, %v6607
  %v6609 = vand.u32 %v6608, 4294901760
  %6610 = vmatprep.subr.mxu0 %v6609
  %v6611 = vand.u32 %v1491, 4294901760
  %v6612 = vsub.f32 %v1491, %v6611
  %v6613 = vand.u32 %v6612, 4294901760
  %6614 = vmatpush1.msra.mxu0 %v6613
  %v6615 = vand.u32 %v1508, 4294901760
  %v6616 = vsub.f32 %v1508, %v6615
  %v6617 = vand.u32 %v6616, 4294901760
  %6618 = vmatprep.subr.mxu0 %v6617
  %v6619 = vand.u32 %v1507, 4294901760
  %v6620 = vsub.f32 %v1507, %v6619
  %v6621 = vand.u32 %v6620, 4294901760
  %6622 = vmatpush1.msra.mxu0 %v6621
  %v6623 = vand.u32 %v1524, 4294901760
  %v6624 = vsub.f32 %v1524, %v6623
  %v6625 = vand.u32 %v6624, 4294901760
  %6626 = vmatprep.subr.mxu0 %v6625
  %v6627 = vand.u32 %v1523, 4294901760
  %v6628 = vsub.f32 %v1523, %v6627
  %v6629 = vand.u32 %v6628, 4294901760
  %6630 = vmatpush1.msra.mxu0 %v6629
  %v6631 = vand.u32 %v1540, 4294901760
  %v6632 = vsub.f32 %v1540, %v6631
  %v6633 = vand.u32 %v6632, 4294901760
  %6634 = vmatprep.subr.mxu0 %v6633
  %v6635 = vand.u32 %v1539, 4294901760
  %v6636 = vsub.f32 %v1539, %v6635
  %v6637 = vand.u32 %v6636, 4294901760
  %6638 = vmatpush1.msra.mxu0 %v6637
  %v6639 = vand.u32 %v1556, 4294901760
  %v6640 = vsub.f32 %v1556, %v6639
  %v6641 = vand.u32 %v6640, 4294901760
  %6642 = vmatprep.subr.mxu0 %v6641
  %v6643 = vand.u32 %v1555, 4294901760
  %v6644 = vsub.f32 %v1555, %v6643
  %v6645 = vand.u32 %v6644, 4294901760
  %6646 = vmatpush1.msra.mxu0 %v6645
  %v6647 = vand.u32 %v1572, 4294901760
  %v6648 = vsub.f32 %v1572, %v6647
  %v6649 = vand.u32 %v6648, 4294901760
  %6650 = vmatprep.subr.mxu0 %v6649
  %v6651 = vand.u32 %v1571, 4294901760
  %v6652 = vsub.f32 %v1571, %v6651
  %v6653 = vand.u32 %v6652, 4294901760
  %6654 = vmatpush1.msra.mxu0 %v6653
  %v6655 = vand.u32 %v1588, 4294901760
  %v6656 = vsub.f32 %v1588, %v6655
  %v6657 = vand.u32 %v6656, 4294901760
  %6658 = vmatprep.subr.mxu0 %v6657
  %v6659 = vand.u32 %v1587, 4294901760
  %v6660 = vsub.f32 %v1587, %v6659
  %v6661 = vand.u32 %v6660, 4294901760
  %6662 = vmatpush1.msra.mxu0 %v6661
  %v6663 = vand.u32 %v1604, 4294901760
  %v6664 = vsub.f32 %v1604, %v6663
  %v6665 = vand.u32 %v6664, 4294901760
  %6666 = vmatprep.subr.mxu0 %v6665
  %v6667 = vand.u32 %v1603, 4294901760
  %v6668 = vsub.f32 %v1603, %v6667
  %v6669 = vand.u32 %v6668, 4294901760
  %6670 = vmatpush1.msra.mxu0 %v6669
  %v6671 = vand.u32 %v1620, 4294901760
  %v6672 = vsub.f32 %v1620, %v6671
  %v6673 = vand.u32 %v6672, 4294901760
  %6674 = vmatprep.subr.mxu0 %v6673
  %v6675 = vand.u32 %v1619, 4294901760
  %v6676 = vsub.f32 %v1619, %v6675
  %v6677 = vand.u32 %v6676, 4294901760
  %6678 = vmatpush1.msra.mxu0 %v6677
  %v6679 = vand.u32 %v1636, 4294901760
  %v6680 = vsub.f32 %v1636, %v6679
  %v6681 = vand.u32 %v6680, 4294901760
  %6682 = vmatprep.subr.mxu0 %v6681
  %v6683 = vand.u32 %v1635, 4294901760
  %v6684 = vsub.f32 %v1635, %v6683
  %v6685 = vand.u32 %v6684, 4294901760
  %6686 = vmatpush1.msra.mxu0 %v6685
  %v6687 = vand.u32 %v1652, 4294901760
  %v6688 = vsub.f32 %v1652, %v6687
  %v6689 = vand.u32 %v6688, 4294901760
  %6690 = vmatprep.subr.mxu0 %v6689
  %v6691 = vand.u32 %v1651, 4294901760
  %v6692 = vsub.f32 %v1651, %v6691
  %v6693 = vand.u32 %v6692, 4294901760
  %6694 = vmatpush1.msra.mxu0 %v6693
  %v6695 = vand.u32 %v1668, 4294901760
  %v6696 = vsub.f32 %v1668, %v6695
  %v6697 = vand.u32 %v6696, 4294901760
  %6698 = vmatprep.subr.mxu0 %v6697
  %v6699 = vand.u32 %v1667, 4294901760
  %v6700 = vsub.f32 %v1667, %v6699
  %v6701 = vand.u32 %v6700, 4294901760
  %6702 = vmatpush1.msra.mxu0 %v6701
  %v6703 = vand.u32 %v1684, 4294901760
  %v6704 = vsub.f32 %v1684, %v6703
  %v6705 = vand.u32 %v6704, 4294901760
  %6706 = vmatprep.subr.mxu0 %v6705
  %v6707 = vand.u32 %v1683, 4294901760
  %v6708 = vsub.f32 %v1683, %v6707
  %v6709 = vand.u32 %v6708, 4294901760
  %6710 = vmatpush1.msra.mxu0 %v6709
  %6711 = vmatprep.subr.mxu0 0.0
  %6712 = vmatpush1.msra.mxu0 0.0
  %6713 = vmatprep.subr.mxu0 0.0
  %6714 = vmatpush1.msra.mxu0 0.0
  %6715 = vmatprep.subr.mxu0 0.0
  %6716 = vmatpush1.msra.mxu0 0.0
  %6717 = vmatprep.subr.mxu0 0.0
  %6718 = vmatpush1.msra.mxu0 0.0
  %6719 = vmatprep.subr.mxu0 0.0
  %6720 = vmatpush1.msra.mxu0 0.0
  %6721 = vmatprep.subr.mxu0 0.0
  %6722 = vmatpush1.msra.mxu0 0.0
  %6723 = vmatprep.subr.mxu0 0.0
  %6724 = vmatpush1.msra.mxu0 0.0
  %6725 = vmatprep.subr.mxu0 0.0
  %6726 = vmatpush1.msra.mxu0 0.0
  %6727 = vmatprep.subr.mxu0 0.0
  %6728 = vmatpush1.msra.mxu0 0.0
  %6729 = vmatprep.subr.mxu0 0.0
  %6730 = vmatpush1.msra.mxu0 0.0
  %6731 = vmatprep.subr.mxu0 0.0
  %6732 = vmatpush1.msra.mxu0 0.0
  %6733 = vmatprep.subr.mxu0 0.0
  %6734 = vmatpush1.msra.mxu0 0.0
  %6735 = vmatprep.subr.mxu0 0.0
  %6736 = vmatpush1.msra.mxu0 0.0
  %6737 = vmatprep.subr.mxu0 0.0
  %6738 = vmatpush1.msra.mxu0 0.0
  %6739 = vmatprep.subr.mxu0 0.0
  %6740 = vmatpush1.msra.mxu0 0.0
  %6741 = vmatprep.subr.mxu0 0.0
  %6742 = vmatpush1.msra.mxu0 0.0
  %6743 = vmatprep.mubr.f32.mxu0 0.0
  %v6744 = vand.u32 %v1689, 4294901760
  %6745 = vmatmul.mubr.f32.gmra.mrb[0].mxu0 %v6744
  %v6746 = vpop.f32.mrb[0].mxu0
  %v6747 = vadd.f32 %v6579, %v6746
  %v6748 = vpop.f32.mrb[0].mxu0
  %v6749 = vadd.f32 %v6581, %v6748
  %6750 = vdwg.mxu0
  %v6751 = vand.u32 %v1444, 4294901760
  %6752 = vmatprep.subr.mxu0 %v6751
  %v6753 = vand.u32 %v1443, 4294901760
  %6754 = vmatpush1.msra.mxu0 %v6753
  %v6755 = vand.u32 %v1460, 4294901760
  %6756 = vmatprep.subr.mxu0 %v6755
  %v6757 = vand.u32 %v1459, 4294901760
  %6758 = vmatpush1.msra.mxu0 %v6757
  %v6759 = vand.u32 %v1476, 4294901760
  %6760 = vmatprep.subr.mxu0 %v6759
  %v6761 = vand.u32 %v1475, 4294901760
  %6762 = vmatpush1.msra.mxu0 %v6761
  %v6763 = vand.u32 %v1492, 4294901760
  %6764 = vmatprep.subr.mxu0 %v6763
  %v6765 = vand.u32 %v1491, 4294901760
  %6766 = vmatpush1.msra.mxu0 %v6765
  %v6767 = vand.u32 %v1508, 4294901760
  %6768 = vmatprep.subr.mxu0 %v6767
  %v6769 = vand.u32 %v1507, 4294901760
  %6770 = vmatpush1.msra.mxu0 %v6769
  %v6771 = vand.u32 %v1524, 4294901760
  %6772 = vmatprep.subr.mxu0 %v6771
  %v6773 = vand.u32 %v1523, 4294901760
  %6774 = vmatpush1.msra.mxu0 %v6773
  %v6775 = vand.u32 %v1540, 4294901760
  %6776 = vmatprep.subr.mxu0 %v6775
  %v6777 = vand.u32 %v1539, 4294901760
  %6778 = vmatpush1.msra.mxu0 %v6777
  %v6779 = vand.u32 %v1556, 4294901760
  %6780 = vmatprep.subr.mxu0 %v6779
  %v6781 = vand.u32 %v1555, 4294901760
  %6782 = vmatpush1.msra.mxu0 %v6781
  %v6783 = vand.u32 %v1572, 4294901760
  %6784 = vmatprep.subr.mxu0 %v6783
  %v6785 = vand.u32 %v1571, 4294901760
  %6786 = vmatpush1.msra.mxu0 %v6785
  %v6787 = vand.u32 %v1588, 4294901760
  %6788 = vmatprep.subr.mxu0 %v6787
  %v6789 = vand.u32 %v1587, 4294901760
  %6790 = vmatpush1.msra.mxu0 %v6789
  %v6791 = vand.u32 %v1604, 4294901760
  %6792 = vmatprep.subr.mxu0 %v6791
  %v6793 = vand.u32 %v1603, 4294901760
  %6794 = vmatpush1.msra.mxu0 %v6793
  %v6795 = vand.u32 %v1620, 4294901760
  %6796 = vmatprep.subr.mxu0 %v6795
  %v6797 = vand.u32 %v1619, 4294901760
  %6798 = vmatpush1.msra.mxu0 %v6797
  %v6799 = vand.u32 %v1636, 4294901760
  %6800 = vmatprep.subr.mxu0 %v6799
  %v6801 = vand.u32 %v1635, 4294901760
  %6802 = vmatpush1.msra.mxu0 %v6801
  %v6803 = vand.u32 %v1652, 4294901760
  %6804 = vmatprep.subr.mxu0 %v6803
  %v6805 = vand.u32 %v1651, 4294901760
  %6806 = vmatpush1.msra.mxu0 %v6805
  %v6807 = vand.u32 %v1668, 4294901760
  %6808 = vmatprep.subr.mxu0 %v6807
  %v6809 = vand.u32 %v1667, 4294901760
  %6810 = vmatpush1.msra.mxu0 %v6809
  %v6811 = vand.u32 %v1684, 4294901760
  %6812 = vmatprep.subr.mxu0 %v6811
  %v6813 = vand.u32 %v1683, 4294901760
  %6814 = vmatpush1.msra.mxu0 %v6813
  %6815 = vmatprep.subr.mxu0 0.0
  %6816 = vmatpush1.msra.mxu0 0.0
  %6817 = vmatprep.subr.mxu0 0.0
  %6818 = vmatpush1.msra.mxu0 0.0
  %6819 = vmatprep.subr.mxu0 0.0
  %6820 = vmatpush1.msra.mxu0 0.0
  %6821 = vmatprep.subr.mxu0 0.0
  %6822 = vmatpush1.msra.mxu0 0.0
  %6823 = vmatprep.subr.mxu0 0.0
  %6824 = vmatpush1.msra.mxu0 0.0
  %6825 = vmatprep.subr.mxu0 0.0
  %6826 = vmatpush1.msra.mxu0 0.0
  %6827 = vmatprep.subr.mxu0 0.0
  %6828 = vmatpush1.msra.mxu0 0.0
  %6829 = vmatprep.subr.mxu0 0.0
  %6830 = vmatpush1.msra.mxu0 0.0
  %6831 = vmatprep.subr.mxu0 0.0
  %6832 = vmatpush1.msra.mxu0 0.0
  %6833 = vmatprep.subr.mxu0 0.0
  %6834 = vmatpush1.msra.mxu0 0.0
  %6835 = vmatprep.subr.mxu0 0.0
  %6836 = vmatpush1.msra.mxu0 0.0
  %6837 = vmatprep.subr.mxu0 0.0
  %6838 = vmatpush1.msra.mxu0 0.0
  %6839 = vmatprep.subr.mxu0 0.0
  %6840 = vmatpush1.msra.mxu0 0.0
  %6841 = vmatprep.subr.mxu0 0.0
  %6842 = vmatpush1.msra.mxu0 0.0
  %6843 = vmatprep.subr.mxu0 0.0
  %6844 = vmatpush1.msra.mxu0 0.0
  %6845 = vmatprep.subr.mxu0 0.0
  %6846 = vmatpush1.msra.mxu0 0.0
  %6847 = vmatprep.mubr.f32.mxu0 0.0
  %v6848 = vand.u32 %v1689, 4294901760
  %6849 = vmatmul.mubr.f32.gmra.mrb[0].mxu0 %v6848
  %v6850 = vpop.f32.mrb[0].mxu0
  %v6851 = vadd.f32 %v6747, %v6850
  %v6852 = vpop.f32.mrb[0].mxu0
  %v6853 = vadd.f32 %v6749, %v6852
  %6854 = vdwg.mxu0
  %v6855 = vand.u32 %v1446, 4294901760
  %6856 = vmatprep.subr.mxu0 %v6855
  %v6857 = vand.u32 %v1445, 4294901760
  %6858 = vmatpush1.msra.mxu0 %v6857
  %v6859 = vand.u32 %v1462, 4294901760
  %6860 = vmatprep.subr.mxu0 %v6859
  %v6861 = vand.u32 %v1461, 4294901760
  %6862 = vmatpush1.msra.mxu0 %v6861
  %v6863 = vand.u32 %v1478, 4294901760
  %6864 = vmatprep.subr.mxu0 %v6863
  %v6865 = vand.u32 %v1477, 4294901760
  %6866 = vmatpush1.msra.mxu0 %v6865
  %v6867 = vand.u32 %v1494, 4294901760
  %6868 = vmatprep.subr.mxu0 %v6867
  %v6869 = vand.u32 %v1493, 4294901760
  %6870 = vmatpush1.msra.mxu0 %v6869
  %v6871 = vand.u32 %v1510, 4294901760
  %6872 = vmatprep.subr.mxu0 %v6871
  %v6873 = vand.u32 %v1509, 4294901760
  %6874 = vmatpush1.msra.mxu0 %v6873
  %v6875 = vand.u32 %v1526, 4294901760
  %6876 = vmatprep.subr.mxu0 %v6875
  %v6877 = vand.u32 %v1525, 4294901760
  %6878 = vmatpush1.msra.mxu0 %v6877
  %v6879 = vand.u32 %v1542, 4294901760
  %6880 = vmatprep.subr.mxu0 %v6879
  %v6881 = vand.u32 %v1541, 4294901760
  %6882 = vmatpush1.msra.mxu0 %v6881
  %v6883 = vand.u32 %v1558, 4294901760
  %6884 = vmatprep.subr.mxu0 %v6883
  %v6885 = vand.u32 %v1557, 4294901760
  %6886 = vmatpush1.msra.mxu0 %v6885
  %v6887 = vand.u32 %v1574, 4294901760
  %6888 = vmatprep.subr.mxu0 %v6887
  %v6889 = vand.u32 %v1573, 4294901760
  %6890 = vmatpush1.msra.mxu0 %v6889
  %v6891 = vand.u32 %v1590, 4294901760
  %6892 = vmatprep.subr.mxu0 %v6891
  %v6893 = vand.u32 %v1589, 4294901760
  %6894 = vmatpush1.msra.mxu0 %v6893
  %v6895 = vand.u32 %v1606, 4294901760
  %6896 = vmatprep.subr.mxu0 %v6895
  %v6897 = vand.u32 %v1605, 4294901760
  %6898 = vmatpush1.msra.mxu0 %v6897
  %v6899 = vand.u32 %v1622, 4294901760
  %6900 = vmatprep.subr.mxu0 %v6899
  %v6901 = vand.u32 %v1621, 4294901760
  %6902 = vmatpush1.msra.mxu0 %v6901
  %v6903 = vand.u32 %v1638, 4294901760
  %6904 = vmatprep.subr.mxu0 %v6903
  %v6905 = vand.u32 %v1637, 4294901760
  %6906 = vmatpush1.msra.mxu0 %v6905
  %v6907 = vand.u32 %v1654, 4294901760
  %6908 = vmatprep.subr.mxu0 %v6907
  %v6909 = vand.u32 %v1653, 4294901760
  %6910 = vmatpush1.msra.mxu0 %v6909
  %v6911 = vand.u32 %v1670, 4294901760
  %6912 = vmatprep.subr.mxu0 %v6911
  %v6913 = vand.u32 %v1669, 4294901760
  %6914 = vmatpush1.msra.mxu0 %v6913
  %v6915 = vand.u32 %v1686, 4294901760
  %6916 = vmatprep.subr.mxu0 %v6915
  %v6917 = vand.u32 %v1685, 4294901760
  %6918 = vmatpush1.msra.mxu0 %v6917
  %6919 = vmatprep.subr.mxu0 0.0
  %6920 = vmatpush1.msra.mxu0 0.0
  %6921 = vmatprep.subr.mxu0 0.0
  %6922 = vmatpush1.msra.mxu0 0.0
  %6923 = vmatprep.subr.mxu0 0.0
  %6924 = vmatpush1.msra.mxu0 0.0
  %6925 = vmatprep.subr.mxu0 0.0
  %6926 = vmatpush1.msra.mxu0 0.0
  %6927 = vmatprep.subr.mxu0 0.0
  %6928 = vmatpush1.msra.mxu0 0.0
  %6929 = vmatprep.subr.mxu0 0.0
  %6930 = vmatpush1.msra.mxu0 0.0
  %6931 = vmatprep.subr.mxu0 0.0
  %6932 = vmatpush1.msra.mxu0 0.0
  %6933 = vmatprep.subr.mxu0 0.0
  %6934 = vmatpush1.msra.mxu0 0.0
  %6935 = vmatprep.subr.mxu0 0.0
  %6936 = vmatpush1.msra.mxu0 0.0
  %6937 = vmatprep.subr.mxu0 0.0
  %6938 = vmatpush1.msra.mxu0 0.0
  %6939 = vmatprep.subr.mxu0 0.0
  %6940 = vmatpush1.msra.mxu0 0.0
  %6941 = vmatprep.subr.mxu0 0.0
  %6942 = vmatpush1.msra.mxu0 0.0
  %6943 = vmatprep.subr.mxu0 0.0
  %6944 = vmatpush1.msra.mxu0 0.0
  %6945 = vmatprep.subr.mxu0 0.0
  %6946 = vmatpush1.msra.mxu0 0.0
  %6947 = vmatprep.subr.mxu0 0.0
  %6948 = vmatpush1.msra.mxu0 0.0
  %6949 = vmatprep.subr.mxu0 0.0
  %6950 = vmatpush1.msra.mxu0 0.0
  %6951 = vmatprep.mubr.f32.mxu0 0.0
  %v6952 = vand.u32 %v1689, 4294901760
  %v6953 = vsub.f32 %v1689, %v6952
  %v6954 = vand.u32 %v6953, 4294901760
  %v6955 = vsub.f32 %v6953, %v6954
  %v6956 = vand.u32 %v6955, 4294901760
  %6957 = vmatmul.mubr.f32.gmra.mrb[0].mxu0 %v6956
  %v6958 = vpop.f32.mrb[0].mxu0
  %v6959 = vadd.f32 %v1711, %v6958
  %v6960 = vpop.f32.mrb[0].mxu0
  %v6961 = vadd.f32 %v1719, %v6960
  %6962 = vdwg.mxu0
  %v6963 = vand.u32 %v1446, 4294901760
  %v6964 = vsub.f32 %v1446, %v6963
  %v6965 = vand.u32 %v6964, 4294901760
  %v6966 = vsub.f32 %v6964, %v6965
  %v6967 = vand.u32 %v6966, 4294901760
  %6968 = vmatprep.subr.mxu0 %v6967
  %v6969 = vand.u32 %v1445, 4294901760
  %v6970 = vsub.f32 %v1445, %v6969
  %v6971 = vand.u32 %v6970, 4294901760
  %v6972 = vsub.f32 %v6970, %v6971
  %v6973 = vand.u32 %v6972, 4294901760
  %6974 = vmatpush1.msra.mxu0 %v6973
  %v6975 = vand.u32 %v1462, 4294901760
  %v6976 = vsub.f32 %v1462, %v6975
  %v6977 = vand.u32 %v6976, 4294901760
  %v6978 = vsub.f32 %v6976, %v6977
  %v6979 = vand.u32 %v6978, 4294901760
  %6980 = vmatprep.subr.mxu0 %v6979
  %v6981 = vand.u32 %v1461, 4294901760
  %v6982 = vsub.f32 %v1461, %v6981
  %v6983 = vand.u32 %v6982, 4294901760
  %v6984 = vsub.f32 %v6982, %v6983
  %v6985 = vand.u32 %v6984, 4294901760
  %6986 = vmatpush1.msra.mxu0 %v6985
  %v6987 = vand.u32 %v1478, 4294901760
  %v6988 = vsub.f32 %v1478, %v6987
  %v6989 = vand.u32 %v6988, 4294901760
  %v6990 = vsub.f32 %v6988, %v6989
  %v6991 = vand.u32 %v6990, 4294901760
  %6992 = vmatprep.subr.mxu0 %v6991
  %v6993 = vand.u32 %v1477, 4294901760
  %v6994 = vsub.f32 %v1477, %v6993
  %v6995 = vand.u32 %v6994, 4294901760
  %v6996 = vsub.f32 %v6994, %v6995
  %v6997 = vand.u32 %v6996, 4294901760
  %6998 = vmatpush1.msra.mxu0 %v6997
  %v6999 = vand.u32 %v1494, 4294901760
  %v7000 = vsub.f32 %v1494, %v6999
  %v7001 = vand.u32 %v7000, 4294901760
  %v7002 = vsub.f32 %v7000, %v7001
  %v7003 = vand.u32 %v7002, 4294901760
  %7004 = vmatprep.subr.mxu0 %v7003
  %v7005 = vand.u32 %v1493, 4294901760
  %v7006 = vsub.f32 %v1493, %v7005
  %v7007 = vand.u32 %v7006, 4294901760
  %v7008 = vsub.f32 %v7006, %v7007
  %v7009 = vand.u32 %v7008, 4294901760
  %7010 = vmatpush1.msra.mxu0 %v7009
  %v7011 = vand.u32 %v1510, 4294901760
  %v7012 = vsub.f32 %v1510, %v7011
  %v7013 = vand.u32 %v7012, 4294901760
  %v7014 = vsub.f32 %v7012, %v7013
  %v7015 = vand.u32 %v7014, 4294901760
  %7016 = vmatprep.subr.mxu0 %v7015
  %v7017 = vand.u32 %v1509, 4294901760
  %v7018 = vsub.f32 %v1509, %v7017
  %v7019 = vand.u32 %v7018, 4294901760
  %v7020 = vsub.f32 %v7018, %v7019
  %v7021 = vand.u32 %v7020, 4294901760
  %7022 = vmatpush1.msra.mxu0 %v7021
  %v7023 = vand.u32 %v1526, 4294901760
  %v7024 = vsub.f32 %v1526, %v7023
  %v7025 = vand.u32 %v7024, 4294901760
  %v7026 = vsub.f32 %v7024, %v7025
  %v7027 = vand.u32 %v7026, 4294901760
  %7028 = vmatprep.subr.mxu0 %v7027
  %v7029 = vand.u32 %v1525, 4294901760
  %v7030 = vsub.f32 %v1525, %v7029
  %v7031 = vand.u32 %v7030, 4294901760
  %v7032 = vsub.f32 %v7030, %v7031
  %v7033 = vand.u32 %v7032, 4294901760
  %7034 = vmatpush1.msra.mxu0 %v7033
  %v7035 = vand.u32 %v1542, 4294901760
  %v7036 = vsub.f32 %v1542, %v7035
  %v7037 = vand.u32 %v7036, 4294901760
  %v7038 = vsub.f32 %v7036, %v7037
  %v7039 = vand.u32 %v7038, 4294901760
  %7040 = vmatprep.subr.mxu0 %v7039
  %v7041 = vand.u32 %v1541, 4294901760
  %v7042 = vsub.f32 %v1541, %v7041
  %v7043 = vand.u32 %v7042, 4294901760
  %v7044 = vsub.f32 %v7042, %v7043
  %v7045 = vand.u32 %v7044, 4294901760
  %7046 = vmatpush1.msra.mxu0 %v7045
  %v7047 = vand.u32 %v1558, 4294901760
  %v7048 = vsub.f32 %v1558, %v7047
  %v7049 = vand.u32 %v7048, 4294901760
  %v7050 = vsub.f32 %v7048, %v7049
  %v7051 = vand.u32 %v7050, 4294901760
  %7052 = vmatprep.subr.mxu0 %v7051
  %v7053 = vand.u32 %v1557, 4294901760
  %v7054 = vsub.f32 %v1557, %v7053
  %v7055 = vand.u32 %v7054, 4294901760
  %v7056 = vsub.f32 %v7054, %v7055
  %v7057 = vand.u32 %v7056, 4294901760
  %7058 = vmatpush1.msra.mxu0 %v7057
  %v7059 = vand.u32 %v1574, 4294901760
  %v7060 = vsub.f32 %v1574, %v7059
  %v7061 = vand.u32 %v7060, 4294901760
  %v7062 = vsub.f32 %v7060, %v7061
  %v7063 = vand.u32 %v7062, 4294901760
  %7064 = vmatprep.subr.mxu0 %v7063
  %v7065 = vand.u32 %v1573, 4294901760
  %v7066 = vsub.f32 %v1573, %v7065
  %v7067 = vand.u32 %v7066, 4294901760
  %v7068 = vsub.f32 %v7066, %v7067
  %v7069 = vand.u32 %v7068, 4294901760
  %7070 = vmatpush1.msra.mxu0 %v7069
  %v7071 = vand.u32 %v1590, 4294901760
  %v7072 = vsub.f32 %v1590, %v7071
  %v7073 = vand.u32 %v7072, 4294901760
  %v7074 = vsub.f32 %v7072, %v7073
  %v7075 = vand.u32 %v7074, 4294901760
  %7076 = vmatprep.subr.mxu0 %v7075
  %v7077 = vand.u32 %v1589, 4294901760
  %v7078 = vsub.f32 %v1589, %v7077
  %v7079 = vand.u32 %v7078, 4294901760
  %v7080 = vsub.f32 %v7078, %v7079
  %v7081 = vand.u32 %v7080, 4294901760
  %7082 = vmatpush1.msra.mxu0 %v7081
  %v7083 = vand.u32 %v1606, 4294901760
  %v7084 = vsub.f32 %v1606, %v7083
  %v7085 = vand.u32 %v7084, 4294901760
  %v7086 = vsub.f32 %v7084, %v7085
  %v7087 = vand.u32 %v7086, 4294901760
  %7088 = vmatprep.subr.mxu0 %v7087
  %v7089 = vand.u32 %v1605, 4294901760
  %v7090 = vsub.f32 %v1605, %v7089
  %v7091 = vand.u32 %v7090, 4294901760
  %v7092 = vsub.f32 %v7090, %v7091
  %v7093 = vand.u32 %v7092, 4294901760
  %7094 = vmatpush1.msra.mxu0 %v7093
  %v7095 = vand.u32 %v1622, 4294901760
  %v7096 = vsub.f32 %v1622, %v7095
  %v7097 = vand.u32 %v7096, 4294901760
  %v7098 = vsub.f32 %v7096, %v7097
  %v7099 = vand.u32 %v7098, 4294901760
  %7100 = vmatprep.subr.mxu0 %v7099
  %v7101 = vand.u32 %v1621, 4294901760
  %v7102 = vsub.f32 %v1621, %v7101
  %v7103 = vand.u32 %v7102, 4294901760
  %v7104 = vsub.f32 %v7102, %v7103
  %v7105 = vand.u32 %v7104, 4294901760
  %7106 = vmatpush1.msra.mxu0 %v7105
  %v7107 = vand.u32 %v1638, 4294901760
  %v7108 = vsub.f32 %v1638, %v7107
  %v7109 = vand.u32 %v7108, 4294901760
  %v7110 = vsub.f32 %v7108, %v7109
  %v7111 = vand.u32 %v7110, 4294901760
  %7112 = vmatprep.subr.mxu0 %v7111
  %v7113 = vand.u32 %v1637, 4294901760
  %v7114 = vsub.f32 %v1637, %v7113
  %v7115 = vand.u32 %v7114, 4294901760
  %v7116 = vsub.f32 %v7114, %v7115
  %v7117 = vand.u32 %v7116, 4294901760
  %7118 = vmatpush1.msra.mxu0 %v7117
  %v7119 = vand.u32 %v1654, 4294901760
  %v7120 = vsub.f32 %v1654, %v7119
  %v7121 = vand.u32 %v7120, 4294901760
  %v7122 = vsub.f32 %v7120, %v7121
  %v7123 = vand.u32 %v7122, 4294901760
  %7124 = vmatprep.subr.mxu0 %v7123
  %v7125 = vand.u32 %v1653, 4294901760
  %v7126 = vsub.f32 %v1653, %v7125
  %v7127 = vand.u32 %v7126, 4294901760
  %v7128 = vsub.f32 %v7126, %v7127
  %v7129 = vand.u32 %v7128, 4294901760
  %7130 = vmatpush1.msra.mxu0 %v7129
  %v7131 = vand.u32 %v1670, 4294901760
  %v7132 = vsub.f32 %v1670, %v7131
  %v7133 = vand.u32 %v7132, 4294901760
  %v7134 = vsub.f32 %v7132, %v7133
  %v7135 = vand.u32 %v7134, 4294901760
  %7136 = vmatprep.subr.mxu0 %v7135
  %v7137 = vand.u32 %v1669, 4294901760
  %v7138 = vsub.f32 %v1669, %v7137
  %v7139 = vand.u32 %v7138, 4294901760
  %v7140 = vsub.f32 %v7138, %v7139
  %v7141 = vand.u32 %v7140, 4294901760
  %7142 = vmatpush1.msra.mxu0 %v7141
  %v7143 = vand.u32 %v1686, 4294901760
  %v7144 = vsub.f32 %v1686, %v7143
  %v7145 = vand.u32 %v7144, 4294901760
  %v7146 = vsub.f32 %v7144, %v7145
  %v7147 = vand.u32 %v7146, 4294901760
  %7148 = vmatprep.subr.mxu0 %v7147
  %v7149 = vand.u32 %v1685, 4294901760
  %v7150 = vsub.f32 %v1685, %v7149
  %v7151 = vand.u32 %v7150, 4294901760
  %v7152 = vsub.f32 %v7150, %v7151
  %v7153 = vand.u32 %v7152, 4294901760
  %7154 = vmatpush1.msra.mxu0 %v7153
  %7155 = vmatprep.subr.mxu0 0.0
  %7156 = vmatpush1.msra.mxu0 0.0
  %7157 = vmatprep.subr.mxu0 0.0
  %7158 = vmatpush1.msra.mxu0 0.0
  %7159 = vmatprep.subr.mxu0 0.0
  %7160 = vmatpush1.msra.mxu0 0.0
  %7161 = vmatprep.subr.mxu0 0.0
  %7162 = vmatpush1.msra.mxu0 0.0
  %7163 = vmatprep.subr.mxu0 0.0
  %7164 = vmatpush1.msra.mxu0 0.0
  %7165 = vmatprep.subr.mxu0 0.0
  %7166 = vmatpush1.msra.mxu0 0.0
  %7167 = vmatprep.subr.mxu0 0.0
  %7168 = vmatpush1.msra.mxu0 0.0
  %7169 = vmatprep.subr.mxu0 0.0
  %7170 = vmatpush1.msra.mxu0 0.0
  %7171 = vmatprep.subr.mxu0 0.0
  %7172 = vmatpush1.msra.mxu0 0.0
  %7173 = vmatprep.subr.mxu0 0.0
  %7174 = vmatpush1.msra.mxu0 0.0
  %7175 = vmatprep.subr.mxu0 0.0
  %7176 = vmatpush1.msra.mxu0 0.0
  %7177 = vmatprep.subr.mxu0 0.0
  %7178 = vmatpush1.msra.mxu0 0.0
  %7179 = vmatprep.subr.mxu0 0.0
  %7180 = vmatpush1.msra.mxu0 0.0
  %7181 = vmatprep.subr.mxu0 0.0
  %7182 = vmatpush1.msra.mxu0 0.0
  %7183 = vmatprep.subr.mxu0 0.0
  %7184 = vmatpush1.msra.mxu0 0.0
  %7185 = vmatprep.subr.mxu0 0.0
  %7186 = vmatpush1.msra.mxu0 0.0
  %7187 = vmatprep.mubr.f32.mxu0 0.0
  %v7188 = vand.u32 %v1689, 4294901760
  %7189 = vmatmul.mubr.f32.gmra.mrb[0].mxu0 %v7188
  %v7190 = vpop.f32.mrb[0].mxu0
  %v7191 = vadd.f32 %v6959, %v7190
  %v7192 = vpop.f32.mrb[0].mxu0
  %v7193 = vadd.f32 %v6961, %v7192
  %7194 = vdwg.mxu0
  %v7195 = vand.u32 %v1446, 4294901760
  %v7196 = vsub.f32 %v1446, %v7195
  %7197 = vmatprep.subr.mxu0 %v7196
  %v7198 = vand.u32 %v1445, 4294901760
  %v7199 = vsub.f32 %v1445, %v7198
  %7200 = vmatpush1.msra.mxu0 %v7199
  %v7201 = vand.u32 %v1462, 4294901760
  %v7202 = vsub.f32 %v1462, %v7201
  %7203 = vmatprep.subr.mxu0 %v7202
  %v7204 = vand.u32 %v1461, 4294901760
  %v7205 = vsub.f32 %v1461, %v7204
  %7206 = vmatpush1.msra.mxu0 %v7205
  %v7207 = vand.u32 %v1478, 4294901760
  %v7208 = vsub.f32 %v1478, %v7207
  %7209 = vmatprep.subr.mxu0 %v7208
  %v7210 = vand.u32 %v1477, 4294901760
  %v7211 = vsub.f32 %v1477, %v7210
  %7212 = vmatpush1.msra.mxu0 %v7211
  %v7213 = vand.u32 %v1494, 4294901760
  %v7214 = vsub.f32 %v1494, %v7213
  %7215 = vmatprep.subr.mxu0 %v7214
  %v7216 = vand.u32 %v1493, 4294901760
  %v7217 = vsub.f32 %v1493, %v7216
  %7218 = vmatpush1.msra.mxu0 %v7217
  %v7219 = vand.u32 %v1510, 4294901760
  %v7220 = vsub.f32 %v1510, %v7219
  %7221 = vmatprep.subr.mxu0 %v7220
  %v7222 = vand.u32 %v1509, 4294901760
  %v7223 = vsub.f32 %v1509, %v7222
  %7224 = vmatpush1.msra.mxu0 %v7223
  %v7225 = vand.u32 %v1526, 4294901760
  %v7226 = vsub.f32 %v1526, %v7225
  %7227 = vmatprep.subr.mxu0 %v7226
  %v7228 = vand.u32 %v1525, 4294901760
  %v7229 = vsub.f32 %v1525, %v7228
  %7230 = vmatpush1.msra.mxu0 %v7229
  %v7231 = vand.u32 %v1542, 4294901760
  %v7232 = vsub.f32 %v1542, %v7231
  %7233 = vmatprep.subr.mxu0 %v7232
  %v7234 = vand.u32 %v1541, 4294901760
  %v7235 = vsub.f32 %v1541, %v7234
  %7236 = vmatpush1.msra.mxu0 %v7235
  %v7237 = vand.u32 %v1558, 4294901760
  %v7238 = vsub.f32 %v1558, %v7237
  %7239 = vmatprep.subr.mxu0 %v7238
  %v7240 = vand.u32 %v1557, 4294901760
  %v7241 = vsub.f32 %v1557, %v7240
  %7242 = vmatpush1.msra.mxu0 %v7241
  %v7243 = vand.u32 %v1574, 4294901760
  %v7244 = vsub.f32 %v1574, %v7243
  %7245 = vmatprep.subr.mxu0 %v7244
  %v7246 = vand.u32 %v1573, 4294901760
  %v7247 = vsub.f32 %v1573, %v7246
  %7248 = vmatpush1.msra.mxu0 %v7247
  %v7249 = vand.u32 %v1590, 4294901760
  %v7250 = vsub.f32 %v1590, %v7249
  %7251 = vmatprep.subr.mxu0 %v7250
  %v7252 = vand.u32 %v1589, 4294901760
  %v7253 = vsub.f32 %v1589, %v7252
  %7254 = vmatpush1.msra.mxu0 %v7253
  %v7255 = vand.u32 %v1606, 4294901760
  %v7256 = vsub.f32 %v1606, %v7255
  %7257 = vmatprep.subr.mxu0 %v7256
  %v7258 = vand.u32 %v1605, 4294901760
  %v7259 = vsub.f32 %v1605, %v7258
  %7260 = vmatpush1.msra.mxu0 %v7259
  %v7261 = vand.u32 %v1622, 4294901760
  %v7262 = vsub.f32 %v1622, %v7261
  %7263 = vmatprep.subr.mxu0 %v7262
  %v7264 = vand.u32 %v1621, 4294901760
  %v7265 = vsub.f32 %v1621, %v7264
  %7266 = vmatpush1.msra.mxu0 %v7265
  %v7267 = vand.u32 %v1638, 4294901760
  %v7268 = vsub.f32 %v1638, %v7267
  %7269 = vmatprep.subr.mxu0 %v7268
  %v7270 = vand.u32 %v1637, 4294901760
  %v7271 = vsub.f32 %v1637, %v7270
  %7272 = vmatpush1.msra.mxu0 %v7271
  %v7273 = vand.u32 %v1654, 4294901760
  %v7274 = vsub.f32 %v1654, %v7273
  %7275 = vmatprep.subr.mxu0 %v7274
  %v7276 = vand.u32 %v1653, 4294901760
  %v7277 = vsub.f32 %v1653, %v7276
  %7278 = vmatpush1.msra.mxu0 %v7277
  %v7279 = vand.u32 %v1670, 4294901760
  %v7280 = vsub.f32 %v1670, %v7279
  %7281 = vmatprep.subr.mxu0 %v7280
  %v7282 = vand.u32 %v1669, 4294901760
  %v7283 = vsub.f32 %v1669, %v7282
  %7284 = vmatpush1.msra.mxu0 %v7283
  %v7285 = vand.u32 %v1686, 4294901760
  %v7286 = vsub.f32 %v1686, %v7285
  %7287 = vmatprep.subr.mxu0 %v7286
  %v7288 = vand.u32 %v1685, 4294901760
  %v7289 = vsub.f32 %v1685, %v7288
  %7290 = vmatpush1.msra.mxu0 %v7289
  %7291 = vmatprep.subr.mxu0 0.0
  %7292 = vmatpush1.msra.mxu0 0.0
  %7293 = vmatprep.subr.mxu0 0.0
  %7294 = vmatpush1.msra.mxu0 0.0
  %7295 = vmatprep.subr.mxu0 0.0
  %7296 = vmatpush1.msra.mxu0 0.0
  %7297 = vmatprep.subr.mxu0 0.0
  %7298 = vmatpush1.msra.mxu0 0.0
  %7299 = vmatprep.subr.mxu0 0.0
  %7300 = vmatpush1.msra.mxu0 0.0
  %7301 = vmatprep.subr.mxu0 0.0
  %7302 = vmatpush1.msra.mxu0 0.0
  %7303 = vmatprep.subr.mxu0 0.0
  %7304 = vmatpush1.msra.mxu0 0.0
  %7305 = vmatprep.subr.mxu0 0.0
  %7306 = vmatpush1.msra.mxu0 0.0
  %7307 = vmatprep.subr.mxu0 0.0
  %7308 = vmatpush1.msra.mxu0 0.0
  %7309 = vmatprep.subr.mxu0 0.0
  %7310 = vmatpush1.msra.mxu0 0.0
  %7311 = vmatprep.subr.mxu0 0.0
  %7312 = vmatpush1.msra.mxu0 0.0
  %7313 = vmatprep.subr.mxu0 0.0
  %7314 = vmatpush1.msra.mxu0 0.0
  %7315 = vmatprep.subr.mxu0 0.0
  %7316 = vmatpush1.msra.mxu0 0.0
  %7317 = vmatprep.subr.mxu0 0.0
  %7318 = vmatpush1.msra.mxu0 0.0
  %7319 = vmatprep.subr.mxu0 0.0
  %7320 = vmatpush1.msra.mxu0 0.0
  %7321 = vmatprep.subr.mxu0 0.0
  %7322 = vmatpush1.msra.mxu0 0.0
  %7323 = vmatprep.mubr.f32.mxu0 0.0
  %v7324 = vand.u32 %v1689, 4294901760
  %v7325 = vsub.f32 %v1689, %v7324
  %7326 = vmatmul.mubr.f32.gmra.mrb[0].mxu0 %v7325
  %v7327 = vpop.f32.mrb[0].mxu0
  %v7328 = vadd.f32 %v7191, %v7327
  %v7329 = vpop.f32.mrb[0].mxu0
  %v7330 = vadd.f32 %v7193, %v7329
  %7331 = vdwg.mxu0
  %v7332 = vand.u32 %v1446, 4294901760
  %7333 = vmatprep.subr.mxu0 %v7332
  %v7334 = vand.u32 %v1445, 4294901760
  %7335 = vmatpush1.msra.mxu0 %v7334
  %v7336 = vand.u32 %v1462, 4294901760
  %7337 = vmatprep.subr.mxu0 %v7336
  %v7338 = vand.u32 %v1461, 4294901760
  %7339 = vmatpush1.msra.mxu0 %v7338
  %v7340 = vand.u32 %v1478, 4294901760
  %7341 = vmatprep.subr.mxu0 %v7340
  %v7342 = vand.u32 %v1477, 4294901760
  %7343 = vmatpush1.msra.mxu0 %v7342
  %v7344 = vand.u32 %v1494, 4294901760
  %7345 = vmatprep.subr.mxu0 %v7344
  %v7346 = vand.u32 %v1493, 4294901760
  %7347 = vmatpush1.msra.mxu0 %v7346
  %v7348 = vand.u32 %v1510, 4294901760
  %7349 = vmatprep.subr.mxu0 %v7348
  %v7350 = vand.u32 %v1509, 4294901760
  %7351 = vmatpush1.msra.mxu0 %v7350
  %v7352 = vand.u32 %v1526, 4294901760
  %7353 = vmatprep.subr.mxu0 %v7352
  %v7354 = vand.u32 %v1525, 4294901760
  %7355 = vmatpush1.msra.mxu0 %v7354
  %v7356 = vand.u32 %v1542, 4294901760
  %7357 = vmatprep.subr.mxu0 %v7356
  %v7358 = vand.u32 %v1541, 4294901760
  %7359 = vmatpush1.msra.mxu0 %v7358
  %v7360 = vand.u32 %v1558, 4294901760
  %7361 = vmatprep.subr.mxu0 %v7360
  %v7362 = vand.u32 %v1557, 4294901760
  %7363 = vmatpush1.msra.mxu0 %v7362
  %v7364 = vand.u32 %v1574, 4294901760
  %7365 = vmatprep.subr.mxu0 %v7364
  %v7366 = vand.u32 %v1573, 4294901760
  %7367 = vmatpush1.msra.mxu0 %v7366
  %v7368 = vand.u32 %v1590, 4294901760
  %7369 = vmatprep.subr.mxu0 %v7368
  %v7370 = vand.u32 %v1589, 4294901760
  %7371 = vmatpush1.msra.mxu0 %v7370
  %v7372 = vand.u32 %v1606, 4294901760
  %7373 = vmatprep.subr.mxu0 %v7372
  %v7374 = vand.u32 %v1605, 4294901760
  %7375 = vmatpush1.msra.mxu0 %v7374
  %v7376 = vand.u32 %v1622, 4294901760
  %7377 = vmatprep.subr.mxu0 %v7376
  %v7378 = vand.u32 %v1621, 4294901760
  %7379 = vmatpush1.msra.mxu0 %v7378
  %v7380 = vand.u32 %v1638, 4294901760
  %7381 = vmatprep.subr.mxu0 %v7380
  %v7382 = vand.u32 %v1637, 4294901760
  %7383 = vmatpush1.msra.mxu0 %v7382
  %v7384 = vand.u32 %v1654, 4294901760
  %7385 = vmatprep.subr.mxu0 %v7384
  %v7386 = vand.u32 %v1653, 4294901760
  %7387 = vmatpush1.msra.mxu0 %v7386
  %v7388 = vand.u32 %v1670, 4294901760
  %7389 = vmatprep.subr.mxu0 %v7388
  %v7390 = vand.u32 %v1669, 4294901760
  %7391 = vmatpush1.msra.mxu0 %v7390
  %v7392 = vand.u32 %v1686, 4294901760
  %7393 = vmatprep.subr.mxu0 %v7392
  %v7394 = vand.u32 %v1685, 4294901760
  %7395 = vmatpush1.msra.mxu0 %v7394
  %7396 = vmatprep.subr.mxu0 0.0
  %7397 = vmatpush1.msra.mxu0 0.0
  %7398 = vmatprep.subr.mxu0 0.0
  %7399 = vmatpush1.msra.mxu0 0.0
  %7400 = vmatprep.subr.mxu0 0.0
  %7401 = vmatpush1.msra.mxu0 0.0
  %7402 = vmatprep.subr.mxu0 0.0
  %7403 = vmatpush1.msra.mxu0 0.0
  %7404 = vmatprep.subr.mxu0 0.0
  %7405 = vmatpush1.msra.mxu0 0.0
  %7406 = vmatprep.subr.mxu0 0.0
  %7407 = vmatpush1.msra.mxu0 0.0
  %7408 = vmatprep.subr.mxu0 0.0
  %7409 = vmatpush1.msra.mxu0 0.0
  %7410 = vmatprep.subr.mxu0 0.0
  %7411 = vmatpush1.msra.mxu0 0.0
  %7412 = vmatprep.subr.mxu0 0.0
  %7413 = vmatpush1.msra.mxu0 0.0
  %7414 = vmatprep.subr.mxu0 0.0
  %7415 = vmatpush1.msra.mxu0 0.0
  %7416 = vmatprep.subr.mxu0 0.0
  %7417 = vmatpush1.msra.mxu0 0.0
  %7418 = vmatprep.subr.mxu0 0.0
  %7419 = vmatpush1.msra.mxu0 0.0
  %7420 = vmatprep.subr.mxu0 0.0
  %7421 = vmatpush1.msra.mxu0 0.0
  %7422 = vmatprep.subr.mxu0 0.0
  %7423 = vmatpush1.msra.mxu0 0.0
  %7424 = vmatprep.subr.mxu0 0.0
  %7425 = vmatpush1.msra.mxu0 0.0
  %7426 = vmatprep.subr.mxu0 0.0
  %7427 = vmatpush1.msra.mxu0 0.0
  %7428 = vmatprep.mubr.f32.mxu0 0.0
  %v7429 = vand.u32 %v1689, 4294901760
  %v7430 = vsub.f32 %v1689, %v7429
  %v7431 = vand.u32 %v7430, 4294901760
  %7432 = vmatmul.mubr.f32.gmra.mrb[0].mxu0 %v7431
  %v7433 = vpop.f32.mrb[0].mxu0
  %v7434 = vadd.f32 %v7328, %v7433
  %v7435 = vpop.f32.mrb[0].mxu0
  %v7436 = vadd.f32 %v7330, %v7435
  %7437 = vdwg.mxu0
  %v7438 = vand.u32 %v1446, 4294901760
  %v7439 = vsub.f32 %v1446, %v7438
  %v7440 = vand.u32 %v7439, 4294901760
  %7441 = vmatprep.subr.mxu0 %v7440
  %v7442 = vand.u32 %v1445, 4294901760
  %v7443 = vsub.f32 %v1445, %v7442
  %v7444 = vand.u32 %v7443, 4294901760
  %7445 = vmatpush1.msra.mxu0 %v7444
  %v7446 = vand.u32 %v1462, 4294901760
  %v7447 = vsub.f32 %v1462, %v7446
  %v7448 = vand.u32 %v7447, 4294901760
  %7449 = vmatprep.subr.mxu0 %v7448
  %v7450 = vand.u32 %v1461, 4294901760
  %v7451 = vsub.f32 %v1461, %v7450
  %v7452 = vand.u32 %v7451, 4294901760
  %7453 = vmatpush1.msra.mxu0 %v7452
  %v7454 = vand.u32 %v1478, 4294901760
  %v7455 = vsub.f32 %v1478, %v7454
  %v7456 = vand.u32 %v7455, 4294901760
  %7457 = vmatprep.subr.mxu0 %v7456
  %v7458 = vand.u32 %v1477, 4294901760
  %v7459 = vsub.f32 %v1477, %v7458
  %v7460 = vand.u32 %v7459, 4294901760
  %7461 = vmatpush1.msra.mxu0 %v7460
  %v7462 = vand.u32 %v1494, 4294901760
  %v7463 = vsub.f32 %v1494, %v7462
  %v7464 = vand.u32 %v7463, 4294901760
  %7465 = vmatprep.subr.mxu0 %v7464
  %v7466 = vand.u32 %v1493, 4294901760
  %v7467 = vsub.f32 %v1493, %v7466
  %v7468 = vand.u32 %v7467, 4294901760
  %7469 = vmatpush1.msra.mxu0 %v7468
  %v7470 = vand.u32 %v1510, 4294901760
  %v7471 = vsub.f32 %v1510, %v7470
  %v7472 = vand.u32 %v7471, 4294901760
  %7473 = vmatprep.subr.mxu0 %v7472
  %v7474 = vand.u32 %v1509, 4294901760
  %v7475 = vsub.f32 %v1509, %v7474
  %v7476 = vand.u32 %v7475, 4294901760
  %7477 = vmatpush1.msra.mxu0 %v7476
  %v7478 = vand.u32 %v1526, 4294901760
  %v7479 = vsub.f32 %v1526, %v7478
  %v7480 = vand.u32 %v7479, 4294901760
  %7481 = vmatprep.subr.mxu0 %v7480
  %v7482 = vand.u32 %v1525, 4294901760
  %v7483 = vsub.f32 %v1525, %v7482
  %v7484 = vand.u32 %v7483, 4294901760
  %7485 = vmatpush1.msra.mxu0 %v7484
  %v7486 = vand.u32 %v1542, 4294901760
  %v7487 = vsub.f32 %v1542, %v7486
  %v7488 = vand.u32 %v7487, 4294901760
  %7489 = vmatprep.subr.mxu0 %v7488
  %v7490 = vand.u32 %v1541, 4294901760
  %v7491 = vsub.f32 %v1541, %v7490
  %v7492 = vand.u32 %v7491, 4294901760
  %7493 = vmatpush1.msra.mxu0 %v7492
  %v7494 = vand.u32 %v1558, 4294901760
  %v7495 = vsub.f32 %v1558, %v7494
  %v7496 = vand.u32 %v7495, 4294901760
  %7497 = vmatprep.subr.mxu0 %v7496
  %v7498 = vand.u32 %v1557, 4294901760
  %v7499 = vsub.f32 %v1557, %v7498
  %v7500 = vand.u32 %v7499, 4294901760
  %7501 = vmatpush1.msra.mxu0 %v7500
  %v7502 = vand.u32 %v1574, 4294901760
  %v7503 = vsub.f32 %v1574, %v7502
  %v7504 = vand.u32 %v7503, 4294901760
  %7505 = vmatprep.subr.mxu0 %v7504
  %v7506 = vand.u32 %v1573, 4294901760
  %v7507 = vsub.f32 %v1573, %v7506
  %v7508 = vand.u32 %v7507, 4294901760
  %7509 = vmatpush1.msra.mxu0 %v7508
  %v7510 = vand.u32 %v1590, 4294901760
  %v7511 = vsub.f32 %v1590, %v7510
  %v7512 = vand.u32 %v7511, 4294901760
  %7513 = vmatprep.subr.mxu0 %v7512
  %v7514 = vand.u32 %v1589, 4294901760
  %v7515 = vsub.f32 %v1589, %v7514
  %v7516 = vand.u32 %v7515, 4294901760
  %7517 = vmatpush1.msra.mxu0 %v7516
  %v7518 = vand.u32 %v1606, 4294901760
  %v7519 = vsub.f32 %v1606, %v7518
  %v7520 = vand.u32 %v7519, 4294901760
  %7521 = vmatprep.subr.mxu0 %v7520
  %v7522 = vand.u32 %v1605, 4294901760
  %v7523 = vsub.f32 %v1605, %v7522
  %v7524 = vand.u32 %v7523, 4294901760
  %7525 = vmatpush1.msra.mxu0 %v7524
  %v7526 = vand.u32 %v1622, 4294901760
  %v7527 = vsub.f32 %v1622, %v7526
  %v7528 = vand.u32 %v7527, 4294901760
  %7529 = vmatprep.subr.mxu0 %v7528
  %v7530 = vand.u32 %v1621, 4294901760
  %v7531 = vsub.f32 %v1621, %v7530
  %v7532 = vand.u32 %v7531, 4294901760
  %7533 = vmatpush1.msra.mxu0 %v7532
  %v7534 = vand.u32 %v1638, 4294901760
  %v7535 = vsub.f32 %v1638, %v7534
  %v7536 = vand.u32 %v7535, 4294901760
  %7537 = vmatprep.subr.mxu0 %v7536
  %v7538 = vand.u32 %v1637, 4294901760
  %v7539 = vsub.f32 %v1637, %v7538
  %v7540 = vand.u32 %v7539, 4294901760
  %7541 = vmatpush1.msra.mxu0 %v7540
  %v7542 = vand.u32 %v1654, 4294901760
  %v7543 = vsub.f32 %v1654, %v7542
  %v7544 = vand.u32 %v7543, 4294901760
  %7545 = vmatprep.subr.mxu0 %v7544
  %v7546 = vand.u32 %v1653, 4294901760
  %v7547 = vsub.f32 %v1653, %v7546
  %v7548 = vand.u32 %v7547, 4294901760
  %7549 = vmatpush1.msra.mxu0 %v7548
  %v7550 = vand.u32 %v1670, 4294901760
  %v7551 = vsub.f32 %v1670, %v7550
  %v7552 = vand.u32 %v7551, 4294901760
  %7553 = vmatprep.subr.mxu0 %v7552
  %v7554 = vand.u32 %v1669, 4294901760
  %v7555 = vsub.f32 %v1669, %v7554
  %v7556 = vand.u32 %v7555, 4294901760
  %7557 = vmatpush1.msra.mxu0 %v7556
  %v7558 = vand.u32 %v1686, 4294901760
  %v7559 = vsub.f32 %v1686, %v7558
  %v7560 = vand.u32 %v7559, 4294901760
  %7561 = vmatprep.subr.mxu0 %v7560
  %v7562 = vand.u32 %v1685, 4294901760
  %v7563 = vsub.f32 %v1685, %v7562
  %v7564 = vand.u32 %v7563, 4294901760
  %7565 = vmatpush1.msra.mxu0 %v7564
  %7566 = vmatprep.subr.mxu0 0.0
  %7567 = vmatpush1.msra.mxu0 0.0
  %7568 = vmatprep.subr.mxu0 0.0
  %7569 = vmatpush1.msra.mxu0 0.0
  %7570 = vmatprep.subr.mxu0 0.0
  %7571 = vmatpush1.msra.mxu0 0.0
  %7572 = vmatprep.subr.mxu0 0.0
  %7573 = vmatpush1.msra.mxu0 0.0
  %7574 = vmatprep.subr.mxu0 0.0
  %7575 = vmatpush1.msra.mxu0 0.0
  %7576 = vmatprep.subr.mxu0 0.0
  %7577 = vmatpush1.msra.mxu0 0.0
  %7578 = vmatprep.subr.mxu0 0.0
  %7579 = vmatpush1.msra.mxu0 0.0
  %7580 = vmatprep.subr.mxu0 0.0
  %7581 = vmatpush1.msra.mxu0 0.0
  %7582 = vmatprep.subr.mxu0 0.0
  %7583 = vmatpush1.msra.mxu0 0.0
  %7584 = vmatprep.subr.mxu0 0.0
  %7585 = vmatpush1.msra.mxu0 0.0
  %7586 = vmatprep.subr.mxu0 0.0
  %7587 = vmatpush1.msra.mxu0 0.0
  %7588 = vmatprep.subr.mxu0 0.0
  %7589 = vmatpush1.msra.mxu0 0.0
  %7590 = vmatprep.subr.mxu0 0.0
  %7591 = vmatpush1.msra.mxu0 0.0
  %7592 = vmatprep.subr.mxu0 0.0
  %7593 = vmatpush1.msra.mxu0 0.0
  %7594 = vmatprep.subr.mxu0 0.0
  %7595 = vmatpush1.msra.mxu0 0.0
  %7596 = vmatprep.subr.mxu0 0.0
  %7597 = vmatpush1.msra.mxu0 0.0
  %7598 = vmatprep.mubr.f32.mxu0 0.0
  %v7599 = vand.u32 %v1689, 4294901760
  %7600 = vmatmul.mubr.f32.gmra.mrb[0].mxu0 %v7599
  %v7601 = vpop.f32.mrb[0].mxu0
  %v7602 = vadd.f32 %v7434, %v7601
  %v7603 = vpop.f32.mrb[0].mxu0
  %v7604 = vadd.f32 %v7436, %v7603
  %7605 = vdwg.mxu0
  %v7606 = vand.u32 %v1446, 4294901760
  %7607 = vmatprep.subr.mxu0 %v7606
  %v7608 = vand.u32 %v1445, 4294901760
  %7609 = vmatpush1.msra.mxu0 %v7608
  %v7610 = vand.u32 %v1462, 4294901760
  %7611 = vmatprep.subr.mxu0 %v7610
  %v7612 = vand.u32 %v1461, 4294901760
  %7613 = vmatpush1.msra.mxu0 %v7612
  %v7614 = vand.u32 %v1478, 4294901760
  %7615 = vmatprep.subr.mxu0 %v7614
  %v7616 = vand.u32 %v1477, 4294901760
  %7617 = vmatpush1.msra.mxu0 %v7616
  %v7618 = vand.u32 %v1494, 4294901760
  %7619 = vmatprep.subr.mxu0 %v7618
  %v7620 = vand.u32 %v1493, 4294901760
  %7621 = vmatpush1.msra.mxu0 %v7620
  %v7622 = vand.u32 %v1510, 4294901760
  %7623 = vmatprep.subr.mxu0 %v7622
  %v7624 = vand.u32 %v1509, 4294901760
  %7625 = vmatpush1.msra.mxu0 %v7624
  %v7626 = vand.u32 %v1526, 4294901760
  %7627 = vmatprep.subr.mxu0 %v7626
  %v7628 = vand.u32 %v1525, 4294901760
  %7629 = vmatpush1.msra.mxu0 %v7628
  %v7630 = vand.u32 %v1542, 4294901760
  %7631 = vmatprep.subr.mxu0 %v7630
  %v7632 = vand.u32 %v1541, 4294901760
  %7633 = vmatpush1.msra.mxu0 %v7632
  %v7634 = vand.u32 %v1558, 4294901760
  %7635 = vmatprep.subr.mxu0 %v7634
  %v7636 = vand.u32 %v1557, 4294901760
  %7637 = vmatpush1.msra.mxu0 %v7636
  %v7638 = vand.u32 %v1574, 4294901760
  %7639 = vmatprep.subr.mxu0 %v7638
  %v7640 = vand.u32 %v1573, 4294901760
  %7641 = vmatpush1.msra.mxu0 %v7640
  %v7642 = vand.u32 %v1590, 4294901760
  %7643 = vmatprep.subr.mxu0 %v7642
  %v7644 = vand.u32 %v1589, 4294901760
  %7645 = vmatpush1.msra.mxu0 %v7644
  %v7646 = vand.u32 %v1606, 4294901760
  %7647 = vmatprep.subr.mxu0 %v7646
  %v7648 = vand.u32 %v1605, 4294901760
  %7649 = vmatpush1.msra.mxu0 %v7648
  %v7650 = vand.u32 %v1622, 4294901760
  %7651 = vmatprep.subr.mxu0 %v7650
  %v7652 = vand.u32 %v1621, 4294901760
  %7653 = vmatpush1.msra.mxu0 %v7652
  %v7654 = vand.u32 %v1638, 4294901760
  %7655 = vmatprep.subr.mxu0 %v7654
  %v7656 = vand.u32 %v1637, 4294901760
  %7657 = vmatpush1.msra.mxu0 %v7656
  %v7658 = vand.u32 %v1654, 4294901760
  %7659 = vmatprep.subr.mxu0 %v7658
  %v7660 = vand.u32 %v1653, 4294901760
  %7661 = vmatpush1.msra.mxu0 %v7660
  %v7662 = vand.u32 %v1670, 4294901760
  %7663 = vmatprep.subr.mxu0 %v7662
  %v7664 = vand.u32 %v1669, 4294901760
  %7665 = vmatpush1.msra.mxu0 %v7664
  %v7666 = vand.u32 %v1686, 4294901760
  %7667 = vmatprep.subr.mxu0 %v7666
  %v7668 = vand.u32 %v1685, 4294901760
  %7669 = vmatpush1.msra.mxu0 %v7668
  %7670 = vmatprep.subr.mxu0 0.0
  %7671 = vmatpush1.msra.mxu0 0.0
  %7672 = vmatprep.subr.mxu0 0.0
  %7673 = vmatpush1.msra.mxu0 0.0
  %7674 = vmatprep.subr.mxu0 0.0
  %7675 = vmatpush1.msra.mxu0 0.0
  %7676 = vmatprep.subr.mxu0 0.0
  %7677 = vmatpush1.msra.mxu0 0.0
  %7678 = vmatprep.subr.mxu0 0.0
  %7679 = vmatpush1.msra.mxu0 0.0
  %7680 = vmatprep.subr.mxu0 0.0
  %7681 = vmatpush1.msra.mxu0 0.0
  %7682 = vmatprep.subr.mxu0 0.0
  %7683 = vmatpush1.msra.mxu0 0.0
  %7684 = vmatprep.subr.mxu0 0.0
  %7685 = vmatpush1.msra.mxu0 0.0
  %7686 = vmatprep.subr.mxu0 0.0
  %7687 = vmatpush1.msra.mxu0 0.0
  %7688 = vmatprep.subr.mxu0 0.0
  %7689 = vmatpush1.msra.mxu0 0.0
  %7690 = vmatprep.subr.mxu0 0.0
  %7691 = vmatpush1.msra.mxu0 0.0
  %7692 = vmatprep.subr.mxu0 0.0
  %7693 = vmatpush1.msra.mxu0 0.0
  %7694 = vmatprep.subr.mxu0 0.0
  %7695 = vmatpush1.msra.mxu0 0.0
  %7696 = vmatprep.subr.mxu0 0.0
  %7697 = vmatpush1.msra.mxu0 0.0
  %7698 = vmatprep.subr.mxu0 0.0
  %7699 = vmatpush1.msra.mxu0 0.0
  %7700 = vmatprep.subr.mxu0 0.0
  %7701 = vmatpush1.msra.mxu0 0.0
  %7702 = vmatprep.mubr.f32.mxu0 0.0
  %v7703 = vand.u32 %v1689, 4294901760
  %7704 = vmatmul.mubr.f32.gmra.mrb[0].mxu0 %v7703
  %v7705 = vpop.f32.mrb[0].mxu0
  %v7706 = vadd.f32 %v7602, %v7705
  %v7707 = vpop.f32.mrb[0].mxu0
  %v7708 = vadd.f32 %v7604, %v7707
  %7709 = vdwg.mxu0
  %v7710 = vand.u32 %v1448, 4294901760
  %7711 = vmatprep.subr.mxu0 %v7710
  %v7712 = vand.u32 %v1447, 4294901760
  %7713 = vmatpush1.msra.mxu0 %v7712
  %v7714 = vand.u32 %v1464, 4294901760
  %7715 = vmatprep.subr.mxu0 %v7714
  %v7716 = vand.u32 %v1463, 4294901760
  %7717 = vmatpush1.msra.mxu0 %v7716
  %v7718 = vand.u32 %v1480, 4294901760
  %7719 = vmatprep.subr.mxu0 %v7718
  %v7720 = vand.u32 %v1479, 4294901760
  %7721 = vmatpush1.msra.mxu0 %v7720
  %v7722 = vand.u32 %v1496, 4294901760
  %7723 = vmatprep.subr.mxu0 %v7722
  %v7724 = vand.u32 %v1495, 4294901760
  %7725 = vmatpush1.msra.mxu0 %v7724
  %v7726 = vand.u32 %v1512, 4294901760
  %7727 = vmatprep.subr.mxu0 %v7726
  %v7728 = vand.u32 %v1511, 4294901760
  %7729 = vmatpush1.msra.mxu0 %v7728
  %v7730 = vand.u32 %v1528, 4294901760
  %7731 = vmatprep.subr.mxu0 %v7730
  %v7732 = vand.u32 %v1527, 4294901760
  %7733 = vmatpush1.msra.mxu0 %v7732
  %v7734 = vand.u32 %v1544, 4294901760
  %7735 = vmatprep.subr.mxu0 %v7734
  %v7736 = vand.u32 %v1543, 4294901760
  %7737 = vmatpush1.msra.mxu0 %v7736
  %v7738 = vand.u32 %v1560, 4294901760
  %7739 = vmatprep.subr.mxu0 %v7738
  %v7740 = vand.u32 %v1559, 4294901760
  %7741 = vmatpush1.msra.mxu0 %v7740
  %v7742 = vand.u32 %v1576, 4294901760
  %7743 = vmatprep.subr.mxu0 %v7742
  %v7744 = vand.u32 %v1575, 4294901760
  %7745 = vmatpush1.msra.mxu0 %v7744
  %v7746 = vand.u32 %v1592, 4294901760
  %7747 = vmatprep.subr.mxu0 %v7746
  %v7748 = vand.u32 %v1591, 4294901760
  %7749 = vmatpush1.msra.mxu0 %v7748
  %v7750 = vand.u32 %v1608, 4294901760
  %7751 = vmatprep.subr.mxu0 %v7750
  %v7752 = vand.u32 %v1607, 4294901760
  %7753 = vmatpush1.msra.mxu0 %v7752
  %v7754 = vand.u32 %v1624, 4294901760
  %7755 = vmatprep.subr.mxu0 %v7754
  %v7756 = vand.u32 %v1623, 4294901760
  %7757 = vmatpush1.msra.mxu0 %v7756
  %v7758 = vand.u32 %v1640, 4294901760
  %7759 = vmatprep.subr.mxu0 %v7758
  %v7760 = vand.u32 %v1639, 4294901760
  %7761 = vmatpush1.msra.mxu0 %v7760
  %v7762 = vand.u32 %v1656, 4294901760
  %7763 = vmatprep.subr.mxu0 %v7762
  %v7764 = vand.u32 %v1655, 4294901760
  %7765 = vmatpush1.msra.mxu0 %v7764
  %v7766 = vand.u32 %v1672, 4294901760
  %7767 = vmatprep.subr.mxu0 %v7766
  %v7768 = vand.u32 %v1671, 4294901760
  %7769 = vmatpush1.msra.mxu0 %v7768
  %v7770 = vand.u32 %v1688, 4294901760
  %7771 = vmatprep.subr.mxu0 %v7770
  %v7772 = vand.u32 %v1687, 4294901760
  %7773 = vmatpush1.msra.mxu0 %v7772
  %7774 = vmatprep.subr.mxu0 0.0
  %7775 = vmatpush1.msra.mxu0 0.0
  %7776 = vmatprep.subr.mxu0 0.0
  %7777 = vmatpush1.msra.mxu0 0.0
  %7778 = vmatprep.subr.mxu0 0.0
  %7779 = vmatpush1.msra.mxu0 0.0
  %7780 = vmatprep.subr.mxu0 0.0
  %7781 = vmatpush1.msra.mxu0 0.0
  %7782 = vmatprep.subr.mxu0 0.0
  %7783 = vmatpush1.msra.mxu0 0.0
  %7784 = vmatprep.subr.mxu0 0.0
  %7785 = vmatpush1.msra.mxu0 0.0
  %7786 = vmatprep.subr.mxu0 0.0
  %7787 = vmatpush1.msra.mxu0 0.0
  %7788 = vmatprep.subr.mxu0 0.0
  %7789 = vmatpush1.msra.mxu0 0.0
  %7790 = vmatprep.subr.mxu0 0.0
  %7791 = vmatpush1.msra.mxu0 0.0
  %7792 = vmatprep.subr.mxu0 0.0
  %7793 = vmatpush1.msra.mxu0 0.0
  %7794 = vmatprep.subr.mxu0 0.0
  %7795 = vmatpush1.msra.mxu0 0.0
  %7796 = vmatprep.subr.mxu0 0.0
  %7797 = vmatpush1.msra.mxu0 0.0
  %7798 = vmatprep.subr.mxu0 0.0
  %7799 = vmatpush1.msra.mxu0 0.0
  %7800 = vmatprep.subr.mxu0 0.0
  %7801 = vmatpush1.msra.mxu0 0.0
  %7802 = vmatprep.subr.mxu0 0.0
  %7803 = vmatpush1.msra.mxu0 0.0
  %7804 = vmatprep.subr.mxu0 0.0
  %7805 = vmatpush1.msra.mxu0 0.0
  %7806 = vmatprep.mubr.f32.mxu0 0.0
  %v7807 = vand.u32 %v1689, 4294901760
  %v7808 = vsub.f32 %v1689, %v7807
  %v7809 = vand.u32 %v7808, 4294901760
  %v7810 = vsub.f32 %v7808, %v7809
  %v7811 = vand.u32 %v7810, 4294901760
  %7812 = vmatmul.mubr.f32.gmra.mrb[0].mxu0 %v7811
  %v7813 = vpop.f32.mrb[0].mxu0
  %v7814 = vadd.f32 %v1718, %v7813
  %v7815 = vpop.f32.mrb[0].mxu0
  %v7816 = vadd.f32 %v1720, %v7815
  %7817 = vdwg.mxu0
  %v7818 = vand.u32 %v1448, 4294901760
  %v7819 = vsub.f32 %v1448, %v7818
  %v7820 = vand.u32 %v7819, 4294901760
  %v7821 = vsub.f32 %v7819, %v7820
  %v7822 = vand.u32 %v7821, 4294901760
  %7823 = vmatprep.subr.mxu0 %v7822
  %v7824 = vand.u32 %v1447, 4294901760
  %v7825 = vsub.f32 %v1447, %v7824
  %v7826 = vand.u32 %v7825, 4294901760
  %v7827 = vsub.f32 %v7825, %v7826
  %v7828 = vand.u32 %v7827, 4294901760
  %7829 = vmatpush1.msra.mxu0 %v7828
  %v7830 = vand.u32 %v1464, 4294901760
  %v7831 = vsub.f32 %v1464, %v7830
  %v7832 = vand.u32 %v7831, 4294901760
  %v7833 = vsub.f32 %v7831, %v7832
  %v7834 = vand.u32 %v7833, 4294901760
  %7835 = vmatprep.subr.mxu0 %v7834
  %v7836 = vand.u32 %v1463, 4294901760
  %v7837 = vsub.f32 %v1463, %v7836
  %v7838 = vand.u32 %v7837, 4294901760
  %v7839 = vsub.f32 %v7837, %v7838
  %v7840 = vand.u32 %v7839, 4294901760
  %7841 = vmatpush1.msra.mxu0 %v7840
  %v7842 = vand.u32 %v1480, 4294901760
  %v7843 = vsub.f32 %v1480, %v7842
  %v7844 = vand.u32 %v7843, 4294901760
  %v7845 = vsub.f32 %v7843, %v7844
  %v7846 = vand.u32 %v7845, 4294901760
  %7847 = vmatprep.subr.mxu0 %v7846
  %v7848 = vand.u32 %v1479, 4294901760
  %v7849 = vsub.f32 %v1479, %v7848
  %v7850 = vand.u32 %v7849, 4294901760
  %v7851 = vsub.f32 %v7849, %v7850
  %v7852 = vand.u32 %v7851, 4294901760
  %7853 = vmatpush1.msra.mxu0 %v7852
  %v7854 = vand.u32 %v1496, 4294901760
  %v7855 = vsub.f32 %v1496, %v7854
  %v7856 = vand.u32 %v7855, 4294901760
  %v7857 = vsub.f32 %v7855, %v7856
  %v7858 = vand.u32 %v7857, 4294901760
  %7859 = vmatprep.subr.mxu0 %v7858
  %v7860 = vand.u32 %v1495, 4294901760
  %v7861 = vsub.f32 %v1495, %v7860
  %v7862 = vand.u32 %v7861, 4294901760
  %v7863 = vsub.f32 %v7861, %v7862
  %v7864 = vand.u32 %v7863, 4294901760
  %7865 = vmatpush1.msra.mxu0 %v7864
  %v7866 = vand.u32 %v1512, 4294901760
  %v7867 = vsub.f32 %v1512, %v7866
  %v7868 = vand.u32 %v7867, 4294901760
  %v7869 = vsub.f32 %v7867, %v7868
  %v7870 = vand.u32 %v7869, 4294901760
  %7871 = vmatprep.subr.mxu0 %v7870
  %v7872 = vand.u32 %v1511, 4294901760
  %v7873 = vsub.f32 %v1511, %v7872
  %v7874 = vand.u32 %v7873, 4294901760
  %v7875 = vsub.f32 %v7873, %v7874
  %v7876 = vand.u32 %v7875, 4294901760
  %7877 = vmatpush1.msra.mxu0 %v7876
  %v7878 = vand.u32 %v1528, 4294901760
  %v7879 = vsub.f32 %v1528, %v7878
  %v7880 = vand.u32 %v7879, 4294901760
  %v7881 = vsub.f32 %v7879, %v7880
  %v7882 = vand.u32 %v7881, 4294901760
  %7883 = vmatprep.subr.mxu0 %v7882
  %v7884 = vand.u32 %v1527, 4294901760
  %v7885 = vsub.f32 %v1527, %v7884
  %v7886 = vand.u32 %v7885, 4294901760
  %v7887 = vsub.f32 %v7885, %v7886
  %v7888 = vand.u32 %v7887, 4294901760
  %7889 = vmatpush1.msra.mxu0 %v7888
  %v7890 = vand.u32 %v1544, 4294901760
  %v7891 = vsub.f32 %v1544, %v7890
  %v7892 = vand.u32 %v7891, 4294901760
  %v7893 = vsub.f32 %v7891, %v7892
  %v7894 = vand.u32 %v7893, 4294901760
  %7895 = vmatprep.subr.mxu0 %v7894
  %v7896 = vand.u32 %v1543, 4294901760
  %v7897 = vsub.f32 %v1543, %v7896
  %v7898 = vand.u32 %v7897, 4294901760
  %v7899 = vsub.f32 %v7897, %v7898
  %v7900 = vand.u32 %v7899, 4294901760
  %7901 = vmatpush1.msra.mxu0 %v7900
  %v7902 = vand.u32 %v1560, 4294901760
  %v7903 = vsub.f32 %v1560, %v7902
  %v7904 = vand.u32 %v7903, 4294901760
  %v7905 = vsub.f32 %v7903, %v7904
  %v7906 = vand.u32 %v7905, 4294901760
  %7907 = vmatprep.subr.mxu0 %v7906
  %v7908 = vand.u32 %v1559, 4294901760
  %v7909 = vsub.f32 %v1559, %v7908
  %v7910 = vand.u32 %v7909, 4294901760
  %v7911 = vsub.f32 %v7909, %v7910
  %v7912 = vand.u32 %v7911, 4294901760
  %7913 = vmatpush1.msra.mxu0 %v7912
  %v7914 = vand.u32 %v1576, 4294901760
  %v7915 = vsub.f32 %v1576, %v7914
  %v7916 = vand.u32 %v7915, 4294901760
  %v7917 = vsub.f32 %v7915, %v7916
  %v7918 = vand.u32 %v7917, 4294901760
  %7919 = vmatprep.subr.mxu0 %v7918
  %v7920 = vand.u32 %v1575, 4294901760
  %v7921 = vsub.f32 %v1575, %v7920
  %v7922 = vand.u32 %v7921, 4294901760
  %v7923 = vsub.f32 %v7921, %v7922
  %v7924 = vand.u32 %v7923, 4294901760
  %7925 = vmatpush1.msra.mxu0 %v7924
  %v7926 = vand.u32 %v1592, 4294901760
  %v7927 = vsub.f32 %v1592, %v7926
  %v7928 = vand.u32 %v7927, 4294901760
  %v7929 = vsub.f32 %v7927, %v7928
  %v7930 = vand.u32 %v7929, 4294901760
  %7931 = vmatprep.subr.mxu0 %v7930
  %v7932 = vand.u32 %v1591, 4294901760
  %v7933 = vsub.f32 %v1591, %v7932
  %v7934 = vand.u32 %v7933, 4294901760
  %v7935 = vsub.f32 %v7933, %v7934
  %v7936 = vand.u32 %v7935, 4294901760
  %7937 = vmatpush1.msra.mxu0 %v7936
  %v7938 = vand.u32 %v1608, 4294901760
  %v7939 = vsub.f32 %v1608, %v7938
  %v7940 = vand.u32 %v7939, 4294901760
  %v7941 = vsub.f32 %v7939, %v7940
  %v7942 = vand.u32 %v7941, 4294901760
  %7943 = vmatprep.subr.mxu0 %v7942
  %v7944 = vand.u32 %v1607, 4294901760
  %v7945 = vsub.f32 %v1607, %v7944
  %v7946 = vand.u32 %v7945, 4294901760
  %v7947 = vsub.f32 %v7945, %v7946
  %v7948 = vand.u32 %v7947, 4294901760
  %7949 = vmatpush1.msra.mxu0 %v7948
  %v7950 = vand.u32 %v1624, 4294901760
  %v7951 = vsub.f32 %v1624, %v7950
  %v7952 = vand.u32 %v7951, 4294901760
  %v7953 = vsub.f32 %v7951, %v7952
  %v7954 = vand.u32 %v7953, 4294901760
  %7955 = vmatprep.subr.mxu0 %v7954
  %v7956 = vand.u32 %v1623, 4294901760
  %v7957 = vsub.f32 %v1623, %v7956
  %v7958 = vand.u32 %v7957, 4294901760
  %v7959 = vsub.f32 %v7957, %v7958
  %v7960 = vand.u32 %v7959, 4294901760
  %7961 = vmatpush1.msra.mxu0 %v7960
  %v7962 = vand.u32 %v1640, 4294901760
  %v7963 = vsub.f32 %v1640, %v7962
  %v7964 = vand.u32 %v7963, 4294901760
  %v7965 = vsub.f32 %v7963, %v7964
  %v7966 = vand.u32 %v7965, 4294901760
  %7967 = vmatprep.subr.mxu0 %v7966
  %v7968 = vand.u32 %v1639, 4294901760
  %v7969 = vsub.f32 %v1639, %v7968
  %v7970 = vand.u32 %v7969, 4294901760
  %v7971 = vsub.f32 %v7969, %v7970
  %v7972 = vand.u32 %v7971, 4294901760
  %7973 = vmatpush1.msra.mxu0 %v7972
  %v7974 = vand.u32 %v1656, 4294901760
  %v7975 = vsub.f32 %v1656, %v7974
  %v7976 = vand.u32 %v7975, 4294901760
  %v7977 = vsub.f32 %v7975, %v7976
  %v7978 = vand.u32 %v7977, 4294901760
  %7979 = vmatprep.subr.mxu0 %v7978
  %v7980 = vand.u32 %v1655, 4294901760
  %v7981 = vsub.f32 %v1655, %v7980
  %v7982 = vand.u32 %v7981, 4294901760
  %v7983 = vsub.f32 %v7981, %v7982
  %v7984 = vand.u32 %v7983, 4294901760
  %7985 = vmatpush1.msra.mxu0 %v7984
  %v7986 = vand.u32 %v1672, 4294901760
  %v7987 = vsub.f32 %v1672, %v7986
  %v7988 = vand.u32 %v7987, 4294901760
  %v7989 = vsub.f32 %v7987, %v7988
  %v7990 = vand.u32 %v7989, 4294901760
  %7991 = vmatprep.subr.mxu0 %v7990
  %v7992 = vand.u32 %v1671, 4294901760
  %v7993 = vsub.f32 %v1671, %v7992
  %v7994 = vand.u32 %v7993, 4294901760
  %v7995 = vsub.f32 %v7993, %v7994
  %v7996 = vand.u32 %v7995, 4294901760
  %7997 = vmatpush1.msra.mxu0 %v7996
  %v7998 = vand.u32 %v1688, 4294901760
  %v7999 = vsub.f32 %v1688, %v7998
  %v8000 = vand.u32 %v7999, 4294901760
  %v8001 = vsub.f32 %v7999, %v8000
  %v8002 = vand.u32 %v8001, 4294901760
  %8003 = vmatprep.subr.mxu0 %v8002
  %v8004 = vand.u32 %v1687, 4294901760
  %v8005 = vsub.f32 %v1687, %v8004
  %v8006 = vand.u32 %v8005, 4294901760
  %v8007 = vsub.f32 %v8005, %v8006
  %v8008 = vand.u32 %v8007, 4294901760
  %8009 = vmatpush1.msra.mxu0 %v8008
  %8010 = vmatprep.subr.mxu0 0.0
  %8011 = vmatpush1.msra.mxu0 0.0
  %8012 = vmatprep.subr.mxu0 0.0
  %8013 = vmatpush1.msra.mxu0 0.0
  %8014 = vmatprep.subr.mxu0 0.0
  %8015 = vmatpush1.msra.mxu0 0.0
  %8016 = vmatprep.subr.mxu0 0.0
  %8017 = vmatpush1.msra.mxu0 0.0
  %8018 = vmatprep.subr.mxu0 0.0
  %8019 = vmatpush1.msra.mxu0 0.0
  %8020 = vmatprep.subr.mxu0 0.0
  %8021 = vmatpush1.msra.mxu0 0.0
  %8022 = vmatprep.subr.mxu0 0.0
  %8023 = vmatpush1.msra.mxu0 0.0
  %8024 = vmatprep.subr.mxu0 0.0
  %8025 = vmatpush1.msra.mxu0 0.0
  %8026 = vmatprep.subr.mxu0 0.0
  %8027 = vmatpush1.msra.mxu0 0.0
  %8028 = vmatprep.subr.mxu0 0.0
  %8029 = vmatpush1.msra.mxu0 0.0
  %8030 = vmatprep.subr.mxu0 0.0
  %8031 = vmatpush1.msra.mxu0 0.0
  %8032 = vmatprep.subr.mxu0 0.0
  %8033 = vmatpush1.msra.mxu0 0.0
  %8034 = vmatprep.subr.mxu0 0.0
  %8035 = vmatpush1.msra.mxu0 0.0
  %8036 = vmatprep.subr.mxu0 0.0
  %8037 = vmatpush1.msra.mxu0 0.0
  %8038 = vmatprep.subr.mxu0 0.0
  %8039 = vmatpush1.msra.mxu0 0.0
  %8040 = vmatprep.subr.mxu0 0.0
  %8041 = vmatpush1.msra.mxu0 0.0
  %8042 = vmatprep.mubr.f32.mxu0 0.0
  %v8043 = vand.u32 %v1689, 4294901760
  %8044 = vmatmul.mubr.f32.gmra.mrb[0].mxu0 %v8043
  %v8045 = vpop.f32.mrb[0].mxu0
  %v8046 = vadd.f32 %v7814, %v8045
  %v8047 = vpop.f32.mrb[0].mxu0
  %v8048 = vadd.f32 %v7816, %v8047
  %8049 = vdwg.mxu0
  %v8050 = vand.u32 %v1448, 4294901760
  %v8051 = vsub.f32 %v1448, %v8050
  %8052 = vmatprep.subr.mxu0 %v8051
  %v8053 = vand.u32 %v1447, 4294901760
  %v8054 = vsub.f32 %v1447, %v8053
  %8055 = vmatpush1.msra.mxu0 %v8054
  %v8056 = vand.u32 %v1464, 4294901760
  %v8057 = vsub.f32 %v1464, %v8056
  %8058 = vmatprep.subr.mxu0 %v8057
  %v8059 = vand.u32 %v1463, 4294901760
  %v8060 = vsub.f32 %v1463, %v8059
  %8061 = vmatpush1.msra.mxu0 %v8060
  %v8062 = vand.u32 %v1480, 4294901760
  %v8063 = vsub.f32 %v1480, %v8062
  %8064 = vmatprep.subr.mxu0 %v8063
  %v8065 = vand.u32 %v1479, 4294901760
  %v8066 = vsub.f32 %v1479, %v8065
  %8067 = vmatpush1.msra.mxu0 %v8066
  %v8068 = vand.u32 %v1496, 4294901760
  %v8069 = vsub.f32 %v1496, %v8068
  %8070 = vmatprep.subr.mxu0 %v8069
  %v8071 = vand.u32 %v1495, 4294901760
  %v8072 = vsub.f32 %v1495, %v8071
  %8073 = vmatpush1.msra.mxu0 %v8072
  %v8074 = vand.u32 %v1512, 4294901760
  %v8075 = vsub.f32 %v1512, %v8074
  %8076 = vmatprep.subr.mxu0 %v8075
  %v8077 = vand.u32 %v1511, 4294901760
  %v8078 = vsub.f32 %v1511, %v8077
  %8079 = vmatpush1.msra.mxu0 %v8078
  %v8080 = vand.u32 %v1528, 4294901760
  %v8081 = vsub.f32 %v1528, %v8080
  %8082 = vmatprep.subr.mxu0 %v8081
  %v8083 = vand.u32 %v1527, 4294901760
  %v8084 = vsub.f32 %v1527, %v8083
  %8085 = vmatpush1.msra.mxu0 %v8084
  %v8086 = vand.u32 %v1544, 4294901760
  %v8087 = vsub.f32 %v1544, %v8086
  %8088 = vmatprep.subr.mxu0 %v8087
  %v8089 = vand.u32 %v1543, 4294901760
  %v8090 = vsub.f32 %v1543, %v8089
  %8091 = vmatpush1.msra.mxu0 %v8090
  %v8092 = vand.u32 %v1560, 4294901760
  %v8093 = vsub.f32 %v1560, %v8092
  %8094 = vmatprep.subr.mxu0 %v8093
  %v8095 = vand.u32 %v1559, 4294901760
  %v8096 = vsub.f32 %v1559, %v8095
  %8097 = vmatpush1.msra.mxu0 %v8096
  %v8098 = vand.u32 %v1576, 4294901760
  %v8099 = vsub.f32 %v1576, %v8098
  %8100 = vmatprep.subr.mxu0 %v8099
  %v8101 = vand.u32 %v1575, 4294901760
  %v8102 = vsub.f32 %v1575, %v8101
  %8103 = vmatpush1.msra.mxu0 %v8102
  %v8104 = vand.u32 %v1592, 4294901760
  %v8105 = vsub.f32 %v1592, %v8104
  %8106 = vmatprep.subr.mxu0 %v8105
  %v8107 = vand.u32 %v1591, 4294901760
  %v8108 = vsub.f32 %v1591, %v8107
  %8109 = vmatpush1.msra.mxu0 %v8108
  %v8110 = vand.u32 %v1608, 4294901760
  %v8111 = vsub.f32 %v1608, %v8110
  %8112 = vmatprep.subr.mxu0 %v8111
  %v8113 = vand.u32 %v1607, 4294901760
  %v8114 = vsub.f32 %v1607, %v8113
  %8115 = vmatpush1.msra.mxu0 %v8114
  %v8116 = vand.u32 %v1624, 4294901760
  %v8117 = vsub.f32 %v1624, %v8116
  %8118 = vmatprep.subr.mxu0 %v8117
  %v8119 = vand.u32 %v1623, 4294901760
  %v8120 = vsub.f32 %v1623, %v8119
  %8121 = vmatpush1.msra.mxu0 %v8120
  %v8122 = vand.u32 %v1640, 4294901760
  %v8123 = vsub.f32 %v1640, %v8122
  %8124 = vmatprep.subr.mxu0 %v8123
  %v8125 = vand.u32 %v1639, 4294901760
  %v8126 = vsub.f32 %v1639, %v8125
  %8127 = vmatpush1.msra.mxu0 %v8126
  %v8128 = vand.u32 %v1656, 4294901760
  %v8129 = vsub.f32 %v1656, %v8128
  %8130 = vmatprep.subr.mxu0 %v8129
  %v8131 = vand.u32 %v1655, 4294901760
  %v8132 = vsub.f32 %v1655, %v8131
  %8133 = vmatpush1.msra.mxu0 %v8132
  %v8134 = vand.u32 %v1672, 4294901760
  %v8135 = vsub.f32 %v1672, %v8134
  %8136 = vmatprep.subr.mxu0 %v8135
  %v8137 = vand.u32 %v1671, 4294901760
  %v8138 = vsub.f32 %v1671, %v8137
  %8139 = vmatpush1.msra.mxu0 %v8138
  %v8140 = vand.u32 %v1688, 4294901760
  %v8141 = vsub.f32 %v1688, %v8140
  %8142 = vmatprep.subr.mxu0 %v8141
  %v8143 = vand.u32 %v1687, 4294901760
  %v8144 = vsub.f32 %v1687, %v8143
  %8145 = vmatpush1.msra.mxu0 %v8144
  %8146 = vmatprep.subr.mxu0 0.0
  %8147 = vmatpush1.msra.mxu0 0.0
  %8148 = vmatprep.subr.mxu0 0.0
  %8149 = vmatpush1.msra.mxu0 0.0
  %8150 = vmatprep.subr.mxu0 0.0
  %8151 = vmatpush1.msra.mxu0 0.0
  %8152 = vmatprep.subr.mxu0 0.0
  %8153 = vmatpush1.msra.mxu0 0.0
  %8154 = vmatprep.subr.mxu0 0.0
  %8155 = vmatpush1.msra.mxu0 0.0
  %8156 = vmatprep.subr.mxu0 0.0
  %8157 = vmatpush1.msra.mxu0 0.0
  %8158 = vmatprep.subr.mxu0 0.0
  %8159 = vmatpush1.msra.mxu0 0.0
  %8160 = vmatprep.subr.mxu0 0.0
  %8161 = vmatpush1.msra.mxu0 0.0
  %8162 = vmatprep.subr.mxu0 0.0
  %8163 = vmatpush1.msra.mxu0 0.0
  %8164 = vmatprep.subr.mxu0 0.0
  %8165 = vmatpush1.msra.mxu0 0.0
  %8166 = vmatprep.subr.mxu0 0.0
  %8167 = vmatpush1.msra.mxu0 0.0
  %8168 = vmatprep.subr.mxu0 0.0
  %8169 = vmatpush1.msra.mxu0 0.0
  %8170 = vmatprep.subr.mxu0 0.0
  %8171 = vmatpush1.msra.mxu0 0.0
  %8172 = vmatprep.subr.mxu0 0.0
  %8173 = vmatpush1.msra.mxu0 0.0
  %8174 = vmatprep.subr.mxu0 0.0
  %8175 = vmatpush1.msra.mxu0 0.0
  %8176 = vmatprep.subr.mxu0 0.0
  %8177 = vmatpush1.msra.mxu0 0.0
  %8178 = vmatprep.mubr.f32.mxu0 0.0
  %v8179 = vand.u32 %v1689, 4294901760
  %v8180 = vsub.f32 %v1689, %v8179
  %8181 = vmatmul.mubr.f32.gmra.mrb[0].mxu0 %v8180
  %v8182 = vpop.f32.mrb[0].mxu0
  %v8183 = vadd.f32 %v8046, %v8182
  %v8184 = vpop.f32.mrb[0].mxu0
  %v8185 = vadd.f32 %v8048, %v8184
  %8186 = vdwg.mxu0
  %v8187 = vand.u32 %v1448, 4294901760
  %8188 = vmatprep.subr.mxu0 %v8187
  %v8189 = vand.u32 %v1447, 4294901760
  %8190 = vmatpush1.msra.mxu0 %v8189
  %v8191 = vand.u32 %v1464, 4294901760
  %8192 = vmatprep.subr.mxu0 %v8191
  %v8193 = vand.u32 %v1463, 4294901760
  %8194 = vmatpush1.msra.mxu0 %v8193
  %v8195 = vand.u32 %v1480, 4294901760
  %8196 = vmatprep.subr.mxu0 %v8195
  %v8197 = vand.u32 %v1479, 4294901760
  %8198 = vmatpush1.msra.mxu0 %v8197
  %v8199 = vand.u32 %v1496, 4294901760
  %8200 = vmatprep.subr.mxu0 %v8199
  %v8201 = vand.u32 %v1495, 4294901760
  %8202 = vmatpush1.msra.mxu0 %v8201
  %v8203 = vand.u32 %v1512, 4294901760
  %8204 = vmatprep.subr.mxu0 %v8203
  %v8205 = vand.u32 %v1511, 4294901760
  %8206 = vmatpush1.msra.mxu0 %v8205
  %v8207 = vand.u32 %v1528, 4294901760
  %8208 = vmatprep.subr.mxu0 %v8207
  %v8209 = vand.u32 %v1527, 4294901760
  %8210 = vmatpush1.msra.mxu0 %v8209
  %v8211 = vand.u32 %v1544, 4294901760
  %8212 = vmatprep.subr.mxu0 %v8211
  %v8213 = vand.u32 %v1543, 4294901760
  %8214 = vmatpush1.msra.mxu0 %v8213
  %v8215 = vand.u32 %v1560, 4294901760
  %8216 = vmatprep.subr.mxu0 %v8215
  %v8217 = vand.u32 %v1559, 4294901760
  %8218 = vmatpush1.msra.mxu0 %v8217
  %v8219 = vand.u32 %v1576, 4294901760
  %8220 = vmatprep.subr.mxu0 %v8219
  %v8221 = vand.u32 %v1575, 4294901760
  %8222 = vmatpush1.msra.mxu0 %v8221
  %v8223 = vand.u32 %v1592, 4294901760
  %8224 = vmatprep.subr.mxu0 %v8223
  %v8225 = vand.u32 %v1591, 4294901760
  %8226 = vmatpush1.msra.mxu0 %v8225
  %v8227 = vand.u32 %v1608, 4294901760
  %8228 = vmatprep.subr.mxu0 %v8227
  %v8229 = vand.u32 %v1607, 4294901760
  %8230 = vmatpush1.msra.mxu0 %v8229
  %v8231 = vand.u32 %v1624, 4294901760
  %8232 = vmatprep.subr.mxu0 %v8231
  %v8233 = vand.u32 %v1623, 4294901760
  %8234 = vmatpush1.msra.mxu0 %v8233
  %v8235 = vand.u32 %v1640, 4294901760
  %8236 = vmatprep.subr.mxu0 %v8235
  %v8237 = vand.u32 %v1639, 4294901760
  %8238 = vmatpush1.msra.mxu0 %v8237
  %v8239 = vand.u32 %v1656, 4294901760
  %8240 = vmatprep.subr.mxu0 %v8239
  %v8241 = vand.u32 %v1655, 4294901760
  %8242 = vmatpush1.msra.mxu0 %v8241
  %v8243 = vand.u32 %v1672, 4294901760
  %8244 = vmatprep.subr.mxu0 %v8243
  %v8245 = vand.u32 %v1671, 4294901760
  %8246 = vmatpush1.msra.mxu0 %v8245
  %v8247 = vand.u32 %v1688, 4294901760
  %8248 = vmatprep.subr.mxu0 %v8247
  %v8249 = vand.u32 %v1687, 4294901760
  %8250 = vmatpush1.msra.mxu0 %v8249
  %8251 = vmatprep.subr.mxu0 0.0
  %8252 = vmatpush1.msra.mxu0 0.0
  %8253 = vmatprep.subr.mxu0 0.0
  %8254 = vmatpush1.msra.mxu0 0.0
  %8255 = vmatprep.subr.mxu0 0.0
  %8256 = vmatpush1.msra.mxu0 0.0
  %8257 = vmatprep.subr.mxu0 0.0
  %8258 = vmatpush1.msra.mxu0 0.0
  %8259 = vmatprep.subr.mxu0 0.0
  %8260 = vmatpush1.msra.mxu0 0.0
  %8261 = vmatprep.subr.mxu0 0.0
  %8262 = vmatpush1.msra.mxu0 0.0
  %8263 = vmatprep.subr.mxu0 0.0
  %8264 = vmatpush1.msra.mxu0 0.0
  %8265 = vmatprep.subr.mxu0 0.0
  %8266 = vmatpush1.msra.mxu0 0.0
  %8267 = vmatprep.subr.mxu0 0.0
  %8268 = vmatpush1.msra.mxu0 0.0
  %8269 = vmatprep.subr.mxu0 0.0
  %8270 = vmatpush1.msra.mxu0 0.0
  %8271 = vmatprep.subr.mxu0 0.0
  %8272 = vmatpush1.msra.mxu0 0.0
  %8273 = vmatprep.subr.mxu0 0.0
  %8274 = vmatpush1.msra.mxu0 0.0
  %8275 = vmatprep.subr.mxu0 0.0
  %8276 = vmatpush1.msra.mxu0 0.0
  %8277 = vmatprep.subr.mxu0 0.0
  %8278 = vmatpush1.msra.mxu0 0.0
  %8279 = vmatprep.subr.mxu0 0.0
  %8280 = vmatpush1.msra.mxu0 0.0
  %8281 = vmatprep.subr.mxu0 0.0
  %8282 = vmatpush1.msra.mxu0 0.0
  %8283 = vmatprep.mubr.f32.mxu0 0.0
  %v8284 = vand.u32 %v1689, 4294901760
  %v8285 = vsub.f32 %v1689, %v8284
  %v8286 = vand.u32 %v8285, 4294901760
  %8287 = vmatmul.mubr.f32.gmra.mrb[0].mxu0 %v8286
  %v8288 = vpop.f32.mrb[0].mxu0
  %v8289 = vadd.f32 %v8183, %v8288
  %v8290 = vpop.f32.mrb[0].mxu0
  %v8291 = vadd.f32 %v8185, %v8290
  %8292 = vdwg.mxu0
  %v8293 = vand.u32 %v1448, 4294901760
  %v8294 = vsub.f32 %v1448, %v8293
  %v8295 = vand.u32 %v8294, 4294901760
  %8296 = vmatprep.subr.mxu0 %v8295
  %v8297 = vand.u32 %v1447, 4294901760
  %v8298 = vsub.f32 %v1447, %v8297
  %v8299 = vand.u32 %v8298, 4294901760
  %8300 = vmatpush1.msra.mxu0 %v8299
  %v8301 = vand.u32 %v1464, 4294901760
  %v8302 = vsub.f32 %v1464, %v8301
  %v8303 = vand.u32 %v8302, 4294901760
  %8304 = vmatprep.subr.mxu0 %v8303
  %v8305 = vand.u32 %v1463, 4294901760
  %v8306 = vsub.f32 %v1463, %v8305
  %v8307 = vand.u32 %v8306, 4294901760
  %8308 = vmatpush1.msra.mxu0 %v8307
  %v8309 = vand.u32 %v1480, 4294901760
  %v8310 = vsub.f32 %v1480, %v8309
  %v8311 = vand.u32 %v8310, 4294901760
  %8312 = vmatprep.subr.mxu0 %v8311
  %v8313 = vand.u32 %v1479, 4294901760
  %v8314 = vsub.f32 %v1479, %v8313
  %v8315 = vand.u32 %v8314, 4294901760
  %8316 = vmatpush1.msra.mxu0 %v8315
  %v8317 = vand.u32 %v1496, 4294901760
  %v8318 = vsub.f32 %v1496, %v8317
  %v8319 = vand.u32 %v8318, 4294901760
  %8320 = vmatprep.subr.mxu0 %v8319
  %v8321 = vand.u32 %v1495, 4294901760
  %v8322 = vsub.f32 %v1495, %v8321
  %v8323 = vand.u32 %v8322, 4294901760
  %8324 = vmatpush1.msra.mxu0 %v8323
  %v8325 = vand.u32 %v1512, 4294901760
  %v8326 = vsub.f32 %v1512, %v8325
  %v8327 = vand.u32 %v8326, 4294901760
  %8328 = vmatprep.subr.mxu0 %v8327
  %v8329 = vand.u32 %v1511, 4294901760
  %v8330 = vsub.f32 %v1511, %v8329
  %v8331 = vand.u32 %v8330, 4294901760
  %8332 = vmatpush1.msra.mxu0 %v8331
  %v8333 = vand.u32 %v1528, 4294901760
  %v8334 = vsub.f32 %v1528, %v8333
  %v8335 = vand.u32 %v8334, 4294901760
  %8336 = vmatprep.subr.mxu0 %v8335
  %v8337 = vand.u32 %v1527, 4294901760
  %v8338 = vsub.f32 %v1527, %v8337
  %v8339 = vand.u32 %v8338, 4294901760
  %8340 = vmatpush1.msra.mxu0 %v8339
  %v8341 = vand.u32 %v1544, 4294901760
  %v8342 = vsub.f32 %v1544, %v8341
  %v8343 = vand.u32 %v8342, 4294901760
  %8344 = vmatprep.subr.mxu0 %v8343
  %v8345 = vand.u32 %v1543, 4294901760
  %v8346 = vsub.f32 %v1543, %v8345
  %v8347 = vand.u32 %v8346, 4294901760
  %8348 = vmatpush1.msra.mxu0 %v8347
  %v8349 = vand.u32 %v1560, 4294901760
  %v8350 = vsub.f32 %v1560, %v8349
  %v8351 = vand.u32 %v8350, 4294901760
  %8352 = vmatprep.subr.mxu0 %v8351
  %v8353 = vand.u32 %v1559, 4294901760
  %v8354 = vsub.f32 %v1559, %v8353
  %v8355 = vand.u32 %v8354, 4294901760
  %8356 = vmatpush1.msra.mxu0 %v8355
  %v8357 = vand.u32 %v1576, 4294901760
  %v8358 = vsub.f32 %v1576, %v8357
  %v8359 = vand.u32 %v8358, 4294901760
  %8360 = vmatprep.subr.mxu0 %v8359
  %v8361 = vand.u32 %v1575, 4294901760
  %v8362 = vsub.f32 %v1575, %v8361
  %v8363 = vand.u32 %v8362, 4294901760
  %8364 = vmatpush1.msra.mxu0 %v8363
  %v8365 = vand.u32 %v1592, 4294901760
  %v8366 = vsub.f32 %v1592, %v8365
  %v8367 = vand.u32 %v8366, 4294901760
  %8368 = vmatprep.subr.mxu0 %v8367
  %v8369 = vand.u32 %v1591, 4294901760
  %v8370 = vsub.f32 %v1591, %v8369
  %v8371 = vand.u32 %v8370, 4294901760
  %8372 = vmatpush1.msra.mxu0 %v8371
  %v8373 = vand.u32 %v1608, 4294901760
  %v8374 = vsub.f32 %v1608, %v8373
  %v8375 = vand.u32 %v8374, 4294901760
  %8376 = vmatprep.subr.mxu0 %v8375
  %v8377 = vand.u32 %v1607, 4294901760
  %v8378 = vsub.f32 %v1607, %v8377
  %v8379 = vand.u32 %v8378, 4294901760
  %8380 = vmatpush1.msra.mxu0 %v8379
  %v8381 = vand.u32 %v1624, 4294901760
  %v8382 = vsub.f32 %v1624, %v8381
  %v8383 = vand.u32 %v8382, 4294901760
  %8384 = vmatprep.subr.mxu0 %v8383
  %v8385 = vand.u32 %v1623, 4294901760
  %v8386 = vsub.f32 %v1623, %v8385
  %v8387 = vand.u32 %v8386, 4294901760
  %8388 = vmatpush1.msra.mxu0 %v8387
  %v8389 = vand.u32 %v1640, 4294901760
  %v8390 = vsub.f32 %v1640, %v8389
  %v8391 = vand.u32 %v8390, 4294901760
  %8392 = vmatprep.subr.mxu0 %v8391
  %v8393 = vand.u32 %v1639, 4294901760
  %v8394 = vsub.f32 %v1639, %v8393
  %v8395 = vand.u32 %v8394, 4294901760
  %8396 = vmatpush1.msra.mxu0 %v8395
  %v8397 = vand.u32 %v1656, 4294901760
  %v8398 = vsub.f32 %v1656, %v8397
  %v8399 = vand.u32 %v8398, 4294901760
  %8400 = vmatprep.subr.mxu0 %v8399
  %v8401 = vand.u32 %v1655, 4294901760
  %v8402 = vsub.f32 %v1655, %v8401
  %v8403 = vand.u32 %v8402, 4294901760
  %8404 = vmatpush1.msra.mxu0 %v8403
  %v8405 = vand.u32 %v1672, 4294901760
  %v8406 = vsub.f32 %v1672, %v8405
  %v8407 = vand.u32 %v8406, 4294901760
  %8408 = vmatprep.subr.mxu0 %v8407
  %v8409 = vand.u32 %v1671, 4294901760
  %v8410 = vsub.f32 %v1671, %v8409
  %v8411 = vand.u32 %v8410, 4294901760
  %8412 = vmatpush1.msra.mxu0 %v8411
  %v8413 = vand.u32 %v1688, 4294901760
  %v8414 = vsub.f32 %v1688, %v8413
  %v8415 = vand.u32 %v8414, 4294901760
  %8416 = vmatprep.subr.mxu0 %v8415
  %v8417 = vand.u32 %v1687, 4294901760
  %v8418 = vsub.f32 %v1687, %v8417
  %v8419 = vand.u32 %v8418, 4294901760
  %8420 = vmatpush1.msra.mxu0 %v8419
  %8421 = vmatprep.subr.mxu0 0.0
  %8422 = vmatpush1.msra.mxu0 0.0
  %8423 = vmatprep.subr.mxu0 0.0
  %8424 = vmatpush1.msra.mxu0 0.0
  %8425 = vmatprep.subr.mxu0 0.0
  %8426 = vmatpush1.msra.mxu0 0.0
  %8427 = vmatprep.subr.mxu0 0.0
  %8428 = vmatpush1.msra.mxu0 0.0
  %8429 = vmatprep.subr.mxu0 0.0
  %8430 = vmatpush1.msra.mxu0 0.0
  %8431 = vmatprep.subr.mxu0 0.0
  %8432 = vmatpush1.msra.mxu0 0.0
  %8433 = vmatprep.subr.mxu0 0.0
  %8434 = vmatpush1.msra.mxu0 0.0
  %8435 = vmatprep.subr.mxu0 0.0
  %8436 = vmatpush1.msra.mxu0 0.0
  %8437 = vmatprep.subr.mxu0 0.0
  %8438 = vmatpush1.msra.mxu0 0.0
  %8439 = vmatprep.subr.mxu0 0.0
  %8440 = vmatpush1.msra.mxu0 0.0
  %8441 = vmatprep.subr.mxu0 0.0
  %8442 = vmatpush1.msra.mxu0 0.0
  %8443 = vmatprep.subr.mxu0 0.0
  %8444 = vmatpush1.msra.mxu0 0.0
  %8445 = vmatprep.subr.mxu0 0.0
  %8446 = vmatpush1.msra.mxu0 0.0
  %8447 = vmatprep.subr.mxu0 0.0
  %8448 = vmatpush1.msra.mxu0 0.0
  %8449 = vmatprep.subr.mxu0 0.0
  %8450 = vmatpush1.msra.mxu0 0.0
  %8451 = vmatprep.subr.mxu0 0.0
  %8452 = vmatpush1.msra.mxu0 0.0
  %8453 = vmatprep.mubr.f32.mxu0 0.0
  %v8454 = vand.u32 %v1689, 4294901760
  %8455 = vmatmul.mubr.f32.gmra.mrb[0].mxu0 %v8454
  %v8456 = vpop.f32.mrb[0].mxu0
  %v8457 = vadd.f32 %v8289, %v8456
  %v8458 = vpop.f32.mrb[0].mxu0
  %v8459 = vadd.f32 %v8291, %v8458
  %8460 = vdwg.mxu0
  %v8461 = vand.u32 %v1448, 4294901760
  %8462 = vmatprep.subr.mxu0 %v8461
  %v8463 = vand.u32 %v1447, 4294901760
  %8464 = vmatpush1.msra.mxu0 %v8463
  %v8465 = vand.u32 %v1464, 4294901760
  %8466 = vmatprep.subr.mxu0 %v8465
  %v8467 = vand.u32 %v1463, 4294901760
  %8468 = vmatpush1.msra.mxu0 %v8467
  %v8469 = vand.u32 %v1480, 4294901760
  %8470 = vmatprep.subr.mxu0 %v8469
  %v8471 = vand.u32 %v1479, 4294901760
  %8472 = vmatpush1.msra.mxu0 %v8471
  %v8473 = vand.u32 %v1496, 4294901760
  %8474 = vmatprep.subr.mxu0 %v8473
  %v8475 = vand.u32 %v1495, 4294901760
  %8476 = vmatpush1.msra.mxu0 %v8475
  %v8477 = vand.u32 %v1512, 4294901760
  %8478 = vmatprep.subr.mxu0 %v8477
  %v8479 = vand.u32 %v1511, 4294901760
  %8480 = vmatpush1.msra.mxu0 %v8479
  %v8481 = vand.u32 %v1528, 4294901760
  %8482 = vmatprep.subr.mxu0 %v8481
  %v8483 = vand.u32 %v1527, 4294901760
  %8484 = vmatpush1.msra.mxu0 %v8483
  %v8485 = vand.u32 %v1544, 4294901760
  %8486 = vmatprep.subr.mxu0 %v8485
  %v8487 = vand.u32 %v1543, 4294901760
  %8488 = vmatpush1.msra.mxu0 %v8487
  %v8489 = vand.u32 %v1560, 4294901760
  %8490 = vmatprep.subr.mxu0 %v8489
  %v8491 = vand.u32 %v1559, 4294901760
  %8492 = vmatpush1.msra.mxu0 %v8491
  %v8493 = vand.u32 %v1576, 4294901760
  %8494 = vmatprep.subr.mxu0 %v8493
  %v8495 = vand.u32 %v1575, 4294901760
  %8496 = vmatpush1.msra.mxu0 %v8495
  %v8497 = vand.u32 %v1592, 4294901760
  %8498 = vmatprep.subr.mxu0 %v8497
  %v8499 = vand.u32 %v1591, 4294901760
  %8500 = vmatpush1.msra.mxu0 %v8499
  %v8501 = vand.u32 %v1608, 4294901760
  %8502 = vmatprep.subr.mxu0 %v8501
  %v8503 = vand.u32 %v1607, 4294901760
  %8504 = vmatpush1.msra.mxu0 %v8503
  %v8505 = vand.u32 %v1624, 4294901760
  %8506 = vmatprep.subr.mxu0 %v8505
  %v8507 = vand.u32 %v1623, 4294901760
  %8508 = vmatpush1.msra.mxu0 %v8507
  %v8509 = vand.u32 %v1640, 4294901760
  %8510 = vmatprep.subr.mxu0 %v8509
  %v8511 = vand.u32 %v1639, 4294901760
  %8512 = vmatpush1.msra.mxu0 %v8511
  %v8513 = vand.u32 %v1656, 4294901760
  %8514 = vmatprep.subr.mxu0 %v8513
  %v8515 = vand.u32 %v1655, 4294901760
  %8516 = vmatpush1.msra.mxu0 %v8515
  %v8517 = vand.u32 %v1672, 4294901760
  %8518 = vmatprep.subr.mxu0 %v8517
  %v8519 = vand.u32 %v1671, 4294901760
  %8520 = vmatpush1.msra.mxu0 %v8519
  %v8521 = vand.u32 %v1688, 4294901760
  %8522 = vmatprep.subr.mxu0 %v8521
  %v8523 = vand.u32 %v1687, 4294901760
  %8524 = vmatpush1.msra.mxu0 %v8523
  %8525 = vmatprep.subr.mxu0 0.0
  %8526 = vmatpush1.msra.mxu0 0.0
  %8527 = vmatprep.subr.mxu0 0.0
  %8528 = vmatpush1.msra.mxu0 0.0
  %8529 = vmatprep.subr.mxu0 0.0
  %8530 = vmatpush1.msra.mxu0 0.0
  %8531 = vmatprep.subr.mxu0 0.0
  %8532 = vmatpush1.msra.mxu0 0.0
  %8533 = vmatprep.subr.mxu0 0.0
  %8534 = vmatpush1.msra.mxu0 0.0
  %8535 = vmatprep.subr.mxu0 0.0
  %8536 = vmatpush1.msra.mxu0 0.0
  %8537 = vmatprep.subr.mxu0 0.0
  %8538 = vmatpush1.msra.mxu0 0.0
  %8539 = vmatprep.subr.mxu0 0.0
  %8540 = vmatpush1.msra.mxu0 0.0
  %8541 = vmatprep.subr.mxu0 0.0
  %8542 = vmatpush1.msra.mxu0 0.0
  %8543 = vmatprep.subr.mxu0 0.0
  %8544 = vmatpush1.msra.mxu0 0.0
  %8545 = vmatprep.subr.mxu0 0.0
  %8546 = vmatpush1.msra.mxu0 0.0
  %8547 = vmatprep.subr.mxu0 0.0
  %8548 = vmatpush1.msra.mxu0 0.0
  %8549 = vmatprep.subr.mxu0 0.0
  %8550 = vmatpush1.msra.mxu0 0.0
  %8551 = vmatprep.subr.mxu0 0.0
  %8552 = vmatpush1.msra.mxu0 0.0
  %8553 = vmatprep.subr.mxu0 0.0
  %8554 = vmatpush1.msra.mxu0 0.0
  %8555 = vmatprep.subr.mxu0 0.0
  %8556 = vmatpush1.msra.mxu0 0.0
  %8557 = vmatprep.mubr.f32.mxu0 0.0
  %v8558 = vand.u32 %v1689, 4294901760
  %8559 = vmatmul.mubr.f32.gmra.mrb[0].mxu0 %v8558
  %v8560 = vpop.f32.mrb[0].mxu0
  %v8561 = vadd.f32 %v8457, %v8560
  %v8562 = vpop.f32.mrb[0].mxu0
  %v8563 = vadd.f32 %v8459, %v8562
  %8564 = vdwg.mxu0
  %v8581 = vcombine.low %v2576, %v2578
  %v8582 = vcombine.low %v3431, %v3433
  %v8584 = vunpack.c.l.s4 1983009808
  %v8585 = vunpack.c.0.s8 %v8584
  %v8586 = vlaneseq
  %v8587 = vshrl.u32 %v8586, 7
  %v8588 = vsub.s32 %v8585, %v8587
  %v8589 = vrot.slane %v8581, %v8588
  %v8591 = vunpack.c.l.s4 1983009808
  %v8592 = vunpack.c.0.s8 %v8591
  %v8593 = vlaneseq
  %v8594 = vshrl.u32 %v8593, 7
  %v8595 = vsub.s32 %v8592, %v8594
  %v8596 = vrot.slane %v8582, %v8595
  %v8597 = vcombine.low %v8589, %v8596
  %v8598 = vcombine.low %v4286, %v4288
  %v8599 = vcombine.low %v5141, %v5143
  %v8601 = vunpack.c.l.s4 1983009808
  %v8602 = vunpack.c.0.s8 %v8601
  %v8603 = vlaneseq
  %v8604 = vshrl.u32 %v8603, 7
  %v8605 = vsub.s32 %v8602, %v8604
  %v8606 = vrot.slane %v8598, %v8605
  %v8608 = vunpack.c.l.s4 1983009808
  %v8609 = vunpack.c.0.s8 %v8608
  %v8610 = vlaneseq
  %v8611 = vshrl.u32 %v8610, 7
  %v8612 = vsub.s32 %v8609, %v8611
  %v8613 = vrot.slane %v8599, %v8612
  %v8614 = vcombine.low %v8606, %v8613
  %v8615 = vcombine.low %v5996, %v5998
  %v8616 = vcombine.low %v6851, %v6853
  %v8618 = vunpack.c.l.s4 1983009808
  %v8619 = vunpack.c.0.s8 %v8618
  %v8620 = vlaneseq
  %v8621 = vshrl.u32 %v8620, 7
  %v8622 = vsub.s32 %v8619, %v8621
  %v8623 = vrot.slane %v8615, %v8622
  %v8625 = vunpack.c.l.s4 1983009808
  %v8626 = vunpack.c.0.s8 %v8625
  %v8627 = vlaneseq
  %v8628 = vshrl.u32 %v8627, 7
  %v8629 = vsub.s32 %v8626, %v8628
  %v8630 = vrot.slane %v8616, %v8629
  %v8631 = vcombine.low %v8623, %v8630
  %v8632 = vcombine.low %v7706, %v7708
  %v8633 = vcombine.low %v8561, %v8563
  %v8635 = vunpack.c.l.s4 1983009808
  %v8636 = vunpack.c.0.s8 %v8635
  %v8637 = vlaneseq
  %v8638 = vshrl.u32 %v8637, 7
  %v8639 = vsub.s32 %v8636, %v8638
  %v8640 = vrot.slane %v8632, %v8639
  %v8642 = vunpack.c.l.s4 1983009808
  %v8643 = vunpack.c.0.s8 %v8642
  %v8644 = vlaneseq
  %v8645 = vshrl.u32 %v8644, 7
  %v8646 = vsub.s32 %v8643, %v8645
  %v8647 = vrot.slane %v8633, %v8646
  %v8648 = vcombine.low %v8640, %v8647
  %8653 = vst [vmem:[%s3] sm:$0xff] %v8597
  %8654 = vst [vmem:[%s3 + $0x8] sm:$0xff] %v8614
  %8655 = vst [vmem:[%s3 + $0x10] sm:$0xff] %v8631
  %8656 = vst [vmem:[%s3 + $0x18] sm:$0xff] %v8648
  // Predicated region
  $region14: #{net_forward.1} parent=0 // pred_check
    _
  $region15: #{net_forward.1} parent=0 // pred_check_branch
    %8658 = sbr.rel (0) target = $region17
  $region16: #{net_forward.1} parent=0 // pred_region
    _
  $region17: #{net_forward.1} parent=0 // pred_fallthru
    _
  // Predicated region
  $region18: #{net_forward.1} parent=0 // pred_check
    _
  $region19: #{net_forward.1} parent=0 // pred_check_branch
    %8660 = sbr.rel (0) target = $region21
  $region20: #{net_forward.1} parent=0 // pred_region
    _
  $region21: #{net_forward.1} parent=0 // pred_fallthru
    _

</llo_original>
